<compile_context>
chip_gen: v7x
topology: tpu7x:2x2x1
jax: 0.10.0
libtpu: 0.0.40
codegen_flags: <defaults>
</compile_context>

<pallas_src>
import jax
import jax.numpy as jnp
from jax.experimental import pallas as pl
from jax.experimental.pallas import tpu as pltpu


def _make_lstm_kernel(T, Bp, Hp):
    """Build the single-invocation LSTM kernel for static (T, Bp, Hp)."""

    def sigmoid_eup(x):
        # Logistic sigmoid as a single EUP tanh: 0.5*tanh(0.5*x) + 0.5.
        return 0.5 * jnp.tanh(0.5 * x) + 0.5

    def kernel(x_ref, wih_ref, b_ref, whh_hbm_ref, h_out_ref,
               xproj_sc, whh_buf, whh_sem):
        # ---- Start W_hh DMA; it is only needed in phase 2, so it overlaps
        # ---- with the phase-1 input-projection matmul. ----------------------
        whh_copy = pltpu.make_async_copy(whh_hbm_ref, whh_buf, whh_sem)
        whh_copy.start()

        # ---- Phase 1 (non-recurrent): hoisted input projection --------------
        # One big MXU pass over all timesteps: (T*Bp, Ep) @ (Ep, 4*Hp) + bias.
        xproj_sc[...] = (
            jnp.dot(x_ref[...], wih_ref[...],
                    preferred_element_type=jnp.float32)
            + b_ref[...])

        # W_hh must be resident before the first recurrent step.
        whh_copy.wait()

        # ---- Phase 2: recurrence, statically unrolled over T -----------------
        h = jnp.zeros((Bp, Hp), jnp.float32)
        c = jnp.zeros((Bp, Hp), jnp.float32)
        for t in range(T):  # T is small & static -> fully unrolled
            h_mx = h.astype(whh_buf.dtype)   # bf16 operand, f32 accumulate
            row = t * Bp                     # sublane-aligned (Bp == 8)

            def gate(g):
                # Lane-aligned static slices (Hp is a multiple of 128).
                pre = xproj_sc[row:row + Bp, g * Hp:(g + 1) * Hp]
                return pre + jnp.dot(
                    h_mx, whh_buf[:, g * Hp:(g + 1) * Hp],
                    preferred_element_type=jnp.float32)

            # Gate-by-gate: four independent (8,Hp)@(Hp,Hp) dots the compiler
            # can spread across MXUs; each result is consumed immediately so
            # peak live vregs stay low inside the unrolled body.
            f_g = sigmoid_eup(gate(1))
            c = f_g * c
            i_g = sigmoid_eup(gate(0))
            g_g = jnp.tanh(gate(2))
            c = c + i_g * g_g
            o_g = sigmoid_eup(gate(3))
            h = o_g * jnp.tanh(c)

        h_out_ref[...] = h

    return kernel


def lstm_classifier_forward(token_ids, word_vec, w_ih, w_hh, b_ih, b_hh,
                            w_fc, b_fc, *, matmul_dtype=jnp.bfloat16):
    """token_ids: [B, T] int32.  Returns logits [B, 3] float32.

    matmul_dtype: dtype of the MXU operands (x, W_ih, W_hh, h). bf16 is the
    default on all generations (MXU is natively bf16 everywhere); gates,
    cell/hidden state and nonlinearities stay float32.
    """
    B, T = token_ids.shape
    E = word_vec.shape[1]
    H = w_hh.shape[0]                # w_hh is (H, 4H), already transposed
    assert w_hh.shape[1] == 4 * H
    C = w_fc.shape[1]                # num classes

    LANE, SUBLANE = 128, 8
    Hp = ((H + LANE - 1) // LANE) * LANE           # lane-aligned per-gate width
    Bp = ((B + SUBLANE - 1) // SUBLANE) * SUBLANE  # sublane-aligned batch
    Ep = ((E + 15) // 16) * 16                     # K clean for f32(8)/bf16(16)

    # --- layout prep (pure data movement, once, in XLA) ----------------------
    def pad_gate_cols(w):  # (K, 4H) -> (K, 4*Hp), each gate zero-padded to Hp
        k = w.shape[0]
        w4 = w.reshape(k, 4, H)
        w4 = jnp.pad(w4, ((0, 0), (0, 0), (0, Hp - H)))
        return w4.reshape(k, 4 * Hp)

    wih_p = pad_gate_cols(w_ih)                               # (E, 4*Hp)
    wih_p = jnp.pad(wih_p, ((0, Ep - E), (0, 0)))             # (Ep, 4*Hp)
    whh_p = pad_gate_cols(w_hh)                               # (H, 4*Hp)
    whh_p = jnp.pad(whh_p, ((0, Hp - H), (0, 0)))             # (Hp, 4*Hp)
    b_p = jnp.pad((b_ih + b_hh).reshape(4, H),
                  ((0, 0), (0, Hp - H))).reshape(1, 4 * Hp)   # (1, 4*Hp) f32

    # Embedding lookup (gather) -- glue, done in plain JAX/XLA.
    emb_x = jnp.take(word_vec, token_ids, axis=0)             # (B, T, E)
    emb_tm = jnp.transpose(emb_x, (1, 0, 2))                  # (T, B, E)
    emb_tm = jnp.pad(emb_tm, ((0, 0), (0, Bp - B), (0, Ep - E)))  # (T, Bp, Ep)
    x2d = emb_tm.reshape(T * Bp, Ep)                          # (T*Bp, Ep)

    # Narrow only the MXU operands; bias / state / nonlinearities stay f32.
    x2d = x2d.astype(matmul_dtype)
    wih_p = wih_p.astype(matmul_dtype)
    whh_p = whh_p.astype(matmul_dtype)

    kernel = _make_lstm_kernel(T, Bp, Hp)
    vmem_spec = pl.BlockSpec(memory_space=pltpu.MemorySpace.VMEM)
    any_spec = pl.BlockSpec(memory_space=pl.ANY)   # raw ref; DMA'd manually

    # TODO(synk): for batched serving, add a leading "parallel" grid axis over
    # batch tiles (v7x second TC) and time-chunk the phase-1 scratch for long T.
    h_final = pl.pallas_call(
        kernel,
        out_shape=jax.ShapeDtypeStruct((Bp, Hp), jnp.float32),
        in_specs=[vmem_spec, vmem_spec, vmem_spec, any_spec],
        out_specs=vmem_spec,
        scratch_shapes=[
            pltpu.VMEM((T * Bp, 4 * Hp), jnp.float32),   # hoisted x-projection
            pltpu.VMEM((Hp, 4 * Hp), matmul_dtype),      # W_hh landing buffer
            pltpu.SemaphoreType.DMA(()),                 # W_hh DMA completion
        ],
    )(x2d, wih_p, b_p, whh_p)

    # Final FC stays outside the kernel (trivially cheap in XLA; avoids masked
    # C=3 partial stores inside the kernel -- kernel output is lane-dense).
    h = h_final[:B, :H]
    return h @ w_fc + b_fc.reshape(1, C)


def _reference_forward(token_ids, word_vec, w_ih, w_hh, b_ih, b_hh, w_fc, b_fc):
    """Pure-JAX reference mirroring torch.nn.LSTM(batch_first=True) + Linear."""
    emb_x = jnp.take(word_vec, token_ids, axis=0)   # (B, T, E)
    B = token_ids.shape[0]
    H = w_hh.shape[1] // 4

    def step(carry, x_t):
        h, c = carry
        gates = x_t @ w_ih + h @ w_hh + b_ih + b_hh
        i = jax.nn.sigmoid(gates[:, 0 * H:1 * H])
        f = jax.nn.sigmoid(gates[:, 1 * H:2 * H])
        g = jnp.tanh(gates[:, 2 * H:3 * H])
        o = jax.nn.sigmoid(gates[:, 3 * H:4 * H])
        c = f * c + i * g
        h = o * jnp.tanh(c)
        return (h, c), None

    init = (jnp.zeros((B, H), jnp.float32), jnp.zeros((B, H), jnp.float32))
    (h, _), _ = jax.lax.scan(step, init, jnp.transpose(emb_x, (1, 0, 2)))
    return h @ w_fc + b_fc.reshape(1, -1)


if __name__ == "__main__":
    key = jax.random.PRNGKey(0)
    ks = jax.random.split(key, 8)

    V, E, H, C = 50, 300, 300, 3     # vocab, embed (=300), hidden (=300), classes
    B, T = 2, 8                      # batch, sequence length

    # Deterministic synthetic parameters (shapes match nn.Embedding(V,300),
    # nn.LSTM(300, 300), nn.LazyLinear(3)); stored pre-transposed for (M,K)@(K,N).
    word_vec = jax.random.normal(ks[0], (V, E), jnp.float32) * 0.1
    w_ih = jax.random.normal(ks[1], (E, 4 * H), jnp.float32) * 0.05   # = W_ih^T
    w_hh = jax.random.normal(ks[2], (H, 4 * H), jnp.float32) * 0.05   # = W_hh^T
    b_ih = jax.random.normal(ks[3], (4 * H,), jnp.float32) * 0.05
    b_hh = jax.random.normal(ks[4], (4 * H,), jnp.float32) * 0.05
    w_fc = jax.random.normal(ks[5], (H, C), jnp.float32) * 0.05       # = W_fc^T
    b_fc = jax.random.normal(ks[6], (C,), jnp.float32) * 0.05

    token_ids = jax.random.randint(ks[7], (B, T), 0, V, jnp.int32)

    ref = _reference_forward(token_ids, word_vec, w_ih, w_hh,
                             b_ih, b_hh, w_fc, b_fc)

    # Default path: bf16 MXU operands everywhere, f32 accumulate + f32 gates.
    logits = lstm_classifier_forward(token_ids, word_vec, w_ih, w_hh,
                                     b_ih, b_hh, w_fc, b_fc)
    logits = jax.block_until_ready(logits)
    assert logits.shape == (B, C)
    assert jnp.allclose(logits, ref, atol=2e-2, rtol=2e-2)

    # f32 MXU operands: exact-path sanity check (tight tolerance).
    logits_f32 = lstm_classifier_forward(token_ids, word_vec, w_ih, w_hh,
                                         b_ih, b_hh, w_fc, b_fc,
                                         matmul_dtype=jnp.float32)
    logits_f32 = jax.block_until_ready(logits_f32)
    assert jnp.allclose(logits_f32, ref, atol=1e-4, rtol=1e-4)

    print("KERNEL_OK")
</pallas_src>

<mosaic_0001>
module attributes {stable_mosaic.version = 11 : i64} {
  func.func @kernel(%arg0: memref<64x304xbf16, #tpu.memory_space<vmem>>, %arg1: memref<304x1536xbf16, #tpu.memory_space<vmem>>, %arg2: memref<1x1536xf32, #tpu.memory_space<vmem>>, %arg3: memref<384x1536xbf16, #tpu.memory_space<any>>, %arg4: memref<8x384xf32, #tpu.memory_space<vmem>>, %arg5: memref<64x1536xf32, #tpu.memory_space<vmem>>, %arg6: memref<384x1536xbf16, #tpu.memory_space<vmem>>, %arg7: memref<!tpu.dma_semaphore, #tpu.memory_space<semaphore_mem>>) attributes {dimension_semantics = [], scalar_prefetch = 0 : i64, scratch_operands = 3 : i64, tpu.core_type = #tpu.core_type<tc>} {
    tpu.enqueue_dma source(%arg3 : memref<384x1536xbf16, #tpu.memory_space<any>>) target(%arg6 : memref<384x1536xbf16, #tpu.memory_space<vmem>>) target_semaphore(%arg7 : memref<!tpu.dma_semaphore, #tpu.memory_space<semaphore_mem>>)
    %c0 = arith.constant 0 : index
    %c0_0 = arith.constant 0 : index
    %0 = vector.load %arg0[%c0, %c0_0] : memref<64x304xbf16, #tpu.memory_space<vmem>>, vector<64x304xbf16>
    %c0_1 = arith.constant 0 : index
    %c0_2 = arith.constant 0 : index
    %1 = vector.load %arg1[%c0_1, %c0_2] : memref<304x1536xbf16, #tpu.memory_space<vmem>>, vector<304x1536xbf16>
    %cst = arith.constant dense<0.000000e+00> : vector<64x1536xf32>
    %2 = tpu.matmul %0, %1, %cst {dimension_numbers = #tpu.dot_dimension_numbers<[1], [0], [0], [1], [0, 0, 1, 1], [], []>} : vector<64x304xbf16>, vector<304x1536xbf16>, vector<64x1536xf32> -> vector<64x1536xf32>
    %c0_3 = arith.constant 0 : index
    %c0_4 = arith.constant 0 : index
    %3 = vector.load %arg2[%c0_3, %c0_4] : memref<1x1536xf32, #tpu.memory_space<vmem>>, vector<1x1536xf32>
    %4 = vector.broadcast %3 : vector<1x1536xf32> to vector<64x1536xf32>
    %5 = arith.addf %2, %4 : vector<64x1536xf32>
    %c0_5 = arith.constant 0 : index
    %c0_6 = arith.constant 0 : index
    %6 = vector.load %arg5[%c0_5, %c0_6] : memref<64x1536xf32, #tpu.memory_space<vmem>>, vector<64x1536xf32>
    tpu.vector_store %arg5[%c0_5, %c0_6], %5 {strides = array<i32>} : memref<64x1536xf32, #tpu.memory_space<vmem>>, vector<64x1536xf32>,
    tpu.wait_dma2 semaphore(%arg7 : memref<!tpu.dma_semaphore, #tpu.memory_space<semaphore_mem>>) src(%arg3 : memref<384x1536xbf16, #tpu.memory_space<any>>) dst(%arg6 : memref<384x1536xbf16, #tpu.memory_space<vmem>>)
    %cst_7 = arith.constant 0.000000e+00 : f32
    %7 = vector.broadcast %cst_7 : f32 to vector<8x384xf32>
    %cst_8 = arith.constant 0.000000e+00 : f32
    %8 = vector.broadcast %cst_8 : f32 to vector<8x384xf32>
    %9 = arith.truncf %7 : vector<8x384xf32> to vector<8x384xbf16>
    %c0_9 = arith.constant 0 : index
    %c384 = arith.constant 384 : index
    %10 = vector.load %arg5[%c0_9, %c384] : memref<64x1536xf32, #tpu.memory_space<vmem>>, vector<8x384xf32>
    %c0_10 = arith.constant 0 : index
    %c384_11 = arith.constant 384 : index
    %11 = vector.load %arg6[%c0_10, %c384_11] : memref<384x1536xbf16, #tpu.memory_space<vmem>>, vector<384x384xbf16>
    %cst_12 = arith.constant dense<0.000000e+00> : vector<8x384xf32>
    %12 = tpu.matmul %9, %11, %cst_12 {dimension_numbers = #tpu.dot_dimension_numbers<[1], [0], [0], [1], [0, 0, 1, 1], [], []>} : vector<8x384xbf16>, vector<384x384xbf16>, vector<8x384xf32> -> vector<8x384xf32>
    %13 = arith.addf %10, %12 : vector<8x384xf32>
    %cst_13 = arith.constant 5.000000e-01 : f32
    %14 = vector.broadcast %cst_13 : f32 to vector<8x384xf32>
    %15 = arith.mulf %14, %13 : vector<8x384xf32>
    %16 = math.tanh %15 : vector<8x384xf32>
    %cst_14 = arith.constant 5.000000e-01 : f32
    %17 = vector.broadcast %cst_14 : f32 to vector<8x384xf32>
    %18 = arith.mulf %17, %16 : vector<8x384xf32>
    %cst_15 = arith.constant 5.000000e-01 : f32
    %19 = vector.broadcast %cst_15 : f32 to vector<8x384xf32>
    %20 = arith.addf %18, %19 : vector<8x384xf32>
    %21 = arith.mulf %20, %8 : vector<8x384xf32>
    %c0_16 = arith.constant 0 : index
    %c0_17 = arith.constant 0 : index
    %22 = vector.load %arg5[%c0_16, %c0_17] : memref<64x1536xf32, #tpu.memory_space<vmem>>, vector<8x384xf32>
    %c0_18 = arith.constant 0 : index
    %c0_19 = arith.constant 0 : index
    %23 = vector.load %arg6[%c0_18, %c0_19] : memref<384x1536xbf16, #tpu.memory_space<vmem>>, vector<384x384xbf16>
    %cst_20 = arith.constant dense<0.000000e+00> : vector<8x384xf32>
    %24 = tpu.matmul %9, %23, %cst_20 {dimension_numbers = #tpu.dot_dimension_numbers<[1], [0], [0], [1], [0, 0, 1, 1], [], []>} : vector<8x384xbf16>, vector<384x384xbf16>, vector<8x384xf32> -> vector<8x384xf32>
    %25 = arith.addf %22, %24 : vector<8x384xf32>
    %cst_21 = arith.constant 5.000000e-01 : f32
    %26 = vector.broadcast %cst_21 : f32 to vector<8x384xf32>
    %27 = arith.mulf %26, %25 : vector<8x384xf32>
    %28 = math.tanh %27 : vector<8x384xf32>
    %cst_22 = arith.constant 5.000000e-01 : f32
    %29 = vector.broadcast %cst_22 : f32 to vector<8x384xf32>
    %30 = arith.mulf %29, %28 : vector<8x384xf32>
    %cst_23 = arith.constant 5.000000e-01 : f32
    %31 = vector.broadcast %cst_23 : f32 to vector<8x384xf32>
    %32 = arith.addf %30, %31 : vector<8x384xf32>
    %c0_24 = arith.constant 0 : index
    %c768 = arith.constant 768 : index
    %33 = vector.load %arg5[%c0_24, %c768] : memref<64x1536xf32, #tpu.memory_space<vmem>>, vector<8x384xf32>
    %c0_25 = arith.constant 0 : index
    %c768_26 = arith.constant 768 : index
    %34 = vector.load %arg6[%c0_25, %c768_26] : memref<384x1536xbf16, #tpu.memory_space<vmem>>, vector<384x384xbf16>
    %cst_27 = arith.constant dense<0.000000e+00> : vector<8x384xf32>
    %35 = tpu.matmul %9, %34, %cst_27 {dimension_numbers = #tpu.dot_dimension_numbers<[1], [0], [0], [1], [0, 0, 1, 1], [], []>} : vector<8x384xbf16>, vector<384x384xbf16>, vector<8x384xf32> -> vector<8x384xf32>
    %36 = arith.addf %33, %35 : vector<8x384xf32>
    %37 = math.tanh %36 : vector<8x384xf32>
    %38 = arith.mulf %32, %37 : vector<8x384xf32>
    %39 = arith.addf %21, %38 : vector<8x384xf32>
    %c0_28 = arith.constant 0 : index
    %c1152 = arith.constant 1152 : index
    %40 = vector.load %arg5[%c0_28, %c1152] : memref<64x1536xf32, #tpu.memory_space<vmem>>, vector<8x384xf32>
    %c0_29 = arith.constant 0 : index
    %c1152_30 = arith.constant 1152 : index
    %41 = vector.load %arg6[%c0_29, %c1152_30] : memref<384x1536xbf16, #tpu.memory_space<vmem>>, vector<384x384xbf16>
    %cst_31 = arith.constant dense<0.000000e+00> : vector<8x384xf32>
    %42 = tpu.matmul %9, %41, %cst_31 {dimension_numbers = #tpu.dot_dimension_numbers<[1], [0], [0], [1], [0, 0, 1, 1], [], []>} : vector<8x384xbf16>, vector<384x384xbf16>, vector<8x384xf32> -> vector<8x384xf32>
    %43 = arith.addf %40, %42 : vector<8x384xf32>
    %cst_32 = arith.constant 5.000000e-01 : f32
    %44 = vector.broadcast %cst_32 : f32 to vector<8x384xf32>
    %45 = arith.mulf %44, %43 : vector<8x384xf32>
    %46 = math.tanh %45 : vector<8x384xf32>
    %cst_33 = arith.constant 5.000000e-01 : f32
    %47 = vector.broadcast %cst_33 : f32 to vector<8x384xf32>
    %48 = arith.mulf %47, %46 : vector<8x384xf32>
    %cst_34 = arith.constant 5.000000e-01 : f32
    %49 = vector.broadcast %cst_34 : f32 to vector<8x384xf32>
    %50 = arith.addf %48, %49 : vector<8x384xf32>
    %51 = math.tanh %39 : vector<8x384xf32>
    %52 = arith.mulf %50, %51 : vector<8x384xf32>
    %53 = arith.truncf %52 : vector<8x384xf32> to vector<8x384xbf16>
    %c8 = arith.constant 8 : index
    %c384_35 = arith.constant 384 : index
    %54 = vector.load %arg5[%c8, %c384_35] : memref<64x1536xf32, #tpu.memory_space<vmem>>, vector<8x384xf32>
    %c0_36 = arith.constant 0 : index
    %c384_37 = arith.constant 384 : index
    %55 = vector.load %arg6[%c0_36, %c384_37] : memref<384x1536xbf16, #tpu.memory_space<vmem>>, vector<384x384xbf16>
    %cst_38 = arith.constant dense<0.000000e+00> : vector<8x384xf32>
    %56 = tpu.matmul %53, %55, %cst_38 {dimension_numbers = #tpu.dot_dimension_numbers<[1], [0], [0], [1], [0, 0, 1, 1], [], []>} : vector<8x384xbf16>, vector<384x384xbf16>, vector<8x384xf32> -> vector<8x384xf32>
    %57 = arith.addf %54, %56 : vector<8x384xf32>
    %cst_39 = arith.constant 5.000000e-01 : f32
    %58 = vector.broadcast %cst_39 : f32 to vector<8x384xf32>
    %59 = arith.mulf %58, %57 : vector<8x384xf32>
    %60 = math.tanh %59 : vector<8x384xf32>
    %cst_40 = arith.constant 5.000000e-01 : f32
    %61 = vector.broadcast %cst_40 : f32 to vector<8x384xf32>
    %62 = arith.mulf %61, %60 : vector<8x384xf32>
    %cst_41 = arith.constant 5.000000e-01 : f32
    %63 = vector.broadcast %cst_41 : f32 to vector<8x384xf32>
    %64 = arith.addf %62, %63 : vector<8x384xf32>
    %65 = arith.mulf %64, %39 : vector<8x384xf32>
    %c8_42 = arith.constant 8 : index
    %c0_43 = arith.constant 0 : index
    %66 = vector.load %arg5[%c8_42, %c0_43] : memref<64x1536xf32, #tpu.memory_space<vmem>>, vector<8x384xf32>
    %c0_44 = arith.constant 0 : index
    %c0_45 = arith.constant 0 : index
    %67 = vector.load %arg6[%c0_44, %c0_45] : memref<384x1536xbf16, #tpu.memory_space<vmem>>, vector<384x384xbf16>
    %cst_46 = arith.constant dense<0.000000e+00> : vector<8x384xf32>
    %68 = tpu.matmul %53, %67, %cst_46 {dimension_numbers = #tpu.dot_dimension_numbers<[1], [0], [0], [1], [0, 0, 1, 1], [], []>} : vector<8x384xbf16>, vector<384x384xbf16>, vector<8x384xf32> -> vector<8x384xf32>
    %69 = arith.addf %66, %68 : vector<8x384xf32>
    %cst_47 = arith.constant 5.000000e-01 : f32
    %70 = vector.broadcast %cst_47 : f32 to vector<8x384xf32>
    %71 = arith.mulf %70, %69 : vector<8x384xf32>
    %72 = math.tanh %71 : vector<8x384xf32>
    %cst_48 = arith.constant 5.000000e-01 : f32
    %73 = vector.broadcast %cst_48 : f32 to vector<8x384xf32>
    %74 = arith.mulf %73, %72 : vector<8x384xf32>
    %cst_49 = arith.constant 5.000000e-01 : f32
    %75 = vector.broadcast %cst_49 : f32 to vector<8x384xf32>
    %76 = arith.addf %74, %75 : vector<8x384xf32>
    %c8_50 = arith.constant 8 : index
    %c768_51 = arith.constant 768 : index
    %77 = vector.load %arg5[%c8_50, %c768_51] : memref<64x1536xf32, #tpu.memory_space<vmem>>, vector<8x384xf32>
    %c0_52 = arith.constant 0 : index
    %c768_53 = arith.constant 768 : index
    %78 = vector.load %arg6[%c0_52, %c768_53] : memref<384x1536xbf16, #tpu.memory_space<vmem>>, vector<384x384xbf16>
    %cst_54 = arith.constant dense<0.000000e+00> : vector<8x384xf32>
    %79 = tpu.matmul %53, %78, %cst_54 {dimension_numbers = #tpu.dot_dimension_numbers<[1], [0], [0], [1], [0, 0, 1, 1], [], []>} : vector<8x384xbf16>, vector<384x384xbf16>, vector<8x384xf32> -> vector<8x384xf32>
    %80 = arith.addf %77, %79 : vector<8x384xf32>
    %81 = math.tanh %80 : vector<8x384xf32>
    %82 = arith.mulf %76, %81 : vector<8x384xf32>
    %83 = arith.addf %65, %82 : vector<8x384xf32>
    %c8_55 = arith.constant 8 : index
    %c1152_56 = arith.constant 1152 : index
    %84 = vector.load %arg5[%c8_55, %c1152_56] : memref<64x1536xf32, #tpu.memory_space<vmem>>, vector<8x384xf32>
    %c0_57 = arith.constant 0 : index
    %c1152_58 = arith.constant 1152 : index
    %85 = vector.load %arg6[%c0_57, %c1152_58] : memref<384x1536xbf16, #tpu.memory_space<vmem>>, vector<384x384xbf16>
    %cst_59 = arith.constant dense<0.000000e+00> : vector<8x384xf32>
    %86 = tpu.matmul %53, %85, %cst_59 {dimension_numbers = #tpu.dot_dimension_numbers<[1], [0], [0], [1], [0, 0, 1, 1], [], []>} : vector<8x384xbf16>, vector<384x384xbf16>, vector<8x384xf32> -> vector<8x384xf32>
    %87 = arith.addf %84, %86 : vector<8x384xf32>
    %cst_60 = arith.constant 5.000000e-01 : f32
    %88 = vector.broadcast %cst_60 : f32 to vector<8x384xf32>
    %89 = arith.mulf %88, %87 : vector<8x384xf32>
    %90 = math.tanh %89 : vector<8x384xf32>
    %cst_61 = arith.constant 5.000000e-01 : f32
    %91 = vector.broadcast %cst_61 : f32 to vector<8x384xf32>
    %92 = arith.mulf %91, %90 : vector<8x384xf32>
    %cst_62 = arith.constant 5.000000e-01 : f32
    %93 = vector.broadcast %cst_62 : f32 to vector<8x384xf32>
    %94 = arith.addf %92, %93 : vector<8x384xf32>
    %95 = math.tanh %83 : vector<8x384xf32>
    %96 = arith.mulf %94, %95 : vector<8x384xf32>
    %97 = arith.truncf %96 : vector<8x384xf32> to vector<8x384xbf16>
    %c16 = arith.constant 16 : index
    %c384_63 = arith.constant 384 : index
    %98 = vector.load %arg5[%c16, %c384_63] : memref<64x1536xf32, #tpu.memory_space<vmem>>, vector<8x384xf32>
    %c0_64 = arith.constant 0 : index
    %c384_65 = arith.constant 384 : index
    %99 = vector.load %arg6[%c0_64, %c384_65] : memref<384x1536xbf16, #tpu.memory_space<vmem>>, vector<384x384xbf16>
    %cst_66 = arith.constant dense<0.000000e+00> : vector<8x384xf32>
    %100 = tpu.matmul %97, %99, %cst_66 {dimension_numbers = #tpu.dot_dimension_numbers<[1], [0], [0], [1], [0, 0, 1, 1], [], []>} : vector<8x384xbf16>, vector<384x384xbf16>, vector<8x384xf32> -> vector<8x384xf32>
    %101 = arith.addf %98, %100 : vector<8x384xf32>
    %cst_67 = arith.constant 5.000000e-01 : f32
    %102 = vector.broadcast %cst_67 : f32 to vector<8x384xf32>
    %103 = arith.mulf %102, %101 : vector<8x384xf32>
    %104 = math.tanh %103 : vector<8x384xf32>
    %cst_68 = arith.constant 5.000000e-01 : f32
    %105 = vector.broadcast %cst_68 : f32 to vector<8x384xf32>
    %106 = arith.mulf %105, %104 : vector<8x384xf32>
    %cst_69 = arith.constant 5.000000e-01 : f32
    %107 = vector.broadcast %cst_69 : f32 to vector<8x384xf32>
    %108 = arith.addf %106, %107 : vector<8x384xf32>
    %109 = arith.mulf %108, %83 : vector<8x384xf32>
    %c16_70 = arith.constant 16 : index
    %c0_71 = arith.constant 0 : index
    %110 = vector.load %arg5[%c16_70, %c0_71] : memref<64x1536xf32, #tpu.memory_space<vmem>>, vector<8x384xf32>
    %c0_72 = arith.constant 0 : index
    %c0_73 = arith.constant 0 : index
    %111 = vector.load %arg6[%c0_72, %c0_73] : memref<384x1536xbf16, #tpu.memory_space<vmem>>, vector<384x384xbf16>
    %cst_74 = arith.constant dense<0.000000e+00> : vector<8x384xf32>
    %112 = tpu.matmul %97, %111, %cst_74 {dimension_numbers = #tpu.dot_dimension_numbers<[1], [0], [0], [1], [0, 0, 1, 1], [], []>} : vector<8x384xbf16>, vector<384x384xbf16>, vector<8x384xf32> -> vector<8x384xf32>
    %113 = arith.addf %110, %112 : vector<8x384xf32>
    %cst_75 = arith.constant 5.000000e-01 : f32
    %114 = vector.broadcast %cst_75 : f32 to vector<8x384xf32>
    %115 = arith.mulf %114, %113 : vector<8x384xf32>
    %116 = math.tanh %115 : vector<8x384xf32>
    %cst_76 = arith.constant 5.000000e-01 : f32
    %117 = vector.broadcast %cst_76 : f32 to vector<8x384xf32>
    %118 = arith.mulf %117, %116 : vector<8x384xf32>
    %cst_77 = arith.constant 5.000000e-01 : f32
    %119 = vector.broadcast %cst_77 : f32 to vector<8x384xf32>
    %120 = arith.addf %118, %119 : vector<8x384xf32>
    %c16_78 = arith.constant 16 : index
    %c768_79 = arith.constant 768 : index
    %121 = vector.load %arg5[%c16_78, %c768_79] : memref<64x1536xf32, #tpu.memory_space<vmem>>, vector<8x384xf32>
    %c0_80 = arith.constant 0 : index
    %c768_81 = arith.constant 768 : index
    %122 = vector.load %arg6[%c0_80, %c768_81] : memref<384x1536xbf16, #tpu.memory_space<vmem>>, vector<384x384xbf16>
    %cst_82 = arith.constant dense<0.000000e+00> : vector<8x384xf32>
    %123 = tpu.matmul %97, %122, %cst_82 {dimension_numbers = #tpu.dot_dimension_numbers<[1], [0], [0], [1], [0, 0, 1, 1], [], []>} : vector<8x384xbf16>, vector<384x384xbf16>, vector<8x384xf32> -> vector<8x384xf32>
    %124 = arith.addf %121, %123 : vector<8x384xf32>
    %125 = math.tanh %124 : vector<8x384xf32>
    %126 = arith.mulf %120, %125 : vector<8x384xf32>
    %127 = arith.addf %109, %126 : vector<8x384xf32>
    %c16_83 = arith.constant 16 : index
    %c1152_84 = arith.constant 1152 : index
    %128 = vector.load %arg5[%c16_83, %c1152_84] : memref<64x1536xf32, #tpu.memory_space<vmem>>, vector<8x384xf32>
    %c0_85 = arith.constant 0 : index
    %c1152_86 = arith.constant 1152 : index
    %129 = vector.load %arg6[%c0_85, %c1152_86] : memref<384x1536xbf16, #tpu.memory_space<vmem>>, vector<384x384xbf16>
    %cst_87 = arith.constant dense<0.000000e+00> : vector<8x384xf32>
    %130 = tpu.matmul %97, %129, %cst_87 {dimension_numbers = #tpu.dot_dimension_numbers<[1], [0], [0], [1], [0, 0, 1, 1], [], []>} : vector<8x384xbf16>, vector<384x384xbf16>, vector<8x384xf32> -> vector<8x384xf32>
    %131 = arith.addf %128, %130 : vector<8x384xf32>
    %cst_88 = arith.constant 5.000000e-01 : f32
    %132 = vector.broadcast %cst_88 : f32 to vector<8x384xf32>
    %133 = arith.mulf %132, %131 : vector<8x384xf32>
    %134 = math.tanh %133 : vector<8x384xf32>
    %cst_89 = arith.constant 5.000000e-01 : f32
    %135 = vector.broadcast %cst_89 : f32 to vector<8x384xf32>
    %136 = arith.mulf %135, %134 : vector<8x384xf32>
    %cst_90 = arith.constant 5.000000e-01 : f32
    %137 = vector.broadcast %cst_90 : f32 to vector<8x384xf32>
    %138 = arith.addf %136, %137 : vector<8x384xf32>
    %139 = math.tanh %127 : vector<8x384xf32>
    %140 = arith.mulf %138, %139 : vector<8x384xf32>
    %141 = arith.truncf %140 : vector<8x384xf32> to vector<8x384xbf16>
    %c24 = arith.constant 24 : index
    %c384_91 = arith.constant 384 : index
    %142 = vector.load %arg5[%c24, %c384_91] : memref<64x1536xf32, #tpu.memory_space<vmem>>, vector<8x384xf32>
    %c0_92 = arith.constant 0 : index
    %c384_93 = arith.constant 384 : index
    %143 = vector.load %arg6[%c0_92, %c384_93] : memref<384x1536xbf16, #tpu.memory_space<vmem>>, vector<384x384xbf16>
    %cst_94 = arith.constant dense<0.000000e+00> : vector<8x384xf32>
    %144 = tpu.matmul %141, %143, %cst_94 {dimension_numbers = #tpu.dot_dimension_numbers<[1], [0], [0], [1], [0, 0, 1, 1], [], []>} : vector<8x384xbf16>, vector<384x384xbf16>, vector<8x384xf32> -> vector<8x384xf32>
    %145 = arith.addf %142, %144 : vector<8x384xf32>
    %cst_95 = arith.constant 5.000000e-01 : f32
    %146 = vector.broadcast %cst_95 : f32 to vector<8x384xf32>
    %147 = arith.mulf %146, %145 : vector<8x384xf32>
    %148 = math.tanh %147 : vector<8x384xf32>
    %cst_96 = arith.constant 5.000000e-01 : f32
    %149 = vector.broadcast %cst_96 : f32 to vector<8x384xf32>
    %150 = arith.mulf %149, %148 : vector<8x384xf32>
    %cst_97 = arith.constant 5.000000e-01 : f32
    %151 = vector.broadcast %cst_97 : f32 to vector<8x384xf32>
    %152 = arith.addf %150, %151 : vector<8x384xf32>
    %153 = arith.mulf %152, %127 : vector<8x384xf32>
    %c24_98 = arith.constant 24 : index
    %c0_99 = arith.constant 0 : index
    %154 = vector.load %arg5[%c24_98, %c0_99] : memref<64x1536xf32, #tpu.memory_space<vmem>>, vector<8x384xf32>
    %c0_100 = arith.constant 0 : index
    %c0_101 = arith.constant 0 : index
    %155 = vector.load %arg6[%c0_100, %c0_101] : memref<384x1536xbf16, #tpu.memory_space<vmem>>, vector<384x384xbf16>
    %cst_102 = arith.constant dense<0.000000e+00> : vector<8x384xf32>
    %156 = tpu.matmul %141, %155, %cst_102 {dimension_numbers = #tpu.dot_dimension_numbers<[1], [0], [0], [1], [0, 0, 1, 1], [], []>} : vector<8x384xbf16>, vector<384x384xbf16>, vector<8x384xf32> -> vector<8x384xf32>
    %157 = arith.addf %154, %156 : vector<8x384xf32>
    %cst_103 = arith.constant 5.000000e-01 : f32
    %158 = vector.broadcast %cst_103 : f32 to vector<8x384xf32>
    %159 = arith.mulf %158, %157 : vector<8x384xf32>
    %160 = math.tanh %159 : vector<8x384xf32>
    %cst_104 = arith.constant 5.000000e-01 : f32
    %161 = vector.broadcast %cst_104 : f32 to vector<8x384xf32>
    %162 = arith.mulf %161, %160 : vector<8x384xf32>
    %cst_105 = arith.constant 5.000000e-01 : f32
    %163 = vector.broadcast %cst_105 : f32 to vector<8x384xf32>
    %164 = arith.addf %162, %163 : vector<8x384xf32>
    %c24_106 = arith.constant 24 : index
    %c768_107 = arith.constant 768 : index
    %165 = vector.load %arg5[%c24_106, %c768_107] : memref<64x1536xf32, #tpu.memory_space<vmem>>, vector<8x384xf32>
    %c0_108 = arith.constant 0 : index
    %c768_109 = arith.constant 768 : index
    %166 = vector.load %arg6[%c0_108, %c768_109] : memref<384x1536xbf16, #tpu.memory_space<vmem>>, vector<384x384xbf16>
    %cst_110 = arith.constant dense<0.000000e+00> : vector<8x384xf32>
    %167 = tpu.matmul %141, %166, %cst_110 {dimension_numbers = #tpu.dot_dimension_numbers<[1], [0], [0], [1], [0, 0, 1, 1], [], []>} : vector<8x384xbf16>, vector<384x384xbf16>, vector<8x384xf32> -> vector<8x384xf32>
    %168 = arith.addf %165, %167 : vector<8x384xf32>
    %169 = math.tanh %168 : vector<8x384xf32>
    %170 = arith.mulf %164, %169 : vector<8x384xf32>
    %171 = arith.addf %153, %170 : vector<8x384xf32>
    %c24_111 = arith.constant 24 : index
    %c1152_112 = arith.constant 1152 : index
    %172 = vector.load %arg5[%c24_111, %c1152_112] : memref<64x1536xf32, #tpu.memory_space<vmem>>, vector<8x384xf32>
    %c0_113 = arith.constant 0 : index
    %c1152_114 = arith.constant 1152 : index
    %173 = vector.load %arg6[%c0_113, %c1152_114] : memref<384x1536xbf16, #tpu.memory_space<vmem>>, vector<384x384xbf16>
    %cst_115 = arith.constant dense<0.000000e+00> : vector<8x384xf32>
    %174 = tpu.matmul %141, %173, %cst_115 {dimension_numbers = #tpu.dot_dimension_numbers<[1], [0], [0], [1], [0, 0, 1, 1], [], []>} : vector<8x384xbf16>, vector<384x384xbf16>, vector<8x384xf32> -> vector<8x384xf32>
    %175 = arith.addf %172, %174 : vector<8x384xf32>
    %cst_116 = arith.constant 5.000000e-01 : f32
    %176 = vector.broadcast %cst_116 : f32 to vector<8x384xf32>
    %177 = arith.mulf %176, %175 : vector<8x384xf32>
    %178 = math.tanh %177 : vector<8x384xf32>
    %cst_117 = arith.constant 5.000000e-01 : f32
    %179 = vector.broadcast %cst_117 : f32 to vector<8x384xf32>
    %180 = arith.mulf %179, %178 : vector<8x384xf32>
    %cst_118 = arith.constant 5.000000e-01 : f32
    %181 = vector.broadcast %cst_118 : f32 to vector<8x384xf32>
    %182 = arith.addf %180, %181 : vector<8x384xf32>
    %183 = math.tanh %171 : vector<8x384xf32>
    %184 = arith.mulf %182, %183 : vector<8x384xf32>
    %185 = arith.truncf %184 : vector<8x384xf32> to vector<8x384xbf16>
    %c32 = arith.constant 32 : index
    %c384_119 = arith.constant 384 : index
    %186 = vector.load %arg5[%c32, %c384_119] : memref<64x1536xf32, #tpu.memory_space<vmem>>, vector<8x384xf32>
    %c0_120 = arith.constant 0 : index
    %c384_121 = arith.constant 384 : index
    %187 = vector.load %arg6[%c0_120, %c384_121] : memref<384x1536xbf16, #tpu.memory_space<vmem>>, vector<384x384xbf16>
    %cst_122 = arith.constant dense<0.000000e+00> : vector<8x384xf32>
    %188 = tpu.matmul %185, %187, %cst_122 {dimension_numbers = #tpu.dot_dimension_numbers<[1], [0], [0], [1], [0, 0, 1, 1], [], []>} : vector<8x384xbf16>, vector<384x384xbf16>, vector<8x384xf32> -> vector<8x384xf32>
    %189 = arith.addf %186, %188 : vector<8x384xf32>
    %cst_123 = arith.constant 5.000000e-01 : f32
    %190 = vector.broadcast %cst_123 : f32 to vector<8x384xf32>
    %191 = arith.mulf %190, %189 : vector<8x384xf32>
    %192 = math.tanh %191 : vector<8x384xf32>
    %cst_124 = arith.constant 5.000000e-01 : f32
    %193 = vector.broadcast %cst_124 : f32 to vector<8x384xf32>
    %194 = arith.mulf %193, %192 : vector<8x384xf32>
    %cst_125 = arith.constant 5.000000e-01 : f32
    %195 = vector.broadcast %cst_125 : f32 to vector<8x384xf32>
    %196 = arith.addf %194, %195 : vector<8x384xf32>
    %197 = arith.mulf %196, %171 : vector<8x384xf32>
    %c32_126 = arith.constant 32 : index
    %c0_127 = arith.constant 0 : index
    %198 = vector.load %arg5[%c32_126, %c0_127] : memref<64x1536xf32, #tpu.memory_space<vmem>>, vector<8x384xf32>
    %c0_128 = arith.constant 0 : index
    %c0_129 = arith.constant 0 : index
    %199 = vector.load %arg6[%c0_128, %c0_129] : memref<384x1536xbf16, #tpu.memory_space<vmem>>, vector<384x384xbf16>
    %cst_130 = arith.constant dense<0.000000e+00> : vector<8x384xf32>
    %200 = tpu.matmul %185, %199, %cst_130 {dimension_numbers = #tpu.dot_dimension_numbers<[1], [0], [0], [1], [0, 0, 1, 1], [], []>} : vector<8x384xbf16>, vector<384x384xbf16>, vector<8x384xf32> -> vector<8x384xf32>
    %201 = arith.addf %198, %200 : vector<8x384xf32>
    %cst_131 = arith.constant 5.000000e-01 : f32
    %202 = vector.broadcast %cst_131 : f32 to vector<8x384xf32>
    %203 = arith.mulf %202, %201 : vector<8x384xf32>
    %204 = math.tanh %203 : vector<8x384xf32>
    %cst_132 = arith.constant 5.000000e-01 : f32
    %205 = vector.broadcast %cst_132 : f32 to vector<8x384xf32>
    %206 = arith.mulf %205, %204 : vector<8x384xf32>
    %cst_133 = arith.constant 5.000000e-01 : f32
    %207 = vector.broadcast %cst_133 : f32 to vector<8x384xf32>
    %208 = arith.addf %206, %207 : vector<8x384xf32>
    %c32_134 = arith.constant 32 : index
    %c768_135 = arith.constant 768 : index
    %209 = vector.load %arg5[%c32_134, %c768_135] : memref<64x1536xf32, #tpu.memory_space<vmem>>, vector<8x384xf32>
    %c0_136 = arith.constant 0 : index
    %c768_137 = arith.constant 768 : index
    %210 = vector.load %arg6[%c0_136, %c768_137] : memref<384x1536xbf16, #tpu.memory_space<vmem>>, vector<384x384xbf16>
    %cst_138 = arith.constant dense<0.000000e+00> : vector<8x384xf32>
    %211 = tpu.matmul %185, %210, %cst_138 {dimension_numbers = #tpu.dot_dimension_numbers<[1], [0], [0], [1], [0, 0, 1, 1], [], []>} : vector<8x384xbf16>, vector<384x384xbf16>, vector<8x384xf32> -> vector<8x384xf32>
    %212 = arith.addf %209, %211 : vector<8x384xf32>
    %213 = math.tanh %212 : vector<8x384xf32>
    %214 = arith.mulf %208, %213 : vector<8x384xf32>
    %215 = arith.addf %197, %214 : vector<8x384xf32>
    %c32_139 = arith.constant 32 : index
    %c1152_140 = arith.constant 1152 : index
    %216 = vector.load %arg5[%c32_139, %c1152_140] : memref<64x1536xf32, #tpu.memory_space<vmem>>, vector<8x384xf32>
    %c0_141 = arith.constant 0 : index
    %c1152_142 = arith.constant 1152 : index
    %217 = vector.load %arg6[%c0_141, %c1152_142] : memref<384x1536xbf16, #tpu.memory_space<vmem>>, vector<384x384xbf16>
    %cst_143 = arith.constant dense<0.000000e+00> : vector<8x384xf32>
    %218 = tpu.matmul %185, %217, %cst_143 {dimension_numbers = #tpu.dot_dimension_numbers<[1], [0], [0], [1], [0, 0, 1, 1], [], []>} : vector<8x384xbf16>, vector<384x384xbf16>, vector<8x384xf32> -> vector<8x384xf32>
    %219 = arith.addf %216, %218 : vector<8x384xf32>
    %cst_144 = arith.constant 5.000000e-01 : f32
    %220 = vector.broadcast %cst_144 : f32 to vector<8x384xf32>
    %221 = arith.mulf %220, %219 : vector<8x384xf32>
    %222 = math.tanh %221 : vector<8x384xf32>
    %cst_145 = arith.constant 5.000000e-01 : f32
    %223 = vector.broadcast %cst_145 : f32 to vector<8x384xf32>
    %224 = arith.mulf %223, %222 : vector<8x384xf32>
    %cst_146 = arith.constant 5.000000e-01 : f32
    %225 = vector.broadcast %cst_146 : f32 to vector<8x384xf32>
    %226 = arith.addf %224, %225 : vector<8x384xf32>
    %227 = math.tanh %215 : vector<8x384xf32>
    %228 = arith.mulf %226, %227 : vector<8x384xf32>
    %229 = arith.truncf %228 : vector<8x384xf32> to vector<8x384xbf16>
    %c40 = arith.constant 40 : index
    %c384_147 = arith.constant 384 : index
    %230 = vector.load %arg5[%c40, %c384_147] : memref<64x1536xf32, #tpu.memory_space<vmem>>, vector<8x384xf32>
    %c0_148 = arith.constant 0 : index
    %c384_149 = arith.constant 384 : index
    %231 = vector.load %arg6[%c0_148, %c384_149] : memref<384x1536xbf16, #tpu.memory_space<vmem>>, vector<384x384xbf16>
    %cst_150 = arith.constant dense<0.000000e+00> : vector<8x384xf32>
    %232 = tpu.matmul %229, %231, %cst_150 {dimension_numbers = #tpu.dot_dimension_numbers<[1], [0], [0], [1], [0, 0, 1, 1], [], []>} : vector<8x384xbf16>, vector<384x384xbf16>, vector<8x384xf32> -> vector<8x384xf32>
    %233 = arith.addf %230, %232 : vector<8x384xf32>
    %cst_151 = arith.constant 5.000000e-01 : f32
    %234 = vector.broadcast %cst_151 : f32 to vector<8x384xf32>
    %235 = arith.mulf %234, %233 : vector<8x384xf32>
    %236 = math.tanh %235 : vector<8x384xf32>
    %cst_152 = arith.constant 5.000000e-01 : f32
    %237 = vector.broadcast %cst_152 : f32 to vector<8x384xf32>
    %238 = arith.mulf %237, %236 : vector<8x384xf32>
    %cst_153 = arith.constant 5.000000e-01 : f32
    %239 = vector.broadcast %cst_153 : f32 to vector<8x384xf32>
    %240 = arith.addf %238, %239 : vector<8x384xf32>
    %241 = arith.mulf %240, %215 : vector<8x384xf32>
    %c40_154 = arith.constant 40 : index
    %c0_155 = arith.constant 0 : index
    %242 = vector.load %arg5[%c40_154, %c0_155] : memref<64x1536xf32, #tpu.memory_space<vmem>>, vector<8x384xf32>
    %c0_156 = arith.constant 0 : index
    %c0_157 = arith.constant 0 : index
    %243 = vector.load %arg6[%c0_156, %c0_157] : memref<384x1536xbf16, #tpu.memory_space<vmem>>, vector<384x384xbf16>
    %cst_158 = arith.constant dense<0.000000e+00> : vector<8x384xf32>
    %244 = tpu.matmul %229, %243, %cst_158 {dimension_numbers = #tpu.dot_dimension_numbers<[1], [0], [0], [1], [0, 0, 1, 1], [], []>} : vector<8x384xbf16>, vector<384x384xbf16>, vector<8x384xf32> -> vector<8x384xf32>
    %245 = arith.addf %242, %244 : vector<8x384xf32>
    %cst_159 = arith.constant 5.000000e-01 : f32
    %246 = vector.broadcast %cst_159 : f32 to vector<8x384xf32>
    %247 = arith.mulf %246, %245 : vector<8x384xf32>
    %248 = math.tanh %247 : vector<8x384xf32>
    %cst_160 = arith.constant 5.000000e-01 : f32
    %249 = vector.broadcast %cst_160 : f32 to vector<8x384xf32>
    %250 = arith.mulf %249, %248 : vector<8x384xf32>
    %cst_161 = arith.constant 5.000000e-01 : f32
    %251 = vector.broadcast %cst_161 : f32 to vector<8x384xf32>
    %252 = arith.addf %250, %251 : vector<8x384xf32>
    %c40_162 = arith.constant 40 : index
    %c768_163 = arith.constant 768 : index
    %253 = vector.load %arg5[%c40_162, %c768_163] : memref<64x1536xf32, #tpu.memory_space<vmem>>, vector<8x384xf32>
    %c0_164 = arith.constant 0 : index
    %c768_165 = arith.constant 768 : index
    %254 = vector.load %arg6[%c0_164, %c768_165] : memref<384x1536xbf16, #tpu.memory_space<vmem>>, vector<384x384xbf16>
    %cst_166 = arith.constant dense<0.000000e+00> : vector<8x384xf32>
    %255 = tpu.matmul %229, %254, %cst_166 {dimension_numbers = #tpu.dot_dimension_numbers<[1], [0], [0], [1], [0, 0, 1, 1], [], []>} : vector<8x384xbf16>, vector<384x384xbf16>, vector<8x384xf32> -> vector<8x384xf32>
    %256 = arith.addf %253, %255 : vector<8x384xf32>
    %257 = math.tanh %256 : vector<8x384xf32>
    %258 = arith.mulf %252, %257 : vector<8x384xf32>
    %259 = arith.addf %241, %258 : vector<8x384xf32>
    %c40_167 = arith.constant 40 : index
    %c1152_168 = arith.constant 1152 : index
    %260 = vector.load %arg5[%c40_167, %c1152_168] : memref<64x1536xf32, #tpu.memory_space<vmem>>, vector<8x384xf32>
    %c0_169 = arith.constant 0 : index
    %c1152_170 = arith.constant 1152 : index
    %261 = vector.load %arg6[%c0_169, %c1152_170] : memref<384x1536xbf16, #tpu.memory_space<vmem>>, vector<384x384xbf16>
    %cst_171 = arith.constant dense<0.000000e+00> : vector<8x384xf32>
    %262 = tpu.matmul %229, %261, %cst_171 {dimension_numbers = #tpu.dot_dimension_numbers<[1], [0], [0], [1], [0, 0, 1, 1], [], []>} : vector<8x384xbf16>, vector<384x384xbf16>, vector<8x384xf32> -> vector<8x384xf32>
    %263 = arith.addf %260, %262 : vector<8x384xf32>
    %cst_172 = arith.constant 5.000000e-01 : f32
    %264 = vector.broadcast %cst_172 : f32 to vector<8x384xf32>
    %265 = arith.mulf %264, %263 : vector<8x384xf32>
    %266 = math.tanh %265 : vector<8x384xf32>
    %cst_173 = arith.constant 5.000000e-01 : f32
    %267 = vector.broadcast %cst_173 : f32 to vector<8x384xf32>
    %268 = arith.mulf %267, %266 : vector<8x384xf32>
    %cst_174 = arith.constant 5.000000e-01 : f32
    %269 = vector.broadcast %cst_174 : f32 to vector<8x384xf32>
    %270 = arith.addf %268, %269 : vector<8x384xf32>
    %271 = math.tanh %259 : vector<8x384xf32>
    %272 = arith.mulf %270, %271 : vector<8x384xf32>
    %273 = arith.truncf %272 : vector<8x384xf32> to vector<8x384xbf16>
    %c48 = arith.constant 48 : index
    %c384_175 = arith.constant 384 : index
    %274 = vector.load %arg5[%c48, %c384_175] : memref<64x1536xf32, #tpu.memory_space<vmem>>, vector<8x384xf32>
    %c0_176 = arith.constant 0 : index
    %c384_177 = arith.constant 384 : index
    %275 = vector.load %arg6[%c0_176, %c384_177] : memref<384x1536xbf16, #tpu.memory_space<vmem>>, vector<384x384xbf16>
    %cst_178 = arith.constant dense<0.000000e+00> : vector<8x384xf32>
    %276 = tpu.matmul %273, %275, %cst_178 {dimension_numbers = #tpu.dot_dimension_numbers<[1], [0], [0], [1], [0, 0, 1, 1], [], []>} : vector<8x384xbf16>, vector<384x384xbf16>, vector<8x384xf32> -> vector<8x384xf32>
    %277 = arith.addf %274, %276 : vector<8x384xf32>
    %cst_179 = arith.constant 5.000000e-01 : f32
    %278 = vector.broadcast %cst_179 : f32 to vector<8x384xf32>
    %279 = arith.mulf %278, %277 : vector<8x384xf32>
    %280 = math.tanh %279 : vector<8x384xf32>
    %cst_180 = arith.constant 5.000000e-01 : f32
    %281 = vector.broadcast %cst_180 : f32 to vector<8x384xf32>
    %282 = arith.mulf %281, %280 : vector<8x384xf32>
    %cst_181 = arith.constant 5.000000e-01 : f32
    %283 = vector.broadcast %cst_181 : f32 to vector<8x384xf32>
    %284 = arith.addf %282, %283 : vector<8x384xf32>
    %285 = arith.mulf %284, %259 : vector<8x384xf32>
    %c48_182 = arith.constant 48 : index
    %c0_183 = arith.constant 0 : index
    %286 = vector.load %arg5[%c48_182, %c0_183] : memref<64x1536xf32, #tpu.memory_space<vmem>>, vector<8x384xf32>
    %c0_184 = arith.constant 0 : index
    %c0_185 = arith.constant 0 : index
    %287 = vector.load %arg6[%c0_184, %c0_185] : memref<384x1536xbf16, #tpu.memory_space<vmem>>, vector<384x384xbf16>
    %cst_186 = arith.constant dense<0.000000e+00> : vector<8x384xf32>
    %288 = tpu.matmul %273, %287, %cst_186 {dimension_numbers = #tpu.dot_dimension_numbers<[1], [0], [0], [1], [0, 0, 1, 1], [], []>} : vector<8x384xbf16>, vector<384x384xbf16>, vector<8x384xf32> -> vector<8x384xf32>
    %289 = arith.addf %286, %288 : vector<8x384xf32>
    %cst_187 = arith.constant 5.000000e-01 : f32
    %290 = vector.broadcast %cst_187 : f32 to vector<8x384xf32>
    %291 = arith.mulf %290, %289 : vector<8x384xf32>
    %292 = math.tanh %291 : vector<8x384xf32>
    %cst_188 = arith.constant 5.000000e-01 : f32
    %293 = vector.broadcast %cst_188 : f32 to vector<8x384xf32>
    %294 = arith.mulf %293, %292 : vector<8x384xf32>
    %cst_189 = arith.constant 5.000000e-01 : f32
    %295 = vector.broadcast %cst_189 : f32 to vector<8x384xf32>
    %296 = arith.addf %294, %295 : vector<8x384xf32>
    %c48_190 = arith.constant 48 : index
    %c768_191 = arith.constant 768 : index
    %297 = vector.load %arg5[%c48_190, %c768_191] : memref<64x1536xf32, #tpu.memory_space<vmem>>, vector<8x384xf32>
    %c0_192 = arith.constant 0 : index
    %c768_193 = arith.constant 768 : index
    %298 = vector.load %arg6[%c0_192, %c768_193] : memref<384x1536xbf16, #tpu.memory_space<vmem>>, vector<384x384xbf16>
    %cst_194 = arith.constant dense<0.000000e+00> : vector<8x384xf32>
    %299 = tpu.matmul %273, %298, %cst_194 {dimension_numbers = #tpu.dot_dimension_numbers<[1], [0], [0], [1], [0, 0, 1, 1], [], []>} : vector<8x384xbf16>, vector<384x384xbf16>, vector<8x384xf32> -> vector<8x384xf32>
    %300 = arith.addf %297, %299 : vector<8x384xf32>
    %301 = math.tanh %300 : vector<8x384xf32>
    %302 = arith.mulf %296, %301 : vector<8x384xf32>
    %303 = arith.addf %285, %302 : vector<8x384xf32>
    %c48_195 = arith.constant 48 : index
    %c1152_196 = arith.constant 1152 : index
    %304 = vector.load %arg5[%c48_195, %c1152_196] : memref<64x1536xf32, #tpu.memory_space<vmem>>, vector<8x384xf32>
    %c0_197 = arith.constant 0 : index
    %c1152_198 = arith.constant 1152 : index
    %305 = vector.load %arg6[%c0_197, %c1152_198] : memref<384x1536xbf16, #tpu.memory_space<vmem>>, vector<384x384xbf16>
    %cst_199 = arith.constant dense<0.000000e+00> : vector<8x384xf32>
    %306 = tpu.matmul %273, %305, %cst_199 {dimension_numbers = #tpu.dot_dimension_numbers<[1], [0], [0], [1], [0, 0, 1, 1], [], []>} : vector<8x384xbf16>, vector<384x384xbf16>, vector<8x384xf32> -> vector<8x384xf32>
    %307 = arith.addf %304, %306 : vector<8x384xf32>
    %cst_200 = arith.constant 5.000000e-01 : f32
    %308 = vector.broadcast %cst_200 : f32 to vector<8x384xf32>
    %309 = arith.mulf %308, %307 : vector<8x384xf32>
    %310 = math.tanh %309 : vector<8x384xf32>
    %cst_201 = arith.constant 5.000000e-01 : f32
    %311 = vector.broadcast %cst_201 : f32 to vector<8x384xf32>
    %312 = arith.mulf %311, %310 : vector<8x384xf32>
    %cst_202 = arith.constant 5.000000e-01 : f32
    %313 = vector.broadcast %cst_202 : f32 to vector<8x384xf32>
    %314 = arith.addf %312, %313 : vector<8x384xf32>
    %315 = math.tanh %303 : vector<8x384xf32>
    %316 = arith.mulf %314, %315 : vector<8x384xf32>
    %317 = arith.truncf %316 : vector<8x384xf32> to vector<8x384xbf16>
    %c56 = arith.constant 56 : index
    %c384_203 = arith.constant 384 : index
    %318 = vector.load %arg5[%c56, %c384_203] : memref<64x1536xf32, #tpu.memory_space<vmem>>, vector<8x384xf32>
    %c0_204 = arith.constant 0 : index
    %c384_205 = arith.constant 384 : index
    %319 = vector.load %arg6[%c0_204, %c384_205] : memref<384x1536xbf16, #tpu.memory_space<vmem>>, vector<384x384xbf16>
    %cst_206 = arith.constant dense<0.000000e+00> : vector<8x384xf32>
    %320 = tpu.matmul %317, %319, %cst_206 {dimension_numbers = #tpu.dot_dimension_numbers<[1], [0], [0], [1], [0, 0, 1, 1], [], []>} : vector<8x384xbf16>, vector<384x384xbf16>, vector<8x384xf32> -> vector<8x384xf32>
    %321 = arith.addf %318, %320 : vector<8x384xf32>
    %cst_207 = arith.constant 5.000000e-01 : f32
    %322 = vector.broadcast %cst_207 : f32 to vector<8x384xf32>
    %323 = arith.mulf %322, %321 : vector<8x384xf32>
    %324 = math.tanh %323 : vector<8x384xf32>
    %cst_208 = arith.constant 5.000000e-01 : f32
    %325 = vector.broadcast %cst_208 : f32 to vector<8x384xf32>
    %326 = arith.mulf %325, %324 : vector<8x384xf32>
    %cst_209 = arith.constant 5.000000e-01 : f32
    %327 = vector.broadcast %cst_209 : f32 to vector<8x384xf32>
    %328 = arith.addf %326, %327 : vector<8x384xf32>
    %329 = arith.mulf %328, %303 : vector<8x384xf32>
    %c56_210 = arith.constant 56 : index
    %c0_211 = arith.constant 0 : index
    %330 = vector.load %arg5[%c56_210, %c0_211] : memref<64x1536xf32, #tpu.memory_space<vmem>>, vector<8x384xf32>
    %c0_212 = arith.constant 0 : index
    %c0_213 = arith.constant 0 : index
    %331 = vector.load %arg6[%c0_212, %c0_213] : memref<384x1536xbf16, #tpu.memory_space<vmem>>, vector<384x384xbf16>
    %cst_214 = arith.constant dense<0.000000e+00> : vector<8x384xf32>
    %332 = tpu.matmul %317, %331, %cst_214 {dimension_numbers = #tpu.dot_dimension_numbers<[1], [0], [0], [1], [0, 0, 1, 1], [], []>} : vector<8x384xbf16>, vector<384x384xbf16>, vector<8x384xf32> -> vector<8x384xf32>
    %333 = arith.addf %330, %332 : vector<8x384xf32>
    %cst_215 = arith.constant 5.000000e-01 : f32
    %334 = vector.broadcast %cst_215 : f32 to vector<8x384xf32>
    %335 = arith.mulf %334, %333 : vector<8x384xf32>
    %336 = math.tanh %335 : vector<8x384xf32>
    %cst_216 = arith.constant 5.000000e-01 : f32
    %337 = vector.broadcast %cst_216 : f32 to vector<8x384xf32>
    %338 = arith.mulf %337, %336 : vector<8x384xf32>
    %cst_217 = arith.constant 5.000000e-01 : f32
    %339 = vector.broadcast %cst_217 : f32 to vector<8x384xf32>
    %340 = arith.addf %338, %339 : vector<8x384xf32>
    %c56_218 = arith.constant 56 : index
    %c768_219 = arith.constant 768 : index
    %341 = vector.load %arg5[%c56_218, %c768_219] : memref<64x1536xf32, #tpu.memory_space<vmem>>, vector<8x384xf32>
    %c0_220 = arith.constant 0 : index
    %c768_221 = arith.constant 768 : index
    %342 = vector.load %arg6[%c0_220, %c768_221] : memref<384x1536xbf16, #tpu.memory_space<vmem>>, vector<384x384xbf16>
    %cst_222 = arith.constant dense<0.000000e+00> : vector<8x384xf32>
    %343 = tpu.matmul %317, %342, %cst_222 {dimension_numbers = #tpu.dot_dimension_numbers<[1], [0], [0], [1], [0, 0, 1, 1], [], []>} : vector<8x384xbf16>, vector<384x384xbf16>, vector<8x384xf32> -> vector<8x384xf32>
    %344 = arith.addf %341, %343 : vector<8x384xf32>
    %345 = math.tanh %344 : vector<8x384xf32>
    %346 = arith.mulf %340, %345 : vector<8x384xf32>
    %347 = arith.addf %329, %346 : vector<8x384xf32>
    %c56_223 = arith.constant 56 : index
    %c1152_224 = arith.constant 1152 : index
    %348 = vector.load %arg5[%c56_223, %c1152_224] : memref<64x1536xf32, #tpu.memory_space<vmem>>, vector<8x384xf32>
    %c0_225 = arith.constant 0 : index
    %c1152_226 = arith.constant 1152 : index
    %349 = vector.load %arg6[%c0_225, %c1152_226] : memref<384x1536xbf16, #tpu.memory_space<vmem>>, vector<384x384xbf16>
    %cst_227 = arith.constant dense<0.000000e+00> : vector<8x384xf32>
    %350 = tpu.matmul %317, %349, %cst_227 {dimension_numbers = #tpu.dot_dimension_numbers<[1], [0], [0], [1], [0, 0, 1, 1], [], []>} : vector<8x384xbf16>, vector<384x384xbf16>, vector<8x384xf32> -> vector<8x384xf32>
    %351 = arith.addf %348, %350 : vector<8x384xf32>
    %cst_228 = arith.constant 5.000000e-01 : f32
    %352 = vector.broadcast %cst_228 : f32 to vector<8x384xf32>
    %353 = arith.mulf %352, %351 : vector<8x384xf32>
    %354 = math.tanh %353 : vector<8x384xf32>
    %cst_229 = arith.constant 5.000000e-01 : f32
    %355 = vector.broadcast %cst_229 : f32 to vector<8x384xf32>
    %356 = arith.mulf %355, %354 : vector<8x384xf32>
    %cst_230 = arith.constant 5.000000e-01 : f32
    %357 = vector.broadcast %cst_230 : f32 to vector<8x384xf32>
    %358 = arith.addf %356, %357 : vector<8x384xf32>
    %359 = math.tanh %347 : vector<8x384xf32>
    %360 = arith.mulf %358, %359 : vector<8x384xf32>
    %c0_231 = arith.constant 0 : index
    %c0_232 = arith.constant 0 : index
    %361 = vector.load %arg4[%c0_231, %c0_232] : memref<8x384xf32, #tpu.memory_space<vmem>>, vector<8x384xf32>
    tpu.vector_store %arg4[%c0_231, %c0_232], %360 {strides = array<i32>} : memref<8x384xf32, #tpu.memory_space<vmem>>, vector<8x384xf32>,
    return
  }
}

</mosaic_0001>

<llo_original>
// kernel: tpu_custom_call.1
$region0: #{tpu_custom_call.1}
  #allocation0 [shape = 'u32[]', space=smem, size = 0x4, offset = 0x4, fixed_abs, tag = 'smem constant byte address 0x4 - core index']
  #allocation1 [shape = 'u32[144,128]{1,0:T(1,128)}', space=vmem, size = 0x12000, scoped, tag = 'internal scratch']
  #allocation2 [shape = 'f32[64,1536]{1,0:T(8,128)}', space=vmem, size = 0x60000, scoped, tag = 'scratch operand']
  #allocation3 [shape = 'bf16[384,1536]{1,0:T(16,128)(2,1)}', space=vmem, size = 0x120000, scoped, tag = 'scratch operand']
  #allocation4 [shape = 's32[1]{0}', space=sflag, size = 0x4, scoped, tag = 'scratch operand']
  #allocation12 [shape = 's32[]', space=sflag, size = 0x4, offset = 0, fixed_abs, tag = 'sflag constant byte address 0x0 - dummy sync flag']
  %s0 = inlined_call_operand.hbm [shape: bf16[64,304], index: 0, kind: input, shape index: {}]
  %s1 = inlined_call_operand.hbm [shape: bf16[304,1536], index: 1, kind: input, shape index: {}]
  %s2 = inlined_call_operand.hbm [shape: f32[1,1536], index: 2, kind: input, shape index: {}]
  %s3 = inlined_call_operand.hbm [shape: bf16[384,1536], index: 3, kind: input, shape index: {}]
  %s4 = inlined_call_operand.hbm [shape: f32[8,384], index: 4, kind: output, shape index: {}]
  %s5 = sld [smem:[#allocation0]]
  $region34: #{tpu_custom_call.1} parent=0
    _
  %s7 = ssub.s32 1, %s5
  %s8 = scalar_select 0, %s7, %s5
  $region1: #{tpu_custom_call.1} parent=0
    #allocation5 [shape = 'u8[49152]{0}', space=vmem, size = 0xc000, scoped, tag = 'input window, operand 0, single buffered']
    #allocation6 [shape = 's32[1]{0}', space=sflag, size = 0x4, scoped, tag = 'scoped memory for tpu_custom_call.1']
    #allocation7 [shape = 's32[1]{0}', space=sflag, size = 0x4, scoped, tag = 'scoped memory for tpu_custom_call.1']
    #allocation8 [shape = 'u8[933888]{0}', space=vmem, size = 0xe4000, scoped, tag = 'input window, operand 1, single buffered']
    #allocation9 [shape = 's32[1]{0}', space=sflag, size = 0x4, scoped, tag = 'scoped memory for tpu_custom_call.1']
    #allocation10 [shape = 'u8[6144]{0}', space=vmem, size = 0x1800, scoped, tag = 'input window, operand 2, single buffered']
    #allocation11 [shape = 'u8[12288]{0}', space=vmem, size = 0x3000, scoped, tag = 'output window, operand 0, single buffered']
    #allocation13 [shape = 'u32[9]{0}', space=smem, size = 0x24, scoped, tag = 'DMA stride descriptor']
    %9 = vsyncpa [#allocation6], 0
    %10 = vsyncpa [#allocation9], 0
    %11 = vsyncpa [#allocation7], 0
    // Predicated region
    $region2: #{tpu_custom_call.1} parent=1 // pred_check
      _
    $region3: #{tpu_custom_call.1} parent=1 // pred_check_branch
      %13 = sbr.rel (0) target = $region5
    $region4: #{tpu_custom_call.1} parent=1 // pred_region
      %s15 = ssub.s32 1536, 1536
      %16 = vsyncadd [#allocation6], %s15
      %s17 = sshll.u32 [#allocation5], 4
      %s18 = int_to_ptr.vmem [resolvable:$true] %s17
      %23 = dma.hbm_to_vmem [thread:$0]  %s0, 1536, %s18, [#allocation6], 192, 192, 12
    $region5: #{tpu_custom_call.1} parent=1 // pred_fallthru
      _
    // Predicated region
    $region6: #{tpu_custom_call.1} parent=1 // pred_check
      _
    $region7: #{tpu_custom_call.1} parent=1 // pred_check_branch
      %25 = sbr.rel (0) target = $region9
    $region8: #{tpu_custom_call.1} parent=1 // pred_region
      %s27 = ssub.s32 29184, 29184
      %28 = vsyncadd [#allocation9], %s27
      %s29 = sshll.u32 [#allocation8], 4
      %s30 = int_to_ptr.vmem [resolvable:$true] %s29
      %35 = dma.hbm_to_vmem [thread:$0]  %s1, 29184, %s30, [#allocation9], 768, 768, 48
    $region9: #{tpu_custom_call.1} parent=1 // pred_fallthru
      _
    // Predicated region
    $region10: #{tpu_custom_call.1} parent=1 // pred_check
      _
    $region11: #{tpu_custom_call.1} parent=1 // pred_check_branch
      %37 = sbr.rel (0) target = $region13
    $region12: #{tpu_custom_call.1} parent=1 // pred_region
      %s39 = ssub.s32 192, 192
      %40 = vsyncadd [#allocation9], %s39
      %s42 = sshll.u32 [#allocation10], 4
      %s43 = int_to_ptr.vmem [resolvable:$true] %s42
      %45 = dma.hbm_to_vmem [thread:$0]  %s2, 192, %s43, [#allocation9]
    $region13: #{tpu_custom_call.1} parent=1 // pred_fallthru
      _
    // Predicated region
    $region14: #{tpu_custom_call.1} parent=1 // pred_check
      _
    $region15: #{tpu_custom_call.1} parent=1 // pred_check_branch
      %47 = sbr.rel (0) target = $region17
    $region16: #{tpu_custom_call.1} parent=1 // pred_region
      %48 = dma.done [#allocation6], 1536
    $region17: #{tpu_custom_call.1} parent=1 // pred_fallthru
      _
    // Predicated region
    $region18: #{tpu_custom_call.1} parent=1 // pred_check
      _
    $region19: #{tpu_custom_call.1} parent=1 // pred_check_branch
      %50 = sbr.rel (0) target = $region21
    $region20: #{tpu_custom_call.1} parent=1 // pred_region
      %51 = dma.done [#allocation9], 29184
    $region21: #{tpu_custom_call.1} parent=1 // pred_fallthru
      _
    // Predicated region
    $region22: #{tpu_custom_call.1} parent=1 // pred_check
      _
    $region23: #{tpu_custom_call.1} parent=1 // pred_check_branch
      %53 = sbr.rel (0) target = $region25
    $region24: #{tpu_custom_call.1} parent=1 // pred_region
      %54 = dma.done [#allocation9], 192
    $region25: #{tpu_custom_call.1} parent=1 // pred_fallthru
      _
    %s57 = sshll.u32 1, 14
    %s58 = sxor.u32 4294967295, %s57
    %s60 = sld [smem:[#allocation0]]
    %s61 = sadd.s32 2, %s60
    %s63 = sshll.u32 7, 26
    %s64 = sxor.u32 4294967295, %s63
    %s65 = sand.u32 0, %s64
    %s66 = sshll.u32 %s61, 26
    %s67 = sor.u32 %s65, %s66
    %s68 = sshll.u32 [#allocation3], 4
    %s69 = int_to_ptr.vmem [resolvable:$true] %s68
    %72 = sst [smem:[#allocation13]] 1536
    %s73 = scalar_lea.smem [#allocation13], 1
    %74 = sst [smem:[%s73]] 1536
    %s75 = scalar_lea.smem [#allocation13], 2
    %76 = sst [smem:[%s75]] 12
    %s77 = scalar_lea.smem [#allocation13], 3
    %78 = sst [smem:[%s77]] 64
    %s79 = scalar_lea.smem [#allocation13], 4
    %80 = sst [smem:[%s79]] 128
    %s81 = scalar_lea.smem [#allocation13], 5
    %82 = sst [smem:[%s81]] 2
    %s83 = scalar_lea.smem [#allocation13], 6
    %84 = sst [smem:[%s83]] 768
    %s85 = scalar_lea.smem [#allocation13], 7
    %86 = sst [smem:[%s85]] 64
    %s87 = scalar_lea.smem [#allocation13], 8
    %88 = sst [smem:[%s87]] 4
    %90 = dma.general %s3, 36864, %s69, [#allocation4], [#allocation12], [#allocation13], %s67, 0
    %v91 = vld [vmem:[#allocation5] sm:$0xff]
    %v92 = vld [vmem:[#allocation5 + $0x8] sm:$0xf]
    %v93 = vld [vmem:[#allocation5 + $0xc] sm:$0xff]
    %v94 = vld [vmem:[#allocation5 + $0x14] sm:$0xf]
    %v95 = vld [vmem:[#allocation5 + $0x18] sm:$0xff]
    %v96 = vld [vmem:[#allocation5 + $0x20] sm:$0xf]
    %v97 = vld [vmem:[#allocation5 + $0x24] sm:$0xff]
    %v98 = vld [vmem:[#allocation5 + $0x2c] sm:$0xf]
    %v99 = vld [vmem:[#allocation5 + $0x30] sm:$0xff]
    %v100 = vld [vmem:[#allocation5 + $0x38] sm:$0xf]
    %v101 = vld [vmem:[#allocation5 + $0x3c] sm:$0xff]
    %v102 = vld [vmem:[#allocation5 + $0x44] sm:$0xf]
    %v103 = vld [vmem:[#allocation5 + $0x48] sm:$0xff]
    %v104 = vld [vmem:[#allocation5 + $0x50] sm:$0xf]
    %v105 = vld [vmem:[#allocation5 + $0x54] sm:$0xff]
    %v106 = vld [vmem:[#allocation5 + $0x5c] sm:$0xf]
    %v107 = vld [vmem:[#allocation8] sm:$0xff]
    %v108 = vld [vmem:[#allocation8 + $0x8] sm:$0xff]
    %v109 = vld [vmem:[#allocation8 + $0x10] sm:$0xff]
    %v110 = vld [vmem:[#allocation8 + $0x18] sm:$0xff]
    %v111 = vld [vmem:[#allocation8 + $0x20] sm:$0xff]
    %v112 = vld [vmem:[#allocation8 + $0x28] sm:$0xff]
    %v113 = vld [vmem:[#allocation8 + $0x30] sm:$0xff]
    %v114 = vld [vmem:[#allocation8 + $0x38] sm:$0xff]
    %v115 = vld [vmem:[#allocation8 + $0x40] sm:$0xff]
    %v116 = vld [vmem:[#allocation8 + $0x48] sm:$0xff]
    %v117 = vld [vmem:[#allocation8 + $0x50] sm:$0xff]
    %v118 = vld [vmem:[#allocation8 + $0x58] sm:$0xff]
    %v119 = vld [vmem:[#allocation8 + $0x60] sm:$0xff]
    %v120 = vld [vmem:[#allocation8 + $0x68] sm:$0xff]
    %v121 = vld [vmem:[#allocation8 + $0x70] sm:$0xff]
    %v122 = vld [vmem:[#allocation8 + $0x78] sm:$0xff]
    %v123 = vld [vmem:[#allocation8 + $0x80] sm:$0xff]
    %v124 = vld [vmem:[#allocation8 + $0x88] sm:$0xff]
    %v125 = vld [vmem:[#allocation8 + $0x90] sm:$0xff]
    %v126 = vld [vmem:[#allocation8 + $0x98] sm:$0xff]
    %v127 = vld [vmem:[#allocation8 + $0xa0] sm:$0xff]
    %v128 = vld [vmem:[#allocation8 + $0xa8] sm:$0xff]
    %v129 = vld [vmem:[#allocation8 + $0xb0] sm:$0xff]
    %v130 = vld [vmem:[#allocation8 + $0xb8] sm:$0xff]
    %v131 = vld [vmem:[#allocation8 + $0xc0] sm:$0xff]
    %v132 = vld [vmem:[#allocation8 + $0xc8] sm:$0xff]
    %v133 = vld [vmem:[#allocation8 + $0xd0] sm:$0xff]
    %v134 = vld [vmem:[#allocation8 + $0xd8] sm:$0xff]
    %v135 = vld [vmem:[#allocation8 + $0xe0] sm:$0xff]
    %v136 = vld [vmem:[#allocation8 + $0xe8] sm:$0xff]
    %v137 = vld [vmem:[#allocation8 + $0xf0] sm:$0xff]
    %v138 = vld [vmem:[#allocation8 + $0xf8] sm:$0xff]
    %v139 = vld [vmem:[#allocation8 + $0x100] sm:$0xff]
    %v140 = vld [vmem:[#allocation8 + $0x108] sm:$0xff]
    %v141 = vld [vmem:[#allocation8 + $0x110] sm:$0xff]
    %v142 = vld [vmem:[#allocation8 + $0x118] sm:$0xff]
    %v143 = vld [vmem:[#allocation8 + $0x120] sm:$0xff]
    %v144 = vld [vmem:[#allocation8 + $0x128] sm:$0xff]
    %v145 = vld [vmem:[#allocation8 + $0x130] sm:$0xff]
    %v146 = vld [vmem:[#allocation8 + $0x138] sm:$0xff]
    %v147 = vld [vmem:[#allocation8 + $0x140] sm:$0xff]
    %v148 = vld [vmem:[#allocation8 + $0x148] sm:$0xff]
    %v149 = vld [vmem:[#allocation8 + $0x150] sm:$0xff]
    %v150 = vld [vmem:[#allocation8 + $0x158] sm:$0xff]
    %v151 = vld [vmem:[#allocation8 + $0x160] sm:$0xff]
    %v152 = vld [vmem:[#allocation8 + $0x168] sm:$0xff]
    %v153 = vld [vmem:[#allocation8 + $0x170] sm:$0xff]
    %v154 = vld [vmem:[#allocation8 + $0x178] sm:$0xff]
    %v155 = vld [vmem:[#allocation8 + $0x180] sm:$0xff]
    %v156 = vld [vmem:[#allocation8 + $0x188] sm:$0xff]
    %v157 = vld [vmem:[#allocation8 + $0x190] sm:$0xff]
    %v158 = vld [vmem:[#allocation8 + $0x198] sm:$0xff]
    %v159 = vld [vmem:[#allocation8 + $0x1a0] sm:$0xff]
    %v160 = vld [vmem:[#allocation8 + $0x1a8] sm:$0xff]
    %v161 = vld [vmem:[#allocation8 + $0x1b0] sm:$0xff]
    %v162 = vld [vmem:[#allocation8 + $0x1b8] sm:$0xff]
    %v163 = vld [vmem:[#allocation8 + $0x1c0] sm:$0xff]
    %v164 = vld [vmem:[#allocation8 + $0x1c8] sm:$0xff]
    %v165 = vld [vmem:[#allocation8 + $0x1d0] sm:$0xff]
    %v166 = vld [vmem:[#allocation8 + $0x1d8] sm:$0xff]
    %v167 = vld [vmem:[#allocation8 + $0x1e0] sm:$0xff]
    %v168 = vld [vmem:[#allocation8 + $0x1e8] sm:$0xff]
    %v169 = vld [vmem:[#allocation8 + $0x1f0] sm:$0xff]
    %v170 = vld [vmem:[#allocation8 + $0x1f8] sm:$0xff]
    %v171 = vld [vmem:[#allocation8 + $0x200] sm:$0xff]
    %v172 = vld [vmem:[#allocation8 + $0x208] sm:$0xff]
    %v173 = vld [vmem:[#allocation8 + $0x210] sm:$0xff]
    %v174 = vld [vmem:[#allocation8 + $0x218] sm:$0xff]
    %v175 = vld [vmem:[#allocation8 + $0x220] sm:$0xff]
    %v176 = vld [vmem:[#allocation8 + $0x228] sm:$0xff]
    %v177 = vld [vmem:[#allocation8 + $0x230] sm:$0xff]
    %v178 = vld [vmem:[#allocation8 + $0x238] sm:$0xff]
    %v179 = vld [vmem:[#allocation8 + $0x240] sm:$0xff]
    %v180 = vld [vmem:[#allocation8 + $0x248] sm:$0xff]
    %v181 = vld [vmem:[#allocation8 + $0x250] sm:$0xff]
    %v182 = vld [vmem:[#allocation8 + $0x258] sm:$0xff]
    %v183 = vld [vmem:[#allocation8 + $0x260] sm:$0xff]
    %v184 = vld [vmem:[#allocation8 + $0x268] sm:$0xff]
    %v185 = vld [vmem:[#allocation8 + $0x270] sm:$0xff]
    %v186 = vld [vmem:[#allocation8 + $0x278] sm:$0xff]
    %v187 = vld [vmem:[#allocation8 + $0x280] sm:$0xff]
    %v188 = vld [vmem:[#allocation8 + $0x288] sm:$0xff]
    %v189 = vld [vmem:[#allocation8 + $0x290] sm:$0xff]
    %v190 = vld [vmem:[#allocation8 + $0x298] sm:$0xff]
    %v191 = vld [vmem:[#allocation8 + $0x2a0] sm:$0xff]
    %v192 = vld [vmem:[#allocation8 + $0x2a8] sm:$0xff]
    %v193 = vld [vmem:[#allocation8 + $0x2b0] sm:$0xff]
    %v194 = vld [vmem:[#allocation8 + $0x2b8] sm:$0xff]
    %v195 = vld [vmem:[#allocation8 + $0x2c0] sm:$0xff]
    %v196 = vld [vmem:[#allocation8 + $0x2c8] sm:$0xff]
    %v197 = vld [vmem:[#allocation8 + $0x2d0] sm:$0xff]
    %v198 = vld [vmem:[#allocation8 + $0x2d8] sm:$0xff]
    %v199 = vld [vmem:[#allocation8 + $0x2e0] sm:$0xff]
    %v200 = vld [vmem:[#allocation8 + $0x2e8] sm:$0xff]
    %v201 = vld [vmem:[#allocation8 + $0x2f0] sm:$0xff]
    %v202 = vld [vmem:[#allocation8 + $0x2f8] sm:$0xff]
    %v203 = vld [vmem:[#allocation8 + $0x300] sm:$0xff]
    %v204 = vld [vmem:[#allocation8 + $0x308] sm:$0xff]
    %v205 = vld [vmem:[#allocation8 + $0x310] sm:$0xff]
    %v206 = vld [vmem:[#allocation8 + $0x318] sm:$0xff]
    %v207 = vld [vmem:[#allocation8 + $0x320] sm:$0xff]
    %v208 = vld [vmem:[#allocation8 + $0x328] sm:$0xff]
    %v209 = vld [vmem:[#allocation8 + $0x330] sm:$0xff]
    %v210 = vld [vmem:[#allocation8 + $0x338] sm:$0xff]
    %v211 = vld [vmem:[#allocation8 + $0x340] sm:$0xff]
    %v212 = vld [vmem:[#allocation8 + $0x348] sm:$0xff]
    %v213 = vld [vmem:[#allocation8 + $0x350] sm:$0xff]
    %v214 = vld [vmem:[#allocation8 + $0x358] sm:$0xff]
    %v215 = vld [vmem:[#allocation8 + $0x360] sm:$0xff]
    %v216 = vld [vmem:[#allocation8 + $0x368] sm:$0xff]
    %v217 = vld [vmem:[#allocation8 + $0x370] sm:$0xff]
    %v218 = vld [vmem:[#allocation8 + $0x378] sm:$0xff]
    %v219 = vld [vmem:[#allocation8 + $0x380] sm:$0xff]
    %v220 = vld [vmem:[#allocation8 + $0x388] sm:$0xff]
    %v221 = vld [vmem:[#allocation8 + $0x390] sm:$0xff]
    %v222 = vld [vmem:[#allocation8 + $0x398] sm:$0xff]
    %v223 = vld [vmem:[#allocation8 + $0x3a0] sm:$0xff]
    %v224 = vld [vmem:[#allocation8 + $0x3a8] sm:$0xff]
    %v225 = vld [vmem:[#allocation8 + $0x3b0] sm:$0xff]
    %v226 = vld [vmem:[#allocation8 + $0x3b8] sm:$0xff]
    %v227 = vld [vmem:[#allocation8 + $0x3c0] sm:$0xff]
    %v228 = vld [vmem:[#allocation8 + $0x3c8] sm:$0xff]
    %v229 = vld [vmem:[#allocation8 + $0x3d0] sm:$0xff]
    %v230 = vld [vmem:[#allocation8 + $0x3d8] sm:$0xff]
    %v231 = vld [vmem:[#allocation8 + $0x3e0] sm:$0xff]
    %v232 = vld [vmem:[#allocation8 + $0x3e8] sm:$0xff]
    %v233 = vld [vmem:[#allocation8 + $0x3f0] sm:$0xff]
    %v234 = vld [vmem:[#allocation8 + $0x3f8] sm:$0xff]
    %v235 = vld [vmem:[#allocation8 + $0x400] sm:$0xff]
    %v236 = vld [vmem:[#allocation8 + $0x408] sm:$0xff]
    %v237 = vld [vmem:[#allocation8 + $0x410] sm:$0xff]
    %v238 = vld [vmem:[#allocation8 + $0x418] sm:$0xff]
    %v239 = vld [vmem:[#allocation8 + $0x420] sm:$0xff]
    %v240 = vld [vmem:[#allocation8 + $0x428] sm:$0xff]
    %v241 = vld [vmem:[#allocation8 + $0x430] sm:$0xff]
    %v242 = vld [vmem:[#allocation8 + $0x438] sm:$0xff]
    %v243 = vld [vmem:[#allocation8 + $0x440] sm:$0xff]
    %v244 = vld [vmem:[#allocation8 + $0x448] sm:$0xff]
    %v245 = vld [vmem:[#allocation8 + $0x450] sm:$0xff]
    %v246 = vld [vmem:[#allocation8 + $0x458] sm:$0xff]
    %v247 = vld [vmem:[#allocation8 + $0x460] sm:$0xff]
    %v248 = vld [vmem:[#allocation8 + $0x468] sm:$0xff]
    %v249 = vld [vmem:[#allocation8 + $0x470] sm:$0xff]
    %v250 = vld [vmem:[#allocation8 + $0x478] sm:$0xff]
    %v251 = vld [vmem:[#allocation8 + $0x480] sm:$0xff]
    %v252 = vld [vmem:[#allocation8 + $0x488] sm:$0xff]
    %v253 = vld [vmem:[#allocation8 + $0x490] sm:$0xff]
    %v254 = vld [vmem:[#allocation8 + $0x498] sm:$0xff]
    %v255 = vld [vmem:[#allocation8 + $0x4a0] sm:$0xff]
    %v256 = vld [vmem:[#allocation8 + $0x4a8] sm:$0xff]
    %v257 = vld [vmem:[#allocation8 + $0x4b0] sm:$0xff]
    %v258 = vld [vmem:[#allocation8 + $0x4b8] sm:$0xff]
    %v259 = vld [vmem:[#allocation8 + $0x4c0] sm:$0xff]
    %v260 = vld [vmem:[#allocation8 + $0x4c8] sm:$0xff]
    %v261 = vld [vmem:[#allocation8 + $0x4d0] sm:$0xff]
    %v262 = vld [vmem:[#allocation8 + $0x4d8] sm:$0xff]
    %v263 = vld [vmem:[#allocation8 + $0x4e0] sm:$0xff]
    %v264 = vld [vmem:[#allocation8 + $0x4e8] sm:$0xff]
    %v265 = vld [vmem:[#allocation8 + $0x4f0] sm:$0xff]
    %v266 = vld [vmem:[#allocation8 + $0x4f8] sm:$0xff]
    %v267 = vld [vmem:[#allocation8 + $0x500] sm:$0xff]
    %v268 = vld [vmem:[#allocation8 + $0x508] sm:$0xff]
    %v269 = vld [vmem:[#allocation8 + $0x510] sm:$0xff]
    %v270 = vld [vmem:[#allocation8 + $0x518] sm:$0xff]
    %v271 = vld [vmem:[#allocation8 + $0x520] sm:$0xff]
    %v272 = vld [vmem:[#allocation8 + $0x528] sm:$0xff]
    %v273 = vld [vmem:[#allocation8 + $0x530] sm:$0xff]
    %v274 = vld [vmem:[#allocation8 + $0x538] sm:$0xff]
    %v275 = vld [vmem:[#allocation8 + $0x540] sm:$0xff]
    %v276 = vld [vmem:[#allocation8 + $0x548] sm:$0xff]
    %v277 = vld [vmem:[#allocation8 + $0x550] sm:$0xff]
    %v278 = vld [vmem:[#allocation8 + $0x558] sm:$0xff]
    %v279 = vld [vmem:[#allocation8 + $0x560] sm:$0xff]
    %v280 = vld [vmem:[#allocation8 + $0x568] sm:$0xff]
    %v281 = vld [vmem:[#allocation8 + $0x570] sm:$0xff]
    %v282 = vld [vmem:[#allocation8 + $0x578] sm:$0xff]
    %v283 = vld [vmem:[#allocation8 + $0x580] sm:$0xff]
    %v284 = vld [vmem:[#allocation8 + $0x588] sm:$0xff]
    %v285 = vld [vmem:[#allocation8 + $0x590] sm:$0xff]
    %v286 = vld [vmem:[#allocation8 + $0x598] sm:$0xff]
    %v287 = vld [vmem:[#allocation8 + $0x5a0] sm:$0xff]
    %v288 = vld [vmem:[#allocation8 + $0x5a8] sm:$0xff]
    %v289 = vld [vmem:[#allocation8 + $0x5b0] sm:$0xff]
    %v290 = vld [vmem:[#allocation8 + $0x5b8] sm:$0xff]
    %v291 = vld [vmem:[#allocation8 + $0x5c0] sm:$0xff]
    %v292 = vld [vmem:[#allocation8 + $0x5c8] sm:$0xff]
    %v293 = vld [vmem:[#allocation8 + $0x5d0] sm:$0xff]
    %v294 = vld [vmem:[#allocation8 + $0x5d8] sm:$0xff]
    %v295 = vld [vmem:[#allocation8 + $0x5e0] sm:$0xff]
    %v296 = vld [vmem:[#allocation8 + $0x5e8] sm:$0xff]
    %v297 = vld [vmem:[#allocation8 + $0x5f0] sm:$0xff]
    %v298 = vld [vmem:[#allocation8 + $0x5f8] sm:$0xff]
    %v299 = vld [vmem:[#allocation8 + $0x600] sm:$0xff]
    %v300 = vld [vmem:[#allocation8 + $0x608] sm:$0xff]
    %v301 = vld [vmem:[#allocation8 + $0x610] sm:$0xff]
    %v302 = vld [vmem:[#allocation8 + $0x618] sm:$0xff]
    %v303 = vld [vmem:[#allocation8 + $0x620] sm:$0xff]
    %v304 = vld [vmem:[#allocation8 + $0x628] sm:$0xff]
    %v305 = vld [vmem:[#allocation8 + $0x630] sm:$0xff]
    %v306 = vld [vmem:[#allocation8 + $0x638] sm:$0xff]
    %v307 = vld [vmem:[#allocation8 + $0x640] sm:$0xff]
    %v308 = vld [vmem:[#allocation8 + $0x648] sm:$0xff]
    %v309 = vld [vmem:[#allocation8 + $0x650] sm:$0xff]
    %v310 = vld [vmem:[#allocation8 + $0x658] sm:$0xff]
    %v311 = vld [vmem:[#allocation8 + $0x660] sm:$0xff]
    %v312 = vld [vmem:[#allocation8 + $0x668] sm:$0xff]
    %v313 = vld [vmem:[#allocation8 + $0x670] sm:$0xff]
    %v314 = vld [vmem:[#allocation8 + $0x678] sm:$0xff]
    %v315 = vld [vmem:[#allocation8 + $0x680] sm:$0xff]
    %v316 = vld [vmem:[#allocation8 + $0x688] sm:$0xff]
    %v317 = vld [vmem:[#allocation8 + $0x690] sm:$0xff]
    %v318 = vld [vmem:[#allocation8 + $0x698] sm:$0xff]
    %v319 = vld [vmem:[#allocation8 + $0x6a0] sm:$0xff]
    %v320 = vld [vmem:[#allocation8 + $0x6a8] sm:$0xff]
    %v321 = vld [vmem:[#allocation8 + $0x6b0] sm:$0xff]
    %v322 = vld [vmem:[#allocation8 + $0x6b8] sm:$0xff]
    %v323 = vld [vmem:[#allocation8 + $0x6c0] sm:$0xff]
    %v324 = vld [vmem:[#allocation8 + $0x6c8] sm:$0xff]
    %v325 = vld [vmem:[#allocation8 + $0x6d0] sm:$0xff]
    %v326 = vld [vmem:[#allocation8 + $0x6d8] sm:$0xff]
    %v327 = vld [vmem:[#allocation8 + $0x6e0] sm:$0xff]
    %v328 = vld [vmem:[#allocation8 + $0x6e8] sm:$0xff]
    %v329 = vld [vmem:[#allocation8 + $0x6f0] sm:$0xff]
    %v330 = vld [vmem:[#allocation8 + $0x6f8] sm:$0xff]
    %v331 = vld [vmem:[#allocation8 + $0x700] sm:$0xff]
    %v332 = vld [vmem:[#allocation8 + $0x708] sm:$0xff]
    %v333 = vld [vmem:[#allocation8 + $0x710] sm:$0xff]
    %v334 = vld [vmem:[#allocation8 + $0x718] sm:$0xff]
    %v335 = vld [vmem:[#allocation10] sm:$0xff]
    %v336 = vld [vmem:[#allocation10 + $0x8] sm:$0xf]
    %v339 = vlaneseq
    %v340 = vshrl.u32 %v339, 7
    %v341 = vsub.s32 0, %v340
    %v342 = vrot.slane %v335, %v341
    %v343 = vlaneseq
    %v344 = vshrl.u32 %v343, 7
    %v345 = vsub.s32 1, %v344
    %v346 = vrot.slane %v335, %v345
    %v347 = vlaneseq
    %v348 = vshrl.u32 %v347, 7
    %v349 = vsub.s32 2, %v348
    %v350 = vrot.slane %v335, %v349
    %v351 = vlaneseq
    %v352 = vshrl.u32 %v351, 7
    %v353 = vsub.s32 3, %v352
    %v354 = vrot.slane %v335, %v353
    %v355 = vlaneseq
    %v356 = vshrl.u32 %v355, 7
    %v357 = vsub.s32 4, %v356
    %v358 = vrot.slane %v335, %v357
    %v359 = vlaneseq
    %v360 = vshrl.u32 %v359, 7
    %v361 = vsub.s32 5, %v360
    %v362 = vrot.slane %v335, %v361
    %v363 = vlaneseq
    %v364 = vshrl.u32 %v363, 7
    %v365 = vsub.s32 6, %v364
    %v366 = vrot.slane %v335, %v365
    %v367 = vlaneseq
    %v368 = vshrl.u32 %v367, 7
    %v369 = vsub.s32 7, %v368
    %v370 = vrot.slane %v335, %v369
    %v371 = vlaneseq
    %v372 = vshrl.u32 %v371, 7
    %v373 = vsub.s32 0, %v372
    %v374 = vrot.slane %v336, %v373
    %v375 = vlaneseq
    %v376 = vshrl.u32 %v375, 7
    %v377 = vsub.s32 1, %v376
    %v378 = vrot.slane %v336, %v377
    %v379 = vlaneseq
    %v380 = vshrl.u32 %v379, 7
    %v381 = vsub.s32 2, %v380
    %v382 = vrot.slane %v336, %v381
    %v383 = vlaneseq
    %v384 = vshrl.u32 %v383, 7
    %v385 = vsub.s32 3, %v384
    %v386 = vrot.slane %v336, %v385
    %v415 = vunpack.c.l.b16 %v91
    %v416 = vunpack.c.h.b16 %v91
    %v417 = vunpack.c.l.b16 %v92
    %v418 = vunpack.c.l.b16 %v93
    %v419 = vunpack.c.h.b16 %v93
    %v420 = vunpack.c.l.b16 %v94
    %v421 = vunpack.c.l.b16 %v95
    %v422 = vunpack.c.h.b16 %v95
    %v423 = vunpack.c.l.b16 %v96
    %v424 = vunpack.c.l.b16 %v97
    %v425 = vunpack.c.h.b16 %v97
    %v426 = vunpack.c.l.b16 %v98
    %v427 = vunpack.c.l.b16 %v99
    %v428 = vunpack.c.h.b16 %v99
    %v429 = vunpack.c.l.b16 %v100
    %v430 = vunpack.c.l.b16 %v101
    %v431 = vunpack.c.h.b16 %v101
    %v432 = vunpack.c.l.b16 %v102
    %v433 = vunpack.c.l.b16 %v103
    %v434 = vunpack.c.h.b16 %v103
    %v435 = vunpack.c.l.b16 %v104
    %v436 = vunpack.c.l.b16 %v105
    %v437 = vunpack.c.h.b16 %v105
    %v438 = vunpack.c.l.b16 %v106
    %v439 = vpack.c.b16 %v418, %v415
    %v440 = vpack.c.b16 %v419, %v416
    %v441 = vpack.c.b16 %v420, %v417
    %v442 = vpack.c.b16 %v424, %v421
    %v443 = vpack.c.b16 %v425, %v422
    %v444 = vpack.c.b16 %v426, %v423
    %v445 = vpack.c.b16 %v430, %v427
    %v446 = vpack.c.b16 %v431, %v428
    %v447 = vpack.c.b16 %v432, %v429
    %v448 = vpack.c.b16 %v436, %v433
    %v449 = vpack.c.b16 %v437, %v434
    %v450 = vpack.c.b16 %v438, %v435
    %v687 = vunpack.c.l.b16 %v107
    %v688 = vunpack.c.h.b16 %v107
    %v689 = vunpack.c.l.b16 %v108
    %v690 = vunpack.c.h.b16 %v108
    %v691 = vunpack.c.l.b16 %v109
    %v692 = vunpack.c.h.b16 %v109
    %v693 = vunpack.c.l.b16 %v110
    %v694 = vunpack.c.h.b16 %v110
    %v695 = vunpack.c.l.b16 %v111
    %v696 = vunpack.c.h.b16 %v111
    %v697 = vunpack.c.l.b16 %v112
    %v698 = vunpack.c.h.b16 %v112
    %v699 = vunpack.c.l.b16 %v113
    %v700 = vunpack.c.h.b16 %v113
    %v701 = vunpack.c.l.b16 %v114
    %v702 = vunpack.c.h.b16 %v114
    %v703 = vunpack.c.l.b16 %v115
    %v704 = vunpack.c.h.b16 %v115
    %v705 = vunpack.c.l.b16 %v116
    %v706 = vunpack.c.h.b16 %v116
    %v707 = vunpack.c.l.b16 %v117
    %v708 = vunpack.c.h.b16 %v117
    %v709 = vunpack.c.l.b16 %v118
    %v710 = vunpack.c.h.b16 %v118
    %v711 = vunpack.c.l.b16 %v119
    %v712 = vunpack.c.h.b16 %v119
    %v713 = vunpack.c.l.b16 %v120
    %v714 = vunpack.c.h.b16 %v120
    %v715 = vunpack.c.l.b16 %v121
    %v716 = vunpack.c.h.b16 %v121
    %v717 = vunpack.c.l.b16 %v122
    %v718 = vunpack.c.h.b16 %v122
    %v719 = vunpack.c.l.b16 %v123
    %v720 = vunpack.c.h.b16 %v123
    %v721 = vunpack.c.l.b16 %v124
    %v722 = vunpack.c.h.b16 %v124
    %v723 = vunpack.c.l.b16 %v125
    %v724 = vunpack.c.h.b16 %v125
    %v725 = vunpack.c.l.b16 %v126
    %v726 = vunpack.c.h.b16 %v126
    %v727 = vunpack.c.l.b16 %v127
    %v728 = vunpack.c.h.b16 %v127
    %v729 = vunpack.c.l.b16 %v128
    %v730 = vunpack.c.h.b16 %v128
    %v731 = vunpack.c.l.b16 %v129
    %v732 = vunpack.c.h.b16 %v129
    %v733 = vunpack.c.l.b16 %v130
    %v734 = vunpack.c.h.b16 %v130
    %v735 = vunpack.c.l.b16 %v131
    %v736 = vunpack.c.h.b16 %v131
    %v737 = vunpack.c.l.b16 %v132
    %v738 = vunpack.c.h.b16 %v132
    %v739 = vunpack.c.l.b16 %v133
    %v740 = vunpack.c.h.b16 %v133
    %v741 = vunpack.c.l.b16 %v134
    %v742 = vunpack.c.h.b16 %v134
    %v743 = vunpack.c.l.b16 %v135
    %v744 = vunpack.c.h.b16 %v135
    %v745 = vunpack.c.l.b16 %v136
    %v746 = vunpack.c.h.b16 %v136
    %v747 = vunpack.c.l.b16 %v137
    %v748 = vunpack.c.h.b16 %v137
    %v749 = vunpack.c.l.b16 %v138
    %v750 = vunpack.c.h.b16 %v138
    %v751 = vunpack.c.l.b16 %v139
    %v752 = vunpack.c.h.b16 %v139
    %v753 = vunpack.c.l.b16 %v140
    %v754 = vunpack.c.h.b16 %v140
    %v755 = vunpack.c.l.b16 %v141
    %v756 = vunpack.c.h.b16 %v141
    %v757 = vunpack.c.l.b16 %v142
    %v758 = vunpack.c.h.b16 %v142
    %v759 = vunpack.c.l.b16 %v143
    %v760 = vunpack.c.h.b16 %v143
    %v761 = vunpack.c.l.b16 %v144
    %v762 = vunpack.c.h.b16 %v144
    %v763 = vunpack.c.l.b16 %v145
    %v764 = vunpack.c.h.b16 %v145
    %v765 = vunpack.c.l.b16 %v146
    %v766 = vunpack.c.h.b16 %v146
    %v767 = vunpack.c.l.b16 %v147
    %v768 = vunpack.c.h.b16 %v147
    %v769 = vunpack.c.l.b16 %v148
    %v770 = vunpack.c.h.b16 %v148
    %v771 = vunpack.c.l.b16 %v149
    %v772 = vunpack.c.h.b16 %v149
    %v773 = vunpack.c.l.b16 %v150
    %v774 = vunpack.c.h.b16 %v150
    %v775 = vunpack.c.l.b16 %v151
    %v776 = vunpack.c.h.b16 %v151
    %v777 = vunpack.c.l.b16 %v152
    %v778 = vunpack.c.h.b16 %v152
    %v779 = vunpack.c.l.b16 %v153
    %v780 = vunpack.c.h.b16 %v153
    %v781 = vunpack.c.l.b16 %v154
    %v782 = vunpack.c.h.b16 %v154
    %v783 = vunpack.c.l.b16 %v155
    %v784 = vunpack.c.h.b16 %v155
    %v785 = vunpack.c.l.b16 %v156
    %v786 = vunpack.c.h.b16 %v156
    %v787 = vunpack.c.l.b16 %v157
    %v788 = vunpack.c.h.b16 %v157
    %v789 = vunpack.c.l.b16 %v158
    %v790 = vunpack.c.h.b16 %v158
    %v791 = vunpack.c.l.b16 %v159
    %v792 = vunpack.c.h.b16 %v159
    %v793 = vunpack.c.l.b16 %v160
    %v794 = vunpack.c.h.b16 %v160
    %v795 = vunpack.c.l.b16 %v161
    %v796 = vunpack.c.h.b16 %v161
    %v797 = vunpack.c.l.b16 %v162
    %v798 = vunpack.c.h.b16 %v162
    %v799 = vunpack.c.l.b16 %v163
    %v800 = vunpack.c.h.b16 %v163
    %v801 = vunpack.c.l.b16 %v164
    %v802 = vunpack.c.h.b16 %v164
    %v803 = vunpack.c.l.b16 %v165
    %v804 = vunpack.c.h.b16 %v165
    %v805 = vunpack.c.l.b16 %v166
    %v806 = vunpack.c.h.b16 %v166
    %v807 = vunpack.c.l.b16 %v167
    %v808 = vunpack.c.h.b16 %v167
    %v809 = vunpack.c.l.b16 %v168
    %v810 = vunpack.c.h.b16 %v168
    %v811 = vunpack.c.l.b16 %v169
    %v812 = vunpack.c.h.b16 %v169
    %v813 = vunpack.c.l.b16 %v170
    %v814 = vunpack.c.h.b16 %v170
    %v815 = vunpack.c.l.b16 %v171
    %v816 = vunpack.c.h.b16 %v171
    %v817 = vunpack.c.l.b16 %v172
    %v818 = vunpack.c.h.b16 %v172
    %v819 = vunpack.c.l.b16 %v173
    %v820 = vunpack.c.h.b16 %v173
    %v821 = vunpack.c.l.b16 %v174
    %v822 = vunpack.c.h.b16 %v174
    %v823 = vunpack.c.l.b16 %v175
    %v824 = vunpack.c.h.b16 %v175
    %v825 = vunpack.c.l.b16 %v176
    %v826 = vunpack.c.h.b16 %v176
    %v827 = vunpack.c.l.b16 %v177
    %v828 = vunpack.c.h.b16 %v177
    %v829 = vunpack.c.l.b16 %v178
    %v830 = vunpack.c.h.b16 %v178
    %v831 = vunpack.c.l.b16 %v179
    %v832 = vunpack.c.h.b16 %v179
    %v833 = vunpack.c.l.b16 %v180
    %v834 = vunpack.c.h.b16 %v180
    %v835 = vunpack.c.l.b16 %v181
    %v836 = vunpack.c.h.b16 %v181
    %v837 = vunpack.c.l.b16 %v182
    %v838 = vunpack.c.h.b16 %v182
    %v839 = vunpack.c.l.b16 %v183
    %v840 = vunpack.c.h.b16 %v183
    %v841 = vunpack.c.l.b16 %v184
    %v842 = vunpack.c.h.b16 %v184
    %v843 = vunpack.c.l.b16 %v185
    %v844 = vunpack.c.h.b16 %v185
    %v845 = vunpack.c.l.b16 %v186
    %v846 = vunpack.c.h.b16 %v186
    %v847 = vunpack.c.l.b16 %v187
    %v848 = vunpack.c.h.b16 %v187
    %v849 = vunpack.c.l.b16 %v188
    %v850 = vunpack.c.h.b16 %v188
    %v851 = vunpack.c.l.b16 %v189
    %v852 = vunpack.c.h.b16 %v189
    %v853 = vunpack.c.l.b16 %v190
    %v854 = vunpack.c.h.b16 %v190
    %v855 = vunpack.c.l.b16 %v191
    %v856 = vunpack.c.h.b16 %v191
    %v857 = vunpack.c.l.b16 %v192
    %v858 = vunpack.c.h.b16 %v192
    %v859 = vunpack.c.l.b16 %v193
    %v860 = vunpack.c.h.b16 %v193
    %v861 = vunpack.c.l.b16 %v194
    %v862 = vunpack.c.h.b16 %v194
    %v863 = vunpack.c.l.b16 %v195
    %v864 = vunpack.c.h.b16 %v195
    %v865 = vunpack.c.l.b16 %v196
    %v866 = vunpack.c.h.b16 %v196
    %v867 = vunpack.c.l.b16 %v197
    %v868 = vunpack.c.h.b16 %v197
    %v869 = vunpack.c.l.b16 %v198
    %v870 = vunpack.c.h.b16 %v198
    %v871 = vunpack.c.l.b16 %v199
    %v872 = vunpack.c.h.b16 %v199
    %v873 = vunpack.c.l.b16 %v200
    %v874 = vunpack.c.h.b16 %v200
    %v875 = vunpack.c.l.b16 %v201
    %v876 = vunpack.c.h.b16 %v201
    %v877 = vunpack.c.l.b16 %v202
    %v878 = vunpack.c.h.b16 %v202
    %v879 = vunpack.c.l.b16 %v203
    %v880 = vunpack.c.h.b16 %v203
    %v881 = vunpack.c.l.b16 %v204
    %v882 = vunpack.c.h.b16 %v204
    %v883 = vunpack.c.l.b16 %v205
    %v884 = vunpack.c.h.b16 %v205
    %v885 = vunpack.c.l.b16 %v206
    %v886 = vunpack.c.h.b16 %v206
    %v887 = vunpack.c.l.b16 %v207
    %v888 = vunpack.c.h.b16 %v207
    %v889 = vunpack.c.l.b16 %v208
    %v890 = vunpack.c.h.b16 %v208
    %v891 = vunpack.c.l.b16 %v209
    %v892 = vunpack.c.h.b16 %v209
    %v893 = vunpack.c.l.b16 %v210
    %v894 = vunpack.c.h.b16 %v210
    %v895 = vunpack.c.l.b16 %v211
    %v896 = vunpack.c.h.b16 %v211
    %v897 = vunpack.c.l.b16 %v212
    %v898 = vunpack.c.h.b16 %v212
    %v899 = vunpack.c.l.b16 %v213
    %v900 = vunpack.c.h.b16 %v213
    %v901 = vunpack.c.l.b16 %v214
    %v902 = vunpack.c.h.b16 %v214
    %v903 = vunpack.c.l.b16 %v215
    %v904 = vunpack.c.h.b16 %v215
    %v905 = vunpack.c.l.b16 %v216
    %v906 = vunpack.c.h.b16 %v216
    %v907 = vunpack.c.l.b16 %v217
    %v908 = vunpack.c.h.b16 %v217
    %v909 = vunpack.c.l.b16 %v218
    %v910 = vunpack.c.h.b16 %v218
    %v911 = vunpack.c.l.b16 %v219
    %v912 = vunpack.c.h.b16 %v219
    %v913 = vunpack.c.l.b16 %v220
    %v914 = vunpack.c.h.b16 %v220
    %v915 = vunpack.c.l.b16 %v221
    %v916 = vunpack.c.h.b16 %v221
    %v917 = vunpack.c.l.b16 %v222
    %v918 = vunpack.c.h.b16 %v222
    %v919 = vunpack.c.l.b16 %v223
    %v920 = vunpack.c.h.b16 %v223
    %v921 = vunpack.c.l.b16 %v224
    %v922 = vunpack.c.h.b16 %v224
    %v923 = vunpack.c.l.b16 %v225
    %v924 = vunpack.c.h.b16 %v225
    %v925 = vunpack.c.l.b16 %v226
    %v926 = vunpack.c.h.b16 %v226
    %v927 = vunpack.c.l.b16 %v227
    %v928 = vunpack.c.h.b16 %v227
    %v929 = vunpack.c.l.b16 %v228
    %v930 = vunpack.c.h.b16 %v228
    %v931 = vunpack.c.l.b16 %v229
    %v932 = vunpack.c.h.b16 %v229
    %v933 = vunpack.c.l.b16 %v230
    %v934 = vunpack.c.h.b16 %v230
    %v935 = vunpack.c.l.b16 %v231
    %v936 = vunpack.c.h.b16 %v231
    %v937 = vunpack.c.l.b16 %v232
    %v938 = vunpack.c.h.b16 %v232
    %v939 = vunpack.c.l.b16 %v233
    %v940 = vunpack.c.h.b16 %v233
    %v941 = vunpack.c.l.b16 %v234
    %v942 = vunpack.c.h.b16 %v234
    %v943 = vunpack.c.l.b16 %v235
    %v944 = vunpack.c.h.b16 %v235
    %v945 = vunpack.c.l.b16 %v236
    %v946 = vunpack.c.h.b16 %v236
    %v947 = vunpack.c.l.b16 %v237
    %v948 = vunpack.c.h.b16 %v237
    %v949 = vunpack.c.l.b16 %v238
    %v950 = vunpack.c.h.b16 %v238
    %v951 = vunpack.c.l.b16 %v239
    %v952 = vunpack.c.h.b16 %v239
    %v953 = vunpack.c.l.b16 %v240
    %v954 = vunpack.c.h.b16 %v240
    %v955 = vunpack.c.l.b16 %v241
    %v956 = vunpack.c.h.b16 %v241
    %v957 = vunpack.c.l.b16 %v242
    %v958 = vunpack.c.h.b16 %v242
    %v959 = vunpack.c.l.b16 %v243
    %v960 = vunpack.c.h.b16 %v243
    %v961 = vunpack.c.l.b16 %v244
    %v962 = vunpack.c.h.b16 %v244
    %v963 = vunpack.c.l.b16 %v245
    %v964 = vunpack.c.h.b16 %v245
    %v965 = vunpack.c.l.b16 %v246
    %v966 = vunpack.c.h.b16 %v246
    %v967 = vunpack.c.l.b16 %v247
    %v968 = vunpack.c.h.b16 %v247
    %v969 = vunpack.c.l.b16 %v248
    %v970 = vunpack.c.h.b16 %v248
    %v971 = vunpack.c.l.b16 %v249
    %v972 = vunpack.c.h.b16 %v249
    %v973 = vunpack.c.l.b16 %v250
    %v974 = vunpack.c.h.b16 %v250
    %v975 = vunpack.c.l.b16 %v251
    %v976 = vunpack.c.h.b16 %v251
    %v977 = vunpack.c.l.b16 %v252
    %v978 = vunpack.c.h.b16 %v252
    %v979 = vunpack.c.l.b16 %v253
    %v980 = vunpack.c.h.b16 %v253
    %v981 = vunpack.c.l.b16 %v254
    %v982 = vunpack.c.h.b16 %v254
    %v983 = vunpack.c.l.b16 %v255
    %v984 = vunpack.c.h.b16 %v255
    %v985 = vunpack.c.l.b16 %v256
    %v986 = vunpack.c.h.b16 %v256
    %v987 = vunpack.c.l.b16 %v257
    %v988 = vunpack.c.h.b16 %v257
    %v989 = vunpack.c.l.b16 %v258
    %v990 = vunpack.c.h.b16 %v258
    %v991 = vunpack.c.l.b16 %v259
    %v992 = vunpack.c.h.b16 %v259
    %v993 = vunpack.c.l.b16 %v260
    %v994 = vunpack.c.h.b16 %v260
    %v995 = vunpack.c.l.b16 %v261
    %v996 = vunpack.c.h.b16 %v261
    %v997 = vunpack.c.l.b16 %v262
    %v998 = vunpack.c.h.b16 %v262
    %v999 = vunpack.c.l.b16 %v263
    %v1000 = vunpack.c.h.b16 %v263
    %v1001 = vunpack.c.l.b16 %v264
    %v1002 = vunpack.c.h.b16 %v264
    %v1003 = vunpack.c.l.b16 %v265
    %v1004 = vunpack.c.h.b16 %v265
    %v1005 = vunpack.c.l.b16 %v266
    %v1006 = vunpack.c.h.b16 %v266
    %v1007 = vunpack.c.l.b16 %v267
    %v1008 = vunpack.c.h.b16 %v267
    %v1009 = vunpack.c.l.b16 %v268
    %v1010 = vunpack.c.h.b16 %v268
    %v1011 = vunpack.c.l.b16 %v269
    %v1012 = vunpack.c.h.b16 %v269
    %v1013 = vunpack.c.l.b16 %v270
    %v1014 = vunpack.c.h.b16 %v270
    %v1015 = vunpack.c.l.b16 %v271
    %v1016 = vunpack.c.h.b16 %v271
    %v1017 = vunpack.c.l.b16 %v272
    %v1018 = vunpack.c.h.b16 %v272
    %v1019 = vunpack.c.l.b16 %v273
    %v1020 = vunpack.c.h.b16 %v273
    %v1021 = vunpack.c.l.b16 %v274
    %v1022 = vunpack.c.h.b16 %v274
    %v1023 = vunpack.c.l.b16 %v275
    %v1024 = vunpack.c.h.b16 %v275
    %v1025 = vunpack.c.l.b16 %v276
    %v1026 = vunpack.c.h.b16 %v276
    %v1027 = vunpack.c.l.b16 %v277
    %v1028 = vunpack.c.h.b16 %v277
    %v1029 = vunpack.c.l.b16 %v278
    %v1030 = vunpack.c.h.b16 %v278
    %v1031 = vunpack.c.l.b16 %v279
    %v1032 = vunpack.c.h.b16 %v279
    %v1033 = vunpack.c.l.b16 %v280
    %v1034 = vunpack.c.h.b16 %v280
    %v1035 = vunpack.c.l.b16 %v281
    %v1036 = vunpack.c.h.b16 %v281
    %v1037 = vunpack.c.l.b16 %v282
    %v1038 = vunpack.c.h.b16 %v282
    %v1039 = vunpack.c.l.b16 %v283
    %v1040 = vunpack.c.h.b16 %v283
    %v1041 = vunpack.c.l.b16 %v284
    %v1042 = vunpack.c.h.b16 %v284
    %v1043 = vunpack.c.l.b16 %v285
    %v1044 = vunpack.c.h.b16 %v285
    %v1045 = vunpack.c.l.b16 %v286
    %v1046 = vunpack.c.h.b16 %v286
    %v1047 = vunpack.c.l.b16 %v287
    %v1048 = vunpack.c.h.b16 %v287
    %v1049 = vunpack.c.l.b16 %v288
    %v1050 = vunpack.c.h.b16 %v288
    %v1051 = vunpack.c.l.b16 %v289
    %v1052 = vunpack.c.h.b16 %v289
    %v1053 = vunpack.c.l.b16 %v290
    %v1054 = vunpack.c.h.b16 %v290
    %v1055 = vunpack.c.l.b16 %v291
    %v1056 = vunpack.c.h.b16 %v291
    %v1057 = vunpack.c.l.b16 %v292
    %v1058 = vunpack.c.h.b16 %v292
    %v1059 = vunpack.c.l.b16 %v293
    %v1060 = vunpack.c.h.b16 %v293
    %v1061 = vunpack.c.l.b16 %v294
    %v1062 = vunpack.c.h.b16 %v294
    %v1063 = vunpack.c.l.b16 %v295
    %v1064 = vunpack.c.h.b16 %v295
    %v1065 = vunpack.c.l.b16 %v296
    %v1066 = vunpack.c.h.b16 %v296
    %v1067 = vunpack.c.l.b16 %v297
    %v1068 = vunpack.c.h.b16 %v297
    %v1069 = vunpack.c.l.b16 %v298
    %v1070 = vunpack.c.h.b16 %v298
    %v1071 = vunpack.c.l.b16 %v299
    %v1072 = vunpack.c.h.b16 %v299
    %v1073 = vunpack.c.l.b16 %v300
    %v1074 = vunpack.c.h.b16 %v300
    %v1075 = vunpack.c.l.b16 %v301
    %v1076 = vunpack.c.h.b16 %v301
    %v1077 = vunpack.c.l.b16 %v302
    %v1078 = vunpack.c.h.b16 %v302
    %v1079 = vunpack.c.l.b16 %v303
    %v1080 = vunpack.c.h.b16 %v303
    %v1081 = vunpack.c.l.b16 %v304
    %v1082 = vunpack.c.h.b16 %v304
    %v1083 = vunpack.c.l.b16 %v305
    %v1084 = vunpack.c.h.b16 %v305
    %v1085 = vunpack.c.l.b16 %v306
    %v1086 = vunpack.c.h.b16 %v306
    %v1087 = vunpack.c.l.b16 %v307
    %v1088 = vunpack.c.h.b16 %v307
    %v1089 = vunpack.c.l.b16 %v308
    %v1090 = vunpack.c.h.b16 %v308
    %v1091 = vunpack.c.l.b16 %v309
    %v1092 = vunpack.c.h.b16 %v309
    %v1093 = vunpack.c.l.b16 %v310
    %v1094 = vunpack.c.h.b16 %v310
    %v1095 = vunpack.c.l.b16 %v311
    %v1096 = vunpack.c.h.b16 %v311
    %v1097 = vunpack.c.l.b16 %v312
    %v1098 = vunpack.c.h.b16 %v312
    %v1099 = vunpack.c.l.b16 %v313
    %v1100 = vunpack.c.h.b16 %v313
    %v1101 = vunpack.c.l.b16 %v314
    %v1102 = vunpack.c.h.b16 %v314
    %v1103 = vunpack.c.l.b16 %v315
    %v1104 = vunpack.c.h.b16 %v315
    %v1105 = vunpack.c.l.b16 %v316
    %v1106 = vunpack.c.h.b16 %v316
    %v1107 = vunpack.c.l.b16 %v317
    %v1108 = vunpack.c.h.b16 %v317
    %v1109 = vunpack.c.l.b16 %v318
    %v1110 = vunpack.c.h.b16 %v318
    %v1111 = vunpack.c.l.b16 %v319
    %v1112 = vunpack.c.h.b16 %v319
    %v1113 = vunpack.c.l.b16 %v320
    %v1114 = vunpack.c.h.b16 %v320
    %v1115 = vunpack.c.l.b16 %v321
    %v1116 = vunpack.c.h.b16 %v321
    %v1117 = vunpack.c.l.b16 %v322
    %v1118 = vunpack.c.h.b16 %v322
    %v1119 = vunpack.c.l.b16 %v323
    %v1120 = vunpack.c.h.b16 %v323
    %v1121 = vunpack.c.l.b16 %v324
    %v1122 = vunpack.c.h.b16 %v324
    %v1123 = vunpack.c.l.b16 %v325
    %v1124 = vunpack.c.h.b16 %v325
    %v1125 = vunpack.c.l.b16 %v326
    %v1126 = vunpack.c.h.b16 %v326
    %v1127 = vunpack.c.l.b16 %v327
    %v1128 = vunpack.c.h.b16 %v327
    %v1129 = vunpack.c.l.b16 %v328
    %v1130 = vunpack.c.h.b16 %v328
    %v1131 = vunpack.c.l.b16 %v329
    %v1132 = vunpack.c.h.b16 %v329
    %v1133 = vunpack.c.l.b16 %v330
    %v1134 = vunpack.c.h.b16 %v330
    %v1135 = vunpack.c.l.b16 %v331
    %v1136 = vunpack.c.h.b16 %v331
    %v1137 = vunpack.c.l.b16 %v332
    %v1138 = vunpack.c.h.b16 %v332
    %v1139 = vunpack.c.l.b16 %v333
    %v1140 = vunpack.c.h.b16 %v333
    %v1141 = vunpack.c.l.b16 %v334
    %v1142 = vunpack.c.h.b16 %v334
    %v1143 = vpack.c.b16 %v699, %v687
    %v1144 = vpack.c.b16 %v700, %v688
    %v1145 = vpack.c.b16 %v701, %v689
    %v1146 = vpack.c.b16 %v702, %v690
    %v1147 = vpack.c.b16 %v703, %v691
    %v1148 = vpack.c.b16 %v704, %v692
    %v1149 = vpack.c.b16 %v705, %v693
    %v1150 = vpack.c.b16 %v706, %v694
    %v1151 = vpack.c.b16 %v707, %v695
    %v1152 = vpack.c.b16 %v708, %v696
    %v1153 = vpack.c.b16 %v709, %v697
    %v1154 = vpack.c.b16 %v710, %v698
    %v1155 = vpack.c.b16 %v723, %v711
    %v1156 = vpack.c.b16 %v724, %v712
    %v1157 = vpack.c.b16 %v725, %v713
    %v1158 = vpack.c.b16 %v726, %v714
    %v1159 = vpack.c.b16 %v727, %v715
    %v1160 = vpack.c.b16 %v728, %v716
    %v1161 = vpack.c.b16 %v729, %v717
    %v1162 = vpack.c.b16 %v730, %v718
    %v1163 = vpack.c.b16 %v731, %v719
    %v1164 = vpack.c.b16 %v732, %v720
    %v1165 = vpack.c.b16 %v733, %v721
    %v1166 = vpack.c.b16 %v734, %v722
    %v1167 = vpack.c.b16 %v747, %v735
    %v1168 = vpack.c.b16 %v748, %v736
    %v1169 = vpack.c.b16 %v749, %v737
    %v1170 = vpack.c.b16 %v750, %v738
    %v1171 = vpack.c.b16 %v751, %v739
    %v1172 = vpack.c.b16 %v752, %v740
    %v1173 = vpack.c.b16 %v753, %v741
    %v1174 = vpack.c.b16 %v754, %v742
    %v1175 = vpack.c.b16 %v755, %v743
    %v1176 = vpack.c.b16 %v756, %v744
    %v1177 = vpack.c.b16 %v757, %v745
    %v1178 = vpack.c.b16 %v758, %v746
    %v1179 = vpack.c.b16 %v771, %v759
    %v1180 = vpack.c.b16 %v772, %v760
    %v1181 = vpack.c.b16 %v773, %v761
    %v1182 = vpack.c.b16 %v774, %v762
    %v1183 = vpack.c.b16 %v775, %v763
    %v1184 = vpack.c.b16 %v776, %v764
    %v1185 = vpack.c.b16 %v777, %v765
    %v1186 = vpack.c.b16 %v778, %v766
    %v1187 = vpack.c.b16 %v779, %v767
    %v1188 = vpack.c.b16 %v780, %v768
    %v1189 = vpack.c.b16 %v781, %v769
    %v1190 = vpack.c.b16 %v782, %v770
    %v1191 = vpack.c.b16 %v795, %v783
    %v1192 = vpack.c.b16 %v796, %v784
    %v1193 = vpack.c.b16 %v797, %v785
    %v1194 = vpack.c.b16 %v798, %v786
    %v1195 = vpack.c.b16 %v799, %v787
    %v1196 = vpack.c.b16 %v800, %v788
    %v1197 = vpack.c.b16 %v801, %v789
    %v1198 = vpack.c.b16 %v802, %v790
    %v1199 = vpack.c.b16 %v803, %v791
    %v1200 = vpack.c.b16 %v804, %v792
    %v1201 = vpack.c.b16 %v805, %v793
    %v1202 = vpack.c.b16 %v806, %v794
    %v1203 = vpack.c.b16 %v819, %v807
    %v1204 = vpack.c.b16 %v820, %v808
    %v1205 = vpack.c.b16 %v821, %v809
    %v1206 = vpack.c.b16 %v822, %v810
    %v1207 = vpack.c.b16 %v823, %v811
    %v1208 = vpack.c.b16 %v824, %v812
    %v1209 = vpack.c.b16 %v825, %v813
    %v1210 = vpack.c.b16 %v826, %v814
    %v1211 = vpack.c.b16 %v827, %v815
    %v1212 = vpack.c.b16 %v828, %v816
    %v1213 = vpack.c.b16 %v829, %v817
    %v1214 = vpack.c.b16 %v830, %v818
    %v1215 = vpack.c.b16 %v843, %v831
    %v1216 = vpack.c.b16 %v844, %v832
    %v1217 = vpack.c.b16 %v845, %v833
    %v1218 = vpack.c.b16 %v846, %v834
    %v1219 = vpack.c.b16 %v847, %v835
    %v1220 = vpack.c.b16 %v848, %v836
    %v1221 = vpack.c.b16 %v849, %v837
    %v1222 = vpack.c.b16 %v850, %v838
    %v1223 = vpack.c.b16 %v851, %v839
    %v1224 = vpack.c.b16 %v852, %v840
    %v1225 = vpack.c.b16 %v853, %v841
    %v1226 = vpack.c.b16 %v854, %v842
    %v1227 = vpack.c.b16 %v867, %v855
    %v1228 = vpack.c.b16 %v868, %v856
    %v1229 = vpack.c.b16 %v869, %v857
    %v1230 = vpack.c.b16 %v870, %v858
    %v1231 = vpack.c.b16 %v871, %v859
    %v1232 = vpack.c.b16 %v872, %v860
    %v1233 = vpack.c.b16 %v873, %v861
    %v1234 = vpack.c.b16 %v874, %v862
    %v1235 = vpack.c.b16 %v875, %v863
    %v1236 = vpack.c.b16 %v876, %v864
    %v1237 = vpack.c.b16 %v877, %v865
    %v1238 = vpack.c.b16 %v878, %v866
    %v1239 = vpack.c.b16 %v891, %v879
    %v1240 = vpack.c.b16 %v892, %v880
    %v1241 = vpack.c.b16 %v893, %v881
    %v1242 = vpack.c.b16 %v894, %v882
    %v1243 = vpack.c.b16 %v895, %v883
    %v1244 = vpack.c.b16 %v896, %v884
    %v1245 = vpack.c.b16 %v897, %v885
    %v1246 = vpack.c.b16 %v898, %v886
    %v1247 = vpack.c.b16 %v899, %v887
    %v1248 = vpack.c.b16 %v900, %v888
    %v1249 = vpack.c.b16 %v901, %v889
    %v1250 = vpack.c.b16 %v902, %v890
    %v1251 = vpack.c.b16 %v915, %v903
    %v1252 = vpack.c.b16 %v916, %v904
    %v1253 = vpack.c.b16 %v917, %v905
    %v1254 = vpack.c.b16 %v918, %v906
    %v1255 = vpack.c.b16 %v919, %v907
    %v1256 = vpack.c.b16 %v920, %v908
    %v1257 = vpack.c.b16 %v921, %v909
    %v1258 = vpack.c.b16 %v922, %v910
    %v1259 = vpack.c.b16 %v923, %v911
    %v1260 = vpack.c.b16 %v924, %v912
    %v1261 = vpack.c.b16 %v925, %v913
    %v1262 = vpack.c.b16 %v926, %v914
    %v1263 = vpack.c.b16 %v939, %v927
    %v1264 = vpack.c.b16 %v940, %v928
    %v1265 = vpack.c.b16 %v941, %v929
    %v1266 = vpack.c.b16 %v942, %v930
    %v1267 = vpack.c.b16 %v943, %v931
    %v1268 = vpack.c.b16 %v944, %v932
    %v1269 = vpack.c.b16 %v945, %v933
    %v1270 = vpack.c.b16 %v946, %v934
    %v1271 = vpack.c.b16 %v947, %v935
    %v1272 = vpack.c.b16 %v948, %v936
    %v1273 = vpack.c.b16 %v949, %v937
    %v1274 = vpack.c.b16 %v950, %v938
    %v1275 = vpack.c.b16 %v963, %v951
    %v1276 = vpack.c.b16 %v964, %v952
    %v1277 = vpack.c.b16 %v965, %v953
    %v1278 = vpack.c.b16 %v966, %v954
    %v1279 = vpack.c.b16 %v967, %v955
    %v1280 = vpack.c.b16 %v968, %v956
    %v1281 = vpack.c.b16 %v969, %v957
    %v1282 = vpack.c.b16 %v970, %v958
    %v1283 = vpack.c.b16 %v971, %v959
    %v1284 = vpack.c.b16 %v972, %v960
    %v1285 = vpack.c.b16 %v973, %v961
    %v1286 = vpack.c.b16 %v974, %v962
    %v1287 = vpack.c.b16 %v987, %v975
    %v1288 = vpack.c.b16 %v988, %v976
    %v1289 = vpack.c.b16 %v989, %v977
    %v1290 = vpack.c.b16 %v990, %v978
    %v1291 = vpack.c.b16 %v991, %v979
    %v1292 = vpack.c.b16 %v992, %v980
    %v1293 = vpack.c.b16 %v993, %v981
    %v1294 = vpack.c.b16 %v994, %v982
    %v1295 = vpack.c.b16 %v995, %v983
    %v1296 = vpack.c.b16 %v996, %v984
    %v1297 = vpack.c.b16 %v997, %v985
    %v1298 = vpack.c.b16 %v998, %v986
    %v1299 = vpack.c.b16 %v1011, %v999
    %v1300 = vpack.c.b16 %v1012, %v1000
    %v1301 = vpack.c.b16 %v1013, %v1001
    %v1302 = vpack.c.b16 %v1014, %v1002
    %v1303 = vpack.c.b16 %v1015, %v1003
    %v1304 = vpack.c.b16 %v1016, %v1004
    %v1305 = vpack.c.b16 %v1017, %v1005
    %v1306 = vpack.c.b16 %v1018, %v1006
    %v1307 = vpack.c.b16 %v1019, %v1007
    %v1308 = vpack.c.b16 %v1020, %v1008
    %v1309 = vpack.c.b16 %v1021, %v1009
    %v1310 = vpack.c.b16 %v1022, %v1010
    %v1311 = vpack.c.b16 %v1035, %v1023
    %v1312 = vpack.c.b16 %v1036, %v1024
    %v1313 = vpack.c.b16 %v1037, %v1025
    %v1314 = vpack.c.b16 %v1038, %v1026
    %v1315 = vpack.c.b16 %v1039, %v1027
    %v1316 = vpack.c.b16 %v1040, %v1028
    %v1317 = vpack.c.b16 %v1041, %v1029
    %v1318 = vpack.c.b16 %v1042, %v1030
    %v1319 = vpack.c.b16 %v1043, %v1031
    %v1320 = vpack.c.b16 %v1044, %v1032
    %v1321 = vpack.c.b16 %v1045, %v1033
    %v1322 = vpack.c.b16 %v1046, %v1034
    %v1323 = vpack.c.b16 %v1059, %v1047
    %v1324 = vpack.c.b16 %v1060, %v1048
    %v1325 = vpack.c.b16 %v1061, %v1049
    %v1326 = vpack.c.b16 %v1062, %v1050
    %v1327 = vpack.c.b16 %v1063, %v1051
    %v1328 = vpack.c.b16 %v1064, %v1052
    %v1329 = vpack.c.b16 %v1065, %v1053
    %v1330 = vpack.c.b16 %v1066, %v1054
    %v1331 = vpack.c.b16 %v1067, %v1055
    %v1332 = vpack.c.b16 %v1068, %v1056
    %v1333 = vpack.c.b16 %v1069, %v1057
    %v1334 = vpack.c.b16 %v1070, %v1058
    %v1335 = vpack.c.b16 %v1083, %v1071
    %v1336 = vpack.c.b16 %v1084, %v1072
    %v1337 = vpack.c.b16 %v1085, %v1073
    %v1338 = vpack.c.b16 %v1086, %v1074
    %v1339 = vpack.c.b16 %v1087, %v1075
    %v1340 = vpack.c.b16 %v1088, %v1076
    %v1341 = vpack.c.b16 %v1089, %v1077
    %v1342 = vpack.c.b16 %v1090, %v1078
    %v1343 = vpack.c.b16 %v1091, %v1079
    %v1344 = vpack.c.b16 %v1092, %v1080
    %v1345 = vpack.c.b16 %v1093, %v1081
    %v1346 = vpack.c.b16 %v1094, %v1082
    %v1347 = vpack.c.b16 %v1107, %v1095
    %v1348 = vpack.c.b16 %v1108, %v1096
    %v1349 = vpack.c.b16 %v1109, %v1097
    %v1350 = vpack.c.b16 %v1110, %v1098
    %v1351 = vpack.c.b16 %v1111, %v1099
    %v1352 = vpack.c.b16 %v1112, %v1100
    %v1353 = vpack.c.b16 %v1113, %v1101
    %v1354 = vpack.c.b16 %v1114, %v1102
    %v1355 = vpack.c.b16 %v1115, %v1103
    %v1356 = vpack.c.b16 %v1116, %v1104
    %v1357 = vpack.c.b16 %v1117, %v1105
    %v1358 = vpack.c.b16 %v1118, %v1106
    %v1359 = vpack.c.b16 %v1131, %v1119
    %v1360 = vpack.c.b16 %v1132, %v1120
    %v1361 = vpack.c.b16 %v1133, %v1121
    %v1362 = vpack.c.b16 %v1134, %v1122
    %v1363 = vpack.c.b16 %v1135, %v1123
    %v1364 = vpack.c.b16 %v1136, %v1124
    %v1365 = vpack.c.b16 %v1137, %v1125
    %v1366 = vpack.c.b16 %v1138, %v1126
    %v1367 = vpack.c.b16 %v1139, %v1127
    %v1368 = vpack.c.b16 %v1140, %v1128
    %v1369 = vpack.c.b16 %v1141, %v1129
    %v1370 = vpack.c.b16 %v1142, %v1130
    %vm1599 = vcmask 392192
    %v1601 = vsel %vm1599, %v441, 0
    %v1604 = vsel %vm1599, %v444, 0
    %v1607 = vsel %vm1599, %v447, 0
    %v1610 = vsel %vm1599, %v450, 0
    %1612 = vmatprep.subr.bf16.mxu0 %v1144
    %1613 = vmatpush1.bf16.msra.mxu0 %v1143
    %1614 = vmatprep.subr.bf16.mxu0 %v1156
    %1615 = vmatpush1.bf16.msra.mxu0 %v1155
    %1616 = vmatprep.subr.bf16.mxu0 %v1168
    %1617 = vmatpush1.bf16.msra.mxu0 %v1167
    %1618 = vmatprep.subr.bf16.mxu0 %v1180
    %1619 = vmatpush1.bf16.msra.mxu0 %v1179
    %1620 = vmatprep.subr.bf16.mxu0 %v1192
    %1621 = vmatpush1.bf16.msra.mxu0 %v1191
    %1622 = vmatprep.subr.bf16.mxu0 %v1204
    %1623 = vmatpush1.bf16.msra.mxu0 %v1203
    %1624 = vmatprep.subr.bf16.mxu0 %v1216
    %1625 = vmatpush1.bf16.msra.mxu0 %v1215
    %1626 = vmatprep.subr.bf16.mxu0 %v1228
    %1627 = vmatpush1.bf16.msra.mxu0 %v1227
    %1628 = vmatprep.subr.bf16.mxu0 %v1240
    %1629 = vmatpush1.bf16.msra.mxu0 %v1239
    %1630 = vmatprep.subr.bf16.mxu0 %v1252
    %1631 = vmatpush1.bf16.msra.mxu0 %v1251
    %1632 = vmatprep.subr.bf16.mxu0 %v1264
    %1633 = vmatpush1.bf16.msra.mxu0 %v1263
    %1634 = vmatprep.subr.bf16.mxu0 %v1276
    %1635 = vmatpush1.bf16.msra.mxu0 %v1275
    %1636 = vmatprep.subr.bf16.mxu0 %v1288
    %1637 = vmatpush1.bf16.msra.mxu0 %v1287
    %1638 = vmatprep.subr.bf16.mxu0 %v1300
    %1639 = vmatpush1.bf16.msra.mxu0 %v1299
    %1640 = vmatprep.subr.bf16.mxu0 %v1312
    %1641 = vmatpush1.bf16.msra.mxu0 %v1311
    %1642 = vmatprep.subr.bf16.mxu0 %v1324
    %1643 = vmatpush1.bf16.msra.mxu0 %v1323
    %1644 = vmatprep.mubr.bf16.mxu0 %v440
    %1645 = vmatmul.mubr.bf16.gmra.mrb[0].mxu0 %v439
    %v1646 = vpop.f32.mrb[0].mxu0
    %v1647 = vadd.f32 %v342, %v1646
    %v1648 = vpop.f32.mrb[0].mxu0
    %v1649 = vadd.f32 %v346, %v1648
    %v1650 = vpop.f32.mrb[0].mxu0
    %v1651 = vadd.f32 %v342, %v1650
    %v1652 = vpop.f32.mrb[0].mxu0
    %v1653 = vadd.f32 %v346, %v1652
    %1654 = vmatprep.mubr.bf16.mxu0 %v443
    %1655 = vmatmul.mubr.bf16.gmra.mrb[0].mxu0 %v442
    %v1656 = vpop.f32.mrb[0].mxu0
    %v1657 = vadd.f32 %v342, %v1656
    %v1658 = vpop.f32.mrb[0].mxu0
    %v1659 = vadd.f32 %v346, %v1658
    %v1660 = vpop.f32.mrb[0].mxu0
    %v1661 = vadd.f32 %v342, %v1660
    %v1662 = vpop.f32.mrb[0].mxu0
    %v1663 = vadd.f32 %v346, %v1662
    %1664 = vmatprep.mubr.bf16.mxu0 %v446
    %1665 = vmatmul.mubr.bf16.gmra.mrb[0].mxu0 %v445
    %v1666 = vpop.f32.mrb[0].mxu0
    %v1667 = vadd.f32 %v342, %v1666
    %v1668 = vpop.f32.mrb[0].mxu0
    %v1669 = vadd.f32 %v346, %v1668
    %v1670 = vpop.f32.mrb[0].mxu0
    %v1671 = vadd.f32 %v342, %v1670
    %v1672 = vpop.f32.mrb[0].mxu0
    %v1673 = vadd.f32 %v346, %v1672
    %1674 = vmatprep.mubr.bf16.mxu0 %v449
    %1675 = vmatmul.mubr.bf16.gmra.mrb[0].mxu0 %v448
    %v1676 = vpop.f32.mrb[0].mxu0
    %v1677 = vadd.f32 %v342, %v1676
    %v1678 = vpop.f32.mrb[0].mxu0
    %v1679 = vadd.f32 %v346, %v1678
    %v1680 = vpop.f32.mrb[0].mxu0
    %v1681 = vadd.f32 %v342, %v1680
    %v1682 = vpop.f32.mrb[0].mxu0
    %v1683 = vadd.f32 %v346, %v1682
    %1684 = vdwg.mxu0
    %1685 = vmatprep.subr.bf16.mxu0 %v1336
    %1686 = vmatpush1.bf16.msra.mxu0 %v1335
    %1687 = vmatprep.subr.bf16.mxu0 %v1348
    %1688 = vmatpush1.bf16.msra.mxu0 %v1347
    %1689 = vmatprep.subr.bf16.mxu0 %v1360
    %1690 = vmatpush1.bf16.msra.mxu0 %v1359
    %1691 = vmatprep.subr.bf16.mxu0 0
    %1692 = vmatpush1.bf16.msra.mxu0 0
    %1693 = vmatprep.subr.bf16.mxu0 0
    %1694 = vmatpush1.bf16.msra.mxu0 0
    %1695 = vmatprep.subr.bf16.mxu0 0
    %1696 = vmatpush1.bf16.msra.mxu0 0
    %1697 = vmatprep.subr.bf16.mxu0 0
    %1698 = vmatpush1.bf16.msra.mxu0 0
    %1699 = vmatprep.subr.bf16.mxu0 0
    %1700 = vmatpush1.bf16.msra.mxu0 0
    %1701 = vmatprep.subr.bf16.mxu0 0
    %1702 = vmatpush1.bf16.msra.mxu0 0
    %1703 = vmatprep.subr.bf16.mxu0 0
    %1704 = vmatpush1.bf16.msra.mxu0 0
    %1705 = vmatprep.subr.bf16.mxu0 0
    %1706 = vmatpush1.bf16.msra.mxu0 0
    %1707 = vmatprep.subr.bf16.mxu0 0
    %1708 = vmatpush1.bf16.msra.mxu0 0
    %1709 = vmatprep.subr.bf16.mxu0 0
    %1710 = vmatpush1.bf16.msra.mxu0 0
    %1711 = vmatprep.subr.bf16.mxu0 0
    %1712 = vmatpush1.bf16.msra.mxu0 0
    %1713 = vmatprep.subr.bf16.mxu0 0
    %1714 = vmatpush1.bf16.msra.mxu0 0
    %1715 = vmatprep.subr.bf16.mxu0 0
    %1716 = vmatpush1.bf16.msra.mxu0 0
    %1717 = vmatprep.mubr.bf16.mxu0 0
    %1718 = vmatmul.mubr.bf16.gmra.mrb[0].mxu0 %v1601
    %v1719 = vpop.f32.mrb[0].mxu0
    %v1720 = vadd.f32 %v1647, %v1719
    %v1721 = vpop.f32.mrb[0].mxu0
    %v1722 = vadd.f32 %v1649, %v1721
    %v1723 = vpop.f32.mrb[0].mxu0
    %v1724 = vadd.f32 %v1651, %v1723
    %v1725 = vpop.f32.mrb[0].mxu0
    %v1726 = vadd.f32 %v1653, %v1725
    %1727 = vmatprep.mubr.bf16.mxu0 0
    %1728 = vmatmul.mubr.bf16.gmra.mrb[0].mxu0 %v1604
    %v1729 = vpop.f32.mrb[0].mxu0
    %v1730 = vadd.f32 %v1657, %v1729
    %v1731 = vpop.f32.mrb[0].mxu0
    %v1732 = vadd.f32 %v1659, %v1731
    %v1733 = vpop.f32.mrb[0].mxu0
    %v1734 = vadd.f32 %v1661, %v1733
    %v1735 = vpop.f32.mrb[0].mxu0
    %v1736 = vadd.f32 %v1663, %v1735
    %1737 = vmatprep.mubr.bf16.mxu0 0
    %1738 = vmatmul.mubr.bf16.gmra.mrb[0].mxu0 %v1607
    %v1739 = vpop.f32.mrb[0].mxu0
    %v1740 = vadd.f32 %v1667, %v1739
    %v1741 = vpop.f32.mrb[0].mxu0
    %v1742 = vadd.f32 %v1669, %v1741
    %v1743 = vpop.f32.mrb[0].mxu0
    %v1744 = vadd.f32 %v1671, %v1743
    %v1745 = vpop.f32.mrb[0].mxu0
    %v1746 = vadd.f32 %v1673, %v1745
    %1747 = vmatprep.mubr.bf16.mxu0 0
    %1748 = vmatmul.mubr.bf16.gmra.mrb[0].mxu0 %v1610
    %v1749 = vpop.f32.mrb[0].mxu0
    %v1750 = vadd.f32 %v1677, %v1749
    %v1751 = vpop.f32.mrb[0].mxu0
    %v1752 = vadd.f32 %v1679, %v1751
    %v1753 = vpop.f32.mrb[0].mxu0
    %v1754 = vadd.f32 %v1681, %v1753
    %v1755 = vpop.f32.mrb[0].mxu0
    %v1756 = vadd.f32 %v1683, %v1755
    %1757 = vdwg.mxu0
    %1758 = vmatprep.subr.bf16.mxu0 %v1146
    %1759 = vmatpush1.bf16.msra.mxu0 %v1145
    %1760 = vmatprep.subr.bf16.mxu0 %v1158
    %1761 = vmatpush1.bf16.msra.mxu0 %v1157
    %1762 = vmatprep.subr.bf16.mxu0 %v1170
    %1763 = vmatpush1.bf16.msra.mxu0 %v1169
    %1764 = vmatprep.subr.bf16.mxu0 %v1182
    %1765 = vmatpush1.bf16.msra.mxu0 %v1181
    %1766 = vmatprep.subr.bf16.mxu0 %v1194
    %1767 = vmatpush1.bf16.msra.mxu0 %v1193
    %1768 = vmatprep.subr.bf16.mxu0 %v1206
    %1769 = vmatpush1.bf16.msra.mxu0 %v1205
    %1770 = vmatprep.subr.bf16.mxu0 %v1218
    %1771 = vmatpush1.bf16.msra.mxu0 %v1217
    %1772 = vmatprep.subr.bf16.mxu0 %v1230
    %1773 = vmatpush1.bf16.msra.mxu0 %v1229
    %1774 = vmatprep.subr.bf16.mxu0 %v1242
    %1775 = vmatpush1.bf16.msra.mxu0 %v1241
    %1776 = vmatprep.subr.bf16.mxu0 %v1254
    %1777 = vmatpush1.bf16.msra.mxu0 %v1253
    %1778 = vmatprep.subr.bf16.mxu0 %v1266
    %1779 = vmatpush1.bf16.msra.mxu0 %v1265
    %1780 = vmatprep.subr.bf16.mxu0 %v1278
    %1781 = vmatpush1.bf16.msra.mxu0 %v1277
    %1782 = vmatprep.subr.bf16.mxu0 %v1290
    %1783 = vmatpush1.bf16.msra.mxu0 %v1289
    %1784 = vmatprep.subr.bf16.mxu0 %v1302
    %1785 = vmatpush1.bf16.msra.mxu0 %v1301
    %1786 = vmatprep.subr.bf16.mxu0 %v1314
    %1787 = vmatpush1.bf16.msra.mxu0 %v1313
    %1788 = vmatprep.subr.bf16.mxu0 %v1326
    %1789 = vmatpush1.bf16.msra.mxu0 %v1325
    %1790 = vmatprep.mubr.bf16.mxu0 %v440
    %1791 = vmatmul.mubr.bf16.gmra.mrb[0].mxu0 %v439
    %v1792 = vpop.f32.mrb[0].mxu0
    %v1793 = vadd.f32 %v350, %v1792
    %v1794 = vpop.f32.mrb[0].mxu0
    %v1795 = vadd.f32 %v354, %v1794
    %v1796 = vpop.f32.mrb[0].mxu0
    %v1797 = vadd.f32 %v350, %v1796
    %v1798 = vpop.f32.mrb[0].mxu0
    %v1799 = vadd.f32 %v354, %v1798
    %1800 = vmatprep.mubr.bf16.mxu0 %v443
    %1801 = vmatmul.mubr.bf16.gmra.mrb[0].mxu0 %v442
    %v1802 = vpop.f32.mrb[0].mxu0
    %v1803 = vadd.f32 %v350, %v1802
    %v1804 = vpop.f32.mrb[0].mxu0
    %v1805 = vadd.f32 %v354, %v1804
    %v1806 = vpop.f32.mrb[0].mxu0
    %v1807 = vadd.f32 %v350, %v1806
    %v1808 = vpop.f32.mrb[0].mxu0
    %v1809 = vadd.f32 %v354, %v1808
    %1810 = vmatprep.mubr.bf16.mxu0 %v446
    %1811 = vmatmul.mubr.bf16.gmra.mrb[0].mxu0 %v445
    %v1812 = vpop.f32.mrb[0].mxu0
    %v1813 = vadd.f32 %v350, %v1812
    %v1814 = vpop.f32.mrb[0].mxu0
    %v1815 = vadd.f32 %v354, %v1814
    %v1816 = vpop.f32.mrb[0].mxu0
    %v1817 = vadd.f32 %v350, %v1816
    %v1818 = vpop.f32.mrb[0].mxu0
    %v1819 = vadd.f32 %v354, %v1818
    %1820 = vmatprep.mubr.bf16.mxu0 %v449
    %1821 = vmatmul.mubr.bf16.gmra.mrb[0].mxu0 %v448
    %v1822 = vpop.f32.mrb[0].mxu0
    %v1823 = vadd.f32 %v350, %v1822
    %v1824 = vpop.f32.mrb[0].mxu0
    %v1825 = vadd.f32 %v354, %v1824
    %v1826 = vpop.f32.mrb[0].mxu0
    %v1827 = vadd.f32 %v350, %v1826
    %v1828 = vpop.f32.mrb[0].mxu0
    %v1829 = vadd.f32 %v354, %v1828
    %1830 = vdwg.mxu0
    %1831 = vmatprep.subr.bf16.mxu0 %v1338
    %1832 = vmatpush1.bf16.msra.mxu0 %v1337
    %1833 = vmatprep.subr.bf16.mxu0 %v1350
    %1834 = vmatpush1.bf16.msra.mxu0 %v1349
    %1835 = vmatprep.subr.bf16.mxu0 %v1362
    %1836 = vmatpush1.bf16.msra.mxu0 %v1361
    %1837 = vmatprep.subr.bf16.mxu0 0
    %1838 = vmatpush1.bf16.msra.mxu0 0
    %1839 = vmatprep.subr.bf16.mxu0 0
    %1840 = vmatpush1.bf16.msra.mxu0 0
    %1841 = vmatprep.subr.bf16.mxu0 0
    %1842 = vmatpush1.bf16.msra.mxu0 0
    %1843 = vmatprep.subr.bf16.mxu0 0
    %1844 = vmatpush1.bf16.msra.mxu0 0
    %1845 = vmatprep.subr.bf16.mxu0 0
    %1846 = vmatpush1.bf16.msra.mxu0 0
    %1847 = vmatprep.subr.bf16.mxu0 0
    %1848 = vmatpush1.bf16.msra.mxu0 0
    %1849 = vmatprep.subr.bf16.mxu0 0
    %1850 = vmatpush1.bf16.msra.mxu0 0
    %1851 = vmatprep.subr.bf16.mxu0 0
    %1852 = vmatpush1.bf16.msra.mxu0 0
    %1853 = vmatprep.subr.bf16.mxu0 0
    %1854 = vmatpush1.bf16.msra.mxu0 0
    %1855 = vmatprep.subr.bf16.mxu0 0
    %1856 = vmatpush1.bf16.msra.mxu0 0
    %1857 = vmatprep.subr.bf16.mxu0 0
    %1858 = vmatpush1.bf16.msra.mxu0 0
    %1859 = vmatprep.subr.bf16.mxu0 0
    %1860 = vmatpush1.bf16.msra.mxu0 0
    %1861 = vmatprep.subr.bf16.mxu0 0
    %1862 = vmatpush1.bf16.msra.mxu0 0
    %1863 = vmatprep.mubr.bf16.mxu0 0
    %1864 = vmatmul.mubr.bf16.gmra.mrb[0].mxu0 %v1601
    %v1865 = vpop.f32.mrb[0].mxu0
    %v1866 = vadd.f32 %v1793, %v1865
    %v1867 = vpop.f32.mrb[0].mxu0
    %v1868 = vadd.f32 %v1795, %v1867
    %v1869 = vpop.f32.mrb[0].mxu0
    %v1870 = vadd.f32 %v1797, %v1869
    %v1871 = vpop.f32.mrb[0].mxu0
    %v1872 = vadd.f32 %v1799, %v1871
    %1873 = vmatprep.mubr.bf16.mxu0 0
    %1874 = vmatmul.mubr.bf16.gmra.mrb[0].mxu0 %v1604
    %v1875 = vpop.f32.mrb[0].mxu0
    %v1876 = vadd.f32 %v1803, %v1875
    %v1877 = vpop.f32.mrb[0].mxu0
    %v1878 = vadd.f32 %v1805, %v1877
    %v1879 = vpop.f32.mrb[0].mxu0
    %v1880 = vadd.f32 %v1807, %v1879
    %v1881 = vpop.f32.mrb[0].mxu0
    %v1882 = vadd.f32 %v1809, %v1881
    %1883 = vmatprep.mubr.bf16.mxu0 0
    %1884 = vmatmul.mubr.bf16.gmra.mrb[0].mxu0 %v1607
    %v1885 = vpop.f32.mrb[0].mxu0
    %v1886 = vadd.f32 %v1813, %v1885
    %v1887 = vpop.f32.mrb[0].mxu0
    %v1888 = vadd.f32 %v1815, %v1887
    %v1889 = vpop.f32.mrb[0].mxu0
    %v1890 = vadd.f32 %v1817, %v1889
    %v1891 = vpop.f32.mrb[0].mxu0
    %v1892 = vadd.f32 %v1819, %v1891
    %1893 = vmatprep.mubr.bf16.mxu0 0
    %1894 = vmatmul.mubr.bf16.gmra.mrb[0].mxu0 %v1610
    %v1895 = vpop.f32.mrb[0].mxu0
    %v1896 = vadd.f32 %v1823, %v1895
    %v1897 = vpop.f32.mrb[0].mxu0
    %v1898 = vadd.f32 %v1825, %v1897
    %v1899 = vpop.f32.mrb[0].mxu0
    %v1900 = vadd.f32 %v1827, %v1899
    %v1901 = vpop.f32.mrb[0].mxu0
    %v1902 = vadd.f32 %v1829, %v1901
    %1903 = vdwg.mxu0
    %1904 = vmatprep.subr.bf16.mxu0 %v1148
    %1905 = vmatpush1.bf16.msra.mxu0 %v1147
    %1906 = vmatprep.subr.bf16.mxu0 %v1160
    %1907 = vmatpush1.bf16.msra.mxu0 %v1159
    %1908 = vmatprep.subr.bf16.mxu0 %v1172
    %1909 = vmatpush1.bf16.msra.mxu0 %v1171
    %1910 = vmatprep.subr.bf16.mxu0 %v1184
    %1911 = vmatpush1.bf16.msra.mxu0 %v1183
    %1912 = vmatprep.subr.bf16.mxu0 %v1196
    %1913 = vmatpush1.bf16.msra.mxu0 %v1195
    %1914 = vmatprep.subr.bf16.mxu0 %v1208
    %1915 = vmatpush1.bf16.msra.mxu0 %v1207
    %1916 = vmatprep.subr.bf16.mxu0 %v1220
    %1917 = vmatpush1.bf16.msra.mxu0 %v1219
    %1918 = vmatprep.subr.bf16.mxu0 %v1232
    %1919 = vmatpush1.bf16.msra.mxu0 %v1231
    %1920 = vmatprep.subr.bf16.mxu0 %v1244
    %1921 = vmatpush1.bf16.msra.mxu0 %v1243
    %1922 = vmatprep.subr.bf16.mxu0 %v1256
    %1923 = vmatpush1.bf16.msra.mxu0 %v1255
    %1924 = vmatprep.subr.bf16.mxu0 %v1268
    %1925 = vmatpush1.bf16.msra.mxu0 %v1267
    %1926 = vmatprep.subr.bf16.mxu0 %v1280
    %1927 = vmatpush1.bf16.msra.mxu0 %v1279
    %1928 = vmatprep.subr.bf16.mxu0 %v1292
    %1929 = vmatpush1.bf16.msra.mxu0 %v1291
    %1930 = vmatprep.subr.bf16.mxu0 %v1304
    %1931 = vmatpush1.bf16.msra.mxu0 %v1303
    %1932 = vmatprep.subr.bf16.mxu0 %v1316
    %1933 = vmatpush1.bf16.msra.mxu0 %v1315
    %1934 = vmatprep.subr.bf16.mxu0 %v1328
    %1935 = vmatpush1.bf16.msra.mxu0 %v1327
    %1936 = vmatprep.mubr.bf16.mxu0 %v440
    %1937 = vmatmul.mubr.bf16.gmra.mrb[0].mxu0 %v439
    %v1938 = vpop.f32.mrb[0].mxu0
    %v1939 = vadd.f32 %v358, %v1938
    %v1940 = vpop.f32.mrb[0].mxu0
    %v1941 = vadd.f32 %v362, %v1940
    %v1942 = vpop.f32.mrb[0].mxu0
    %v1943 = vadd.f32 %v358, %v1942
    %v1944 = vpop.f32.mrb[0].mxu0
    %v1945 = vadd.f32 %v362, %v1944
    %1946 = vmatprep.mubr.bf16.mxu0 %v443
    %1947 = vmatmul.mubr.bf16.gmra.mrb[0].mxu0 %v442
    %v1948 = vpop.f32.mrb[0].mxu0
    %v1949 = vadd.f32 %v358, %v1948
    %v1950 = vpop.f32.mrb[0].mxu0
    %v1951 = vadd.f32 %v362, %v1950
    %v1952 = vpop.f32.mrb[0].mxu0
    %v1953 = vadd.f32 %v358, %v1952
    %v1954 = vpop.f32.mrb[0].mxu0
    %v1955 = vadd.f32 %v362, %v1954
    %1956 = vmatprep.mubr.bf16.mxu0 %v446
    %1957 = vmatmul.mubr.bf16.gmra.mrb[0].mxu0 %v445
    %v1958 = vpop.f32.mrb[0].mxu0
    %v1959 = vadd.f32 %v358, %v1958
    %v1960 = vpop.f32.mrb[0].mxu0
    %v1961 = vadd.f32 %v362, %v1960
    %v1962 = vpop.f32.mrb[0].mxu0
    %v1963 = vadd.f32 %v358, %v1962
    %v1964 = vpop.f32.mrb[0].mxu0
    %v1965 = vadd.f32 %v362, %v1964
    %1966 = vmatprep.mubr.bf16.mxu0 %v449
    %1967 = vmatmul.mubr.bf16.gmra.mrb[0].mxu0 %v448
    %v1968 = vpop.f32.mrb[0].mxu0
    %v1969 = vadd.f32 %v358, %v1968
    %v1970 = vpop.f32.mrb[0].mxu0
    %v1971 = vadd.f32 %v362, %v1970
    %v1972 = vpop.f32.mrb[0].mxu0
    %v1973 = vadd.f32 %v358, %v1972
    %v1974 = vpop.f32.mrb[0].mxu0
    %v1975 = vadd.f32 %v362, %v1974
    %1976 = vdwg.mxu0
    %1977 = vmatprep.subr.bf16.mxu0 %v1340
    %1978 = vmatpush1.bf16.msra.mxu0 %v1339
    %1979 = vmatprep.subr.bf16.mxu0 %v1352
    %1980 = vmatpush1.bf16.msra.mxu0 %v1351
    %1981 = vmatprep.subr.bf16.mxu0 %v1364
    %1982 = vmatpush1.bf16.msra.mxu0 %v1363
    %1983 = vmatprep.subr.bf16.mxu0 0
    %1984 = vmatpush1.bf16.msra.mxu0 0
    %1985 = vmatprep.subr.bf16.mxu0 0
    %1986 = vmatpush1.bf16.msra.mxu0 0
    %1987 = vmatprep.subr.bf16.mxu0 0
    %1988 = vmatpush1.bf16.msra.mxu0 0
    %1989 = vmatprep.subr.bf16.mxu0 0
    %1990 = vmatpush1.bf16.msra.mxu0 0
    %1991 = vmatprep.subr.bf16.mxu0 0
    %1992 = vmatpush1.bf16.msra.mxu0 0
    %1993 = vmatprep.subr.bf16.mxu0 0
    %1994 = vmatpush1.bf16.msra.mxu0 0
    %1995 = vmatprep.subr.bf16.mxu0 0
    %1996 = vmatpush1.bf16.msra.mxu0 0
    %1997 = vmatprep.subr.bf16.mxu0 0
    %1998 = vmatpush1.bf16.msra.mxu0 0
    %1999 = vmatprep.subr.bf16.mxu0 0
    %2000 = vmatpush1.bf16.msra.mxu0 0
    %2001 = vmatprep.subr.bf16.mxu0 0
    %2002 = vmatpush1.bf16.msra.mxu0 0
    %2003 = vmatprep.subr.bf16.mxu0 0
    %2004 = vmatpush1.bf16.msra.mxu0 0
    %2005 = vmatprep.subr.bf16.mxu0 0
    %2006 = vmatpush1.bf16.msra.mxu0 0
    %2007 = vmatprep.subr.bf16.mxu0 0
    %2008 = vmatpush1.bf16.msra.mxu0 0
    %2009 = vmatprep.mubr.bf16.mxu0 0
    %2010 = vmatmul.mubr.bf16.gmra.mrb[0].mxu0 %v1601
    %v2011 = vpop.f32.mrb[0].mxu0
    %v2012 = vadd.f32 %v1939, %v2011
    %v2013 = vpop.f32.mrb[0].mxu0
    %v2014 = vadd.f32 %v1941, %v2013
    %v2015 = vpop.f32.mrb[0].mxu0
    %v2016 = vadd.f32 %v1943, %v2015
    %v2017 = vpop.f32.mrb[0].mxu0
    %v2018 = vadd.f32 %v1945, %v2017
    %2019 = vmatprep.mubr.bf16.mxu0 0
    %2020 = vmatmul.mubr.bf16.gmra.mrb[0].mxu0 %v1604
    %v2021 = vpop.f32.mrb[0].mxu0
    %v2022 = vadd.f32 %v1949, %v2021
    %v2023 = vpop.f32.mrb[0].mxu0
    %v2024 = vadd.f32 %v1951, %v2023
    %v2025 = vpop.f32.mrb[0].mxu0
    %v2026 = vadd.f32 %v1953, %v2025
    %v2027 = vpop.f32.mrb[0].mxu0
    %v2028 = vadd.f32 %v1955, %v2027
    %2029 = vmatprep.mubr.bf16.mxu0 0
    %2030 = vmatmul.mubr.bf16.gmra.mrb[0].mxu0 %v1607
    %v2031 = vpop.f32.mrb[0].mxu0
    %v2032 = vadd.f32 %v1959, %v2031
    %v2033 = vpop.f32.mrb[0].mxu0
    %v2034 = vadd.f32 %v1961, %v2033
    %v2035 = vpop.f32.mrb[0].mxu0
    %v2036 = vadd.f32 %v1963, %v2035
    %v2037 = vpop.f32.mrb[0].mxu0
    %v2038 = vadd.f32 %v1965, %v2037
    %2039 = vmatprep.mubr.bf16.mxu0 0
    %2040 = vmatmul.mubr.bf16.gmra.mrb[0].mxu0 %v1610
    %v2041 = vpop.f32.mrb[0].mxu0
    %v2042 = vadd.f32 %v1969, %v2041
    %v2043 = vpop.f32.mrb[0].mxu0
    %v2044 = vadd.f32 %v1971, %v2043
    %v2045 = vpop.f32.mrb[0].mxu0
    %v2046 = vadd.f32 %v1973, %v2045
    %v2047 = vpop.f32.mrb[0].mxu0
    %v2048 = vadd.f32 %v1975, %v2047
    %2049 = vdwg.mxu0
    %2050 = vmatprep.subr.bf16.mxu0 %v1150
    %2051 = vmatpush1.bf16.msra.mxu0 %v1149
    %2052 = vmatprep.subr.bf16.mxu0 %v1162
    %2053 = vmatpush1.bf16.msra.mxu0 %v1161
    %2054 = vmatprep.subr.bf16.mxu0 %v1174
    %2055 = vmatpush1.bf16.msra.mxu0 %v1173
    %2056 = vmatprep.subr.bf16.mxu0 %v1186
    %2057 = vmatpush1.bf16.msra.mxu0 %v1185
    %2058 = vmatprep.subr.bf16.mxu0 %v1198
    %2059 = vmatpush1.bf16.msra.mxu0 %v1197
    %2060 = vmatprep.subr.bf16.mxu0 %v1210
    %2061 = vmatpush1.bf16.msra.mxu0 %v1209
    %2062 = vmatprep.subr.bf16.mxu0 %v1222
    %2063 = vmatpush1.bf16.msra.mxu0 %v1221
    %2064 = vmatprep.subr.bf16.mxu0 %v1234
    %2065 = vmatpush1.bf16.msra.mxu0 %v1233
    %2066 = vmatprep.subr.bf16.mxu0 %v1246
    %2067 = vmatpush1.bf16.msra.mxu0 %v1245
    %2068 = vmatprep.subr.bf16.mxu0 %v1258
    %2069 = vmatpush1.bf16.msra.mxu0 %v1257
    %2070 = vmatprep.subr.bf16.mxu0 %v1270
    %2071 = vmatpush1.bf16.msra.mxu0 %v1269
    %2072 = vmatprep.subr.bf16.mxu0 %v1282
    %2073 = vmatpush1.bf16.msra.mxu0 %v1281
    %2074 = vmatprep.subr.bf16.mxu0 %v1294
    %2075 = vmatpush1.bf16.msra.mxu0 %v1293
    %2076 = vmatprep.subr.bf16.mxu0 %v1306
    %2077 = vmatpush1.bf16.msra.mxu0 %v1305
    %2078 = vmatprep.subr.bf16.mxu0 %v1318
    %2079 = vmatpush1.bf16.msra.mxu0 %v1317
    %2080 = vmatprep.subr.bf16.mxu0 %v1330
    %2081 = vmatpush1.bf16.msra.mxu0 %v1329
    %2082 = vmatprep.mubr.bf16.mxu0 %v440
    %2083 = vmatmul.mubr.bf16.gmra.mrb[0].mxu0 %v439
    %v2084 = vpop.f32.mrb[0].mxu0
    %v2085 = vadd.f32 %v366, %v2084
    %v2086 = vpop.f32.mrb[0].mxu0
    %v2087 = vadd.f32 %v370, %v2086
    %v2088 = vpop.f32.mrb[0].mxu0
    %v2089 = vadd.f32 %v366, %v2088
    %v2090 = vpop.f32.mrb[0].mxu0
    %v2091 = vadd.f32 %v370, %v2090
    %2092 = vmatprep.mubr.bf16.mxu0 %v443
    %2093 = vmatmul.mubr.bf16.gmra.mrb[0].mxu0 %v442
    %v2094 = vpop.f32.mrb[0].mxu0
    %v2095 = vadd.f32 %v366, %v2094
    %v2096 = vpop.f32.mrb[0].mxu0
    %v2097 = vadd.f32 %v370, %v2096
    %v2098 = vpop.f32.mrb[0].mxu0
    %v2099 = vadd.f32 %v366, %v2098
    %v2100 = vpop.f32.mrb[0].mxu0
    %v2101 = vadd.f32 %v370, %v2100
    %2102 = vmatprep.mubr.bf16.mxu0 %v446
    %2103 = vmatmul.mubr.bf16.gmra.mrb[0].mxu0 %v445
    %v2104 = vpop.f32.mrb[0].mxu0
    %v2105 = vadd.f32 %v366, %v2104
    %v2106 = vpop.f32.mrb[0].mxu0
    %v2107 = vadd.f32 %v370, %v2106
    %v2108 = vpop.f32.mrb[0].mxu0
    %v2109 = vadd.f32 %v366, %v2108
    %v2110 = vpop.f32.mrb[0].mxu0
    %v2111 = vadd.f32 %v370, %v2110
    %2112 = vmatprep.mubr.bf16.mxu0 %v449
    %2113 = vmatmul.mubr.bf16.gmra.mrb[0].mxu0 %v448
    %v2114 = vpop.f32.mrb[0].mxu0
    %v2115 = vadd.f32 %v366, %v2114
    %v2116 = vpop.f32.mrb[0].mxu0
    %v2117 = vadd.f32 %v370, %v2116
    %v2118 = vpop.f32.mrb[0].mxu0
    %v2119 = vadd.f32 %v366, %v2118
    %v2120 = vpop.f32.mrb[0].mxu0
    %v2121 = vadd.f32 %v370, %v2120
    %2122 = vdwg.mxu0
    %2123 = vmatprep.subr.bf16.mxu0 %v1342
    %2124 = vmatpush1.bf16.msra.mxu0 %v1341
    %2125 = vmatprep.subr.bf16.mxu0 %v1354
    %2126 = vmatpush1.bf16.msra.mxu0 %v1353
    %2127 = vmatprep.subr.bf16.mxu0 %v1366
    %2128 = vmatpush1.bf16.msra.mxu0 %v1365
    %2129 = vmatprep.subr.bf16.mxu0 0
    %2130 = vmatpush1.bf16.msra.mxu0 0
    %2131 = vmatprep.subr.bf16.mxu0 0
    %2132 = vmatpush1.bf16.msra.mxu0 0
    %2133 = vmatprep.subr.bf16.mxu0 0
    %2134 = vmatpush1.bf16.msra.mxu0 0
    %2135 = vmatprep.subr.bf16.mxu0 0
    %2136 = vmatpush1.bf16.msra.mxu0 0
    %2137 = vmatprep.subr.bf16.mxu0 0
    %2138 = vmatpush1.bf16.msra.mxu0 0
    %2139 = vmatprep.subr.bf16.mxu0 0
    %2140 = vmatpush1.bf16.msra.mxu0 0
    %2141 = vmatprep.subr.bf16.mxu0 0
    %2142 = vmatpush1.bf16.msra.mxu0 0
    %2143 = vmatprep.subr.bf16.mxu0 0
    %2144 = vmatpush1.bf16.msra.mxu0 0
    %2145 = vmatprep.subr.bf16.mxu0 0
    %2146 = vmatpush1.bf16.msra.mxu0 0
    %2147 = vmatprep.subr.bf16.mxu0 0
    %2148 = vmatpush1.bf16.msra.mxu0 0
    %2149 = vmatprep.subr.bf16.mxu0 0
    %2150 = vmatpush1.bf16.msra.mxu0 0
    %2151 = vmatprep.subr.bf16.mxu0 0
    %2152 = vmatpush1.bf16.msra.mxu0 0
    %2153 = vmatprep.subr.bf16.mxu0 0
    %2154 = vmatpush1.bf16.msra.mxu0 0
    %2155 = vmatprep.mubr.bf16.mxu0 0
    %2156 = vmatmul.mubr.bf16.gmra.mrb[0].mxu0 %v1601
    %v2157 = vpop.f32.mrb[0].mxu0
    %v2158 = vadd.f32 %v2085, %v2157
    %v2159 = vpop.f32.mrb[0].mxu0
    %v2160 = vadd.f32 %v2087, %v2159
    %v2161 = vpop.f32.mrb[0].mxu0
    %v2162 = vadd.f32 %v2089, %v2161
    %v2163 = vpop.f32.mrb[0].mxu0
    %v2164 = vadd.f32 %v2091, %v2163
    %2165 = vmatprep.mubr.bf16.mxu0 0
    %2166 = vmatmul.mubr.bf16.gmra.mrb[0].mxu0 %v1604
    %v2167 = vpop.f32.mrb[0].mxu0
    %v2168 = vadd.f32 %v2095, %v2167
    %v2169 = vpop.f32.mrb[0].mxu0
    %v2170 = vadd.f32 %v2097, %v2169
    %v2171 = vpop.f32.mrb[0].mxu0
    %v2172 = vadd.f32 %v2099, %v2171
    %v2173 = vpop.f32.mrb[0].mxu0
    %v2174 = vadd.f32 %v2101, %v2173
    %2175 = vmatprep.mubr.bf16.mxu0 0
    %2176 = vmatmul.mubr.bf16.gmra.mrb[0].mxu0 %v1607
    %v2177 = vpop.f32.mrb[0].mxu0
    %v2178 = vadd.f32 %v2105, %v2177
    %v2179 = vpop.f32.mrb[0].mxu0
    %v2180 = vadd.f32 %v2107, %v2179
    %v2181 = vpop.f32.mrb[0].mxu0
    %v2182 = vadd.f32 %v2109, %v2181
    %v2183 = vpop.f32.mrb[0].mxu0
    %v2184 = vadd.f32 %v2111, %v2183
    %2185 = vmatprep.mubr.bf16.mxu0 0
    %2186 = vmatmul.mubr.bf16.gmra.mrb[0].mxu0 %v1610
    %v2187 = vpop.f32.mrb[0].mxu0
    %v2188 = vadd.f32 %v2115, %v2187
    %v2189 = vpop.f32.mrb[0].mxu0
    %v2190 = vadd.f32 %v2117, %v2189
    %v2191 = vpop.f32.mrb[0].mxu0
    %v2192 = vadd.f32 %v2119, %v2191
    %v2193 = vpop.f32.mrb[0].mxu0
    %v2194 = vadd.f32 %v2121, %v2193
    %2195 = vdwg.mxu0
    %2196 = vmatprep.subr.bf16.mxu0 %v1152
    %2197 = vmatpush1.bf16.msra.mxu0 %v1151
    %2198 = vmatprep.subr.bf16.mxu0 %v1164
    %2199 = vmatpush1.bf16.msra.mxu0 %v1163
    %2200 = vmatprep.subr.bf16.mxu0 %v1176
    %2201 = vmatpush1.bf16.msra.mxu0 %v1175
    %2202 = vmatprep.subr.bf16.mxu0 %v1188
    %2203 = vmatpush1.bf16.msra.mxu0 %v1187
    %2204 = vmatprep.subr.bf16.mxu0 %v1200
    %2205 = vmatpush1.bf16.msra.mxu0 %v1199
    %2206 = vmatprep.subr.bf16.mxu0 %v1212
    %2207 = vmatpush1.bf16.msra.mxu0 %v1211
    %2208 = vmatprep.subr.bf16.mxu0 %v1224
    %2209 = vmatpush1.bf16.msra.mxu0 %v1223
    %2210 = vmatprep.subr.bf16.mxu0 %v1236
    %2211 = vmatpush1.bf16.msra.mxu0 %v1235
    %2212 = vmatprep.subr.bf16.mxu0 %v1248
    %2213 = vmatpush1.bf16.msra.mxu0 %v1247
    %2214 = vmatprep.subr.bf16.mxu0 %v1260
    %2215 = vmatpush1.bf16.msra.mxu0 %v1259
    %2216 = vmatprep.subr.bf16.mxu0 %v1272
    %2217 = vmatpush1.bf16.msra.mxu0 %v1271
    %2218 = vmatprep.subr.bf16.mxu0 %v1284
    %2219 = vmatpush1.bf16.msra.mxu0 %v1283
    %2220 = vmatprep.subr.bf16.mxu0 %v1296
    %2221 = vmatpush1.bf16.msra.mxu0 %v1295
    %2222 = vmatprep.subr.bf16.mxu0 %v1308
    %2223 = vmatpush1.bf16.msra.mxu0 %v1307
    %2224 = vmatprep.subr.bf16.mxu0 %v1320
    %2225 = vmatpush1.bf16.msra.mxu0 %v1319
    %2226 = vmatprep.subr.bf16.mxu0 %v1332
    %2227 = vmatpush1.bf16.msra.mxu0 %v1331
    %2228 = vmatprep.mubr.bf16.mxu0 %v440
    %2229 = vmatmul.mubr.bf16.gmra.mrb[0].mxu0 %v439
    %v2230 = vpop.f32.mrb[0].mxu0
    %v2231 = vadd.f32 %v374, %v2230
    %v2232 = vpop.f32.mrb[0].mxu0
    %v2233 = vadd.f32 %v378, %v2232
    %v2234 = vpop.f32.mrb[0].mxu0
    %v2235 = vadd.f32 %v374, %v2234
    %v2236 = vpop.f32.mrb[0].mxu0
    %v2237 = vadd.f32 %v378, %v2236
    %2238 = vmatprep.mubr.bf16.mxu0 %v443
    %2239 = vmatmul.mubr.bf16.gmra.mrb[0].mxu0 %v442
    %v2240 = vpop.f32.mrb[0].mxu0
    %v2241 = vadd.f32 %v374, %v2240
    %v2242 = vpop.f32.mrb[0].mxu0
    %v2243 = vadd.f32 %v378, %v2242
    %v2244 = vpop.f32.mrb[0].mxu0
    %v2245 = vadd.f32 %v374, %v2244
    %v2246 = vpop.f32.mrb[0].mxu0
    %v2247 = vadd.f32 %v378, %v2246
    %2248 = vmatprep.mubr.bf16.mxu0 %v446
    %2249 = vmatmul.mubr.bf16.gmra.mrb[0].mxu0 %v445
    %v2250 = vpop.f32.mrb[0].mxu0
    %v2251 = vadd.f32 %v374, %v2250
    %v2252 = vpop.f32.mrb[0].mxu0
    %v2253 = vadd.f32 %v378, %v2252
    %v2254 = vpop.f32.mrb[0].mxu0
    %v2255 = vadd.f32 %v374, %v2254
    %v2256 = vpop.f32.mrb[0].mxu0
    %v2257 = vadd.f32 %v378, %v2256
    %2258 = vmatprep.mubr.bf16.mxu0 %v449
    %2259 = vmatmul.mubr.bf16.gmra.mrb[0].mxu0 %v448
    %v2260 = vpop.f32.mrb[0].mxu0
    %v2261 = vadd.f32 %v374, %v2260
    %v2262 = vpop.f32.mrb[0].mxu0
    %v2263 = vadd.f32 %v378, %v2262
    %v2264 = vpop.f32.mrb[0].mxu0
    %v2265 = vadd.f32 %v374, %v2264
    %v2266 = vpop.f32.mrb[0].mxu0
    %v2267 = vadd.f32 %v378, %v2266
    %2268 = vdwg.mxu0
    %2269 = vmatprep.subr.bf16.mxu0 %v1344
    %2270 = vmatpush1.bf16.msra.mxu0 %v1343
    %2271 = vmatprep.subr.bf16.mxu0 %v1356
    %2272 = vmatpush1.bf16.msra.mxu0 %v1355
    %2273 = vmatprep.subr.bf16.mxu0 %v1368
    %2274 = vmatpush1.bf16.msra.mxu0 %v1367
    %2275 = vmatprep.subr.bf16.mxu0 0
    %2276 = vmatpush1.bf16.msra.mxu0 0
    %2277 = vmatprep.subr.bf16.mxu0 0
    %2278 = vmatpush1.bf16.msra.mxu0 0
    %2279 = vmatprep.subr.bf16.mxu0 0
    %2280 = vmatpush1.bf16.msra.mxu0 0
    %2281 = vmatprep.subr.bf16.mxu0 0
    %2282 = vmatpush1.bf16.msra.mxu0 0
    %2283 = vmatprep.subr.bf16.mxu0 0
    %2284 = vmatpush1.bf16.msra.mxu0 0
    %2285 = vmatprep.subr.bf16.mxu0 0
    %2286 = vmatpush1.bf16.msra.mxu0 0
    %2287 = vmatprep.subr.bf16.mxu0 0
    %2288 = vmatpush1.bf16.msra.mxu0 0
    %2289 = vmatprep.subr.bf16.mxu0 0
    %2290 = vmatpush1.bf16.msra.mxu0 0
    %2291 = vmatprep.subr.bf16.mxu0 0
    %2292 = vmatpush1.bf16.msra.mxu0 0
    %2293 = vmatprep.subr.bf16.mxu0 0
    %2294 = vmatpush1.bf16.msra.mxu0 0
    %2295 = vmatprep.subr.bf16.mxu0 0
    %2296 = vmatpush1.bf16.msra.mxu0 0
    %2297 = vmatprep.subr.bf16.mxu0 0
    %2298 = vmatpush1.bf16.msra.mxu0 0
    %2299 = vmatprep.subr.bf16.mxu0 0
    %2300 = vmatpush1.bf16.msra.mxu0 0
    %2301 = vmatprep.mubr.bf16.mxu0 0
    %2302 = vmatmul.mubr.bf16.gmra.mrb[0].mxu0 %v1601
    %v2303 = vpop.f32.mrb[0].mxu0
    %v2304 = vadd.f32 %v2231, %v2303
    %v2305 = vpop.f32.mrb[0].mxu0
    %v2306 = vadd.f32 %v2233, %v2305
    %v2307 = vpop.f32.mrb[0].mxu0
    %v2308 = vadd.f32 %v2235, %v2307
    %v2309 = vpop.f32.mrb[0].mxu0
    %v2310 = vadd.f32 %v2237, %v2309
    %2311 = vmatprep.mubr.bf16.mxu0 0
    %2312 = vmatmul.mubr.bf16.gmra.mrb[0].mxu0 %v1604
    %v2313 = vpop.f32.mrb[0].mxu0
    %v2314 = vadd.f32 %v2241, %v2313
    %v2315 = vpop.f32.mrb[0].mxu0
    %v2316 = vadd.f32 %v2243, %v2315
    %v2317 = vpop.f32.mrb[0].mxu0
    %v2318 = vadd.f32 %v2245, %v2317
    %v2319 = vpop.f32.mrb[0].mxu0
    %v2320 = vadd.f32 %v2247, %v2319
    %2321 = vmatprep.mubr.bf16.mxu0 0
    %2322 = vmatmul.mubr.bf16.gmra.mrb[0].mxu0 %v1607
    %v2323 = vpop.f32.mrb[0].mxu0
    %v2324 = vadd.f32 %v2251, %v2323
    %v2325 = vpop.f32.mrb[0].mxu0
    %v2326 = vadd.f32 %v2253, %v2325
    %v2327 = vpop.f32.mrb[0].mxu0
    %v2328 = vadd.f32 %v2255, %v2327
    %v2329 = vpop.f32.mrb[0].mxu0
    %v2330 = vadd.f32 %v2257, %v2329
    %2331 = vmatprep.mubr.bf16.mxu0 0
    %2332 = vmatmul.mubr.bf16.gmra.mrb[0].mxu0 %v1610
    %v2333 = vpop.f32.mrb[0].mxu0
    %v2334 = vadd.f32 %v2261, %v2333
    %v2335 = vpop.f32.mrb[0].mxu0
    %v2336 = vadd.f32 %v2263, %v2335
    %v2337 = vpop.f32.mrb[0].mxu0
    %v2338 = vadd.f32 %v2265, %v2337
    %v2339 = vpop.f32.mrb[0].mxu0
    %v2340 = vadd.f32 %v2267, %v2339
    %2341 = vdwg.mxu0
    %2342 = vmatprep.subr.bf16.mxu0 %v1154
    %2343 = vmatpush1.bf16.msra.mxu0 %v1153
    %2344 = vmatprep.subr.bf16.mxu0 %v1166
    %2345 = vmatpush1.bf16.msra.mxu0 %v1165
    %2346 = vmatprep.subr.bf16.mxu0 %v1178
    %2347 = vmatpush1.bf16.msra.mxu0 %v1177
    %2348 = vmatprep.subr.bf16.mxu0 %v1190
    %2349 = vmatpush1.bf16.msra.mxu0 %v1189
    %2350 = vmatprep.subr.bf16.mxu0 %v1202
    %2351 = vmatpush1.bf16.msra.mxu0 %v1201
    %2352 = vmatprep.subr.bf16.mxu0 %v1214
    %2353 = vmatpush1.bf16.msra.mxu0 %v1213
    %2354 = vmatprep.subr.bf16.mxu0 %v1226
    %2355 = vmatpush1.bf16.msra.mxu0 %v1225
    %2356 = vmatprep.subr.bf16.mxu0 %v1238
    %2357 = vmatpush1.bf16.msra.mxu0 %v1237
    %2358 = vmatprep.subr.bf16.mxu0 %v1250
    %2359 = vmatpush1.bf16.msra.mxu0 %v1249
    %2360 = vmatprep.subr.bf16.mxu0 %v1262
    %2361 = vmatpush1.bf16.msra.mxu0 %v1261
    %2362 = vmatprep.subr.bf16.mxu0 %v1274
    %2363 = vmatpush1.bf16.msra.mxu0 %v1273
    %2364 = vmatprep.subr.bf16.mxu0 %v1286
    %2365 = vmatpush1.bf16.msra.mxu0 %v1285
    %2366 = vmatprep.subr.bf16.mxu0 %v1298
    %2367 = vmatpush1.bf16.msra.mxu0 %v1297
    %2368 = vmatprep.subr.bf16.mxu0 %v1310
    %2369 = vmatpush1.bf16.msra.mxu0 %v1309
    %2370 = vmatprep.subr.bf16.mxu0 %v1322
    %2371 = vmatpush1.bf16.msra.mxu0 %v1321
    %2372 = vmatprep.subr.bf16.mxu0 %v1334
    %2373 = vmatpush1.bf16.msra.mxu0 %v1333
    %2374 = vmatprep.mubr.bf16.mxu0 %v440
    %2375 = vmatmul.mubr.bf16.gmra.mrb[0].mxu0 %v439
    %v2376 = vpop.f32.mrb[0].mxu0
    %v2377 = vadd.f32 %v382, %v2376
    %v2378 = vpop.f32.mrb[0].mxu0
    %v2379 = vadd.f32 %v386, %v2378
    %v2380 = vpop.f32.mrb[0].mxu0
    %v2381 = vadd.f32 %v382, %v2380
    %v2382 = vpop.f32.mrb[0].mxu0
    %v2383 = vadd.f32 %v386, %v2382
    %2384 = vmatprep.mubr.bf16.mxu0 %v443
    %2385 = vmatmul.mubr.bf16.gmra.mrb[0].mxu0 %v442
    %v2386 = vpop.f32.mrb[0].mxu0
    %v2387 = vadd.f32 %v382, %v2386
    %v2388 = vpop.f32.mrb[0].mxu0
    %v2389 = vadd.f32 %v386, %v2388
    %v2390 = vpop.f32.mrb[0].mxu0
    %v2391 = vadd.f32 %v382, %v2390
    %v2392 = vpop.f32.mrb[0].mxu0
    %v2393 = vadd.f32 %v386, %v2392
    %2394 = vmatprep.mubr.bf16.mxu0 %v446
    %2395 = vmatmul.mubr.bf16.gmra.mrb[0].mxu0 %v445
    %v2396 = vpop.f32.mrb[0].mxu0
    %v2397 = vadd.f32 %v382, %v2396
    %v2398 = vpop.f32.mrb[0].mxu0
    %v2399 = vadd.f32 %v386, %v2398
    %v2400 = vpop.f32.mrb[0].mxu0
    %v2401 = vadd.f32 %v382, %v2400
    %v2402 = vpop.f32.mrb[0].mxu0
    %v2403 = vadd.f32 %v386, %v2402
    %2404 = vmatprep.mubr.bf16.mxu0 %v449
    %2405 = vmatmul.mubr.bf16.gmra.mrb[0].mxu0 %v448
    %v2406 = vpop.f32.mrb[0].mxu0
    %v2407 = vadd.f32 %v382, %v2406
    %v2408 = vpop.f32.mrb[0].mxu0
    %v2409 = vadd.f32 %v386, %v2408
    %v2410 = vpop.f32.mrb[0].mxu0
    %v2411 = vadd.f32 %v382, %v2410
    %v2412 = vpop.f32.mrb[0].mxu0
    %v2413 = vadd.f32 %v386, %v2412
    %2414 = vdwg.mxu0
    %2415 = vmatprep.subr.bf16.mxu0 %v1346
    %2416 = vmatpush1.bf16.msra.mxu0 %v1345
    %2417 = vmatprep.subr.bf16.mxu0 %v1358
    %2418 = vmatpush1.bf16.msra.mxu0 %v1357
    %2419 = vmatprep.subr.bf16.mxu0 %v1370
    %2420 = vmatpush1.bf16.msra.mxu0 %v1369
    %2421 = vmatprep.subr.bf16.mxu0 0
    %2422 = vmatpush1.bf16.msra.mxu0 0
    %2423 = vmatprep.subr.bf16.mxu0 0
    %2424 = vmatpush1.bf16.msra.mxu0 0
    %2425 = vmatprep.subr.bf16.mxu0 0
    %2426 = vmatpush1.bf16.msra.mxu0 0
    %2427 = vmatprep.subr.bf16.mxu0 0
    %2428 = vmatpush1.bf16.msra.mxu0 0
    %2429 = vmatprep.subr.bf16.mxu0 0
    %2430 = vmatpush1.bf16.msra.mxu0 0
    %2431 = vmatprep.subr.bf16.mxu0 0
    %2432 = vmatpush1.bf16.msra.mxu0 0
    %2433 = vmatprep.subr.bf16.mxu0 0
    %2434 = vmatpush1.bf16.msra.mxu0 0
    %2435 = vmatprep.subr.bf16.mxu0 0
    %2436 = vmatpush1.bf16.msra.mxu0 0
    %2437 = vmatprep.subr.bf16.mxu0 0
    %2438 = vmatpush1.bf16.msra.mxu0 0
    %2439 = vmatprep.subr.bf16.mxu0 0
    %2440 = vmatpush1.bf16.msra.mxu0 0
    %2441 = vmatprep.subr.bf16.mxu0 0
    %2442 = vmatpush1.bf16.msra.mxu0 0
    %2443 = vmatprep.subr.bf16.mxu0 0
    %2444 = vmatpush1.bf16.msra.mxu0 0
    %2445 = vmatprep.subr.bf16.mxu0 0
    %2446 = vmatpush1.bf16.msra.mxu0 0
    %2447 = vmatprep.mubr.bf16.mxu0 0
    %2448 = vmatmul.mubr.bf16.gmra.mrb[0].mxu0 %v1601
    %v2449 = vpop.f32.mrb[0].mxu0
    %v2450 = vadd.f32 %v2377, %v2449
    %v2451 = vpop.f32.mrb[0].mxu0
    %v2452 = vadd.f32 %v2379, %v2451
    %v2453 = vpop.f32.mrb[0].mxu0
    %v2454 = vadd.f32 %v2381, %v2453
    %v2455 = vpop.f32.mrb[0].mxu0
    %v2456 = vadd.f32 %v2383, %v2455
    %2457 = vmatprep.mubr.bf16.mxu0 0
    %2458 = vmatmul.mubr.bf16.gmra.mrb[0].mxu0 %v1604
    %v2459 = vpop.f32.mrb[0].mxu0
    %v2460 = vadd.f32 %v2387, %v2459
    %v2461 = vpop.f32.mrb[0].mxu0
    %v2462 = vadd.f32 %v2389, %v2461
    %v2463 = vpop.f32.mrb[0].mxu0
    %v2464 = vadd.f32 %v2391, %v2463
    %v2465 = vpop.f32.mrb[0].mxu0
    %v2466 = vadd.f32 %v2393, %v2465
    %2467 = vmatprep.mubr.bf16.mxu0 0
    %2468 = vmatmul.mubr.bf16.gmra.mrb[0].mxu0 %v1607
    %v2469 = vpop.f32.mrb[0].mxu0
    %v2470 = vadd.f32 %v2397, %v2469
    %v2471 = vpop.f32.mrb[0].mxu0
    %v2472 = vadd.f32 %v2399, %v2471
    %v2473 = vpop.f32.mrb[0].mxu0
    %v2474 = vadd.f32 %v2401, %v2473
    %v2475 = vpop.f32.mrb[0].mxu0
    %v2476 = vadd.f32 %v2403, %v2475
    %2477 = vmatprep.mubr.bf16.mxu0 0
    %2478 = vmatmul.mubr.bf16.gmra.mrb[0].mxu0 %v1610
    %v2479 = vpop.f32.mrb[0].mxu0
    %v2480 = vadd.f32 %v2407, %v2479
    %v2481 = vpop.f32.mrb[0].mxu0
    %v2482 = vadd.f32 %v2409, %v2481
    %v2483 = vpop.f32.mrb[0].mxu0
    %v2484 = vadd.f32 %v2411, %v2483
    %v2485 = vpop.f32.mrb[0].mxu0
    %v2486 = vadd.f32 %v2413, %v2485
    %2487 = vdwg.mxu0
    %2488 = vst [vmem:[#allocation2] sm:$0xff] %v1720
    %2489 = vst [vmem:[#allocation2 + $0x8] sm:$0xff] %v1722
    %2490 = vst [vmem:[#allocation2 + $0x10] sm:$0xff] %v1866
    %2491 = vst [vmem:[#allocation2 + $0x18] sm:$0xff] %v1868
    %2492 = vst [vmem:[#allocation2 + $0x20] sm:$0xff] %v2012
    %2493 = vst [vmem:[#allocation2 + $0x28] sm:$0xff] %v2014
    %2494 = vst [vmem:[#allocation2 + $0x30] sm:$0xff] %v2158
    %2495 = vst [vmem:[#allocation2 + $0x38] sm:$0xff] %v2160
    %2496 = vst [vmem:[#allocation2 + $0x40] sm:$0xff] %v2304
    %2497 = vst [vmem:[#allocation2 + $0x48] sm:$0xff] %v2306
    %2498 = vst [vmem:[#allocation2 + $0x50] sm:$0xff] %v2450
    %2499 = vst [vmem:[#allocation2 + $0x58] sm:$0xff] %v2452
    %2500 = vst [vmem:[#allocation2 + $0x60] sm:$0xff] %v1724
    %2501 = vst [vmem:[#allocation2 + $0x68] sm:$0xff] %v1726
    %2502 = vst [vmem:[#allocation2 + $0x70] sm:$0xff] %v1870
    %2503 = vst [vmem:[#allocation2 + $0x78] sm:$0xff] %v1872
    %2504 = vst [vmem:[#allocation2 + $0x80] sm:$0xff] %v2016
    %2505 = vst [vmem:[#allocation2 + $0x88] sm:$0xff] %v2018
    %2506 = vst [vmem:[#allocation2 + $0x90] sm:$0xff] %v2162
    %2507 = vst [vmem:[#allocation2 + $0x98] sm:$0xff] %v2164
    %2508 = vst [vmem:[#allocation2 + $0xa0] sm:$0xff] %v2308
    %2509 = vst [vmem:[#allocation2 + $0xa8] sm:$0xff] %v2310
    %2510 = vst [vmem:[#allocation2 + $0xb0] sm:$0xff] %v2454
    %2511 = vst [vmem:[#allocation2 + $0xb8] sm:$0xff] %v2456
    %2512 = vst [vmem:[#allocation2 + $0xc0] sm:$0xff] %v1730
    %2513 = vst [vmem:[#allocation2 + $0xc8] sm:$0xff] %v1732
    %2514 = vst [vmem:[#allocation2 + $0xd0] sm:$0xff] %v1876
    %2515 = vst [vmem:[#allocation2 + $0xd8] sm:$0xff] %v1878
    %2516 = vst [vmem:[#allocation2 + $0xe0] sm:$0xff] %v2022
    %2517 = vst [vmem:[#allocation2 + $0xe8] sm:$0xff] %v2024
    %2518 = vst [vmem:[#allocation2 + $0xf0] sm:$0xff] %v2168
    %2519 = vst [vmem:[#allocation2 + $0xf8] sm:$0xff] %v2170
    %2520 = vst [vmem:[#allocation2 + $0x100] sm:$0xff] %v2314
    %2521 = vst [vmem:[#allocation2 + $0x108] sm:$0xff] %v2316
    %2522 = vst [vmem:[#allocation2 + $0x110] sm:$0xff] %v2460
    %2523 = vst [vmem:[#allocation2 + $0x118] sm:$0xff] %v2462
    %2524 = vst [vmem:[#allocation2 + $0x120] sm:$0xff] %v1734
    %2525 = vst [vmem:[#allocation2 + $0x128] sm:$0xff] %v1736
    %2526 = vst [vmem:[#allocation2 + $0x130] sm:$0xff] %v1880
    %2527 = vst [vmem:[#allocation2 + $0x138] sm:$0xff] %v1882
    %2528 = vst [vmem:[#allocation2 + $0x140] sm:$0xff] %v2026
    %2529 = vst [vmem:[#allocation2 + $0x148] sm:$0xff] %v2028
    %2530 = vst [vmem:[#allocation2 + $0x150] sm:$0xff] %v2172
    %2531 = vst [vmem:[#allocation2 + $0x158] sm:$0xff] %v2174
    %2532 = vst [vmem:[#allocation2 + $0x160] sm:$0xff] %v2318
    %2533 = vst [vmem:[#allocation2 + $0x168] sm:$0xff] %v2320
    %2534 = vst [vmem:[#allocation2 + $0x170] sm:$0xff] %v2464
    %2535 = vst [vmem:[#allocation2 + $0x178] sm:$0xff] %v2466
    %2536 = vst [vmem:[#allocation2 + $0x180] sm:$0xff] %v1740
    %2537 = vst [vmem:[#allocation2 + $0x188] sm:$0xff] %v1742
    %2538 = vst [vmem:[#allocation2 + $0x190] sm:$0xff] %v1886
    %2539 = vst [vmem:[#allocation2 + $0x198] sm:$0xff] %v1888
    %2540 = vst [vmem:[#allocation2 + $0x1a0] sm:$0xff] %v2032
    %2541 = vst [vmem:[#allocation2 + $0x1a8] sm:$0xff] %v2034
    %2542 = vst [vmem:[#allocation2 + $0x1b0] sm:$0xff] %v2178
    %2543 = vst [vmem:[#allocation2 + $0x1b8] sm:$0xff] %v2180
    %2544 = vst [vmem:[#allocation2 + $0x1c0] sm:$0xff] %v2324
    %2545 = vst [vmem:[#allocation2 + $0x1c8] sm:$0xff] %v2326
    %2546 = vst [vmem:[#allocation2 + $0x1d0] sm:$0xff] %v2470
    %2547 = vst [vmem:[#allocation2 + $0x1d8] sm:$0xff] %v2472
    %2548 = vst [vmem:[#allocation2 + $0x1e0] sm:$0xff] %v1744
    %2549 = vst [vmem:[#allocation2 + $0x1e8] sm:$0xff] %v1746
    %2550 = vst [vmem:[#allocation2 + $0x1f0] sm:$0xff] %v1890
    %2551 = vst [vmem:[#allocation2 + $0x1f8] sm:$0xff] %v1892
    %2552 = vst [vmem:[#allocation2 + $0x200] sm:$0xff] %v2036
    %2553 = vst [vmem:[#allocation2 + $0x208] sm:$0xff] %v2038
    %2554 = vst [vmem:[#allocation2 + $0x210] sm:$0xff] %v2182
    %2555 = vst [vmem:[#allocation2 + $0x218] sm:$0xff] %v2184
    %2556 = vst [vmem:[#allocation2 + $0x220] sm:$0xff] %v2328
    %2557 = vst [vmem:[#allocation2 + $0x228] sm:$0xff] %v2330
    %2558 = vst [vmem:[#allocation2 + $0x230] sm:$0xff] %v2474
    %2559 = vst [vmem:[#allocation2 + $0x238] sm:$0xff] %v2476
    %2560 = vst [vmem:[#allocation2 + $0x240] sm:$0xff] %v1750
    %2561 = vst [vmem:[#allocation2 + $0x248] sm:$0xff] %v1752
    %2562 = vst [vmem:[#allocation2 + $0x250] sm:$0xff] %v1896
    %2563 = vst [vmem:[#allocation2 + $0x258] sm:$0xff] %v1898
    %2564 = vst [vmem:[#allocation2 + $0x260] sm:$0xff] %v2042
    %2565 = vst [vmem:[#allocation2 + $0x268] sm:$0xff] %v2044
    %2566 = vst [vmem:[#allocation2 + $0x270] sm:$0xff] %v2188
    %2567 = vst [vmem:[#allocation2 + $0x278] sm:$0xff] %v2190
    %2568 = vst [vmem:[#allocation2 + $0x280] sm:$0xff] %v2334
    %2569 = vst [vmem:[#allocation2 + $0x288] sm:$0xff] %v2336
    %2570 = vst [vmem:[#allocation2 + $0x290] sm:$0xff] %v2480
    %2571 = vst [vmem:[#allocation2 + $0x298] sm:$0xff] %v2482
    %2572 = vst [vmem:[#allocation2 + $0x2a0] sm:$0xff] %v1754
    %2573 = vst [vmem:[#allocation2 + $0x2a8] sm:$0xff] %v1756
    %2574 = vst [vmem:[#allocation2 + $0x2b0] sm:$0xff] %v1900
    %2575 = vst [vmem:[#allocation2 + $0x2b8] sm:$0xff] %v1902
    %2576 = vst [vmem:[#allocation2 + $0x2c0] sm:$0xff] %v2046
    %2577 = vst [vmem:[#allocation2 + $0x2c8] sm:$0xff] %v2048
    %2578 = vst [vmem:[#allocation2 + $0x2d0] sm:$0xff] %v2192
    %2579 = vst [vmem:[#allocation2 + $0x2d8] sm:$0xff] %v2194
    %2580 = vst [vmem:[#allocation2 + $0x2e0] sm:$0xff] %v2338
    %2581 = vst [vmem:[#allocation2 + $0x2e8] sm:$0xff] %v2340
    %2582 = vst [vmem:[#allocation2 + $0x2f0] sm:$0xff] %v2484
    %2583 = vst [vmem:[#allocation2 + $0x2f8] sm:$0xff] %v2486
    %s2584 = smul.u32 4, 48
    %s2585 = smul.u32 %s2584, 12
    %s2586 = sshll.u32 %s2585, 4
    %2587 = dma.done [#allocation4], %s2586
    %v2588 = vld [vmem:[#allocation2 + $0x18] sm:$0xff]
    %v2589 = vld [vmem:[#allocation2 + $0x20] sm:$0xff]
    %v2590 = vld [vmem:[#allocation2 + $0x28] sm:$0xff]
    %v2591 = vld [vmem:[#allocation3 + $0x18] sm:$0xff]
    %v2592 = vld [vmem:[#allocation3 + $0x20] sm:$0xff]
    %v2593 = vld [vmem:[#allocation3 + $0x28] sm:$0xff]
    %v2594 = vld [vmem:[#allocation3 + $0x78] sm:$0xff]
    %v2595 = vld [vmem:[#allocation3 + $0x80] sm:$0xff]
    %v2596 = vld [vmem:[#allocation3 + $0x88] sm:$0xff]
    %v2597 = vld [vmem:[#allocation3 + $0xd8] sm:$0xff]
    %v2598 = vld [vmem:[#allocation3 + $0xe0] sm:$0xff]
    %v2599 = vld [vmem:[#allocation3 + $0xe8] sm:$0xff]
    %v2600 = vld [vmem:[#allocation3 + $0x138] sm:$0xff]
    %v2601 = vld [vmem:[#allocation3 + $0x140] sm:$0xff]
    %v2602 = vld [vmem:[#allocation3 + $0x148] sm:$0xff]
    %v2603 = vld [vmem:[#allocation3 + $0x198] sm:$0xff]
    %v2604 = vld [vmem:[#allocation3 + $0x1a0] sm:$0xff]
    %v2605 = vld [vmem:[#allocation3 + $0x1a8] sm:$0xff]
    %v2606 = vld [vmem:[#allocation3 + $0x1f8] sm:$0xff]
    %v2607 = vld [vmem:[#allocation3 + $0x200] sm:$0xff]
    %v2608 = vld [vmem:[#allocation3 + $0x208] sm:$0xff]
    %v2609 = vld [vmem:[#allocation3 + $0x258] sm:$0xff]
    %v2610 = vld [vmem:[#allocation3 + $0x260] sm:$0xff]
    %v2611 = vld [vmem:[#allocation3 + $0x268] sm:$0xff]
    %v2612 = vld [vmem:[#allocation3 + $0x2b8] sm:$0xff]
    %v2613 = vld [vmem:[#allocation3 + $0x2c0] sm:$0xff]
    %v2614 = vld [vmem:[#allocation3 + $0x2c8] sm:$0xff]
    %v2615 = vld [vmem:[#allocation3 + $0x318] sm:$0xff]
    %v2616 = vld [vmem:[#allocation3 + $0x320] sm:$0xff]
    %v2617 = vld [vmem:[#allocation3 + $0x328] sm:$0xff]
    %v2618 = vld [vmem:[#allocation3 + $0x378] sm:$0xff]
    %v2619 = vld [vmem:[#allocation3 + $0x380] sm:$0xff]
    %v2620 = vld [vmem:[#allocation3 + $0x388] sm:$0xff]
    %v2621 = vld [vmem:[#allocation3 + $0x3d8] sm:$0xff]
    %v2622 = vld [vmem:[#allocation3 + $0x3e0] sm:$0xff]
    %v2623 = vld [vmem:[#allocation3 + $0x3e8] sm:$0xff]
    %v2624 = vld [vmem:[#allocation3 + $0x438] sm:$0xff]
    %v2625 = vld [vmem:[#allocation3 + $0x440] sm:$0xff]
    %v2626 = vld [vmem:[#allocation3 + $0x448] sm:$0xff]
    %v2627 = vld [vmem:[#allocation3 + $0x498] sm:$0xff]
    %v2628 = vld [vmem:[#allocation3 + $0x4a0] sm:$0xff]
    %v2629 = vld [vmem:[#allocation3 + $0x4a8] sm:$0xff]
    %v2630 = vld [vmem:[#allocation3 + $0x4f8] sm:$0xff]
    %v2631 = vld [vmem:[#allocation3 + $0x500] sm:$0xff]
    %v2632 = vld [vmem:[#allocation3 + $0x508] sm:$0xff]
    %v2633 = vld [vmem:[#allocation3 + $0x558] sm:$0xff]
    %v2634 = vld [vmem:[#allocation3 + $0x560] sm:$0xff]
    %v2635 = vld [vmem:[#allocation3 + $0x568] sm:$0xff]
    %v2636 = vld [vmem:[#allocation3 + $0x5b8] sm:$0xff]
    %v2637 = vld [vmem:[#allocation3 + $0x5c0] sm:$0xff]
    %v2638 = vld [vmem:[#allocation3 + $0x5c8] sm:$0xff]
    %v2639 = vld [vmem:[#allocation3 + $0x618] sm:$0xff]
    %v2640 = vld [vmem:[#allocation3 + $0x620] sm:$0xff]
    %v2641 = vld [vmem:[#allocation3 + $0x628] sm:$0xff]
    %v2642 = vld [vmem:[#allocation3 + $0x678] sm:$0xff]
    %v2643 = vld [vmem:[#allocation3 + $0x680] sm:$0xff]
    %v2644 = vld [vmem:[#allocation3 + $0x688] sm:$0xff]
    %v2645 = vld [vmem:[#allocation3 + $0x6d8] sm:$0xff]
    %v2646 = vld [vmem:[#allocation3 + $0x6e0] sm:$0xff]
    %v2647 = vld [vmem:[#allocation3 + $0x6e8] sm:$0xff]
    %v2648 = vld [vmem:[#allocation3 + $0x738] sm:$0xff]
    %v2649 = vld [vmem:[#allocation3 + $0x740] sm:$0xff]
    %v2650 = vld [vmem:[#allocation3 + $0x748] sm:$0xff]
    %v2651 = vld [vmem:[#allocation3 + $0x798] sm:$0xff]
    %v2652 = vld [vmem:[#allocation3 + $0x7a0] sm:$0xff]
    %v2653 = vld [vmem:[#allocation3 + $0x7a8] sm:$0xff]
    %v2654 = vld [vmem:[#allocation3 + $0x7f8] sm:$0xff]
    %v2655 = vld [vmem:[#allocation3 + $0x800] sm:$0xff]
    %v2656 = vld [vmem:[#allocation3 + $0x808] sm:$0xff]
    %v2657 = vld [vmem:[#allocation3 + $0x858] sm:$0xff]
    %v2658 = vld [vmem:[#allocation3 + $0x860] sm:$0xff]
    %v2659 = vld [vmem:[#allocation3 + $0x868] sm:$0xff]
    %v2660 = vld [vmem:[#allocation3 + $0x8b8] sm:$0xff]
    %v2661 = vld [vmem:[#allocation3 + $0x8c0] sm:$0xff]
    %v2662 = vld [vmem:[#allocation3 + $0x8c8] sm:$0xff]
    %2663 = vmatprep.subr.bf16.mxu0 %v2592
    %2664 = vmatpush1.bf16.msra.mxu0 %v2591
    %2665 = vmatprep.subr.bf16.mxu0 %v2595
    %2666 = vmatpush1.bf16.msra.mxu0 %v2594
    %2667 = vmatprep.subr.bf16.mxu0 %v2598
    %2668 = vmatpush1.bf16.msra.mxu0 %v2597
    %2669 = vmatprep.subr.bf16.mxu0 %v2601
    %2670 = vmatpush1.bf16.msra.mxu0 %v2600
    %2671 = vmatprep.subr.bf16.mxu0 %v2604
    %2672 = vmatpush1.bf16.msra.mxu0 %v2603
    %2673 = vmatprep.subr.bf16.mxu0 %v2607
    %2674 = vmatpush1.bf16.msra.mxu0 %v2606
    %2675 = vmatprep.subr.bf16.mxu0 %v2610
    %2676 = vmatpush1.bf16.msra.mxu0 %v2609
    %2677 = vmatprep.subr.bf16.mxu0 %v2613
    %2678 = vmatpush1.bf16.msra.mxu0 %v2612
    %2679 = vmatprep.subr.bf16.mxu0 %v2616
    %2680 = vmatpush1.bf16.msra.mxu0 %v2615
    %2681 = vmatprep.subr.bf16.mxu0 %v2619
    %2682 = vmatpush1.bf16.msra.mxu0 %v2618
    %2683 = vmatprep.subr.bf16.mxu0 %v2622
    %2684 = vmatpush1.bf16.msra.mxu0 %v2621
    %2685 = vmatprep.subr.bf16.mxu0 %v2625
    %2686 = vmatpush1.bf16.msra.mxu0 %v2624
    %2687 = vmatprep.subr.bf16.mxu0 %v2628
    %2688 = vmatpush1.bf16.msra.mxu0 %v2627
    %2689 = vmatprep.subr.bf16.mxu0 %v2631
    %2690 = vmatpush1.bf16.msra.mxu0 %v2630
    %2691 = vmatprep.subr.bf16.mxu0 %v2634
    %2692 = vmatpush1.bf16.msra.mxu0 %v2633
    %2693 = vmatprep.subr.bf16.mxu0 %v2637
    %2694 = vmatpush1.bf16.msra.mxu0 %v2636
    %2695 = vmatprep.mubr.bf16.mxu0 0
    %2696 = vmatmul.mubr.bf16.gmra.mrb[0].mxu0 0
    %v2697 = vpop.f32.mrb[0].mxu0
    %v2698 = vadd.f32 0.0, %v2697
    %v2699 = vpop.f32.mrb[0].mxu0
    %v2700 = vadd.f32 0.0, %v2699
    %v2701 = vpop.f32.mrb[0].mxu0
    %v2702 = vpop.f32.mrb[0].mxu0
    %2703 = vdwg.mxu0
    %2704 = vmatprep.subr.bf16.mxu0 %v2640
    %2705 = vmatpush1.bf16.msra.mxu0 %v2639
    %2706 = vmatprep.subr.bf16.mxu0 %v2643
    %2707 = vmatpush1.bf16.msra.mxu0 %v2642
    %2708 = vmatprep.subr.bf16.mxu0 %v2646
    %2709 = vmatpush1.bf16.msra.mxu0 %v2645
    %2710 = vmatprep.subr.bf16.mxu0 %v2649
    %2711 = vmatpush1.bf16.msra.mxu0 %v2648
    %2712 = vmatprep.subr.bf16.mxu0 %v2652
    %2713 = vmatpush1.bf16.msra.mxu0 %v2651
    %2714 = vmatprep.subr.bf16.mxu0 %v2655
    %2715 = vmatpush1.bf16.msra.mxu0 %v2654
    %2716 = vmatprep.subr.bf16.mxu0 %v2658
    %2717 = vmatpush1.bf16.msra.mxu0 %v2657
    %2718 = vmatprep.subr.bf16.mxu0 %v2661
    %2719 = vmatpush1.bf16.msra.mxu0 %v2660
    %2720 = vmatprep.subr.bf16.mxu0 0
    %2721 = vmatpush1.bf16.msra.mxu0 0
    %2722 = vmatprep.subr.bf16.mxu0 0
    %2723 = vmatpush1.bf16.msra.mxu0 0
    %2724 = vmatprep.subr.bf16.mxu0 0
    %2725 = vmatpush1.bf16.msra.mxu0 0
    %2726 = vmatprep.subr.bf16.mxu0 0
    %2727 = vmatpush1.bf16.msra.mxu0 0
    %2728 = vmatprep.subr.bf16.mxu0 0
    %2729 = vmatpush1.bf16.msra.mxu0 0
    %2730 = vmatprep.subr.bf16.mxu0 0
    %2731 = vmatpush1.bf16.msra.mxu0 0
    %2732 = vmatprep.subr.bf16.mxu0 0
    %2733 = vmatpush1.bf16.msra.mxu0 0
    %2734 = vmatprep.subr.bf16.mxu0 0
    %2735 = vmatpush1.bf16.msra.mxu0 0
    %2736 = vmatprep.mubr.bf16.mxu0 0
    %2737 = vmatmul.mubr.bf16.gmra.mrb[0].mxu0 0
    %v2738 = vpop.f32.mrb[0].mxu0
    %v2739 = vadd.f32 %v2698, %v2738
    %v2740 = vpop.f32.mrb[0].mxu0
    %v2741 = vadd.f32 %v2700, %v2740
    %v2742 = vpop.f32.mrb[0].mxu0
    %v2743 = vpop.f32.mrb[0].mxu0
    %2744 = vdwg.mxu0
    %2745 = vmatprep.subr.bf16.mxu0 0
    %2746 = vmatpush1.bf16.msra.mxu0 %v2593
    %2747 = vmatprep.subr.bf16.mxu0 0
    %2748 = vmatpush1.bf16.msra.mxu0 %v2596
    %2749 = vmatprep.subr.bf16.mxu0 0
    %2750 = vmatpush1.bf16.msra.mxu0 %v2599
    %2751 = vmatprep.subr.bf16.mxu0 0
    %2752 = vmatpush1.bf16.msra.mxu0 %v2602
    %2753 = vmatprep.subr.bf16.mxu0 0
    %2754 = vmatpush1.bf16.msra.mxu0 %v2605
    %2755 = vmatprep.subr.bf16.mxu0 0
    %2756 = vmatpush1.bf16.msra.mxu0 %v2608
    %2757 = vmatprep.subr.bf16.mxu0 0
    %2758 = vmatpush1.bf16.msra.mxu0 %v2611
    %2759 = vmatprep.subr.bf16.mxu0 0
    %2760 = vmatpush1.bf16.msra.mxu0 %v2614
    %2761 = vmatprep.subr.bf16.mxu0 0
    %2762 = vmatpush1.bf16.msra.mxu0 %v2617
    %2763 = vmatprep.subr.bf16.mxu0 0
    %2764 = vmatpush1.bf16.msra.mxu0 %v2620
    %2765 = vmatprep.subr.bf16.mxu0 0
    %2766 = vmatpush1.bf16.msra.mxu0 %v2623
    %2767 = vmatprep.subr.bf16.mxu0 0
    %2768 = vmatpush1.bf16.msra.mxu0 %v2626
    %2769 = vmatprep.subr.bf16.mxu0 0
    %2770 = vmatpush1.bf16.msra.mxu0 %v2629
    %2771 = vmatprep.subr.bf16.mxu0 0
    %2772 = vmatpush1.bf16.msra.mxu0 %v2632
    %2773 = vmatprep.subr.bf16.mxu0 0
    %2774 = vmatpush1.bf16.msra.mxu0 %v2635
    %2775 = vmatprep.subr.bf16.mxu0 0
    %2776 = vmatpush1.bf16.msra.mxu0 %v2638
    %2777 = vmatprep.mubr.bf16.mxu0 0
    %2778 = vmatmul.mubr.bf16.gmra.mrb[0].mxu0 0
    %v2779 = vpop.f32.mrb[0].mxu0
    %v2780 = vadd.f32 0.0, %v2779
    %v2781 = vpop.f32.mrb[0].mxu0
    %v2782 = vpop.f32.mrb[0].mxu0
    %v2783 = vpop.f32.mrb[0].mxu0
    %2784 = vdwg.mxu0
    %2785 = vmatprep.subr.bf16.mxu0 0
    %2786 = vmatpush1.bf16.msra.mxu0 %v2641
    %2787 = vmatprep.subr.bf16.mxu0 0
    %2788 = vmatpush1.bf16.msra.mxu0 %v2644
    %2789 = vmatprep.subr.bf16.mxu0 0
    %2790 = vmatpush1.bf16.msra.mxu0 %v2647
    %2791 = vmatprep.subr.bf16.mxu0 0
    %2792 = vmatpush1.bf16.msra.mxu0 %v2650
    %2793 = vmatprep.subr.bf16.mxu0 0
    %2794 = vmatpush1.bf16.msra.mxu0 %v2653
    %2795 = vmatprep.subr.bf16.mxu0 0
    %2796 = vmatpush1.bf16.msra.mxu0 %v2656
    %2797 = vmatprep.subr.bf16.mxu0 0
    %2798 = vmatpush1.bf16.msra.mxu0 %v2659
    %2799 = vmatprep.subr.bf16.mxu0 0
    %2800 = vmatpush1.bf16.msra.mxu0 %v2662
    %2801 = vmatprep.subr.bf16.mxu0 0
    %2802 = vmatpush1.bf16.msra.mxu0 0
    %2803 = vmatprep.subr.bf16.mxu0 0
    %2804 = vmatpush1.bf16.msra.mxu0 0
    %2805 = vmatprep.subr.bf16.mxu0 0
    %2806 = vmatpush1.bf16.msra.mxu0 0
    %2807 = vmatprep.subr.bf16.mxu0 0
    %2808 = vmatpush1.bf16.msra.mxu0 0
    %2809 = vmatprep.subr.bf16.mxu0 0
    %2810 = vmatpush1.bf16.msra.mxu0 0
    %2811 = vmatprep.subr.bf16.mxu0 0
    %2812 = vmatpush1.bf16.msra.mxu0 0
    %2813 = vmatprep.subr.bf16.mxu0 0
    %2814 = vmatpush1.bf16.msra.mxu0 0
    %2815 = vmatprep.subr.bf16.mxu0 0
    %2816 = vmatpush1.bf16.msra.mxu0 0
    %2817 = vmatprep.mubr.bf16.mxu0 0
    %2818 = vmatmul.mubr.bf16.gmra.mrb[0].mxu0 0
    %v2819 = vpop.f32.mrb[0].mxu0
    %v2820 = vadd.f32 %v2780, %v2819
    %v2821 = vpop.f32.mrb[0].mxu0
    %v2822 = vpop.f32.mrb[0].mxu0
    %v2823 = vpop.f32.mrb[0].mxu0
    %2824 = vdwg.mxu0
    %v2825 = vadd.f32 %v2588, %v2739
    %v2826 = vadd.f32 %v2589, %v2741
    %v2827 = vadd.f32 %v2590, %v2820
    %v2828 = vmul.f32 %v2825, 0.5
    %v2829 = vmul.f32 %v2826, 0.5
    %v2830 = vmul.f32 %v2827, 0.5
    %v2831 = vtanh.pop %v2828
    %v2832 = vtanh.pop %v2829
    %v2833 = vtanh.pop %v2830
    %v2834 = vmul.f32 %v2831, 0.5
    %v2835 = vmul.f32 %v2832, 0.5
    %v2836 = vmul.f32 %v2833, 0.5
    %v2837 = vadd.f32 %v2834, 0.5
    %v2838 = vadd.f32 %v2835, 0.5
    %v2839 = vadd.f32 %v2836, 0.5
    %v2840 = vmul.f32 %v2837, 0.0
    %v2841 = vmul.f32 %v2838, 0.0
    %v2842 = vmul.f32 %v2839, 0.0
    %v2843 = vld [vmem:[#allocation2] sm:$0xff]
    %v2844 = vld [vmem:[#allocation2 + $0x8] sm:$0xff]
    %v2845 = vld [vmem:[#allocation2 + $0x10] sm:$0xff]
    %v2846 = vld [vmem:[#allocation3] sm:$0xff]
    %v2847 = vld [vmem:[#allocation3 + $0x8] sm:$0xff]
    %v2848 = vld [vmem:[#allocation3 + $0x10] sm:$0xff]
    %v2849 = vld [vmem:[#allocation3 + $0x60] sm:$0xff]
    %v2850 = vld [vmem:[#allocation3 + $0x68] sm:$0xff]
    %v2851 = vld [vmem:[#allocation3 + $0x70] sm:$0xff]
    %v2852 = vld [vmem:[#allocation3 + $0xc0] sm:$0xff]
    %v2853 = vld [vmem:[#allocation3 + $0xc8] sm:$0xff]
    %v2854 = vld [vmem:[#allocation3 + $0xd0] sm:$0xff]
    %v2855 = vld [vmem:[#allocation3 + $0x120] sm:$0xff]
    %v2856 = vld [vmem:[#allocation3 + $0x128] sm:$0xff]
    %v2857 = vld [vmem:[#allocation3 + $0x130] sm:$0xff]
    %v2858 = vld [vmem:[#allocation3 + $0x180] sm:$0xff]
    %v2859 = vld [vmem:[#allocation3 + $0x188] sm:$0xff]
    %v2860 = vld [vmem:[#allocation3 + $0x190] sm:$0xff]
    %v2861 = vld [vmem:[#allocation3 + $0x1e0] sm:$0xff]
    %v2862 = vld [vmem:[#allocation3 + $0x1e8] sm:$0xff]
    %v2863 = vld [vmem:[#allocation3 + $0x1f0] sm:$0xff]
    %v2864 = vld [vmem:[#allocation3 + $0x240] sm:$0xff]
    %v2865 = vld [vmem:[#allocation3 + $0x248] sm:$0xff]
    %v2866 = vld [vmem:[#allocation3 + $0x250] sm:$0xff]
    %v2867 = vld [vmem:[#allocation3 + $0x2a0] sm:$0xff]
    %v2868 = vld [vmem:[#allocation3 + $0x2a8] sm:$0xff]
    %v2869 = vld [vmem:[#allocation3 + $0x2b0] sm:$0xff]
    %v2870 = vld [vmem:[#allocation3 + $0x300] sm:$0xff]
    %v2871 = vld [vmem:[#allocation3 + $0x308] sm:$0xff]
    %v2872 = vld [vmem:[#allocation3 + $0x310] sm:$0xff]
    %v2873 = vld [vmem:[#allocation3 + $0x360] sm:$0xff]
    %v2874 = vld [vmem:[#allocation3 + $0x368] sm:$0xff]
    %v2875 = vld [vmem:[#allocation3 + $0x370] sm:$0xff]
    %v2876 = vld [vmem:[#allocation3 + $0x3c0] sm:$0xff]
    %v2877 = vld [vmem:[#allocation3 + $0x3c8] sm:$0xff]
    %v2878 = vld [vmem:[#allocation3 + $0x3d0] sm:$0xff]
    %v2879 = vld [vmem:[#allocation3 + $0x420] sm:$0xff]
    %v2880 = vld [vmem:[#allocation3 + $0x428] sm:$0xff]
    %v2881 = vld [vmem:[#allocation3 + $0x430] sm:$0xff]
    %v2882 = vld [vmem:[#allocation3 + $0x480] sm:$0xff]
    %v2883 = vld [vmem:[#allocation3 + $0x488] sm:$0xff]
    %v2884 = vld [vmem:[#allocation3 + $0x490] sm:$0xff]
    %v2885 = vld [vmem:[#allocation3 + $0x4e0] sm:$0xff]
    %v2886 = vld [vmem:[#allocation3 + $0x4e8] sm:$0xff]
    %v2887 = vld [vmem:[#allocation3 + $0x4f0] sm:$0xff]
    %v2888 = vld [vmem:[#allocation3 + $0x540] sm:$0xff]
    %v2889 = vld [vmem:[#allocation3 + $0x548] sm:$0xff]
    %v2890 = vld [vmem:[#allocation3 + $0x550] sm:$0xff]
    %v2891 = vld [vmem:[#allocation3 + $0x5a0] sm:$0xff]
    %v2892 = vld [vmem:[#allocation3 + $0x5a8] sm:$0xff]
    %v2893 = vld [vmem:[#allocation3 + $0x5b0] sm:$0xff]
    %v2894 = vld [vmem:[#allocation3 + $0x600] sm:$0xff]
    %v2895 = vld [vmem:[#allocation3 + $0x608] sm:$0xff]
    %v2896 = vld [vmem:[#allocation3 + $0x610] sm:$0xff]
    %v2897 = vld [vmem:[#allocation3 + $0x660] sm:$0xff]
    %v2898 = vld [vmem:[#allocation3 + $0x668] sm:$0xff]
    %v2899 = vld [vmem:[#allocation3 + $0x670] sm:$0xff]
    %v2900 = vld [vmem:[#allocation3 + $0x6c0] sm:$0xff]
    %v2901 = vld [vmem:[#allocation3 + $0x6c8] sm:$0xff]
    %v2902 = vld [vmem:[#allocation3 + $0x6d0] sm:$0xff]
    %v2903 = vld [vmem:[#allocation3 + $0x720] sm:$0xff]
    %v2904 = vld [vmem:[#allocation3 + $0x728] sm:$0xff]
    %v2905 = vld [vmem:[#allocation3 + $0x730] sm:$0xff]
    %v2906 = vld [vmem:[#allocation3 + $0x780] sm:$0xff]
    %v2907 = vld [vmem:[#allocation3 + $0x788] sm:$0xff]
    %v2908 = vld [vmem:[#allocation3 + $0x790] sm:$0xff]
    %v2909 = vld [vmem:[#allocation3 + $0x7e0] sm:$0xff]
    %v2910 = vld [vmem:[#allocation3 + $0x7e8] sm:$0xff]
    %v2911 = vld [vmem:[#allocation3 + $0x7f0] sm:$0xff]
    %v2912 = vld [vmem:[#allocation3 + $0x840] sm:$0xff]
    %v2913 = vld [vmem:[#allocation3 + $0x848] sm:$0xff]
    %v2914 = vld [vmem:[#allocation3 + $0x850] sm:$0xff]
    %v2915 = vld [vmem:[#allocation3 + $0x8a0] sm:$0xff]
    %v2916 = vld [vmem:[#allocation3 + $0x8a8] sm:$0xff]
    %v2917 = vld [vmem:[#allocation3 + $0x8b0] sm:$0xff]
    %2918 = vmatprep.subr.bf16.mxu0 %v2847
    %2919 = vmatpush1.bf16.msra.mxu0 %v2846
    %2920 = vmatprep.subr.bf16.mxu0 %v2850
    %2921 = vmatpush1.bf16.msra.mxu0 %v2849
    %2922 = vmatprep.subr.bf16.mxu0 %v2853
    %2923 = vmatpush1.bf16.msra.mxu0 %v2852
    %2924 = vmatprep.subr.bf16.mxu0 %v2856
    %2925 = vmatpush1.bf16.msra.mxu0 %v2855
    %2926 = vmatprep.subr.bf16.mxu0 %v2859
    %2927 = vmatpush1.bf16.msra.mxu0 %v2858
    %2928 = vmatprep.subr.bf16.mxu0 %v2862
    %2929 = vmatpush1.bf16.msra.mxu0 %v2861
    %2930 = vmatprep.subr.bf16.mxu0 %v2865
    %2931 = vmatpush1.bf16.msra.mxu0 %v2864
    %2932 = vmatprep.subr.bf16.mxu0 %v2868
    %2933 = vmatpush1.bf16.msra.mxu0 %v2867
    %2934 = vmatprep.subr.bf16.mxu0 %v2871
    %2935 = vmatpush1.bf16.msra.mxu0 %v2870
    %2936 = vmatprep.subr.bf16.mxu0 %v2874
    %2937 = vmatpush1.bf16.msra.mxu0 %v2873
    %2938 = vmatprep.subr.bf16.mxu0 %v2877
    %2939 = vmatpush1.bf16.msra.mxu0 %v2876
    %2940 = vmatprep.subr.bf16.mxu0 %v2880
    %2941 = vmatpush1.bf16.msra.mxu0 %v2879
    %2942 = vmatprep.subr.bf16.mxu0 %v2883
    %2943 = vmatpush1.bf16.msra.mxu0 %v2882
    %2944 = vmatprep.subr.bf16.mxu0 %v2886
    %2945 = vmatpush1.bf16.msra.mxu0 %v2885
    %2946 = vmatprep.subr.bf16.mxu0 %v2889
    %2947 = vmatpush1.bf16.msra.mxu0 %v2888
    %2948 = vmatprep.subr.bf16.mxu0 %v2892
    %2949 = vmatpush1.bf16.msra.mxu0 %v2891
    %2950 = vmatprep.mubr.bf16.mxu0 0
    %2951 = vmatmul.mubr.bf16.gmra.mrb[0].mxu0 0
    %v2952 = vpop.f32.mrb[0].mxu0
    %v2953 = vadd.f32 0.0, %v2952
    %v2954 = vpop.f32.mrb[0].mxu0
    %v2955 = vadd.f32 0.0, %v2954
    %v2956 = vpop.f32.mrb[0].mxu0
    %v2957 = vpop.f32.mrb[0].mxu0
    %2958 = vdwg.mxu0
    %2959 = vmatprep.subr.bf16.mxu0 %v2895
    %2960 = vmatpush1.bf16.msra.mxu0 %v2894
    %2961 = vmatprep.subr.bf16.mxu0 %v2898
    %2962 = vmatpush1.bf16.msra.mxu0 %v2897
    %2963 = vmatprep.subr.bf16.mxu0 %v2901
    %2964 = vmatpush1.bf16.msra.mxu0 %v2900
    %2965 = vmatprep.subr.bf16.mxu0 %v2904
    %2966 = vmatpush1.bf16.msra.mxu0 %v2903
    %2967 = vmatprep.subr.bf16.mxu0 %v2907
    %2968 = vmatpush1.bf16.msra.mxu0 %v2906
    %2969 = vmatprep.subr.bf16.mxu0 %v2910
    %2970 = vmatpush1.bf16.msra.mxu0 %v2909
    %2971 = vmatprep.subr.bf16.mxu0 %v2913
    %2972 = vmatpush1.bf16.msra.mxu0 %v2912
    %2973 = vmatprep.subr.bf16.mxu0 %v2916
    %2974 = vmatpush1.bf16.msra.mxu0 %v2915
    %2975 = vmatprep.subr.bf16.mxu0 0
    %2976 = vmatpush1.bf16.msra.mxu0 0
    %2977 = vmatprep.subr.bf16.mxu0 0
    %2978 = vmatpush1.bf16.msra.mxu0 0
    %2979 = vmatprep.subr.bf16.mxu0 0
    %2980 = vmatpush1.bf16.msra.mxu0 0
    %2981 = vmatprep.subr.bf16.mxu0 0
    %2982 = vmatpush1.bf16.msra.mxu0 0
    %2983 = vmatprep.subr.bf16.mxu0 0
    %2984 = vmatpush1.bf16.msra.mxu0 0
    %2985 = vmatprep.subr.bf16.mxu0 0
    %2986 = vmatpush1.bf16.msra.mxu0 0
    %2987 = vmatprep.subr.bf16.mxu0 0
    %2988 = vmatpush1.bf16.msra.mxu0 0
    %2989 = vmatprep.subr.bf16.mxu0 0
    %2990 = vmatpush1.bf16.msra.mxu0 0
    %2991 = vmatprep.mubr.bf16.mxu0 0
    %2992 = vmatmul.mubr.bf16.gmra.mrb[0].mxu0 0
    %v2993 = vpop.f32.mrb[0].mxu0
    %v2994 = vadd.f32 %v2953, %v2993
    %v2995 = vpop.f32.mrb[0].mxu0
    %v2996 = vadd.f32 %v2955, %v2995
    %v2997 = vpop.f32.mrb[0].mxu0
    %v2998 = vpop.f32.mrb[0].mxu0
    %2999 = vdwg.mxu0
    %3000 = vmatprep.subr.bf16.mxu0 0
    %3001 = vmatpush1.bf16.msra.mxu0 %v2848
    %3002 = vmatprep.subr.bf16.mxu0 0
    %3003 = vmatpush1.bf16.msra.mxu0 %v2851
    %3004 = vmatprep.subr.bf16.mxu0 0
    %3005 = vmatpush1.bf16.msra.mxu0 %v2854
    %3006 = vmatprep.subr.bf16.mxu0 0
    %3007 = vmatpush1.bf16.msra.mxu0 %v2857
    %3008 = vmatprep.subr.bf16.mxu0 0
    %3009 = vmatpush1.bf16.msra.mxu0 %v2860
    %3010 = vmatprep.subr.bf16.mxu0 0
    %3011 = vmatpush1.bf16.msra.mxu0 %v2863
    %3012 = vmatprep.subr.bf16.mxu0 0
    %3013 = vmatpush1.bf16.msra.mxu0 %v2866
    %3014 = vmatprep.subr.bf16.mxu0 0
    %3015 = vmatpush1.bf16.msra.mxu0 %v2869
    %3016 = vmatprep.subr.bf16.mxu0 0
    %3017 = vmatpush1.bf16.msra.mxu0 %v2872
    %3018 = vmatprep.subr.bf16.mxu0 0
    %3019 = vmatpush1.bf16.msra.mxu0 %v2875
    %3020 = vmatprep.subr.bf16.mxu0 0
    %3021 = vmatpush1.bf16.msra.mxu0 %v2878
    %3022 = vmatprep.subr.bf16.mxu0 0
    %3023 = vmatpush1.bf16.msra.mxu0 %v2881
    %3024 = vmatprep.subr.bf16.mxu0 0
    %3025 = vmatpush1.bf16.msra.mxu0 %v2884
    %3026 = vmatprep.subr.bf16.mxu0 0
    %3027 = vmatpush1.bf16.msra.mxu0 %v2887
    %3028 = vmatprep.subr.bf16.mxu0 0
    %3029 = vmatpush1.bf16.msra.mxu0 %v2890
    %3030 = vmatprep.subr.bf16.mxu0 0
    %3031 = vmatpush1.bf16.msra.mxu0 %v2893
    %3032 = vmatprep.mubr.bf16.mxu0 0
    %3033 = vmatmul.mubr.bf16.gmra.mrb[0].mxu0 0
    %v3034 = vpop.f32.mrb[0].mxu0
    %v3035 = vadd.f32 0.0, %v3034
    %v3036 = vpop.f32.mrb[0].mxu0
    %v3037 = vpop.f32.mrb[0].mxu0
    %v3038 = vpop.f32.mrb[0].mxu0
    %3039 = vdwg.mxu0
    %3040 = vmatprep.subr.bf16.mxu0 0
    %3041 = vmatpush1.bf16.msra.mxu0 %v2896
    %3042 = vmatprep.subr.bf16.mxu0 0
    %3043 = vmatpush1.bf16.msra.mxu0 %v2899
    %3044 = vmatprep.subr.bf16.mxu0 0
    %3045 = vmatpush1.bf16.msra.mxu0 %v2902
    %3046 = vmatprep.subr.bf16.mxu0 0
    %3047 = vmatpush1.bf16.msra.mxu0 %v2905
    %3048 = vmatprep.subr.bf16.mxu0 0
    %3049 = vmatpush1.bf16.msra.mxu0 %v2908
    %3050 = vmatprep.subr.bf16.mxu0 0
    %3051 = vmatpush1.bf16.msra.mxu0 %v2911
    %3052 = vmatprep.subr.bf16.mxu0 0
    %3053 = vmatpush1.bf16.msra.mxu0 %v2914
    %3054 = vmatprep.subr.bf16.mxu0 0
    %3055 = vmatpush1.bf16.msra.mxu0 %v2917
    %3056 = vmatprep.subr.bf16.mxu0 0
    %3057 = vmatpush1.bf16.msra.mxu0 0
    %3058 = vmatprep.subr.bf16.mxu0 0
    %3059 = vmatpush1.bf16.msra.mxu0 0
    %3060 = vmatprep.subr.bf16.mxu0 0
    %3061 = vmatpush1.bf16.msra.mxu0 0
    %3062 = vmatprep.subr.bf16.mxu0 0
    %3063 = vmatpush1.bf16.msra.mxu0 0
    %3064 = vmatprep.subr.bf16.mxu0 0
    %3065 = vmatpush1.bf16.msra.mxu0 0
    %3066 = vmatprep.subr.bf16.mxu0 0
    %3067 = vmatpush1.bf16.msra.mxu0 0
    %3068 = vmatprep.subr.bf16.mxu0 0
    %3069 = vmatpush1.bf16.msra.mxu0 0
    %3070 = vmatprep.subr.bf16.mxu0 0
    %3071 = vmatpush1.bf16.msra.mxu0 0
    %3072 = vmatprep.mubr.bf16.mxu0 0
    %3073 = vmatmul.mubr.bf16.gmra.mrb[0].mxu0 0
    %v3074 = vpop.f32.mrb[0].mxu0
    %v3075 = vadd.f32 %v3035, %v3074
    %v3076 = vpop.f32.mrb[0].mxu0
    %v3077 = vpop.f32.mrb[0].mxu0
    %v3078 = vpop.f32.mrb[0].mxu0
    %3079 = vdwg.mxu0
    %v3080 = vadd.f32 %v2843, %v2994
    %v3081 = vadd.f32 %v2844, %v2996
    %v3082 = vadd.f32 %v2845, %v3075
    %v3083 = vmul.f32 %v3080, 0.5
    %v3084 = vmul.f32 %v3081, 0.5
    %v3085 = vmul.f32 %v3082, 0.5
    %v3086 = vtanh.pop %v3083
    %v3087 = vtanh.pop %v3084
    %v3088 = vtanh.pop %v3085
    %v3089 = vmul.f32 %v3086, 0.5
    %v3090 = vmul.f32 %v3087, 0.5
    %v3091 = vmul.f32 %v3088, 0.5
    %v3092 = vadd.f32 %v3089, 0.5
    %v3093 = vadd.f32 %v3090, 0.5
    %v3094 = vadd.f32 %v3091, 0.5
    %v3095 = vld [vmem:[#allocation2 + $0x30] sm:$0xff]
    %v3096 = vld [vmem:[#allocation2 + $0x38] sm:$0xff]
    %v3097 = vld [vmem:[#allocation2 + $0x40] sm:$0xff]
    %v3098 = vld [vmem:[#allocation3 + $0x30] sm:$0xff]
    %v3099 = vld [vmem:[#allocation3 + $0x38] sm:$0xff]
    %v3100 = vld [vmem:[#allocation3 + $0x40] sm:$0xff]
    %v3101 = vld [vmem:[#allocation3 + $0x90] sm:$0xff]
    %v3102 = vld [vmem:[#allocation3 + $0x98] sm:$0xff]
    %v3103 = vld [vmem:[#allocation3 + $0xa0] sm:$0xff]
    %v3104 = vld [vmem:[#allocation3 + $0xf0] sm:$0xff]
    %v3105 = vld [vmem:[#allocation3 + $0xf8] sm:$0xff]
    %v3106 = vld [vmem:[#allocation3 + $0x100] sm:$0xff]
    %v3107 = vld [vmem:[#allocation3 + $0x150] sm:$0xff]
    %v3108 = vld [vmem:[#allocation3 + $0x158] sm:$0xff]
    %v3109 = vld [vmem:[#allocation3 + $0x160] sm:$0xff]
    %v3110 = vld [vmem:[#allocation3 + $0x1b0] sm:$0xff]
    %v3111 = vld [vmem:[#allocation3 + $0x1b8] sm:$0xff]
    %v3112 = vld [vmem:[#allocation3 + $0x1c0] sm:$0xff]
    %v3113 = vld [vmem:[#allocation3 + $0x210] sm:$0xff]
    %v3114 = vld [vmem:[#allocation3 + $0x218] sm:$0xff]
    %v3115 = vld [vmem:[#allocation3 + $0x220] sm:$0xff]
    %v3116 = vld [vmem:[#allocation3 + $0x270] sm:$0xff]
    %v3117 = vld [vmem:[#allocation3 + $0x278] sm:$0xff]
    %v3118 = vld [vmem:[#allocation3 + $0x280] sm:$0xff]
    %v3119 = vld [vmem:[#allocation3 + $0x2d0] sm:$0xff]
    %v3120 = vld [vmem:[#allocation3 + $0x2d8] sm:$0xff]
    %v3121 = vld [vmem:[#allocation3 + $0x2e0] sm:$0xff]
    %v3122 = vld [vmem:[#allocation3 + $0x330] sm:$0xff]
    %v3123 = vld [vmem:[#allocation3 + $0x338] sm:$0xff]
    %v3124 = vld [vmem:[#allocation3 + $0x340] sm:$0xff]
    %v3125 = vld [vmem:[#allocation3 + $0x390] sm:$0xff]
    %v3126 = vld [vmem:[#allocation3 + $0x398] sm:$0xff]
    %v3127 = vld [vmem:[#allocation3 + $0x3a0] sm:$0xff]
    %v3128 = vld [vmem:[#allocation3 + $0x3f0] sm:$0xff]
    %v3129 = vld [vmem:[#allocation3 + $0x3f8] sm:$0xff]
    %v3130 = vld [vmem:[#allocation3 + $0x400] sm:$0xff]
    %v3131 = vld [vmem:[#allocation3 + $0x450] sm:$0xff]
    %v3132 = vld [vmem:[#allocation3 + $0x458] sm:$0xff]
    %v3133 = vld [vmem:[#allocation3 + $0x460] sm:$0xff]
    %v3134 = vld [vmem:[#allocation3 + $0x4b0] sm:$0xff]
    %v3135 = vld [vmem:[#allocation3 + $0x4b8] sm:$0xff]
    %v3136 = vld [vmem:[#allocation3 + $0x4c0] sm:$0xff]
    %v3137 = vld [vmem:[#allocation3 + $0x510] sm:$0xff]
    %v3138 = vld [vmem:[#allocation3 + $0x518] sm:$0xff]
    %v3139 = vld [vmem:[#allocation3 + $0x520] sm:$0xff]
    %v3140 = vld [vmem:[#allocation3 + $0x570] sm:$0xff]
    %v3141 = vld [vmem:[#allocation3 + $0x578] sm:$0xff]
    %v3142 = vld [vmem:[#allocation3 + $0x580] sm:$0xff]
    %v3143 = vld [vmem:[#allocation3 + $0x5d0] sm:$0xff]
    %v3144 = vld [vmem:[#allocation3 + $0x5d8] sm:$0xff]
    %v3145 = vld [vmem:[#allocation3 + $0x5e0] sm:$0xff]
    %v3146 = vld [vmem:[#allocation3 + $0x630] sm:$0xff]
    %v3147 = vld [vmem:[#allocation3 + $0x638] sm:$0xff]
    %v3148 = vld [vmem:[#allocation3 + $0x640] sm:$0xff]
    %v3149 = vld [vmem:[#allocation3 + $0x690] sm:$0xff]
    %v3150 = vld [vmem:[#allocation3 + $0x698] sm:$0xff]
    %v3151 = vld [vmem:[#allocation3 + $0x6a0] sm:$0xff]
    %v3152 = vld [vmem:[#allocation3 + $0x6f0] sm:$0xff]
    %v3153 = vld [vmem:[#allocation3 + $0x6f8] sm:$0xff]
    %v3154 = vld [vmem:[#allocation3 + $0x700] sm:$0xff]
    %v3155 = vld [vmem:[#allocation3 + $0x750] sm:$0xff]
    %v3156 = vld [vmem:[#allocation3 + $0x758] sm:$0xff]
    %v3157 = vld [vmem:[#allocation3 + $0x760] sm:$0xff]
    %v3158 = vld [vmem:[#allocation3 + $0x7b0] sm:$0xff]
    %v3159 = vld [vmem:[#allocation3 + $0x7b8] sm:$0xff]
    %v3160 = vld [vmem:[#allocation3 + $0x7c0] sm:$0xff]
    %v3161 = vld [vmem:[#allocation3 + $0x810] sm:$0xff]
    %v3162 = vld [vmem:[#allocation3 + $0x818] sm:$0xff]
    %v3163 = vld [vmem:[#allocation3 + $0x820] sm:$0xff]
    %v3164 = vld [vmem:[#allocation3 + $0x870] sm:$0xff]
    %v3165 = vld [vmem:[#allocation3 + $0x878] sm:$0xff]
    %v3166 = vld [vmem:[#allocation3 + $0x880] sm:$0xff]
    %v3167 = vld [vmem:[#allocation3 + $0x8d0] sm:$0xff]
    %v3168 = vld [vmem:[#allocation3 + $0x8d8] sm:$0xff]
    %v3169 = vld [vmem:[#allocation3 + $0x8e0] sm:$0xff]
    %3170 = vmatprep.subr.bf16.mxu0 %v3099
    %3171 = vmatpush1.bf16.msra.mxu0 %v3098
    %3172 = vmatprep.subr.bf16.mxu0 %v3102
    %3173 = vmatpush1.bf16.msra.mxu0 %v3101
    %3174 = vmatprep.subr.bf16.mxu0 %v3105
    %3175 = vmatpush1.bf16.msra.mxu0 %v3104
    %3176 = vmatprep.subr.bf16.mxu0 %v3108
    %3177 = vmatpush1.bf16.msra.mxu0 %v3107
    %3178 = vmatprep.subr.bf16.mxu0 %v3111
    %3179 = vmatpush1.bf16.msra.mxu0 %v3110
    %3180 = vmatprep.subr.bf16.mxu0 %v3114
    %3181 = vmatpush1.bf16.msra.mxu0 %v3113
    %3182 = vmatprep.subr.bf16.mxu0 %v3117
    %3183 = vmatpush1.bf16.msra.mxu0 %v3116
    %3184 = vmatprep.subr.bf16.mxu0 %v3120
    %3185 = vmatpush1.bf16.msra.mxu0 %v3119
    %3186 = vmatprep.subr.bf16.mxu0 %v3123
    %3187 = vmatpush1.bf16.msra.mxu0 %v3122
    %3188 = vmatprep.subr.bf16.mxu0 %v3126
    %3189 = vmatpush1.bf16.msra.mxu0 %v3125
    %3190 = vmatprep.subr.bf16.mxu0 %v3129
    %3191 = vmatpush1.bf16.msra.mxu0 %v3128
    %3192 = vmatprep.subr.bf16.mxu0 %v3132
    %3193 = vmatpush1.bf16.msra.mxu0 %v3131
    %3194 = vmatprep.subr.bf16.mxu0 %v3135
    %3195 = vmatpush1.bf16.msra.mxu0 %v3134
    %3196 = vmatprep.subr.bf16.mxu0 %v3138
    %3197 = vmatpush1.bf16.msra.mxu0 %v3137
    %3198 = vmatprep.subr.bf16.mxu0 %v3141
    %3199 = vmatpush1.bf16.msra.mxu0 %v3140
    %3200 = vmatprep.subr.bf16.mxu0 %v3144
    %3201 = vmatpush1.bf16.msra.mxu0 %v3143
    %3202 = vmatprep.mubr.bf16.mxu0 0
    %3203 = vmatmul.mubr.bf16.gmra.mrb[0].mxu0 0
    %v3204 = vpop.f32.mrb[0].mxu0
    %v3205 = vadd.f32 0.0, %v3204
    %v3206 = vpop.f32.mrb[0].mxu0
    %v3207 = vadd.f32 0.0, %v3206
    %v3208 = vpop.f32.mrb[0].mxu0
    %v3209 = vpop.f32.mrb[0].mxu0
    %3210 = vdwg.mxu0
    %3211 = vmatprep.subr.bf16.mxu0 %v3147
    %3212 = vmatpush1.bf16.msra.mxu0 %v3146
    %3213 = vmatprep.subr.bf16.mxu0 %v3150
    %3214 = vmatpush1.bf16.msra.mxu0 %v3149
    %3215 = vmatprep.subr.bf16.mxu0 %v3153
    %3216 = vmatpush1.bf16.msra.mxu0 %v3152
    %3217 = vmatprep.subr.bf16.mxu0 %v3156
    %3218 = vmatpush1.bf16.msra.mxu0 %v3155
    %3219 = vmatprep.subr.bf16.mxu0 %v3159
    %3220 = vmatpush1.bf16.msra.mxu0 %v3158
    %3221 = vmatprep.subr.bf16.mxu0 %v3162
    %3222 = vmatpush1.bf16.msra.mxu0 %v3161
    %3223 = vmatprep.subr.bf16.mxu0 %v3165
    %3224 = vmatpush1.bf16.msra.mxu0 %v3164
    %3225 = vmatprep.subr.bf16.mxu0 %v3168
    %3226 = vmatpush1.bf16.msra.mxu0 %v3167
    %3227 = vmatprep.subr.bf16.mxu0 0
    %3228 = vmatpush1.bf16.msra.mxu0 0
    %3229 = vmatprep.subr.bf16.mxu0 0
    %3230 = vmatpush1.bf16.msra.mxu0 0
    %3231 = vmatprep.subr.bf16.mxu0 0
    %3232 = vmatpush1.bf16.msra.mxu0 0
    %3233 = vmatprep.subr.bf16.mxu0 0
    %3234 = vmatpush1.bf16.msra.mxu0 0
    %3235 = vmatprep.subr.bf16.mxu0 0
    %3236 = vmatpush1.bf16.msra.mxu0 0
    %3237 = vmatprep.subr.bf16.mxu0 0
    %3238 = vmatpush1.bf16.msra.mxu0 0
    %3239 = vmatprep.subr.bf16.mxu0 0
    %3240 = vmatpush1.bf16.msra.mxu0 0
    %3241 = vmatprep.subr.bf16.mxu0 0
    %3242 = vmatpush1.bf16.msra.mxu0 0
    %3243 = vmatprep.mubr.bf16.mxu0 0
    %3244 = vmatmul.mubr.bf16.gmra.mrb[0].mxu0 0
    %v3245 = vpop.f32.mrb[0].mxu0
    %v3246 = vadd.f32 %v3205, %v3245
    %v3247 = vpop.f32.mrb[0].mxu0
    %v3248 = vadd.f32 %v3207, %v3247
    %v3249 = vpop.f32.mrb[0].mxu0
    %v3250 = vpop.f32.mrb[0].mxu0
    %3251 = vdwg.mxu0
    %3252 = vmatprep.subr.bf16.mxu0 0
    %3253 = vmatpush1.bf16.msra.mxu0 %v3100
    %3254 = vmatprep.subr.bf16.mxu0 0
    %3255 = vmatpush1.bf16.msra.mxu0 %v3103
    %3256 = vmatprep.subr.bf16.mxu0 0
    %3257 = vmatpush1.bf16.msra.mxu0 %v3106
    %3258 = vmatprep.subr.bf16.mxu0 0
    %3259 = vmatpush1.bf16.msra.mxu0 %v3109
    %3260 = vmatprep.subr.bf16.mxu0 0
    %3261 = vmatpush1.bf16.msra.mxu0 %v3112
    %3262 = vmatprep.subr.bf16.mxu0 0
    %3263 = vmatpush1.bf16.msra.mxu0 %v3115
    %3264 = vmatprep.subr.bf16.mxu0 0
    %3265 = vmatpush1.bf16.msra.mxu0 %v3118
    %3266 = vmatprep.subr.bf16.mxu0 0
    %3267 = vmatpush1.bf16.msra.mxu0 %v3121
    %3268 = vmatprep.subr.bf16.mxu0 0
    %3269 = vmatpush1.bf16.msra.mxu0 %v3124
    %3270 = vmatprep.subr.bf16.mxu0 0
    %3271 = vmatpush1.bf16.msra.mxu0 %v3127
    %3272 = vmatprep.subr.bf16.mxu0 0
    %3273 = vmatpush1.bf16.msra.mxu0 %v3130
    %3274 = vmatprep.subr.bf16.mxu0 0
    %3275 = vmatpush1.bf16.msra.mxu0 %v3133
    %3276 = vmatprep.subr.bf16.mxu0 0
    %3277 = vmatpush1.bf16.msra.mxu0 %v3136
    %3278 = vmatprep.subr.bf16.mxu0 0
    %3279 = vmatpush1.bf16.msra.mxu0 %v3139
    %3280 = vmatprep.subr.bf16.mxu0 0
    %3281 = vmatpush1.bf16.msra.mxu0 %v3142
    %3282 = vmatprep.subr.bf16.mxu0 0
    %3283 = vmatpush1.bf16.msra.mxu0 %v3145
    %3284 = vmatprep.mubr.bf16.mxu0 0
    %3285 = vmatmul.mubr.bf16.gmra.mrb[0].mxu0 0
    %v3286 = vpop.f32.mrb[0].mxu0
    %v3287 = vadd.f32 0.0, %v3286
    %v3288 = vpop.f32.mrb[0].mxu0
    %v3289 = vpop.f32.mrb[0].mxu0
    %v3290 = vpop.f32.mrb[0].mxu0
    %3291 = vdwg.mxu0
    %3292 = vmatprep.subr.bf16.mxu0 0
    %3293 = vmatpush1.bf16.msra.mxu0 %v3148
    %3294 = vmatprep.subr.bf16.mxu0 0
    %3295 = vmatpush1.bf16.msra.mxu0 %v3151
    %3296 = vmatprep.subr.bf16.mxu0 0
    %3297 = vmatpush1.bf16.msra.mxu0 %v3154
    %3298 = vmatprep.subr.bf16.mxu0 0
    %3299 = vmatpush1.bf16.msra.mxu0 %v3157
    %3300 = vmatprep.subr.bf16.mxu0 0
    %3301 = vmatpush1.bf16.msra.mxu0 %v3160
    %3302 = vmatprep.subr.bf16.mxu0 0
    %3303 = vmatpush1.bf16.msra.mxu0 %v3163
    %3304 = vmatprep.subr.bf16.mxu0 0
    %3305 = vmatpush1.bf16.msra.mxu0 %v3166
    %3306 = vmatprep.subr.bf16.mxu0 0
    %3307 = vmatpush1.bf16.msra.mxu0 %v3169
    %3308 = vmatprep.subr.bf16.mxu0 0
    %3309 = vmatpush1.bf16.msra.mxu0 0
    %3310 = vmatprep.subr.bf16.mxu0 0
    %3311 = vmatpush1.bf16.msra.mxu0 0
    %3312 = vmatprep.subr.bf16.mxu0 0
    %3313 = vmatpush1.bf16.msra.mxu0 0
    %3314 = vmatprep.subr.bf16.mxu0 0
    %3315 = vmatpush1.bf16.msra.mxu0 0
    %3316 = vmatprep.subr.bf16.mxu0 0
    %3317 = vmatpush1.bf16.msra.mxu0 0
    %3318 = vmatprep.subr.bf16.mxu0 0
    %3319 = vmatpush1.bf16.msra.mxu0 0
    %3320 = vmatprep.subr.bf16.mxu0 0
    %3321 = vmatpush1.bf16.msra.mxu0 0
    %3322 = vmatprep.subr.bf16.mxu0 0
    %3323 = vmatpush1.bf16.msra.mxu0 0
    %3324 = vmatprep.mubr.bf16.mxu0 0
    %3325 = vmatmul.mubr.bf16.gmra.mrb[0].mxu0 0
    %v3326 = vpop.f32.mrb[0].mxu0
    %v3327 = vadd.f32 %v3287, %v3326
    %v3328 = vpop.f32.mrb[0].mxu0
    %v3329 = vpop.f32.mrb[0].mxu0
    %v3330 = vpop.f32.mrb[0].mxu0
    %3331 = vdwg.mxu0
    %v3332 = vadd.f32 %v3095, %v3246
    %v3333 = vadd.f32 %v3096, %v3248
    %v3334 = vadd.f32 %v3097, %v3327
    %v3335 = vtanh.pop %v3332
    %v3336 = vtanh.pop %v3333
    %v3337 = vtanh.pop %v3334
    %v3338 = vmul.f32 %v3092, %v3335
    %v3339 = vmul.f32 %v3093, %v3336
    %v3340 = vmul.f32 %v3094, %v3337
    %v3341 = vadd.f32 %v2840, %v3338
    %v3342 = vadd.f32 %v2841, %v3339
    %v3343 = vadd.f32 %v2842, %v3340
    %v3344 = vld [vmem:[#allocation2 + $0x48] sm:$0xff]
    %v3345 = vld [vmem:[#allocation2 + $0x50] sm:$0xff]
    %v3346 = vld [vmem:[#allocation2 + $0x58] sm:$0xff]
    %v3347 = vld [vmem:[#allocation3 + $0x48] sm:$0xff]
    %v3348 = vld [vmem:[#allocation3 + $0x50] sm:$0xff]
    %v3349 = vld [vmem:[#allocation3 + $0x58] sm:$0xff]
    %v3350 = vld [vmem:[#allocation3 + $0xa8] sm:$0xff]
    %v3351 = vld [vmem:[#allocation3 + $0xb0] sm:$0xff]
    %v3352 = vld [vmem:[#allocation3 + $0xb8] sm:$0xff]
    %v3353 = vld [vmem:[#allocation3 + $0x108] sm:$0xff]
    %v3354 = vld [vmem:[#allocation3 + $0x110] sm:$0xff]
    %v3355 = vld [vmem:[#allocation3 + $0x118] sm:$0xff]
    %v3356 = vld [vmem:[#allocation3 + $0x168] sm:$0xff]
    %v3357 = vld [vmem:[#allocation3 + $0x170] sm:$0xff]
    %v3358 = vld [vmem:[#allocation3 + $0x178] sm:$0xff]
    %v3359 = vld [vmem:[#allocation3 + $0x1c8] sm:$0xff]
    %v3360 = vld [vmem:[#allocation3 + $0x1d0] sm:$0xff]
    %v3361 = vld [vmem:[#allocation3 + $0x1d8] sm:$0xff]
    %v3362 = vld [vmem:[#allocation3 + $0x228] sm:$0xff]
    %v3363 = vld [vmem:[#allocation3 + $0x230] sm:$0xff]
    %v3364 = vld [vmem:[#allocation3 + $0x238] sm:$0xff]
    %v3365 = vld [vmem:[#allocation3 + $0x288] sm:$0xff]
    %v3366 = vld [vmem:[#allocation3 + $0x290] sm:$0xff]
    %v3367 = vld [vmem:[#allocation3 + $0x298] sm:$0xff]
    %v3368 = vld [vmem:[#allocation3 + $0x2e8] sm:$0xff]
    %v3369 = vld [vmem:[#allocation3 + $0x2f0] sm:$0xff]
    %v3370 = vld [vmem:[#allocation3 + $0x2f8] sm:$0xff]
    %v3371 = vld [vmem:[#allocation3 + $0x348] sm:$0xff]
    %v3372 = vld [vmem:[#allocation3 + $0x350] sm:$0xff]
    %v3373 = vld [vmem:[#allocation3 + $0x358] sm:$0xff]
    %v3374 = vld [vmem:[#allocation3 + $0x3a8] sm:$0xff]
    %v3375 = vld [vmem:[#allocation3 + $0x3b0] sm:$0xff]
    %v3376 = vld [vmem:[#allocation3 + $0x3b8] sm:$0xff]
    %v3377 = vld [vmem:[#allocation3 + $0x408] sm:$0xff]
    %v3378 = vld [vmem:[#allocation3 + $0x410] sm:$0xff]
    %v3379 = vld [vmem:[#allocation3 + $0x418] sm:$0xff]
    %v3380 = vld [vmem:[#allocation3 + $0x468] sm:$0xff]
    %v3381 = vld [vmem:[#allocation3 + $0x470] sm:$0xff]
    %v3382 = vld [vmem:[#allocation3 + $0x478] sm:$0xff]
    %v3383 = vld [vmem:[#allocation3 + $0x4c8] sm:$0xff]
    %v3384 = vld [vmem:[#allocation3 + $0x4d0] sm:$0xff]
    %v3385 = vld [vmem:[#allocation3 + $0x4d8] sm:$0xff]
    %v3386 = vld [vmem:[#allocation3 + $0x528] sm:$0xff]
    %v3387 = vld [vmem:[#allocation3 + $0x530] sm:$0xff]
    %v3388 = vld [vmem:[#allocation3 + $0x538] sm:$0xff]
    %v3389 = vld [vmem:[#allocation3 + $0x588] sm:$0xff]
    %v3390 = vld [vmem:[#allocation3 + $0x590] sm:$0xff]
    %v3391 = vld [vmem:[#allocation3 + $0x598] sm:$0xff]
    %v3392 = vld [vmem:[#allocation3 + $0x5e8] sm:$0xff]
    %v3393 = vld [vmem:[#allocation3 + $0x5f0] sm:$0xff]
    %v3394 = vld [vmem:[#allocation3 + $0x5f8] sm:$0xff]
    %v3395 = vld [vmem:[#allocation3 + $0x648] sm:$0xff]
    %v3396 = vld [vmem:[#allocation3 + $0x650] sm:$0xff]
    %v3397 = vld [vmem:[#allocation3 + $0x658] sm:$0xff]
    %v3398 = vld [vmem:[#allocation3 + $0x6a8] sm:$0xff]
    %v3399 = vld [vmem:[#allocation3 + $0x6b0] sm:$0xff]
    %v3400 = vld [vmem:[#allocation3 + $0x6b8] sm:$0xff]
    %v3401 = vld [vmem:[#allocation3 + $0x708] sm:$0xff]
    %v3402 = vld [vmem:[#allocation3 + $0x710] sm:$0xff]
    %v3403 = vld [vmem:[#allocation3 + $0x718] sm:$0xff]
    %v3404 = vld [vmem:[#allocation3 + $0x768] sm:$0xff]
    %v3405 = vld [vmem:[#allocation3 + $0x770] sm:$0xff]
    %v3406 = vld [vmem:[#allocation3 + $0x778] sm:$0xff]
    %v3407 = vld [vmem:[#allocation3 + $0x7c8] sm:$0xff]
    %v3408 = vld [vmem:[#allocation3 + $0x7d0] sm:$0xff]
    %v3409 = vld [vmem:[#allocation3 + $0x7d8] sm:$0xff]
    %v3410 = vld [vmem:[#allocation3 + $0x828] sm:$0xff]
    %v3411 = vld [vmem:[#allocation3 + $0x830] sm:$0xff]
    %v3412 = vld [vmem:[#allocation3 + $0x838] sm:$0xff]
    %v3413 = vld [vmem:[#allocation3 + $0x888] sm:$0xff]
    %v3414 = vld [vmem:[#allocation3 + $0x890] sm:$0xff]
    %v3415 = vld [vmem:[#allocation3 + $0x898] sm:$0xff]
    %v3416 = vld [vmem:[#allocation3 + $0x8e8] sm:$0xff]
    %v3417 = vld [vmem:[#allocation3 + $0x8f0] sm:$0xff]
    %v3418 = vld [vmem:[#allocation3 + $0x8f8] sm:$0xff]
    %3419 = vmatprep.subr.bf16.mxu0 %v3348
    %3420 = vmatpush1.bf16.msra.mxu0 %v3347
    %3421 = vmatprep.subr.bf16.mxu0 %v3351
    %3422 = vmatpush1.bf16.msra.mxu0 %v3350
    %3423 = vmatprep.subr.bf16.mxu0 %v3354
    %3424 = vmatpush1.bf16.msra.mxu0 %v3353
    %3425 = vmatprep.subr.bf16.mxu0 %v3357
    %3426 = vmatpush1.bf16.msra.mxu0 %v3356
    %3427 = vmatprep.subr.bf16.mxu0 %v3360
    %3428 = vmatpush1.bf16.msra.mxu0 %v3359
    %3429 = vmatprep.subr.bf16.mxu0 %v3363
    %3430 = vmatpush1.bf16.msra.mxu0 %v3362
    %3431 = vmatprep.subr.bf16.mxu0 %v3366
    %3432 = vmatpush1.bf16.msra.mxu0 %v3365
    %3433 = vmatprep.subr.bf16.mxu0 %v3369
    %3434 = vmatpush1.bf16.msra.mxu0 %v3368
    %3435 = vmatprep.subr.bf16.mxu0 %v3372
    %3436 = vmatpush1.bf16.msra.mxu0 %v3371
    %3437 = vmatprep.subr.bf16.mxu0 %v3375
    %3438 = vmatpush1.bf16.msra.mxu0 %v3374
    %3439 = vmatprep.subr.bf16.mxu0 %v3378
    %3440 = vmatpush1.bf16.msra.mxu0 %v3377
    %3441 = vmatprep.subr.bf16.mxu0 %v3381
    %3442 = vmatpush1.bf16.msra.mxu0 %v3380
    %3443 = vmatprep.subr.bf16.mxu0 %v3384
    %3444 = vmatpush1.bf16.msra.mxu0 %v3383
    %3445 = vmatprep.subr.bf16.mxu0 %v3387
    %3446 = vmatpush1.bf16.msra.mxu0 %v3386
    %3447 = vmatprep.subr.bf16.mxu0 %v3390
    %3448 = vmatpush1.bf16.msra.mxu0 %v3389
    %3449 = vmatprep.subr.bf16.mxu0 %v3393
    %3450 = vmatpush1.bf16.msra.mxu0 %v3392
    %3451 = vmatprep.mubr.bf16.mxu0 0
    %3452 = vmatmul.mubr.bf16.gmra.mrb[0].mxu0 0
    %v3453 = vpop.f32.mrb[0].mxu0
    %v3454 = vadd.f32 0.0, %v3453
    %v3455 = vpop.f32.mrb[0].mxu0
    %v3456 = vadd.f32 0.0, %v3455
    %v3457 = vpop.f32.mrb[0].mxu0
    %v3458 = vpop.f32.mrb[0].mxu0
    %3459 = vdwg.mxu0
    %3460 = vmatprep.subr.bf16.mxu0 %v3396
    %3461 = vmatpush1.bf16.msra.mxu0 %v3395
    %3462 = vmatprep.subr.bf16.mxu0 %v3399
    %3463 = vmatpush1.bf16.msra.mxu0 %v3398
    %3464 = vmatprep.subr.bf16.mxu0 %v3402
    %3465 = vmatpush1.bf16.msra.mxu0 %v3401
    %3466 = vmatprep.subr.bf16.mxu0 %v3405
    %3467 = vmatpush1.bf16.msra.mxu0 %v3404
    %3468 = vmatprep.subr.bf16.mxu0 %v3408
    %3469 = vmatpush1.bf16.msra.mxu0 %v3407
    %3470 = vmatprep.subr.bf16.mxu0 %v3411
    %3471 = vmatpush1.bf16.msra.mxu0 %v3410
    %3472 = vmatprep.subr.bf16.mxu0 %v3414
    %3473 = vmatpush1.bf16.msra.mxu0 %v3413
    %3474 = vmatprep.subr.bf16.mxu0 %v3417
    %3475 = vmatpush1.bf16.msra.mxu0 %v3416
    %3476 = vmatprep.subr.bf16.mxu0 0
    %3477 = vmatpush1.bf16.msra.mxu0 0
    %3478 = vmatprep.subr.bf16.mxu0 0
    %3479 = vmatpush1.bf16.msra.mxu0 0
    %3480 = vmatprep.subr.bf16.mxu0 0
    %3481 = vmatpush1.bf16.msra.mxu0 0
    %3482 = vmatprep.subr.bf16.mxu0 0
    %3483 = vmatpush1.bf16.msra.mxu0 0
    %3484 = vmatprep.subr.bf16.mxu0 0
    %3485 = vmatpush1.bf16.msra.mxu0 0
    %3486 = vmatprep.subr.bf16.mxu0 0
    %3487 = vmatpush1.bf16.msra.mxu0 0
    %3488 = vmatprep.subr.bf16.mxu0 0
    %3489 = vmatpush1.bf16.msra.mxu0 0
    %3490 = vmatprep.subr.bf16.mxu0 0
    %3491 = vmatpush1.bf16.msra.mxu0 0
    %3492 = vmatprep.mubr.bf16.mxu0 0
    %3493 = vmatmul.mubr.bf16.gmra.mrb[0].mxu0 0
    %v3494 = vpop.f32.mrb[0].mxu0
    %v3495 = vadd.f32 %v3454, %v3494
    %v3496 = vpop.f32.mrb[0].mxu0
    %v3497 = vadd.f32 %v3456, %v3496
    %v3498 = vpop.f32.mrb[0].mxu0
    %v3499 = vpop.f32.mrb[0].mxu0
    %3500 = vdwg.mxu0
    %3501 = vmatprep.subr.bf16.mxu0 0
    %3502 = vmatpush1.bf16.msra.mxu0 %v3349
    %3503 = vmatprep.subr.bf16.mxu0 0
    %3504 = vmatpush1.bf16.msra.mxu0 %v3352
    %3505 = vmatprep.subr.bf16.mxu0 0
    %3506 = vmatpush1.bf16.msra.mxu0 %v3355
    %3507 = vmatprep.subr.bf16.mxu0 0
    %3508 = vmatpush1.bf16.msra.mxu0 %v3358
    %3509 = vmatprep.subr.bf16.mxu0 0
    %3510 = vmatpush1.bf16.msra.mxu0 %v3361
    %3511 = vmatprep.subr.bf16.mxu0 0
    %3512 = vmatpush1.bf16.msra.mxu0 %v3364
    %3513 = vmatprep.subr.bf16.mxu0 0
    %3514 = vmatpush1.bf16.msra.mxu0 %v3367
    %3515 = vmatprep.subr.bf16.mxu0 0
    %3516 = vmatpush1.bf16.msra.mxu0 %v3370
    %3517 = vmatprep.subr.bf16.mxu0 0
    %3518 = vmatpush1.bf16.msra.mxu0 %v3373
    %3519 = vmatprep.subr.bf16.mxu0 0
    %3520 = vmatpush1.bf16.msra.mxu0 %v3376
    %3521 = vmatprep.subr.bf16.mxu0 0
    %3522 = vmatpush1.bf16.msra.mxu0 %v3379
    %3523 = vmatprep.subr.bf16.mxu0 0
    %3524 = vmatpush1.bf16.msra.mxu0 %v3382
    %3525 = vmatprep.subr.bf16.mxu0 0
    %3526 = vmatpush1.bf16.msra.mxu0 %v3385
    %3527 = vmatprep.subr.bf16.mxu0 0
    %3528 = vmatpush1.bf16.msra.mxu0 %v3388
    %3529 = vmatprep.subr.bf16.mxu0 0
    %3530 = vmatpush1.bf16.msra.mxu0 %v3391
    %3531 = vmatprep.subr.bf16.mxu0 0
    %3532 = vmatpush1.bf16.msra.mxu0 %v3394
    %3533 = vmatprep.mubr.bf16.mxu0 0
    %3534 = vmatmul.mubr.bf16.gmra.mrb[0].mxu0 0
    %v3535 = vpop.f32.mrb[0].mxu0
    %v3536 = vadd.f32 0.0, %v3535
    %v3537 = vpop.f32.mrb[0].mxu0
    %v3538 = vpop.f32.mrb[0].mxu0
    %v3539 = vpop.f32.mrb[0].mxu0
    %3540 = vdwg.mxu0
    %3541 = vmatprep.subr.bf16.mxu0 0
    %3542 = vmatpush1.bf16.msra.mxu0 %v3397
    %3543 = vmatprep.subr.bf16.mxu0 0
    %3544 = vmatpush1.bf16.msra.mxu0 %v3400
    %3545 = vmatprep.subr.bf16.mxu0 0
    %3546 = vmatpush1.bf16.msra.mxu0 %v3403
    %3547 = vmatprep.subr.bf16.mxu0 0
    %3548 = vmatpush1.bf16.msra.mxu0 %v3406
    %3549 = vmatprep.subr.bf16.mxu0 0
    %3550 = vmatpush1.bf16.msra.mxu0 %v3409
    %3551 = vmatprep.subr.bf16.mxu0 0
    %3552 = vmatpush1.bf16.msra.mxu0 %v3412
    %3553 = vmatprep.subr.bf16.mxu0 0
    %3554 = vmatpush1.bf16.msra.mxu0 %v3415
    %3555 = vmatprep.subr.bf16.mxu0 0
    %3556 = vmatpush1.bf16.msra.mxu0 %v3418
    %3557 = vmatprep.subr.bf16.mxu0 0
    %3558 = vmatpush1.bf16.msra.mxu0 0
    %3559 = vmatprep.subr.bf16.mxu0 0
    %3560 = vmatpush1.bf16.msra.mxu0 0
    %3561 = vmatprep.subr.bf16.mxu0 0
    %3562 = vmatpush1.bf16.msra.mxu0 0
    %3563 = vmatprep.subr.bf16.mxu0 0
    %3564 = vmatpush1.bf16.msra.mxu0 0
    %3565 = vmatprep.subr.bf16.mxu0 0
    %3566 = vmatpush1.bf16.msra.mxu0 0
    %3567 = vmatprep.subr.bf16.mxu0 0
    %3568 = vmatpush1.bf16.msra.mxu0 0
    %3569 = vmatprep.subr.bf16.mxu0 0
    %3570 = vmatpush1.bf16.msra.mxu0 0
    %3571 = vmatprep.subr.bf16.mxu0 0
    %3572 = vmatpush1.bf16.msra.mxu0 0
    %3573 = vmatprep.mubr.bf16.mxu0 0
    %3574 = vmatmul.mubr.bf16.gmra.mrb[0].mxu0 0
    %v3575 = vpop.f32.mrb[0].mxu0
    %v3576 = vadd.f32 %v3536, %v3575
    %v3577 = vpop.f32.mrb[0].mxu0
    %v3578 = vpop.f32.mrb[0].mxu0
    %v3579 = vpop.f32.mrb[0].mxu0
    %3580 = vdwg.mxu0
    %v3581 = vadd.f32 %v3344, %v3495
    %v3582 = vadd.f32 %v3345, %v3497
    %v3583 = vadd.f32 %v3346, %v3576
    %v3584 = vmul.f32 %v3581, 0.5
    %v3585 = vmul.f32 %v3582, 0.5
    %v3586 = vmul.f32 %v3583, 0.5
    %v3587 = vtanh.pop %v3584
    %v3588 = vtanh.pop %v3585
    %v3589 = vtanh.pop %v3586
    %v3590 = vmul.f32 %v3587, 0.5
    %v3591 = vmul.f32 %v3588, 0.5
    %v3592 = vmul.f32 %v3589, 0.5
    %v3593 = vadd.f32 %v3590, 0.5
    %v3594 = vadd.f32 %v3591, 0.5
    %v3595 = vadd.f32 %v3592, 0.5
    %v3596 = vtanh.pop %v3341
    %v3597 = vtanh.pop %v3342
    %v3598 = vtanh.pop %v3343
    %v3599 = vmul.f32 %v3593, %v3596
    %v3600 = vmul.f32 %v3594, %v3597
    %v3601 = vmul.f32 %v3595, %v3598
    %v3602 = vpack.c.bf16 %v3599, %v3599
    %v3603 = vpack.c.bf16 %v3600, %v3600
    %v3604 = vpack.c.bf16 %v3601, %v3601
    %v3605 = vld [vmem:[#allocation2 + $0x78] sm:$0xff]
    %v3606 = vld [vmem:[#allocation2 + $0x80] sm:$0xff]
    %v3607 = vld [vmem:[#allocation2 + $0x88] sm:$0xff]
    %3608 = vmatprep.subr.bf16.mxu0 %v2592
    %3609 = vmatpush1.bf16.msra.mxu0 %v2591
    %3610 = vmatprep.subr.bf16.mxu0 %v2595
    %3611 = vmatpush1.bf16.msra.mxu0 %v2594
    %3612 = vmatprep.subr.bf16.mxu0 %v2598
    %3613 = vmatpush1.bf16.msra.mxu0 %v2597
    %3614 = vmatprep.subr.bf16.mxu0 %v2601
    %3615 = vmatpush1.bf16.msra.mxu0 %v2600
    %3616 = vmatprep.subr.bf16.mxu0 %v2604
    %3617 = vmatpush1.bf16.msra.mxu0 %v2603
    %3618 = vmatprep.subr.bf16.mxu0 %v2607
    %3619 = vmatpush1.bf16.msra.mxu0 %v2606
    %3620 = vmatprep.subr.bf16.mxu0 %v2610
    %3621 = vmatpush1.bf16.msra.mxu0 %v2609
    %3622 = vmatprep.subr.bf16.mxu0 %v2613
    %3623 = vmatpush1.bf16.msra.mxu0 %v2612
    %3624 = vmatprep.subr.bf16.mxu0 %v2616
    %3625 = vmatpush1.bf16.msra.mxu0 %v2615
    %3626 = vmatprep.subr.bf16.mxu0 %v2619
    %3627 = vmatpush1.bf16.msra.mxu0 %v2618
    %3628 = vmatprep.subr.bf16.mxu0 %v2622
    %3629 = vmatpush1.bf16.msra.mxu0 %v2621
    %3630 = vmatprep.subr.bf16.mxu0 %v2625
    %3631 = vmatpush1.bf16.msra.mxu0 %v2624
    %3632 = vmatprep.subr.bf16.mxu0 %v2628
    %3633 = vmatpush1.bf16.msra.mxu0 %v2627
    %3634 = vmatprep.subr.bf16.mxu0 %v2631
    %3635 = vmatpush1.bf16.msra.mxu0 %v2630
    %3636 = vmatprep.subr.bf16.mxu0 %v2634
    %3637 = vmatpush1.bf16.msra.mxu0 %v2633
    %3638 = vmatprep.subr.bf16.mxu0 %v2637
    %3639 = vmatpush1.bf16.msra.mxu0 %v2636
    %3640 = vmatprep.mubr.bf16.mxu0 %v3603
    %3641 = vmatmul.mubr.bf16.gmra.mrb[0].mxu0 %v3602
    %v3642 = vpop.f32.mrb[0].mxu0
    %v3643 = vadd.f32 0.0, %v3642
    %v3644 = vpop.f32.mrb[0].mxu0
    %v3645 = vadd.f32 0.0, %v3644
    %v3646 = vpop.f32.mrb[0].mxu0
    %v3647 = vpop.f32.mrb[0].mxu0
    %3648 = vdwg.mxu0
    %3649 = vmatprep.subr.bf16.mxu0 %v2640
    %3650 = vmatpush1.bf16.msra.mxu0 %v2639
    %3651 = vmatprep.subr.bf16.mxu0 %v2643
    %3652 = vmatpush1.bf16.msra.mxu0 %v2642
    %3653 = vmatprep.subr.bf16.mxu0 %v2646
    %3654 = vmatpush1.bf16.msra.mxu0 %v2645
    %3655 = vmatprep.subr.bf16.mxu0 %v2649
    %3656 = vmatpush1.bf16.msra.mxu0 %v2648
    %3657 = vmatprep.subr.bf16.mxu0 %v2652
    %3658 = vmatpush1.bf16.msra.mxu0 %v2651
    %3659 = vmatprep.subr.bf16.mxu0 %v2655
    %3660 = vmatpush1.bf16.msra.mxu0 %v2654
    %3661 = vmatprep.subr.bf16.mxu0 %v2658
    %3662 = vmatpush1.bf16.msra.mxu0 %v2657
    %3663 = vmatprep.subr.bf16.mxu0 %v2661
    %3664 = vmatpush1.bf16.msra.mxu0 %v2660
    %3665 = vmatprep.subr.bf16.mxu0 0
    %3666 = vmatpush1.bf16.msra.mxu0 0
    %3667 = vmatprep.subr.bf16.mxu0 0
    %3668 = vmatpush1.bf16.msra.mxu0 0
    %3669 = vmatprep.subr.bf16.mxu0 0
    %3670 = vmatpush1.bf16.msra.mxu0 0
    %3671 = vmatprep.subr.bf16.mxu0 0
    %3672 = vmatpush1.bf16.msra.mxu0 0
    %3673 = vmatprep.subr.bf16.mxu0 0
    %3674 = vmatpush1.bf16.msra.mxu0 0
    %3675 = vmatprep.subr.bf16.mxu0 0
    %3676 = vmatpush1.bf16.msra.mxu0 0
    %3677 = vmatprep.subr.bf16.mxu0 0
    %3678 = vmatpush1.bf16.msra.mxu0 0
    %3679 = vmatprep.subr.bf16.mxu0 0
    %3680 = vmatpush1.bf16.msra.mxu0 0
    %3681 = vmatprep.mubr.bf16.mxu0 0
    %3682 = vmatmul.mubr.bf16.gmra.mrb[0].mxu0 %v3604
    %v3683 = vpop.f32.mrb[0].mxu0
    %v3684 = vadd.f32 %v3643, %v3683
    %v3685 = vpop.f32.mrb[0].mxu0
    %v3686 = vadd.f32 %v3645, %v3685
    %v3687 = vpop.f32.mrb[0].mxu0
    %v3688 = vpop.f32.mrb[0].mxu0
    %3689 = vdwg.mxu0
    %3690 = vmatprep.subr.bf16.mxu0 0
    %3691 = vmatpush1.bf16.msra.mxu0 %v2593
    %3692 = vmatprep.subr.bf16.mxu0 0
    %3693 = vmatpush1.bf16.msra.mxu0 %v2596
    %3694 = vmatprep.subr.bf16.mxu0 0
    %3695 = vmatpush1.bf16.msra.mxu0 %v2599
    %3696 = vmatprep.subr.bf16.mxu0 0
    %3697 = vmatpush1.bf16.msra.mxu0 %v2602
    %3698 = vmatprep.subr.bf16.mxu0 0
    %3699 = vmatpush1.bf16.msra.mxu0 %v2605
    %3700 = vmatprep.subr.bf16.mxu0 0
    %3701 = vmatpush1.bf16.msra.mxu0 %v2608
    %3702 = vmatprep.subr.bf16.mxu0 0
    %3703 = vmatpush1.bf16.msra.mxu0 %v2611
    %3704 = vmatprep.subr.bf16.mxu0 0
    %3705 = vmatpush1.bf16.msra.mxu0 %v2614
    %3706 = vmatprep.subr.bf16.mxu0 0
    %3707 = vmatpush1.bf16.msra.mxu0 %v2617
    %3708 = vmatprep.subr.bf16.mxu0 0
    %3709 = vmatpush1.bf16.msra.mxu0 %v2620
    %3710 = vmatprep.subr.bf16.mxu0 0
    %3711 = vmatpush1.bf16.msra.mxu0 %v2623
    %3712 = vmatprep.subr.bf16.mxu0 0
    %3713 = vmatpush1.bf16.msra.mxu0 %v2626
    %3714 = vmatprep.subr.bf16.mxu0 0
    %3715 = vmatpush1.bf16.msra.mxu0 %v2629
    %3716 = vmatprep.subr.bf16.mxu0 0
    %3717 = vmatpush1.bf16.msra.mxu0 %v2632
    %3718 = vmatprep.subr.bf16.mxu0 0
    %3719 = vmatpush1.bf16.msra.mxu0 %v2635
    %3720 = vmatprep.subr.bf16.mxu0 0
    %3721 = vmatpush1.bf16.msra.mxu0 %v2638
    %3722 = vmatprep.mubr.bf16.mxu0 %v3603
    %3723 = vmatmul.mubr.bf16.gmra.mrb[0].mxu0 %v3602
    %v3724 = vpop.f32.mrb[0].mxu0
    %v3725 = vadd.f32 0.0, %v3724
    %v3726 = vpop.f32.mrb[0].mxu0
    %v3727 = vpop.f32.mrb[0].mxu0
    %v3728 = vpop.f32.mrb[0].mxu0
    %3729 = vdwg.mxu0
    %3730 = vmatprep.subr.bf16.mxu0 0
    %3731 = vmatpush1.bf16.msra.mxu0 %v2641
    %3732 = vmatprep.subr.bf16.mxu0 0
    %3733 = vmatpush1.bf16.msra.mxu0 %v2644
    %3734 = vmatprep.subr.bf16.mxu0 0
    %3735 = vmatpush1.bf16.msra.mxu0 %v2647
    %3736 = vmatprep.subr.bf16.mxu0 0
    %3737 = vmatpush1.bf16.msra.mxu0 %v2650
    %3738 = vmatprep.subr.bf16.mxu0 0
    %3739 = vmatpush1.bf16.msra.mxu0 %v2653
    %3740 = vmatprep.subr.bf16.mxu0 0
    %3741 = vmatpush1.bf16.msra.mxu0 %v2656
    %3742 = vmatprep.subr.bf16.mxu0 0
    %3743 = vmatpush1.bf16.msra.mxu0 %v2659
    %3744 = vmatprep.subr.bf16.mxu0 0
    %3745 = vmatpush1.bf16.msra.mxu0 %v2662
    %3746 = vmatprep.subr.bf16.mxu0 0
    %3747 = vmatpush1.bf16.msra.mxu0 0
    %3748 = vmatprep.subr.bf16.mxu0 0
    %3749 = vmatpush1.bf16.msra.mxu0 0
    %3750 = vmatprep.subr.bf16.mxu0 0
    %3751 = vmatpush1.bf16.msra.mxu0 0
    %3752 = vmatprep.subr.bf16.mxu0 0
    %3753 = vmatpush1.bf16.msra.mxu0 0
    %3754 = vmatprep.subr.bf16.mxu0 0
    %3755 = vmatpush1.bf16.msra.mxu0 0
    %3756 = vmatprep.subr.bf16.mxu0 0
    %3757 = vmatpush1.bf16.msra.mxu0 0
    %3758 = vmatprep.subr.bf16.mxu0 0
    %3759 = vmatpush1.bf16.msra.mxu0 0
    %3760 = vmatprep.subr.bf16.mxu0 0
    %3761 = vmatpush1.bf16.msra.mxu0 0
    %3762 = vmatprep.mubr.bf16.mxu0 0
    %3763 = vmatmul.mubr.bf16.gmra.mrb[0].mxu0 %v3604
    %v3764 = vpop.f32.mrb[0].mxu0
    %v3765 = vadd.f32 %v3725, %v3764
    %v3766 = vpop.f32.mrb[0].mxu0
    %v3767 = vpop.f32.mrb[0].mxu0
    %v3768 = vpop.f32.mrb[0].mxu0
    %3769 = vdwg.mxu0
    %v3770 = vadd.f32 %v3605, %v3684
    %v3771 = vadd.f32 %v3606, %v3686
    %v3772 = vadd.f32 %v3607, %v3765
    %v3773 = vmul.f32 %v3770, 0.5
    %v3774 = vmul.f32 %v3771, 0.5
    %v3775 = vmul.f32 %v3772, 0.5
    %v3776 = vtanh.pop %v3773
    %v3777 = vtanh.pop %v3774
    %v3778 = vtanh.pop %v3775
    %v3779 = vmul.f32 %v3776, 0.5
    %v3780 = vmul.f32 %v3777, 0.5
    %v3781 = vmul.f32 %v3778, 0.5
    %v3782 = vadd.f32 %v3779, 0.5
    %v3783 = vadd.f32 %v3780, 0.5
    %v3784 = vadd.f32 %v3781, 0.5
    %v3785 = vmul.f32 %v3782, %v3341
    %v3786 = vmul.f32 %v3783, %v3342
    %v3787 = vmul.f32 %v3784, %v3343
    %v3788 = vld [vmem:[#allocation2 + $0x60] sm:$0xff]
    %v3789 = vld [vmem:[#allocation2 + $0x68] sm:$0xff]
    %v3790 = vld [vmem:[#allocation2 + $0x70] sm:$0xff]
    %3791 = vmatprep.subr.bf16.mxu0 %v2847
    %3792 = vmatpush1.bf16.msra.mxu0 %v2846
    %3793 = vmatprep.subr.bf16.mxu0 %v2850
    %3794 = vmatpush1.bf16.msra.mxu0 %v2849
    %3795 = vmatprep.subr.bf16.mxu0 %v2853
    %3796 = vmatpush1.bf16.msra.mxu0 %v2852
    %3797 = vmatprep.subr.bf16.mxu0 %v2856
    %3798 = vmatpush1.bf16.msra.mxu0 %v2855
    %3799 = vmatprep.subr.bf16.mxu0 %v2859
    %3800 = vmatpush1.bf16.msra.mxu0 %v2858
    %3801 = vmatprep.subr.bf16.mxu0 %v2862
    %3802 = vmatpush1.bf16.msra.mxu0 %v2861
    %3803 = vmatprep.subr.bf16.mxu0 %v2865
    %3804 = vmatpush1.bf16.msra.mxu0 %v2864
    %3805 = vmatprep.subr.bf16.mxu0 %v2868
    %3806 = vmatpush1.bf16.msra.mxu0 %v2867
    %3807 = vmatprep.subr.bf16.mxu0 %v2871
    %3808 = vmatpush1.bf16.msra.mxu0 %v2870
    %3809 = vmatprep.subr.bf16.mxu0 %v2874
    %3810 = vmatpush1.bf16.msra.mxu0 %v2873
    %3811 = vmatprep.subr.bf16.mxu0 %v2877
    %3812 = vmatpush1.bf16.msra.mxu0 %v2876
    %3813 = vmatprep.subr.bf16.mxu0 %v2880
    %3814 = vmatpush1.bf16.msra.mxu0 %v2879
    %3815 = vmatprep.subr.bf16.mxu0 %v2883
    %3816 = vmatpush1.bf16.msra.mxu0 %v2882
    %3817 = vmatprep.subr.bf16.mxu0 %v2886
    %3818 = vmatpush1.bf16.msra.mxu0 %v2885
    %3819 = vmatprep.subr.bf16.mxu0 %v2889
    %3820 = vmatpush1.bf16.msra.mxu0 %v2888
    %3821 = vmatprep.subr.bf16.mxu0 %v2892
    %3822 = vmatpush1.bf16.msra.mxu0 %v2891
    %3823 = vmatprep.mubr.bf16.mxu0 %v3603
    %3824 = vmatmul.mubr.bf16.gmra.mrb[0].mxu0 %v3602
    %v3825 = vpop.f32.mrb[0].mxu0
    %v3826 = vadd.f32 0.0, %v3825
    %v3827 = vpop.f32.mrb[0].mxu0
    %v3828 = vadd.f32 0.0, %v3827
    %v3829 = vpop.f32.mrb[0].mxu0
    %v3830 = vpop.f32.mrb[0].mxu0
    %3831 = vdwg.mxu0
    %3832 = vmatprep.subr.bf16.mxu0 %v2895
    %3833 = vmatpush1.bf16.msra.mxu0 %v2894
    %3834 = vmatprep.subr.bf16.mxu0 %v2898
    %3835 = vmatpush1.bf16.msra.mxu0 %v2897
    %3836 = vmatprep.subr.bf16.mxu0 %v2901
    %3837 = vmatpush1.bf16.msra.mxu0 %v2900
    %3838 = vmatprep.subr.bf16.mxu0 %v2904
    %3839 = vmatpush1.bf16.msra.mxu0 %v2903
    %3840 = vmatprep.subr.bf16.mxu0 %v2907
    %3841 = vmatpush1.bf16.msra.mxu0 %v2906
    %3842 = vmatprep.subr.bf16.mxu0 %v2910
    %3843 = vmatpush1.bf16.msra.mxu0 %v2909
    %3844 = vmatprep.subr.bf16.mxu0 %v2913
    %3845 = vmatpush1.bf16.msra.mxu0 %v2912
    %3846 = vmatprep.subr.bf16.mxu0 %v2916
    %3847 = vmatpush1.bf16.msra.mxu0 %v2915
    %3848 = vmatprep.subr.bf16.mxu0 0
    %3849 = vmatpush1.bf16.msra.mxu0 0
    %3850 = vmatprep.subr.bf16.mxu0 0
    %3851 = vmatpush1.bf16.msra.mxu0 0
    %3852 = vmatprep.subr.bf16.mxu0 0
    %3853 = vmatpush1.bf16.msra.mxu0 0
    %3854 = vmatprep.subr.bf16.mxu0 0
    %3855 = vmatpush1.bf16.msra.mxu0 0
    %3856 = vmatprep.subr.bf16.mxu0 0
    %3857 = vmatpush1.bf16.msra.mxu0 0
    %3858 = vmatprep.subr.bf16.mxu0 0
    %3859 = vmatpush1.bf16.msra.mxu0 0
    %3860 = vmatprep.subr.bf16.mxu0 0
    %3861 = vmatpush1.bf16.msra.mxu0 0
    %3862 = vmatprep.subr.bf16.mxu0 0
    %3863 = vmatpush1.bf16.msra.mxu0 0
    %3864 = vmatprep.mubr.bf16.mxu0 0
    %3865 = vmatmul.mubr.bf16.gmra.mrb[0].mxu0 %v3604
    %v3866 = vpop.f32.mrb[0].mxu0
    %v3867 = vadd.f32 %v3826, %v3866
    %v3868 = vpop.f32.mrb[0].mxu0
    %v3869 = vadd.f32 %v3828, %v3868
    %v3870 = vpop.f32.mrb[0].mxu0
    %v3871 = vpop.f32.mrb[0].mxu0
    %3872 = vdwg.mxu0
    %3873 = vmatprep.subr.bf16.mxu0 0
    %3874 = vmatpush1.bf16.msra.mxu0 %v2848
    %3875 = vmatprep.subr.bf16.mxu0 0
    %3876 = vmatpush1.bf16.msra.mxu0 %v2851
    %3877 = vmatprep.subr.bf16.mxu0 0
    %3878 = vmatpush1.bf16.msra.mxu0 %v2854
    %3879 = vmatprep.subr.bf16.mxu0 0
    %3880 = vmatpush1.bf16.msra.mxu0 %v2857
    %3881 = vmatprep.subr.bf16.mxu0 0
    %3882 = vmatpush1.bf16.msra.mxu0 %v2860
    %3883 = vmatprep.subr.bf16.mxu0 0
    %3884 = vmatpush1.bf16.msra.mxu0 %v2863
    %3885 = vmatprep.subr.bf16.mxu0 0
    %3886 = vmatpush1.bf16.msra.mxu0 %v2866
    %3887 = vmatprep.subr.bf16.mxu0 0
    %3888 = vmatpush1.bf16.msra.mxu0 %v2869
    %3889 = vmatprep.subr.bf16.mxu0 0
    %3890 = vmatpush1.bf16.msra.mxu0 %v2872
    %3891 = vmatprep.subr.bf16.mxu0 0
    %3892 = vmatpush1.bf16.msra.mxu0 %v2875
    %3893 = vmatprep.subr.bf16.mxu0 0
    %3894 = vmatpush1.bf16.msra.mxu0 %v2878
    %3895 = vmatprep.subr.bf16.mxu0 0
    %3896 = vmatpush1.bf16.msra.mxu0 %v2881
    %3897 = vmatprep.subr.bf16.mxu0 0
    %3898 = vmatpush1.bf16.msra.mxu0 %v2884
    %3899 = vmatprep.subr.bf16.mxu0 0
    %3900 = vmatpush1.bf16.msra.mxu0 %v2887
    %3901 = vmatprep.subr.bf16.mxu0 0
    %3902 = vmatpush1.bf16.msra.mxu0 %v2890
    %3903 = vmatprep.subr.bf16.mxu0 0
    %3904 = vmatpush1.bf16.msra.mxu0 %v2893
    %3905 = vmatprep.mubr.bf16.mxu0 %v3603
    %3906 = vmatmul.mubr.bf16.gmra.mrb[0].mxu0 %v3602
    %v3907 = vpop.f32.mrb[0].mxu0
    %v3908 = vadd.f32 0.0, %v3907
    %v3909 = vpop.f32.mrb[0].mxu0
    %v3910 = vpop.f32.mrb[0].mxu0
    %v3911 = vpop.f32.mrb[0].mxu0
    %3912 = vdwg.mxu0
    %3913 = vmatprep.subr.bf16.mxu0 0
    %3914 = vmatpush1.bf16.msra.mxu0 %v2896
    %3915 = vmatprep.subr.bf16.mxu0 0
    %3916 = vmatpush1.bf16.msra.mxu0 %v2899
    %3917 = vmatprep.subr.bf16.mxu0 0
    %3918 = vmatpush1.bf16.msra.mxu0 %v2902
    %3919 = vmatprep.subr.bf16.mxu0 0
    %3920 = vmatpush1.bf16.msra.mxu0 %v2905
    %3921 = vmatprep.subr.bf16.mxu0 0
    %3922 = vmatpush1.bf16.msra.mxu0 %v2908
    %3923 = vmatprep.subr.bf16.mxu0 0
    %3924 = vmatpush1.bf16.msra.mxu0 %v2911
    %3925 = vmatprep.subr.bf16.mxu0 0
    %3926 = vmatpush1.bf16.msra.mxu0 %v2914
    %3927 = vmatprep.subr.bf16.mxu0 0
    %3928 = vmatpush1.bf16.msra.mxu0 %v2917
    %3929 = vmatprep.subr.bf16.mxu0 0
    %3930 = vmatpush1.bf16.msra.mxu0 0
    %3931 = vmatprep.subr.bf16.mxu0 0
    %3932 = vmatpush1.bf16.msra.mxu0 0
    %3933 = vmatprep.subr.bf16.mxu0 0
    %3934 = vmatpush1.bf16.msra.mxu0 0
    %3935 = vmatprep.subr.bf16.mxu0 0
    %3936 = vmatpush1.bf16.msra.mxu0 0
    %3937 = vmatprep.subr.bf16.mxu0 0
    %3938 = vmatpush1.bf16.msra.mxu0 0
    %3939 = vmatprep.subr.bf16.mxu0 0
    %3940 = vmatpush1.bf16.msra.mxu0 0
    %3941 = vmatprep.subr.bf16.mxu0 0
    %3942 = vmatpush1.bf16.msra.mxu0 0
    %3943 = vmatprep.subr.bf16.mxu0 0
    %3944 = vmatpush1.bf16.msra.mxu0 0
    %3945 = vmatprep.mubr.bf16.mxu0 0
    %3946 = vmatmul.mubr.bf16.gmra.mrb[0].mxu0 %v3604
    %v3947 = vpop.f32.mrb[0].mxu0
    %v3948 = vadd.f32 %v3908, %v3947
    %v3949 = vpop.f32.mrb[0].mxu0
    %v3950 = vpop.f32.mrb[0].mxu0
    %v3951 = vpop.f32.mrb[0].mxu0
    %3952 = vdwg.mxu0
    %v3953 = vadd.f32 %v3788, %v3867
    %v3954 = vadd.f32 %v3789, %v3869
    %v3955 = vadd.f32 %v3790, %v3948
    %v3956 = vmul.f32 %v3953, 0.5
    %v3957 = vmul.f32 %v3954, 0.5
    %v3958 = vmul.f32 %v3955, 0.5
    %v3959 = vtanh.pop %v3956
    %v3960 = vtanh.pop %v3957
    %v3961 = vtanh.pop %v3958
    %v3962 = vmul.f32 %v3959, 0.5
    %v3963 = vmul.f32 %v3960, 0.5
    %v3964 = vmul.f32 %v3961, 0.5
    %v3965 = vadd.f32 %v3962, 0.5
    %v3966 = vadd.f32 %v3963, 0.5
    %v3967 = vadd.f32 %v3964, 0.5
    %v3968 = vld [vmem:[#allocation2 + $0x90] sm:$0xff]
    %v3969 = vld [vmem:[#allocation2 + $0x98] sm:$0xff]
    %v3970 = vld [vmem:[#allocation2 + $0xa0] sm:$0xff]
    %3971 = vmatprep.subr.bf16.mxu0 %v3099
    %3972 = vmatpush1.bf16.msra.mxu0 %v3098
    %3973 = vmatprep.subr.bf16.mxu0 %v3102
    %3974 = vmatpush1.bf16.msra.mxu0 %v3101
    %3975 = vmatprep.subr.bf16.mxu0 %v3105
    %3976 = vmatpush1.bf16.msra.mxu0 %v3104
    %3977 = vmatprep.subr.bf16.mxu0 %v3108
    %3978 = vmatpush1.bf16.msra.mxu0 %v3107
    %3979 = vmatprep.subr.bf16.mxu0 %v3111
    %3980 = vmatpush1.bf16.msra.mxu0 %v3110
    %3981 = vmatprep.subr.bf16.mxu0 %v3114
    %3982 = vmatpush1.bf16.msra.mxu0 %v3113
    %3983 = vmatprep.subr.bf16.mxu0 %v3117
    %3984 = vmatpush1.bf16.msra.mxu0 %v3116
    %3985 = vmatprep.subr.bf16.mxu0 %v3120
    %3986 = vmatpush1.bf16.msra.mxu0 %v3119
    %3987 = vmatprep.subr.bf16.mxu0 %v3123
    %3988 = vmatpush1.bf16.msra.mxu0 %v3122
    %3989 = vmatprep.subr.bf16.mxu0 %v3126
    %3990 = vmatpush1.bf16.msra.mxu0 %v3125
    %3991 = vmatprep.subr.bf16.mxu0 %v3129
    %3992 = vmatpush1.bf16.msra.mxu0 %v3128
    %3993 = vmatprep.subr.bf16.mxu0 %v3132
    %3994 = vmatpush1.bf16.msra.mxu0 %v3131
    %3995 = vmatprep.subr.bf16.mxu0 %v3135
    %3996 = vmatpush1.bf16.msra.mxu0 %v3134
    %3997 = vmatprep.subr.bf16.mxu0 %v3138
    %3998 = vmatpush1.bf16.msra.mxu0 %v3137
    %3999 = vmatprep.subr.bf16.mxu0 %v3141
    %4000 = vmatpush1.bf16.msra.mxu0 %v3140
    %4001 = vmatprep.subr.bf16.mxu0 %v3144
    %4002 = vmatpush1.bf16.msra.mxu0 %v3143
    %4003 = vmatprep.mubr.bf16.mxu0 %v3603
    %4004 = vmatmul.mubr.bf16.gmra.mrb[0].mxu0 %v3602
    %v4005 = vpop.f32.mrb[0].mxu0
    %v4006 = vadd.f32 0.0, %v4005
    %v4007 = vpop.f32.mrb[0].mxu0
    %v4008 = vadd.f32 0.0, %v4007
    %v4009 = vpop.f32.mrb[0].mxu0
    %v4010 = vpop.f32.mrb[0].mxu0
    %4011 = vdwg.mxu0
    %4012 = vmatprep.subr.bf16.mxu0 %v3147
    %4013 = vmatpush1.bf16.msra.mxu0 %v3146
    %4014 = vmatprep.subr.bf16.mxu0 %v3150
    %4015 = vmatpush1.bf16.msra.mxu0 %v3149
    %4016 = vmatprep.subr.bf16.mxu0 %v3153
    %4017 = vmatpush1.bf16.msra.mxu0 %v3152
    %4018 = vmatprep.subr.bf16.mxu0 %v3156
    %4019 = vmatpush1.bf16.msra.mxu0 %v3155
    %4020 = vmatprep.subr.bf16.mxu0 %v3159
    %4021 = vmatpush1.bf16.msra.mxu0 %v3158
    %4022 = vmatprep.subr.bf16.mxu0 %v3162
    %4023 = vmatpush1.bf16.msra.mxu0 %v3161
    %4024 = vmatprep.subr.bf16.mxu0 %v3165
    %4025 = vmatpush1.bf16.msra.mxu0 %v3164
    %4026 = vmatprep.subr.bf16.mxu0 %v3168
    %4027 = vmatpush1.bf16.msra.mxu0 %v3167
    %4028 = vmatprep.subr.bf16.mxu0 0
    %4029 = vmatpush1.bf16.msra.mxu0 0
    %4030 = vmatprep.subr.bf16.mxu0 0
    %4031 = vmatpush1.bf16.msra.mxu0 0
    %4032 = vmatprep.subr.bf16.mxu0 0
    %4033 = vmatpush1.bf16.msra.mxu0 0
    %4034 = vmatprep.subr.bf16.mxu0 0
    %4035 = vmatpush1.bf16.msra.mxu0 0
    %4036 = vmatprep.subr.bf16.mxu0 0
    %4037 = vmatpush1.bf16.msra.mxu0 0
    %4038 = vmatprep.subr.bf16.mxu0 0
    %4039 = vmatpush1.bf16.msra.mxu0 0
    %4040 = vmatprep.subr.bf16.mxu0 0
    %4041 = vmatpush1.bf16.msra.mxu0 0
    %4042 = vmatprep.subr.bf16.mxu0 0
    %4043 = vmatpush1.bf16.msra.mxu0 0
    %4044 = vmatprep.mubr.bf16.mxu0 0
    %4045 = vmatmul.mubr.bf16.gmra.mrb[0].mxu0 %v3604
    %v4046 = vpop.f32.mrb[0].mxu0
    %v4047 = vadd.f32 %v4006, %v4046
    %v4048 = vpop.f32.mrb[0].mxu0
    %v4049 = vadd.f32 %v4008, %v4048
    %v4050 = vpop.f32.mrb[0].mxu0
    %v4051 = vpop.f32.mrb[0].mxu0
    %4052 = vdwg.mxu0
    %4053 = vmatprep.subr.bf16.mxu0 0
    %4054 = vmatpush1.bf16.msra.mxu0 %v3100
    %4055 = vmatprep.subr.bf16.mxu0 0
    %4056 = vmatpush1.bf16.msra.mxu0 %v3103
    %4057 = vmatprep.subr.bf16.mxu0 0
    %4058 = vmatpush1.bf16.msra.mxu0 %v3106
    %4059 = vmatprep.subr.bf16.mxu0 0
    %4060 = vmatpush1.bf16.msra.mxu0 %v3109
    %4061 = vmatprep.subr.bf16.mxu0 0
    %4062 = vmatpush1.bf16.msra.mxu0 %v3112
    %4063 = vmatprep.subr.bf16.mxu0 0
    %4064 = vmatpush1.bf16.msra.mxu0 %v3115
    %4065 = vmatprep.subr.bf16.mxu0 0
    %4066 = vmatpush1.bf16.msra.mxu0 %v3118
    %4067 = vmatprep.subr.bf16.mxu0 0
    %4068 = vmatpush1.bf16.msra.mxu0 %v3121
    %4069 = vmatprep.subr.bf16.mxu0 0
    %4070 = vmatpush1.bf16.msra.mxu0 %v3124
    %4071 = vmatprep.subr.bf16.mxu0 0
    %4072 = vmatpush1.bf16.msra.mxu0 %v3127
    %4073 = vmatprep.subr.bf16.mxu0 0
    %4074 = vmatpush1.bf16.msra.mxu0 %v3130
    %4075 = vmatprep.subr.bf16.mxu0 0
    %4076 = vmatpush1.bf16.msra.mxu0 %v3133
    %4077 = vmatprep.subr.bf16.mxu0 0
    %4078 = vmatpush1.bf16.msra.mxu0 %v3136
    %4079 = vmatprep.subr.bf16.mxu0 0
    %4080 = vmatpush1.bf16.msra.mxu0 %v3139
    %4081 = vmatprep.subr.bf16.mxu0 0
    %4082 = vmatpush1.bf16.msra.mxu0 %v3142
    %4083 = vmatprep.subr.bf16.mxu0 0
    %4084 = vmatpush1.bf16.msra.mxu0 %v3145
    %4085 = vmatprep.mubr.bf16.mxu0 %v3603
    %4086 = vmatmul.mubr.bf16.gmra.mrb[0].mxu0 %v3602
    %v4087 = vpop.f32.mrb[0].mxu0
    %v4088 = vadd.f32 0.0, %v4087
    %v4089 = vpop.f32.mrb[0].mxu0
    %v4090 = vpop.f32.mrb[0].mxu0
    %v4091 = vpop.f32.mrb[0].mxu0
    %4092 = vdwg.mxu0
    %4093 = vmatprep.subr.bf16.mxu0 0
    %4094 = vmatpush1.bf16.msra.mxu0 %v3148
    %4095 = vmatprep.subr.bf16.mxu0 0
    %4096 = vmatpush1.bf16.msra.mxu0 %v3151
    %4097 = vmatprep.subr.bf16.mxu0 0
    %4098 = vmatpush1.bf16.msra.mxu0 %v3154
    %4099 = vmatprep.subr.bf16.mxu0 0
    %4100 = vmatpush1.bf16.msra.mxu0 %v3157
    %4101 = vmatprep.subr.bf16.mxu0 0
    %4102 = vmatpush1.bf16.msra.mxu0 %v3160
    %4103 = vmatprep.subr.bf16.mxu0 0
    %4104 = vmatpush1.bf16.msra.mxu0 %v3163
    %4105 = vmatprep.subr.bf16.mxu0 0
    %4106 = vmatpush1.bf16.msra.mxu0 %v3166
    %4107 = vmatprep.subr.bf16.mxu0 0
    %4108 = vmatpush1.bf16.msra.mxu0 %v3169
    %4109 = vmatprep.subr.bf16.mxu0 0
    %4110 = vmatpush1.bf16.msra.mxu0 0
    %4111 = vmatprep.subr.bf16.mxu0 0
    %4112 = vmatpush1.bf16.msra.mxu0 0
    %4113 = vmatprep.subr.bf16.mxu0 0
    %4114 = vmatpush1.bf16.msra.mxu0 0
    %4115 = vmatprep.subr.bf16.mxu0 0
    %4116 = vmatpush1.bf16.msra.mxu0 0
    %4117 = vmatprep.subr.bf16.mxu0 0
    %4118 = vmatpush1.bf16.msra.mxu0 0
    %4119 = vmatprep.subr.bf16.mxu0 0
    %4120 = vmatpush1.bf16.msra.mxu0 0
    %4121 = vmatprep.subr.bf16.mxu0 0
    %4122 = vmatpush1.bf16.msra.mxu0 0
    %4123 = vmatprep.subr.bf16.mxu0 0
    %4124 = vmatpush1.bf16.msra.mxu0 0
    %4125 = vmatprep.mubr.bf16.mxu0 0
    %4126 = vmatmul.mubr.bf16.gmra.mrb[0].mxu0 %v3604
    %v4127 = vpop.f32.mrb[0].mxu0
    %v4128 = vadd.f32 %v4088, %v4127
    %v4129 = vpop.f32.mrb[0].mxu0
    %v4130 = vpop.f32.mrb[0].mxu0
    %v4131 = vpop.f32.mrb[0].mxu0
    %4132 = vdwg.mxu0
    %v4133 = vadd.f32 %v3968, %v4047
    %v4134 = vadd.f32 %v3969, %v4049
    %v4135 = vadd.f32 %v3970, %v4128
    %v4136 = vtanh.pop %v4133
    %v4137 = vtanh.pop %v4134
    %v4138 = vtanh.pop %v4135
    %v4139 = vmul.f32 %v3965, %v4136
    %v4140 = vmul.f32 %v3966, %v4137
    %v4141 = vmul.f32 %v3967, %v4138
    %v4142 = vadd.f32 %v3785, %v4139
    %v4143 = vadd.f32 %v3786, %v4140
    %v4144 = vadd.f32 %v3787, %v4141
    %v4145 = vld [vmem:[#allocation2 + $0xa8] sm:$0xff]
    %v4146 = vld [vmem:[#allocation2 + $0xb0] sm:$0xff]
    %v4147 = vld [vmem:[#allocation2 + $0xb8] sm:$0xff]
    %4148 = vmatprep.subr.bf16.mxu0 %v3348
    %4149 = vmatpush1.bf16.msra.mxu0 %v3347
    %4150 = vmatprep.subr.bf16.mxu0 %v3351
    %4151 = vmatpush1.bf16.msra.mxu0 %v3350
    %4152 = vmatprep.subr.bf16.mxu0 %v3354
    %4153 = vmatpush1.bf16.msra.mxu0 %v3353
    %4154 = vmatprep.subr.bf16.mxu0 %v3357
    %4155 = vmatpush1.bf16.msra.mxu0 %v3356
    %4156 = vmatprep.subr.bf16.mxu0 %v3360
    %4157 = vmatpush1.bf16.msra.mxu0 %v3359
    %4158 = vmatprep.subr.bf16.mxu0 %v3363
    %4159 = vmatpush1.bf16.msra.mxu0 %v3362
    %4160 = vmatprep.subr.bf16.mxu0 %v3366
    %4161 = vmatpush1.bf16.msra.mxu0 %v3365
    %4162 = vmatprep.subr.bf16.mxu0 %v3369
    %4163 = vmatpush1.bf16.msra.mxu0 %v3368
    %4164 = vmatprep.subr.bf16.mxu0 %v3372
    %4165 = vmatpush1.bf16.msra.mxu0 %v3371
    %4166 = vmatprep.subr.bf16.mxu0 %v3375
    %4167 = vmatpush1.bf16.msra.mxu0 %v3374
    %4168 = vmatprep.subr.bf16.mxu0 %v3378
    %4169 = vmatpush1.bf16.msra.mxu0 %v3377
    %4170 = vmatprep.subr.bf16.mxu0 %v3381
    %4171 = vmatpush1.bf16.msra.mxu0 %v3380
    %4172 = vmatprep.subr.bf16.mxu0 %v3384
    %4173 = vmatpush1.bf16.msra.mxu0 %v3383
    %4174 = vmatprep.subr.bf16.mxu0 %v3387
    %4175 = vmatpush1.bf16.msra.mxu0 %v3386
    %4176 = vmatprep.subr.bf16.mxu0 %v3390
    %4177 = vmatpush1.bf16.msra.mxu0 %v3389
    %4178 = vmatprep.subr.bf16.mxu0 %v3393
    %4179 = vmatpush1.bf16.msra.mxu0 %v3392
    %4180 = vmatprep.mubr.bf16.mxu0 %v3603
    %4181 = vmatmul.mubr.bf16.gmra.mrb[0].mxu0 %v3602
    %v4182 = vpop.f32.mrb[0].mxu0
    %v4183 = vadd.f32 0.0, %v4182
    %v4184 = vpop.f32.mrb[0].mxu0
    %v4185 = vadd.f32 0.0, %v4184
    %v4186 = vpop.f32.mrb[0].mxu0
    %v4187 = vpop.f32.mrb[0].mxu0
    %4188 = vdwg.mxu0
    %4189 = vmatprep.subr.bf16.mxu0 %v3396
    %4190 = vmatpush1.bf16.msra.mxu0 %v3395
    %4191 = vmatprep.subr.bf16.mxu0 %v3399
    %4192 = vmatpush1.bf16.msra.mxu0 %v3398
    %4193 = vmatprep.subr.bf16.mxu0 %v3402
    %4194 = vmatpush1.bf16.msra.mxu0 %v3401
    %4195 = vmatprep.subr.bf16.mxu0 %v3405
    %4196 = vmatpush1.bf16.msra.mxu0 %v3404
    %4197 = vmatprep.subr.bf16.mxu0 %v3408
    %4198 = vmatpush1.bf16.msra.mxu0 %v3407
    %4199 = vmatprep.subr.bf16.mxu0 %v3411
    %4200 = vmatpush1.bf16.msra.mxu0 %v3410
    %4201 = vmatprep.subr.bf16.mxu0 %v3414
    %4202 = vmatpush1.bf16.msra.mxu0 %v3413
    %4203 = vmatprep.subr.bf16.mxu0 %v3417
    %4204 = vmatpush1.bf16.msra.mxu0 %v3416
    %4205 = vmatprep.subr.bf16.mxu0 0
    %4206 = vmatpush1.bf16.msra.mxu0 0
    %4207 = vmatprep.subr.bf16.mxu0 0
    %4208 = vmatpush1.bf16.msra.mxu0 0
    %4209 = vmatprep.subr.bf16.mxu0 0
    %4210 = vmatpush1.bf16.msra.mxu0 0
    %4211 = vmatprep.subr.bf16.mxu0 0
    %4212 = vmatpush1.bf16.msra.mxu0 0
    %4213 = vmatprep.subr.bf16.mxu0 0
    %4214 = vmatpush1.bf16.msra.mxu0 0
    %4215 = vmatprep.subr.bf16.mxu0 0
    %4216 = vmatpush1.bf16.msra.mxu0 0
    %4217 = vmatprep.subr.bf16.mxu0 0
    %4218 = vmatpush1.bf16.msra.mxu0 0
    %4219 = vmatprep.subr.bf16.mxu0 0
    %4220 = vmatpush1.bf16.msra.mxu0 0
    %4221 = vmatprep.mubr.bf16.mxu0 0
    %4222 = vmatmul.mubr.bf16.gmra.mrb[0].mxu0 %v3604
    %v4223 = vpop.f32.mrb[0].mxu0
    %v4224 = vadd.f32 %v4183, %v4223
    %v4225 = vpop.f32.mrb[0].mxu0
    %v4226 = vadd.f32 %v4185, %v4225
    %v4227 = vpop.f32.mrb[0].mxu0
    %v4228 = vpop.f32.mrb[0].mxu0
    %4229 = vdwg.mxu0
    %4230 = vmatprep.subr.bf16.mxu0 0
    %4231 = vmatpush1.bf16.msra.mxu0 %v3349
    %4232 = vmatprep.subr.bf16.mxu0 0
    %4233 = vmatpush1.bf16.msra.mxu0 %v3352
    %4234 = vmatprep.subr.bf16.mxu0 0
    %4235 = vmatpush1.bf16.msra.mxu0 %v3355
    %4236 = vmatprep.subr.bf16.mxu0 0
    %4237 = vmatpush1.bf16.msra.mxu0 %v3358
    %4238 = vmatprep.subr.bf16.mxu0 0
    %4239 = vmatpush1.bf16.msra.mxu0 %v3361
    %4240 = vmatprep.subr.bf16.mxu0 0
    %4241 = vmatpush1.bf16.msra.mxu0 %v3364
    %4242 = vmatprep.subr.bf16.mxu0 0
    %4243 = vmatpush1.bf16.msra.mxu0 %v3367
    %4244 = vmatprep.subr.bf16.mxu0 0
    %4245 = vmatpush1.bf16.msra.mxu0 %v3370
    %4246 = vmatprep.subr.bf16.mxu0 0
    %4247 = vmatpush1.bf16.msra.mxu0 %v3373
    %4248 = vmatprep.subr.bf16.mxu0 0
    %4249 = vmatpush1.bf16.msra.mxu0 %v3376
    %4250 = vmatprep.subr.bf16.mxu0 0
    %4251 = vmatpush1.bf16.msra.mxu0 %v3379
    %4252 = vmatprep.subr.bf16.mxu0 0
    %4253 = vmatpush1.bf16.msra.mxu0 %v3382
    %4254 = vmatprep.subr.bf16.mxu0 0
    %4255 = vmatpush1.bf16.msra.mxu0 %v3385
    %4256 = vmatprep.subr.bf16.mxu0 0
    %4257 = vmatpush1.bf16.msra.mxu0 %v3388
    %4258 = vmatprep.subr.bf16.mxu0 0
    %4259 = vmatpush1.bf16.msra.mxu0 %v3391
    %4260 = vmatprep.subr.bf16.mxu0 0
    %4261 = vmatpush1.bf16.msra.mxu0 %v3394
    %4262 = vmatprep.mubr.bf16.mxu0 %v3603
    %4263 = vmatmul.mubr.bf16.gmra.mrb[0].mxu0 %v3602
    %v4264 = vpop.f32.mrb[0].mxu0
    %v4265 = vadd.f32 0.0, %v4264
    %v4266 = vpop.f32.mrb[0].mxu0
    %v4267 = vpop.f32.mrb[0].mxu0
    %v4268 = vpop.f32.mrb[0].mxu0
    %4269 = vdwg.mxu0
    %4270 = vmatprep.subr.bf16.mxu0 0
    %4271 = vmatpush1.bf16.msra.mxu0 %v3397
    %4272 = vmatprep.subr.bf16.mxu0 0
    %4273 = vmatpush1.bf16.msra.mxu0 %v3400
    %4274 = vmatprep.subr.bf16.mxu0 0
    %4275 = vmatpush1.bf16.msra.mxu0 %v3403
    %4276 = vmatprep.subr.bf16.mxu0 0
    %4277 = vmatpush1.bf16.msra.mxu0 %v3406
    %4278 = vmatprep.subr.bf16.mxu0 0
    %4279 = vmatpush1.bf16.msra.mxu0 %v3409
    %4280 = vmatprep.subr.bf16.mxu0 0
    %4281 = vmatpush1.bf16.msra.mxu0 %v3412
    %4282 = vmatprep.subr.bf16.mxu0 0
    %4283 = vmatpush1.bf16.msra.mxu0 %v3415
    %4284 = vmatprep.subr.bf16.mxu0 0
    %4285 = vmatpush1.bf16.msra.mxu0 %v3418
    %4286 = vmatprep.subr.bf16.mxu0 0
    %4287 = vmatpush1.bf16.msra.mxu0 0
    %4288 = vmatprep.subr.bf16.mxu0 0
    %4289 = vmatpush1.bf16.msra.mxu0 0
    %4290 = vmatprep.subr.bf16.mxu0 0
    %4291 = vmatpush1.bf16.msra.mxu0 0
    %4292 = vmatprep.subr.bf16.mxu0 0
    %4293 = vmatpush1.bf16.msra.mxu0 0
    %4294 = vmatprep.subr.bf16.mxu0 0
    %4295 = vmatpush1.bf16.msra.mxu0 0
    %4296 = vmatprep.subr.bf16.mxu0 0
    %4297 = vmatpush1.bf16.msra.mxu0 0
    %4298 = vmatprep.subr.bf16.mxu0 0
    %4299 = vmatpush1.bf16.msra.mxu0 0
    %4300 = vmatprep.subr.bf16.mxu0 0
    %4301 = vmatpush1.bf16.msra.mxu0 0
    %4302 = vmatprep.mubr.bf16.mxu0 0
    %4303 = vmatmul.mubr.bf16.gmra.mrb[0].mxu0 %v3604
    %v4304 = vpop.f32.mrb[0].mxu0
    %v4305 = vadd.f32 %v4265, %v4304
    %v4306 = vpop.f32.mrb[0].mxu0
    %v4307 = vpop.f32.mrb[0].mxu0
    %v4308 = vpop.f32.mrb[0].mxu0
    %4309 = vdwg.mxu0
    %v4310 = vadd.f32 %v4145, %v4224
    %v4311 = vadd.f32 %v4146, %v4226
    %v4312 = vadd.f32 %v4147, %v4305
    %v4313 = vmul.f32 %v4310, 0.5
    %v4314 = vmul.f32 %v4311, 0.5
    %v4315 = vmul.f32 %v4312, 0.5
    %v4316 = vtanh.pop %v4313
    %v4317 = vtanh.pop %v4314
    %v4318 = vtanh.pop %v4315
    %v4319 = vmul.f32 %v4316, 0.5
    %v4320 = vmul.f32 %v4317, 0.5
    %v4321 = vmul.f32 %v4318, 0.5
    %v4322 = vadd.f32 %v4319, 0.5
    %v4323 = vadd.f32 %v4320, 0.5
    %v4324 = vadd.f32 %v4321, 0.5
    %v4325 = vtanh.pop %v4142
    %v4326 = vtanh.pop %v4143
    %v4327 = vtanh.pop %v4144
    %v4328 = vmul.f32 %v4322, %v4325
    %v4329 = vmul.f32 %v4323, %v4326
    %v4330 = vmul.f32 %v4324, %v4327
    %v4331 = vpack.c.bf16 %v4328, %v4328
    %v4332 = vpack.c.bf16 %v4329, %v4329
    %v4333 = vpack.c.bf16 %v4330, %v4330
    %v4334 = vld [vmem:[#allocation2 + $0xd8] sm:$0xff]
    %v4335 = vld [vmem:[#allocation2 + $0xe0] sm:$0xff]
    %v4336 = vld [vmem:[#allocation2 + $0xe8] sm:$0xff]
    %4337 = vmatprep.subr.bf16.mxu0 %v2592
    %4338 = vmatpush1.bf16.msra.mxu0 %v2591
    %4339 = vmatprep.subr.bf16.mxu0 %v2595
    %4340 = vmatpush1.bf16.msra.mxu0 %v2594
    %4341 = vmatprep.subr.bf16.mxu0 %v2598
    %4342 = vmatpush1.bf16.msra.mxu0 %v2597
    %4343 = vmatprep.subr.bf16.mxu0 %v2601
    %4344 = vmatpush1.bf16.msra.mxu0 %v2600
    %4345 = vmatprep.subr.bf16.mxu0 %v2604
    %4346 = vmatpush1.bf16.msra.mxu0 %v2603
    %4347 = vmatprep.subr.bf16.mxu0 %v2607
    %4348 = vmatpush1.bf16.msra.mxu0 %v2606
    %4349 = vmatprep.subr.bf16.mxu0 %v2610
    %4350 = vmatpush1.bf16.msra.mxu0 %v2609
    %4351 = vmatprep.subr.bf16.mxu0 %v2613
    %4352 = vmatpush1.bf16.msra.mxu0 %v2612
    %4353 = vmatprep.subr.bf16.mxu0 %v2616
    %4354 = vmatpush1.bf16.msra.mxu0 %v2615
    %4355 = vmatprep.subr.bf16.mxu0 %v2619
    %4356 = vmatpush1.bf16.msra.mxu0 %v2618
    %4357 = vmatprep.subr.bf16.mxu0 %v2622
    %4358 = vmatpush1.bf16.msra.mxu0 %v2621
    %4359 = vmatprep.subr.bf16.mxu0 %v2625
    %4360 = vmatpush1.bf16.msra.mxu0 %v2624
    %4361 = vmatprep.subr.bf16.mxu0 %v2628
    %4362 = vmatpush1.bf16.msra.mxu0 %v2627
    %4363 = vmatprep.subr.bf16.mxu0 %v2631
    %4364 = vmatpush1.bf16.msra.mxu0 %v2630
    %4365 = vmatprep.subr.bf16.mxu0 %v2634
    %4366 = vmatpush1.bf16.msra.mxu0 %v2633
    %4367 = vmatprep.subr.bf16.mxu0 %v2637
    %4368 = vmatpush1.bf16.msra.mxu0 %v2636
    %4369 = vmatprep.mubr.bf16.mxu0 %v4332
    %4370 = vmatmul.mubr.bf16.gmra.mrb[0].mxu0 %v4331
    %v4371 = vpop.f32.mrb[0].mxu0
    %v4372 = vadd.f32 0.0, %v4371
    %v4373 = vpop.f32.mrb[0].mxu0
    %v4374 = vadd.f32 0.0, %v4373
    %v4375 = vpop.f32.mrb[0].mxu0
    %v4376 = vpop.f32.mrb[0].mxu0
    %4377 = vdwg.mxu0
    %4378 = vmatprep.subr.bf16.mxu0 %v2640
    %4379 = vmatpush1.bf16.msra.mxu0 %v2639
    %4380 = vmatprep.subr.bf16.mxu0 %v2643
    %4381 = vmatpush1.bf16.msra.mxu0 %v2642
    %4382 = vmatprep.subr.bf16.mxu0 %v2646
    %4383 = vmatpush1.bf16.msra.mxu0 %v2645
    %4384 = vmatprep.subr.bf16.mxu0 %v2649
    %4385 = vmatpush1.bf16.msra.mxu0 %v2648
    %4386 = vmatprep.subr.bf16.mxu0 %v2652
    %4387 = vmatpush1.bf16.msra.mxu0 %v2651
    %4388 = vmatprep.subr.bf16.mxu0 %v2655
    %4389 = vmatpush1.bf16.msra.mxu0 %v2654
    %4390 = vmatprep.subr.bf16.mxu0 %v2658
    %4391 = vmatpush1.bf16.msra.mxu0 %v2657
    %4392 = vmatprep.subr.bf16.mxu0 %v2661
    %4393 = vmatpush1.bf16.msra.mxu0 %v2660
    %4394 = vmatprep.subr.bf16.mxu0 0
    %4395 = vmatpush1.bf16.msra.mxu0 0
    %4396 = vmatprep.subr.bf16.mxu0 0
    %4397 = vmatpush1.bf16.msra.mxu0 0
    %4398 = vmatprep.subr.bf16.mxu0 0
    %4399 = vmatpush1.bf16.msra.mxu0 0
    %4400 = vmatprep.subr.bf16.mxu0 0
    %4401 = vmatpush1.bf16.msra.mxu0 0
    %4402 = vmatprep.subr.bf16.mxu0 0
    %4403 = vmatpush1.bf16.msra.mxu0 0
    %4404 = vmatprep.subr.bf16.mxu0 0
    %4405 = vmatpush1.bf16.msra.mxu0 0
    %4406 = vmatprep.subr.bf16.mxu0 0
    %4407 = vmatpush1.bf16.msra.mxu0 0
    %4408 = vmatprep.subr.bf16.mxu0 0
    %4409 = vmatpush1.bf16.msra.mxu0 0
    %4410 = vmatprep.mubr.bf16.mxu0 0
    %4411 = vmatmul.mubr.bf16.gmra.mrb[0].mxu0 %v4333
    %v4412 = vpop.f32.mrb[0].mxu0
    %v4413 = vadd.f32 %v4372, %v4412
    %v4414 = vpop.f32.mrb[0].mxu0
    %v4415 = vadd.f32 %v4374, %v4414
    %v4416 = vpop.f32.mrb[0].mxu0
    %v4417 = vpop.f32.mrb[0].mxu0
    %4418 = vdwg.mxu0
    %4419 = vmatprep.subr.bf16.mxu0 0
    %4420 = vmatpush1.bf16.msra.mxu0 %v2593
    %4421 = vmatprep.subr.bf16.mxu0 0
    %4422 = vmatpush1.bf16.msra.mxu0 %v2596
    %4423 = vmatprep.subr.bf16.mxu0 0
    %4424 = vmatpush1.bf16.msra.mxu0 %v2599
    %4425 = vmatprep.subr.bf16.mxu0 0
    %4426 = vmatpush1.bf16.msra.mxu0 %v2602
    %4427 = vmatprep.subr.bf16.mxu0 0
    %4428 = vmatpush1.bf16.msra.mxu0 %v2605
    %4429 = vmatprep.subr.bf16.mxu0 0
    %4430 = vmatpush1.bf16.msra.mxu0 %v2608
    %4431 = vmatprep.subr.bf16.mxu0 0
    %4432 = vmatpush1.bf16.msra.mxu0 %v2611
    %4433 = vmatprep.subr.bf16.mxu0 0
    %4434 = vmatpush1.bf16.msra.mxu0 %v2614
    %4435 = vmatprep.subr.bf16.mxu0 0
    %4436 = vmatpush1.bf16.msra.mxu0 %v2617
    %4437 = vmatprep.subr.bf16.mxu0 0
    %4438 = vmatpush1.bf16.msra.mxu0 %v2620
    %4439 = vmatprep.subr.bf16.mxu0 0
    %4440 = vmatpush1.bf16.msra.mxu0 %v2623
    %4441 = vmatprep.subr.bf16.mxu0 0
    %4442 = vmatpush1.bf16.msra.mxu0 %v2626
    %4443 = vmatprep.subr.bf16.mxu0 0
    %4444 = vmatpush1.bf16.msra.mxu0 %v2629
    %4445 = vmatprep.subr.bf16.mxu0 0
    %4446 = vmatpush1.bf16.msra.mxu0 %v2632
    %4447 = vmatprep.subr.bf16.mxu0 0
    %4448 = vmatpush1.bf16.msra.mxu0 %v2635
    %4449 = vmatprep.subr.bf16.mxu0 0
    %4450 = vmatpush1.bf16.msra.mxu0 %v2638
    %4451 = vmatprep.mubr.bf16.mxu0 %v4332
    %4452 = vmatmul.mubr.bf16.gmra.mrb[0].mxu0 %v4331
    %v4453 = vpop.f32.mrb[0].mxu0
    %v4454 = vadd.f32 0.0, %v4453
    %v4455 = vpop.f32.mrb[0].mxu0
    %v4456 = vpop.f32.mrb[0].mxu0
    %v4457 = vpop.f32.mrb[0].mxu0
    %4458 = vdwg.mxu0
    %4459 = vmatprep.subr.bf16.mxu0 0
    %4460 = vmatpush1.bf16.msra.mxu0 %v2641
    %4461 = vmatprep.subr.bf16.mxu0 0
    %4462 = vmatpush1.bf16.msra.mxu0 %v2644
    %4463 = vmatprep.subr.bf16.mxu0 0
    %4464 = vmatpush1.bf16.msra.mxu0 %v2647
    %4465 = vmatprep.subr.bf16.mxu0 0
    %4466 = vmatpush1.bf16.msra.mxu0 %v2650
    %4467 = vmatprep.subr.bf16.mxu0 0
    %4468 = vmatpush1.bf16.msra.mxu0 %v2653
    %4469 = vmatprep.subr.bf16.mxu0 0
    %4470 = vmatpush1.bf16.msra.mxu0 %v2656
    %4471 = vmatprep.subr.bf16.mxu0 0
    %4472 = vmatpush1.bf16.msra.mxu0 %v2659
    %4473 = vmatprep.subr.bf16.mxu0 0
    %4474 = vmatpush1.bf16.msra.mxu0 %v2662
    %4475 = vmatprep.subr.bf16.mxu0 0
    %4476 = vmatpush1.bf16.msra.mxu0 0
    %4477 = vmatprep.subr.bf16.mxu0 0
    %4478 = vmatpush1.bf16.msra.mxu0 0
    %4479 = vmatprep.subr.bf16.mxu0 0
    %4480 = vmatpush1.bf16.msra.mxu0 0
    %4481 = vmatprep.subr.bf16.mxu0 0
    %4482 = vmatpush1.bf16.msra.mxu0 0
    %4483 = vmatprep.subr.bf16.mxu0 0
    %4484 = vmatpush1.bf16.msra.mxu0 0
    %4485 = vmatprep.subr.bf16.mxu0 0
    %4486 = vmatpush1.bf16.msra.mxu0 0
    %4487 = vmatprep.subr.bf16.mxu0 0
    %4488 = vmatpush1.bf16.msra.mxu0 0
    %4489 = vmatprep.subr.bf16.mxu0 0
    %4490 = vmatpush1.bf16.msra.mxu0 0
    %4491 = vmatprep.mubr.bf16.mxu0 0
    %4492 = vmatmul.mubr.bf16.gmra.mrb[0].mxu0 %v4333
    %v4493 = vpop.f32.mrb[0].mxu0
    %v4494 = vadd.f32 %v4454, %v4493
    %v4495 = vpop.f32.mrb[0].mxu0
    %v4496 = vpop.f32.mrb[0].mxu0
    %v4497 = vpop.f32.mrb[0].mxu0
    %4498 = vdwg.mxu0
    %v4499 = vadd.f32 %v4334, %v4413
    %v4500 = vadd.f32 %v4335, %v4415
    %v4501 = vadd.f32 %v4336, %v4494
    %v4502 = vmul.f32 %v4499, 0.5
    %v4503 = vmul.f32 %v4500, 0.5
    %v4504 = vmul.f32 %v4501, 0.5
    %v4505 = vtanh.pop %v4502
    %v4506 = vtanh.pop %v4503
    %v4507 = vtanh.pop %v4504
    %v4508 = vmul.f32 %v4505, 0.5
    %v4509 = vmul.f32 %v4506, 0.5
    %v4510 = vmul.f32 %v4507, 0.5
    %v4511 = vadd.f32 %v4508, 0.5
    %v4512 = vadd.f32 %v4509, 0.5
    %v4513 = vadd.f32 %v4510, 0.5
    %v4514 = vmul.f32 %v4511, %v4142
    %v4515 = vmul.f32 %v4512, %v4143
    %v4516 = vmul.f32 %v4513, %v4144
    %v4517 = vld [vmem:[#allocation2 + $0xc0] sm:$0xff]
    %v4518 = vld [vmem:[#allocation2 + $0xc8] sm:$0xff]
    %v4519 = vld [vmem:[#allocation2 + $0xd0] sm:$0xff]
    %4520 = vmatprep.subr.bf16.mxu0 %v2847
    %4521 = vmatpush1.bf16.msra.mxu0 %v2846
    %4522 = vmatprep.subr.bf16.mxu0 %v2850
    %4523 = vmatpush1.bf16.msra.mxu0 %v2849
    %4524 = vmatprep.subr.bf16.mxu0 %v2853
    %4525 = vmatpush1.bf16.msra.mxu0 %v2852
    %4526 = vmatprep.subr.bf16.mxu0 %v2856
    %4527 = vmatpush1.bf16.msra.mxu0 %v2855
    %4528 = vmatprep.subr.bf16.mxu0 %v2859
    %4529 = vmatpush1.bf16.msra.mxu0 %v2858
    %4530 = vmatprep.subr.bf16.mxu0 %v2862
    %4531 = vmatpush1.bf16.msra.mxu0 %v2861
    %4532 = vmatprep.subr.bf16.mxu0 %v2865
    %4533 = vmatpush1.bf16.msra.mxu0 %v2864
    %4534 = vmatprep.subr.bf16.mxu0 %v2868
    %4535 = vmatpush1.bf16.msra.mxu0 %v2867
    %4536 = vmatprep.subr.bf16.mxu0 %v2871
    %4537 = vmatpush1.bf16.msra.mxu0 %v2870
    %4538 = vmatprep.subr.bf16.mxu0 %v2874
    %4539 = vmatpush1.bf16.msra.mxu0 %v2873
    %4540 = vmatprep.subr.bf16.mxu0 %v2877
    %4541 = vmatpush1.bf16.msra.mxu0 %v2876
    %4542 = vmatprep.subr.bf16.mxu0 %v2880
    %4543 = vmatpush1.bf16.msra.mxu0 %v2879
    %4544 = vmatprep.subr.bf16.mxu0 %v2883
    %4545 = vmatpush1.bf16.msra.mxu0 %v2882
    %4546 = vmatprep.subr.bf16.mxu0 %v2886
    %4547 = vmatpush1.bf16.msra.mxu0 %v2885
    %4548 = vmatprep.subr.bf16.mxu0 %v2889
    %4549 = vmatpush1.bf16.msra.mxu0 %v2888
    %4550 = vmatprep.subr.bf16.mxu0 %v2892
    %4551 = vmatpush1.bf16.msra.mxu0 %v2891
    %4552 = vmatprep.mubr.bf16.mxu0 %v4332
    %4553 = vmatmul.mubr.bf16.gmra.mrb[0].mxu0 %v4331
    %v4554 = vpop.f32.mrb[0].mxu0
    %v4555 = vadd.f32 0.0, %v4554
    %v4556 = vpop.f32.mrb[0].mxu0
    %v4557 = vadd.f32 0.0, %v4556
    %v4558 = vpop.f32.mrb[0].mxu0
    %v4559 = vpop.f32.mrb[0].mxu0
    %4560 = vdwg.mxu0
    %4561 = vmatprep.subr.bf16.mxu0 %v2895
    %4562 = vmatpush1.bf16.msra.mxu0 %v2894
    %4563 = vmatprep.subr.bf16.mxu0 %v2898
    %4564 = vmatpush1.bf16.msra.mxu0 %v2897
    %4565 = vmatprep.subr.bf16.mxu0 %v2901
    %4566 = vmatpush1.bf16.msra.mxu0 %v2900
    %4567 = vmatprep.subr.bf16.mxu0 %v2904
    %4568 = vmatpush1.bf16.msra.mxu0 %v2903
    %4569 = vmatprep.subr.bf16.mxu0 %v2907
    %4570 = vmatpush1.bf16.msra.mxu0 %v2906
    %4571 = vmatprep.subr.bf16.mxu0 %v2910
    %4572 = vmatpush1.bf16.msra.mxu0 %v2909
    %4573 = vmatprep.subr.bf16.mxu0 %v2913
    %4574 = vmatpush1.bf16.msra.mxu0 %v2912
    %4575 = vmatprep.subr.bf16.mxu0 %v2916
    %4576 = vmatpush1.bf16.msra.mxu0 %v2915
    %4577 = vmatprep.subr.bf16.mxu0 0
    %4578 = vmatpush1.bf16.msra.mxu0 0
    %4579 = vmatprep.subr.bf16.mxu0 0
    %4580 = vmatpush1.bf16.msra.mxu0 0
    %4581 = vmatprep.subr.bf16.mxu0 0
    %4582 = vmatpush1.bf16.msra.mxu0 0
    %4583 = vmatprep.subr.bf16.mxu0 0
    %4584 = vmatpush1.bf16.msra.mxu0 0
    %4585 = vmatprep.subr.bf16.mxu0 0
    %4586 = vmatpush1.bf16.msra.mxu0 0
    %4587 = vmatprep.subr.bf16.mxu0 0
    %4588 = vmatpush1.bf16.msra.mxu0 0
    %4589 = vmatprep.subr.bf16.mxu0 0
    %4590 = vmatpush1.bf16.msra.mxu0 0
    %4591 = vmatprep.subr.bf16.mxu0 0
    %4592 = vmatpush1.bf16.msra.mxu0 0
    %4593 = vmatprep.mubr.bf16.mxu0 0
    %4594 = vmatmul.mubr.bf16.gmra.mrb[0].mxu0 %v4333
    %v4595 = vpop.f32.mrb[0].mxu0
    %v4596 = vadd.f32 %v4555, %v4595
    %v4597 = vpop.f32.mrb[0].mxu0
    %v4598 = vadd.f32 %v4557, %v4597
    %v4599 = vpop.f32.mrb[0].mxu0
    %v4600 = vpop.f32.mrb[0].mxu0
    %4601 = vdwg.mxu0
    %4602 = vmatprep.subr.bf16.mxu0 0
    %4603 = vmatpush1.bf16.msra.mxu0 %v2848
    %4604 = vmatprep.subr.bf16.mxu0 0
    %4605 = vmatpush1.bf16.msra.mxu0 %v2851
    %4606 = vmatprep.subr.bf16.mxu0 0
    %4607 = vmatpush1.bf16.msra.mxu0 %v2854
    %4608 = vmatprep.subr.bf16.mxu0 0
    %4609 = vmatpush1.bf16.msra.mxu0 %v2857
    %4610 = vmatprep.subr.bf16.mxu0 0
    %4611 = vmatpush1.bf16.msra.mxu0 %v2860
    %4612 = vmatprep.subr.bf16.mxu0 0
    %4613 = vmatpush1.bf16.msra.mxu0 %v2863
    %4614 = vmatprep.subr.bf16.mxu0 0
    %4615 = vmatpush1.bf16.msra.mxu0 %v2866
    %4616 = vmatprep.subr.bf16.mxu0 0
    %4617 = vmatpush1.bf16.msra.mxu0 %v2869
    %4618 = vmatprep.subr.bf16.mxu0 0
    %4619 = vmatpush1.bf16.msra.mxu0 %v2872
    %4620 = vmatprep.subr.bf16.mxu0 0
    %4621 = vmatpush1.bf16.msra.mxu0 %v2875
    %4622 = vmatprep.subr.bf16.mxu0 0
    %4623 = vmatpush1.bf16.msra.mxu0 %v2878
    %4624 = vmatprep.subr.bf16.mxu0 0
    %4625 = vmatpush1.bf16.msra.mxu0 %v2881
    %4626 = vmatprep.subr.bf16.mxu0 0
    %4627 = vmatpush1.bf16.msra.mxu0 %v2884
    %4628 = vmatprep.subr.bf16.mxu0 0
    %4629 = vmatpush1.bf16.msra.mxu0 %v2887
    %4630 = vmatprep.subr.bf16.mxu0 0
    %4631 = vmatpush1.bf16.msra.mxu0 %v2890
    %4632 = vmatprep.subr.bf16.mxu0 0
    %4633 = vmatpush1.bf16.msra.mxu0 %v2893
    %4634 = vmatprep.mubr.bf16.mxu0 %v4332
    %4635 = vmatmul.mubr.bf16.gmra.mrb[0].mxu0 %v4331
    %v4636 = vpop.f32.mrb[0].mxu0
    %v4637 = vadd.f32 0.0, %v4636
    %v4638 = vpop.f32.mrb[0].mxu0
    %v4639 = vpop.f32.mrb[0].mxu0
    %v4640 = vpop.f32.mrb[0].mxu0
    %4641 = vdwg.mxu0
    %4642 = vmatprep.subr.bf16.mxu0 0
    %4643 = vmatpush1.bf16.msra.mxu0 %v2896
    %4644 = vmatprep.subr.bf16.mxu0 0
    %4645 = vmatpush1.bf16.msra.mxu0 %v2899
    %4646 = vmatprep.subr.bf16.mxu0 0
    %4647 = vmatpush1.bf16.msra.mxu0 %v2902
    %4648 = vmatprep.subr.bf16.mxu0 0
    %4649 = vmatpush1.bf16.msra.mxu0 %v2905
    %4650 = vmatprep.subr.bf16.mxu0 0
    %4651 = vmatpush1.bf16.msra.mxu0 %v2908
    %4652 = vmatprep.subr.bf16.mxu0 0
    %4653 = vmatpush1.bf16.msra.mxu0 %v2911
    %4654 = vmatprep.subr.bf16.mxu0 0
    %4655 = vmatpush1.bf16.msra.mxu0 %v2914
    %4656 = vmatprep.subr.bf16.mxu0 0
    %4657 = vmatpush1.bf16.msra.mxu0 %v2917
    %4658 = vmatprep.subr.bf16.mxu0 0
    %4659 = vmatpush1.bf16.msra.mxu0 0
    %4660 = vmatprep.subr.bf16.mxu0 0
    %4661 = vmatpush1.bf16.msra.mxu0 0
    %4662 = vmatprep.subr.bf16.mxu0 0
    %4663 = vmatpush1.bf16.msra.mxu0 0
    %4664 = vmatprep.subr.bf16.mxu0 0
    %4665 = vmatpush1.bf16.msra.mxu0 0
    %4666 = vmatprep.subr.bf16.mxu0 0
    %4667 = vmatpush1.bf16.msra.mxu0 0
    %4668 = vmatprep.subr.bf16.mxu0 0
    %4669 = vmatpush1.bf16.msra.mxu0 0
    %4670 = vmatprep.subr.bf16.mxu0 0
    %4671 = vmatpush1.bf16.msra.mxu0 0
    %4672 = vmatprep.subr.bf16.mxu0 0
    %4673 = vmatpush1.bf16.msra.mxu0 0
    %4674 = vmatprep.mubr.bf16.mxu0 0
    %4675 = vmatmul.mubr.bf16.gmra.mrb[0].mxu0 %v4333
    %v4676 = vpop.f32.mrb[0].mxu0
    %v4677 = vadd.f32 %v4637, %v4676
    %v4678 = vpop.f32.mrb[0].mxu0
    %v4679 = vpop.f32.mrb[0].mxu0
    %v4680 = vpop.f32.mrb[0].mxu0
    %4681 = vdwg.mxu0
    %v4682 = vadd.f32 %v4517, %v4596
    %v4683 = vadd.f32 %v4518, %v4598
    %v4684 = vadd.f32 %v4519, %v4677
    %v4685 = vmul.f32 %v4682, 0.5
    %v4686 = vmul.f32 %v4683, 0.5
    %v4687 = vmul.f32 %v4684, 0.5
    %v4688 = vtanh.pop %v4685
    %v4689 = vtanh.pop %v4686
    %v4690 = vtanh.pop %v4687
    %v4691 = vmul.f32 %v4688, 0.5
    %v4692 = vmul.f32 %v4689, 0.5
    %v4693 = vmul.f32 %v4690, 0.5
    %v4694 = vadd.f32 %v4691, 0.5
    %v4695 = vadd.f32 %v4692, 0.5
    %v4696 = vadd.f32 %v4693, 0.5
    %v4697 = vld [vmem:[#allocation2 + $0xf0] sm:$0xff]
    %v4698 = vld [vmem:[#allocation2 + $0xf8] sm:$0xff]
    %v4699 = vld [vmem:[#allocation2 + $0x100] sm:$0xff]
    %4700 = vmatprep.subr.bf16.mxu0 %v3099
    %4701 = vmatpush1.bf16.msra.mxu0 %v3098
    %4702 = vmatprep.subr.bf16.mxu0 %v3102
    %4703 = vmatpush1.bf16.msra.mxu0 %v3101
    %4704 = vmatprep.subr.bf16.mxu0 %v3105
    %4705 = vmatpush1.bf16.msra.mxu0 %v3104
    %4706 = vmatprep.subr.bf16.mxu0 %v3108
    %4707 = vmatpush1.bf16.msra.mxu0 %v3107
    %4708 = vmatprep.subr.bf16.mxu0 %v3111
    %4709 = vmatpush1.bf16.msra.mxu0 %v3110
    %4710 = vmatprep.subr.bf16.mxu0 %v3114
    %4711 = vmatpush1.bf16.msra.mxu0 %v3113
    %4712 = vmatprep.subr.bf16.mxu0 %v3117
    %4713 = vmatpush1.bf16.msra.mxu0 %v3116
    %4714 = vmatprep.subr.bf16.mxu0 %v3120
    %4715 = vmatpush1.bf16.msra.mxu0 %v3119
    %4716 = vmatprep.subr.bf16.mxu0 %v3123
    %4717 = vmatpush1.bf16.msra.mxu0 %v3122
    %4718 = vmatprep.subr.bf16.mxu0 %v3126
    %4719 = vmatpush1.bf16.msra.mxu0 %v3125
    %4720 = vmatprep.subr.bf16.mxu0 %v3129
    %4721 = vmatpush1.bf16.msra.mxu0 %v3128
    %4722 = vmatprep.subr.bf16.mxu0 %v3132
    %4723 = vmatpush1.bf16.msra.mxu0 %v3131
    %4724 = vmatprep.subr.bf16.mxu0 %v3135
    %4725 = vmatpush1.bf16.msra.mxu0 %v3134
    %4726 = vmatprep.subr.bf16.mxu0 %v3138
    %4727 = vmatpush1.bf16.msra.mxu0 %v3137
    %4728 = vmatprep.subr.bf16.mxu0 %v3141
    %4729 = vmatpush1.bf16.msra.mxu0 %v3140
    %4730 = vmatprep.subr.bf16.mxu0 %v3144
    %4731 = vmatpush1.bf16.msra.mxu0 %v3143
    %4732 = vmatprep.mubr.bf16.mxu0 %v4332
    %4733 = vmatmul.mubr.bf16.gmra.mrb[0].mxu0 %v4331
    %v4734 = vpop.f32.mrb[0].mxu0
    %v4735 = vadd.f32 0.0, %v4734
    %v4736 = vpop.f32.mrb[0].mxu0
    %v4737 = vadd.f32 0.0, %v4736
    %v4738 = vpop.f32.mrb[0].mxu0
    %v4739 = vpop.f32.mrb[0].mxu0
    %4740 = vdwg.mxu0
    %4741 = vmatprep.subr.bf16.mxu0 %v3147
    %4742 = vmatpush1.bf16.msra.mxu0 %v3146
    %4743 = vmatprep.subr.bf16.mxu0 %v3150
    %4744 = vmatpush1.bf16.msra.mxu0 %v3149
    %4745 = vmatprep.subr.bf16.mxu0 %v3153
    %4746 = vmatpush1.bf16.msra.mxu0 %v3152
    %4747 = vmatprep.subr.bf16.mxu0 %v3156
    %4748 = vmatpush1.bf16.msra.mxu0 %v3155
    %4749 = vmatprep.subr.bf16.mxu0 %v3159
    %4750 = vmatpush1.bf16.msra.mxu0 %v3158
    %4751 = vmatprep.subr.bf16.mxu0 %v3162
    %4752 = vmatpush1.bf16.msra.mxu0 %v3161
    %4753 = vmatprep.subr.bf16.mxu0 %v3165
    %4754 = vmatpush1.bf16.msra.mxu0 %v3164
    %4755 = vmatprep.subr.bf16.mxu0 %v3168
    %4756 = vmatpush1.bf16.msra.mxu0 %v3167
    %4757 = vmatprep.subr.bf16.mxu0 0
    %4758 = vmatpush1.bf16.msra.mxu0 0
    %4759 = vmatprep.subr.bf16.mxu0 0
    %4760 = vmatpush1.bf16.msra.mxu0 0
    %4761 = vmatprep.subr.bf16.mxu0 0
    %4762 = vmatpush1.bf16.msra.mxu0 0
    %4763 = vmatprep.subr.bf16.mxu0 0
    %4764 = vmatpush1.bf16.msra.mxu0 0
    %4765 = vmatprep.subr.bf16.mxu0 0
    %4766 = vmatpush1.bf16.msra.mxu0 0
    %4767 = vmatprep.subr.bf16.mxu0 0
    %4768 = vmatpush1.bf16.msra.mxu0 0
    %4769 = vmatprep.subr.bf16.mxu0 0
    %4770 = vmatpush1.bf16.msra.mxu0 0
    %4771 = vmatprep.subr.bf16.mxu0 0
    %4772 = vmatpush1.bf16.msra.mxu0 0
    %4773 = vmatprep.mubr.bf16.mxu0 0
    %4774 = vmatmul.mubr.bf16.gmra.mrb[0].mxu0 %v4333
    %v4775 = vpop.f32.mrb[0].mxu0
    %v4776 = vadd.f32 %v4735, %v4775
    %v4777 = vpop.f32.mrb[0].mxu0
    %v4778 = vadd.f32 %v4737, %v4777
    %v4779 = vpop.f32.mrb[0].mxu0
    %v4780 = vpop.f32.mrb[0].mxu0
    %4781 = vdwg.mxu0
    %4782 = vmatprep.subr.bf16.mxu0 0
    %4783 = vmatpush1.bf16.msra.mxu0 %v3100
    %4784 = vmatprep.subr.bf16.mxu0 0
    %4785 = vmatpush1.bf16.msra.mxu0 %v3103
    %4786 = vmatprep.subr.bf16.mxu0 0
    %4787 = vmatpush1.bf16.msra.mxu0 %v3106
    %4788 = vmatprep.subr.bf16.mxu0 0
    %4789 = vmatpush1.bf16.msra.mxu0 %v3109
    %4790 = vmatprep.subr.bf16.mxu0 0
    %4791 = vmatpush1.bf16.msra.mxu0 %v3112
    %4792 = vmatprep.subr.bf16.mxu0 0
    %4793 = vmatpush1.bf16.msra.mxu0 %v3115
    %4794 = vmatprep.subr.bf16.mxu0 0
    %4795 = vmatpush1.bf16.msra.mxu0 %v3118
    %4796 = vmatprep.subr.bf16.mxu0 0
    %4797 = vmatpush1.bf16.msra.mxu0 %v3121
    %4798 = vmatprep.subr.bf16.mxu0 0
    %4799 = vmatpush1.bf16.msra.mxu0 %v3124
    %4800 = vmatprep.subr.bf16.mxu0 0
    %4801 = vmatpush1.bf16.msra.mxu0 %v3127
    %4802 = vmatprep.subr.bf16.mxu0 0
    %4803 = vmatpush1.bf16.msra.mxu0 %v3130
    %4804 = vmatprep.subr.bf16.mxu0 0
    %4805 = vmatpush1.bf16.msra.mxu0 %v3133
    %4806 = vmatprep.subr.bf16.mxu0 0
    %4807 = vmatpush1.bf16.msra.mxu0 %v3136
    %4808 = vmatprep.subr.bf16.mxu0 0
    %4809 = vmatpush1.bf16.msra.mxu0 %v3139
    %4810 = vmatprep.subr.bf16.mxu0 0
    %4811 = vmatpush1.bf16.msra.mxu0 %v3142
    %4812 = vmatprep.subr.bf16.mxu0 0
    %4813 = vmatpush1.bf16.msra.mxu0 %v3145
    %4814 = vmatprep.mubr.bf16.mxu0 %v4332
    %4815 = vmatmul.mubr.bf16.gmra.mrb[0].mxu0 %v4331
    %v4816 = vpop.f32.mrb[0].mxu0
    %v4817 = vadd.f32 0.0, %v4816
    %v4818 = vpop.f32.mrb[0].mxu0
    %v4819 = vpop.f32.mrb[0].mxu0
    %v4820 = vpop.f32.mrb[0].mxu0
    %4821 = vdwg.mxu0
    %4822 = vmatprep.subr.bf16.mxu0 0
    %4823 = vmatpush1.bf16.msra.mxu0 %v3148
    %4824 = vmatprep.subr.bf16.mxu0 0
    %4825 = vmatpush1.bf16.msra.mxu0 %v3151
    %4826 = vmatprep.subr.bf16.mxu0 0
    %4827 = vmatpush1.bf16.msra.mxu0 %v3154
    %4828 = vmatprep.subr.bf16.mxu0 0
    %4829 = vmatpush1.bf16.msra.mxu0 %v3157
    %4830 = vmatprep.subr.bf16.mxu0 0
    %4831 = vmatpush1.bf16.msra.mxu0 %v3160
    %4832 = vmatprep.subr.bf16.mxu0 0
    %4833 = vmatpush1.bf16.msra.mxu0 %v3163
    %4834 = vmatprep.subr.bf16.mxu0 0
    %4835 = vmatpush1.bf16.msra.mxu0 %v3166
    %4836 = vmatprep.subr.bf16.mxu0 0
    %4837 = vmatpush1.bf16.msra.mxu0 %v3169
    %4838 = vmatprep.subr.bf16.mxu0 0
    %4839 = vmatpush1.bf16.msra.mxu0 0
    %4840 = vmatprep.subr.bf16.mxu0 0
    %4841 = vmatpush1.bf16.msra.mxu0 0
    %4842 = vmatprep.subr.bf16.mxu0 0
    %4843 = vmatpush1.bf16.msra.mxu0 0
    %4844 = vmatprep.subr.bf16.mxu0 0
    %4845 = vmatpush1.bf16.msra.mxu0 0
    %4846 = vmatprep.subr.bf16.mxu0 0
    %4847 = vmatpush1.bf16.msra.mxu0 0
    %4848 = vmatprep.subr.bf16.mxu0 0
    %4849 = vmatpush1.bf16.msra.mxu0 0
    %4850 = vmatprep.subr.bf16.mxu0 0
    %4851 = vmatpush1.bf16.msra.mxu0 0
    %4852 = vmatprep.subr.bf16.mxu0 0
    %4853 = vmatpush1.bf16.msra.mxu0 0
    %4854 = vmatprep.mubr.bf16.mxu0 0
    %4855 = vmatmul.mubr.bf16.gmra.mrb[0].mxu0 %v4333
    %v4856 = vpop.f32.mrb[0].mxu0
    %v4857 = vadd.f32 %v4817, %v4856
    %v4858 = vpop.f32.mrb[0].mxu0
    %v4859 = vpop.f32.mrb[0].mxu0
    %v4860 = vpop.f32.mrb[0].mxu0
    %4861 = vdwg.mxu0
    %v4862 = vadd.f32 %v4697, %v4776
    %v4863 = vadd.f32 %v4698, %v4778
    %v4864 = vadd.f32 %v4699, %v4857
    %v4865 = vtanh.pop %v4862
    %v4866 = vtanh.pop %v4863
    %v4867 = vtanh.pop %v4864
    %v4868 = vmul.f32 %v4694, %v4865
    %v4869 = vmul.f32 %v4695, %v4866
    %v4870 = vmul.f32 %v4696, %v4867
    %v4871 = vadd.f32 %v4514, %v4868
    %v4872 = vadd.f32 %v4515, %v4869
    %v4873 = vadd.f32 %v4516, %v4870
    %v4874 = vld [vmem:[#allocation2 + $0x108] sm:$0xff]
    %v4875 = vld [vmem:[#allocation2 + $0x110] sm:$0xff]
    %v4876 = vld [vmem:[#allocation2 + $0x118] sm:$0xff]
    %4877 = vmatprep.subr.bf16.mxu0 %v3348
    %4878 = vmatpush1.bf16.msra.mxu0 %v3347
    %4879 = vmatprep.subr.bf16.mxu0 %v3351
    %4880 = vmatpush1.bf16.msra.mxu0 %v3350
    %4881 = vmatprep.subr.bf16.mxu0 %v3354
    %4882 = vmatpush1.bf16.msra.mxu0 %v3353
    %4883 = vmatprep.subr.bf16.mxu0 %v3357
    %4884 = vmatpush1.bf16.msra.mxu0 %v3356
    %4885 = vmatprep.subr.bf16.mxu0 %v3360
    %4886 = vmatpush1.bf16.msra.mxu0 %v3359
    %4887 = vmatprep.subr.bf16.mxu0 %v3363
    %4888 = vmatpush1.bf16.msra.mxu0 %v3362
    %4889 = vmatprep.subr.bf16.mxu0 %v3366
    %4890 = vmatpush1.bf16.msra.mxu0 %v3365
    %4891 = vmatprep.subr.bf16.mxu0 %v3369
    %4892 = vmatpush1.bf16.msra.mxu0 %v3368
    %4893 = vmatprep.subr.bf16.mxu0 %v3372
    %4894 = vmatpush1.bf16.msra.mxu0 %v3371
    %4895 = vmatprep.subr.bf16.mxu0 %v3375
    %4896 = vmatpush1.bf16.msra.mxu0 %v3374
    %4897 = vmatprep.subr.bf16.mxu0 %v3378
    %4898 = vmatpush1.bf16.msra.mxu0 %v3377
    %4899 = vmatprep.subr.bf16.mxu0 %v3381
    %4900 = vmatpush1.bf16.msra.mxu0 %v3380
    %4901 = vmatprep.subr.bf16.mxu0 %v3384
    %4902 = vmatpush1.bf16.msra.mxu0 %v3383
    %4903 = vmatprep.subr.bf16.mxu0 %v3387
    %4904 = vmatpush1.bf16.msra.mxu0 %v3386
    %4905 = vmatprep.subr.bf16.mxu0 %v3390
    %4906 = vmatpush1.bf16.msra.mxu0 %v3389
    %4907 = vmatprep.subr.bf16.mxu0 %v3393
    %4908 = vmatpush1.bf16.msra.mxu0 %v3392
    %4909 = vmatprep.mubr.bf16.mxu0 %v4332
    %4910 = vmatmul.mubr.bf16.gmra.mrb[0].mxu0 %v4331
    %v4911 = vpop.f32.mrb[0].mxu0
    %v4912 = vadd.f32 0.0, %v4911
    %v4913 = vpop.f32.mrb[0].mxu0
    %v4914 = vadd.f32 0.0, %v4913
    %v4915 = vpop.f32.mrb[0].mxu0
    %v4916 = vpop.f32.mrb[0].mxu0
    %4917 = vdwg.mxu0
    %4918 = vmatprep.subr.bf16.mxu0 %v3396
    %4919 = vmatpush1.bf16.msra.mxu0 %v3395
    %4920 = vmatprep.subr.bf16.mxu0 %v3399
    %4921 = vmatpush1.bf16.msra.mxu0 %v3398
    %4922 = vmatprep.subr.bf16.mxu0 %v3402
    %4923 = vmatpush1.bf16.msra.mxu0 %v3401
    %4924 = vmatprep.subr.bf16.mxu0 %v3405
    %4925 = vmatpush1.bf16.msra.mxu0 %v3404
    %4926 = vmatprep.subr.bf16.mxu0 %v3408
    %4927 = vmatpush1.bf16.msra.mxu0 %v3407
    %4928 = vmatprep.subr.bf16.mxu0 %v3411
    %4929 = vmatpush1.bf16.msra.mxu0 %v3410
    %4930 = vmatprep.subr.bf16.mxu0 %v3414
    %4931 = vmatpush1.bf16.msra.mxu0 %v3413
    %4932 = vmatprep.subr.bf16.mxu0 %v3417
    %4933 = vmatpush1.bf16.msra.mxu0 %v3416
    %4934 = vmatprep.subr.bf16.mxu0 0
    %4935 = vmatpush1.bf16.msra.mxu0 0
    %4936 = vmatprep.subr.bf16.mxu0 0
    %4937 = vmatpush1.bf16.msra.mxu0 0
    %4938 = vmatprep.subr.bf16.mxu0 0
    %4939 = vmatpush1.bf16.msra.mxu0 0
    %4940 = vmatprep.subr.bf16.mxu0 0
    %4941 = vmatpush1.bf16.msra.mxu0 0
    %4942 = vmatprep.subr.bf16.mxu0 0
    %4943 = vmatpush1.bf16.msra.mxu0 0
    %4944 = vmatprep.subr.bf16.mxu0 0
    %4945 = vmatpush1.bf16.msra.mxu0 0
    %4946 = vmatprep.subr.bf16.mxu0 0
    %4947 = vmatpush1.bf16.msra.mxu0 0
    %4948 = vmatprep.subr.bf16.mxu0 0
    %4949 = vmatpush1.bf16.msra.mxu0 0
    %4950 = vmatprep.mubr.bf16.mxu0 0
    %4951 = vmatmul.mubr.bf16.gmra.mrb[0].mxu0 %v4333
    %v4952 = vpop.f32.mrb[0].mxu0
    %v4953 = vadd.f32 %v4912, %v4952
    %v4954 = vpop.f32.mrb[0].mxu0
    %v4955 = vadd.f32 %v4914, %v4954
    %v4956 = vpop.f32.mrb[0].mxu0
    %v4957 = vpop.f32.mrb[0].mxu0
    %4958 = vdwg.mxu0
    %4959 = vmatprep.subr.bf16.mxu0 0
    %4960 = vmatpush1.bf16.msra.mxu0 %v3349
    %4961 = vmatprep.subr.bf16.mxu0 0
    %4962 = vmatpush1.bf16.msra.mxu0 %v3352
    %4963 = vmatprep.subr.bf16.mxu0 0
    %4964 = vmatpush1.bf16.msra.mxu0 %v3355
    %4965 = vmatprep.subr.bf16.mxu0 0
    %4966 = vmatpush1.bf16.msra.mxu0 %v3358
    %4967 = vmatprep.subr.bf16.mxu0 0
    %4968 = vmatpush1.bf16.msra.mxu0 %v3361
    %4969 = vmatprep.subr.bf16.mxu0 0
    %4970 = vmatpush1.bf16.msra.mxu0 %v3364
    %4971 = vmatprep.subr.bf16.mxu0 0
    %4972 = vmatpush1.bf16.msra.mxu0 %v3367
    %4973 = vmatprep.subr.bf16.mxu0 0
    %4974 = vmatpush1.bf16.msra.mxu0 %v3370
    %4975 = vmatprep.subr.bf16.mxu0 0
    %4976 = vmatpush1.bf16.msra.mxu0 %v3373
    %4977 = vmatprep.subr.bf16.mxu0 0
    %4978 = vmatpush1.bf16.msra.mxu0 %v3376
    %4979 = vmatprep.subr.bf16.mxu0 0
    %4980 = vmatpush1.bf16.msra.mxu0 %v3379
    %4981 = vmatprep.subr.bf16.mxu0 0
    %4982 = vmatpush1.bf16.msra.mxu0 %v3382
    %4983 = vmatprep.subr.bf16.mxu0 0
    %4984 = vmatpush1.bf16.msra.mxu0 %v3385
    %4985 = vmatprep.subr.bf16.mxu0 0
    %4986 = vmatpush1.bf16.msra.mxu0 %v3388
    %4987 = vmatprep.subr.bf16.mxu0 0
    %4988 = vmatpush1.bf16.msra.mxu0 %v3391
    %4989 = vmatprep.subr.bf16.mxu0 0
    %4990 = vmatpush1.bf16.msra.mxu0 %v3394
    %4991 = vmatprep.mubr.bf16.mxu0 %v4332
    %4992 = vmatmul.mubr.bf16.gmra.mrb[0].mxu0 %v4331
    %v4993 = vpop.f32.mrb[0].mxu0
    %v4994 = vadd.f32 0.0, %v4993
    %v4995 = vpop.f32.mrb[0].mxu0
    %v4996 = vpop.f32.mrb[0].mxu0
    %v4997 = vpop.f32.mrb[0].mxu0
    %4998 = vdwg.mxu0
    %4999 = vmatprep.subr.bf16.mxu0 0
    %5000 = vmatpush1.bf16.msra.mxu0 %v3397
    %5001 = vmatprep.subr.bf16.mxu0 0
    %5002 = vmatpush1.bf16.msra.mxu0 %v3400
    %5003 = vmatprep.subr.bf16.mxu0 0
    %5004 = vmatpush1.bf16.msra.mxu0 %v3403
    %5005 = vmatprep.subr.bf16.mxu0 0
    %5006 = vmatpush1.bf16.msra.mxu0 %v3406
    %5007 = vmatprep.subr.bf16.mxu0 0
    %5008 = vmatpush1.bf16.msra.mxu0 %v3409
    %5009 = vmatprep.subr.bf16.mxu0 0
    %5010 = vmatpush1.bf16.msra.mxu0 %v3412
    %5011 = vmatprep.subr.bf16.mxu0 0
    %5012 = vmatpush1.bf16.msra.mxu0 %v3415
    %5013 = vmatprep.subr.bf16.mxu0 0
    %5014 = vmatpush1.bf16.msra.mxu0 %v3418
    %5015 = vmatprep.subr.bf16.mxu0 0
    %5016 = vmatpush1.bf16.msra.mxu0 0
    %5017 = vmatprep.subr.bf16.mxu0 0
    %5018 = vmatpush1.bf16.msra.mxu0 0
    %5019 = vmatprep.subr.bf16.mxu0 0
    %5020 = vmatpush1.bf16.msra.mxu0 0
    %5021 = vmatprep.subr.bf16.mxu0 0
    %5022 = vmatpush1.bf16.msra.mxu0 0
    %5023 = vmatprep.subr.bf16.mxu0 0
    %5024 = vmatpush1.bf16.msra.mxu0 0
    %5025 = vmatprep.subr.bf16.mxu0 0
    %5026 = vmatpush1.bf16.msra.mxu0 0
    %5027 = vmatprep.subr.bf16.mxu0 0
    %5028 = vmatpush1.bf16.msra.mxu0 0
    %5029 = vmatprep.subr.bf16.mxu0 0
    %5030 = vmatpush1.bf16.msra.mxu0 0
    %5031 = vmatprep.mubr.bf16.mxu0 0
    %5032 = vmatmul.mubr.bf16.gmra.mrb[0].mxu0 %v4333
    %v5033 = vpop.f32.mrb[0].mxu0
    %v5034 = vadd.f32 %v4994, %v5033
    %v5035 = vpop.f32.mrb[0].mxu0
    %v5036 = vpop.f32.mrb[0].mxu0
    %v5037 = vpop.f32.mrb[0].mxu0
    %5038 = vdwg.mxu0
    %v5039 = vadd.f32 %v4874, %v4953
    %v5040 = vadd.f32 %v4875, %v4955
    %v5041 = vadd.f32 %v4876, %v5034
    %v5042 = vmul.f32 %v5039, 0.5
    %v5043 = vmul.f32 %v5040, 0.5
    %v5044 = vmul.f32 %v5041, 0.5
    %v5045 = vtanh.pop %v5042
    %v5046 = vtanh.pop %v5043
    %v5047 = vtanh.pop %v5044
    %v5048 = vmul.f32 %v5045, 0.5
    %v5049 = vmul.f32 %v5046, 0.5
    %v5050 = vmul.f32 %v5047, 0.5
    %v5051 = vadd.f32 %v5048, 0.5
    %v5052 = vadd.f32 %v5049, 0.5
    %v5053 = vadd.f32 %v5050, 0.5
    %v5054 = vtanh.pop %v4871
    %v5055 = vtanh.pop %v4872
    %v5056 = vtanh.pop %v4873
    %v5057 = vmul.f32 %v5051, %v5054
    %v5058 = vmul.f32 %v5052, %v5055
    %v5059 = vmul.f32 %v5053, %v5056
    %v5060 = vpack.c.bf16 %v5057, %v5057
    %v5061 = vpack.c.bf16 %v5058, %v5058
    %v5062 = vpack.c.bf16 %v5059, %v5059
    %v5063 = vld [vmem:[#allocation2 + $0x138] sm:$0xff]
    %v5064 = vld [vmem:[#allocation2 + $0x140] sm:$0xff]
    %v5065 = vld [vmem:[#allocation2 + $0x148] sm:$0xff]
    %5066 = vmatprep.subr.bf16.mxu0 %v2592
    %5067 = vmatpush1.bf16.msra.mxu0 %v2591
    %5068 = vmatprep.subr.bf16.mxu0 %v2595
    %5069 = vmatpush1.bf16.msra.mxu0 %v2594
    %5070 = vmatprep.subr.bf16.mxu0 %v2598
    %5071 = vmatpush1.bf16.msra.mxu0 %v2597
    %5072 = vmatprep.subr.bf16.mxu0 %v2601
    %5073 = vmatpush1.bf16.msra.mxu0 %v2600
    %5074 = vmatprep.subr.bf16.mxu0 %v2604
    %5075 = vmatpush1.bf16.msra.mxu0 %v2603
    %5076 = vmatprep.subr.bf16.mxu0 %v2607
    %5077 = vmatpush1.bf16.msra.mxu0 %v2606
    %5078 = vmatprep.subr.bf16.mxu0 %v2610
    %5079 = vmatpush1.bf16.msra.mxu0 %v2609
    %5080 = vmatprep.subr.bf16.mxu0 %v2613
    %5081 = vmatpush1.bf16.msra.mxu0 %v2612
    %5082 = vmatprep.subr.bf16.mxu0 %v2616
    %5083 = vmatpush1.bf16.msra.mxu0 %v2615
    %5084 = vmatprep.subr.bf16.mxu0 %v2619
    %5085 = vmatpush1.bf16.msra.mxu0 %v2618
    %5086 = vmatprep.subr.bf16.mxu0 %v2622
    %5087 = vmatpush1.bf16.msra.mxu0 %v2621
    %5088 = vmatprep.subr.bf16.mxu0 %v2625
    %5089 = vmatpush1.bf16.msra.mxu0 %v2624
    %5090 = vmatprep.subr.bf16.mxu0 %v2628
    %5091 = vmatpush1.bf16.msra.mxu0 %v2627
    %5092 = vmatprep.subr.bf16.mxu0 %v2631
    %5093 = vmatpush1.bf16.msra.mxu0 %v2630
    %5094 = vmatprep.subr.bf16.mxu0 %v2634
    %5095 = vmatpush1.bf16.msra.mxu0 %v2633
    %5096 = vmatprep.subr.bf16.mxu0 %v2637
    %5097 = vmatpush1.bf16.msra.mxu0 %v2636
    %5098 = vmatprep.mubr.bf16.mxu0 %v5061
    %5099 = vmatmul.mubr.bf16.gmra.mrb[0].mxu0 %v5060
    %v5100 = vpop.f32.mrb[0].mxu0
    %v5101 = vadd.f32 0.0, %v5100
    %v5102 = vpop.f32.mrb[0].mxu0
    %v5103 = vadd.f32 0.0, %v5102
    %v5104 = vpop.f32.mrb[0].mxu0
    %v5105 = vpop.f32.mrb[0].mxu0
    %5106 = vdwg.mxu0
    %5107 = vmatprep.subr.bf16.mxu0 %v2640
    %5108 = vmatpush1.bf16.msra.mxu0 %v2639
    %5109 = vmatprep.subr.bf16.mxu0 %v2643
    %5110 = vmatpush1.bf16.msra.mxu0 %v2642
    %5111 = vmatprep.subr.bf16.mxu0 %v2646
    %5112 = vmatpush1.bf16.msra.mxu0 %v2645
    %5113 = vmatprep.subr.bf16.mxu0 %v2649
    %5114 = vmatpush1.bf16.msra.mxu0 %v2648
    %5115 = vmatprep.subr.bf16.mxu0 %v2652
    %5116 = vmatpush1.bf16.msra.mxu0 %v2651
    %5117 = vmatprep.subr.bf16.mxu0 %v2655
    %5118 = vmatpush1.bf16.msra.mxu0 %v2654
    %5119 = vmatprep.subr.bf16.mxu0 %v2658
    %5120 = vmatpush1.bf16.msra.mxu0 %v2657
    %5121 = vmatprep.subr.bf16.mxu0 %v2661
    %5122 = vmatpush1.bf16.msra.mxu0 %v2660
    %5123 = vmatprep.subr.bf16.mxu0 0
    %5124 = vmatpush1.bf16.msra.mxu0 0
    %5125 = vmatprep.subr.bf16.mxu0 0
    %5126 = vmatpush1.bf16.msra.mxu0 0
    %5127 = vmatprep.subr.bf16.mxu0 0
    %5128 = vmatpush1.bf16.msra.mxu0 0
    %5129 = vmatprep.subr.bf16.mxu0 0
    %5130 = vmatpush1.bf16.msra.mxu0 0
    %5131 = vmatprep.subr.bf16.mxu0 0
    %5132 = vmatpush1.bf16.msra.mxu0 0
    %5133 = vmatprep.subr.bf16.mxu0 0
    %5134 = vmatpush1.bf16.msra.mxu0 0
    %5135 = vmatprep.subr.bf16.mxu0 0
    %5136 = vmatpush1.bf16.msra.mxu0 0
    %5137 = vmatprep.subr.bf16.mxu0 0
    %5138 = vmatpush1.bf16.msra.mxu0 0
    %5139 = vmatprep.mubr.bf16.mxu0 0
    %5140 = vmatmul.mubr.bf16.gmra.mrb[0].mxu0 %v5062
    %v5141 = vpop.f32.mrb[0].mxu0
    %v5142 = vadd.f32 %v5101, %v5141
    %v5143 = vpop.f32.mrb[0].mxu0
    %v5144 = vadd.f32 %v5103, %v5143
    %v5145 = vpop.f32.mrb[0].mxu0
    %v5146 = vpop.f32.mrb[0].mxu0
    %5147 = vdwg.mxu0
    %5148 = vmatprep.subr.bf16.mxu0 0
    %5149 = vmatpush1.bf16.msra.mxu0 %v2593
    %5150 = vmatprep.subr.bf16.mxu0 0
    %5151 = vmatpush1.bf16.msra.mxu0 %v2596
    %5152 = vmatprep.subr.bf16.mxu0 0
    %5153 = vmatpush1.bf16.msra.mxu0 %v2599
    %5154 = vmatprep.subr.bf16.mxu0 0
    %5155 = vmatpush1.bf16.msra.mxu0 %v2602
    %5156 = vmatprep.subr.bf16.mxu0 0
    %5157 = vmatpush1.bf16.msra.mxu0 %v2605
    %5158 = vmatprep.subr.bf16.mxu0 0
    %5159 = vmatpush1.bf16.msra.mxu0 %v2608
    %5160 = vmatprep.subr.bf16.mxu0 0
    %5161 = vmatpush1.bf16.msra.mxu0 %v2611
    %5162 = vmatprep.subr.bf16.mxu0 0
    %5163 = vmatpush1.bf16.msra.mxu0 %v2614
    %5164 = vmatprep.subr.bf16.mxu0 0
    %5165 = vmatpush1.bf16.msra.mxu0 %v2617
    %5166 = vmatprep.subr.bf16.mxu0 0
    %5167 = vmatpush1.bf16.msra.mxu0 %v2620
    %5168 = vmatprep.subr.bf16.mxu0 0
    %5169 = vmatpush1.bf16.msra.mxu0 %v2623
    %5170 = vmatprep.subr.bf16.mxu0 0
    %5171 = vmatpush1.bf16.msra.mxu0 %v2626
    %5172 = vmatprep.subr.bf16.mxu0 0
    %5173 = vmatpush1.bf16.msra.mxu0 %v2629
    %5174 = vmatprep.subr.bf16.mxu0 0
    %5175 = vmatpush1.bf16.msra.mxu0 %v2632
    %5176 = vmatprep.subr.bf16.mxu0 0
    %5177 = vmatpush1.bf16.msra.mxu0 %v2635
    %5178 = vmatprep.subr.bf16.mxu0 0
    %5179 = vmatpush1.bf16.msra.mxu0 %v2638
    %5180 = vmatprep.mubr.bf16.mxu0 %v5061
    %5181 = vmatmul.mubr.bf16.gmra.mrb[0].mxu0 %v5060
    %v5182 = vpop.f32.mrb[0].mxu0
    %v5183 = vadd.f32 0.0, %v5182
    %v5184 = vpop.f32.mrb[0].mxu0
    %v5185 = vpop.f32.mrb[0].mxu0
    %v5186 = vpop.f32.mrb[0].mxu0
    %5187 = vdwg.mxu0
    %5188 = vmatprep.subr.bf16.mxu0 0
    %5189 = vmatpush1.bf16.msra.mxu0 %v2641
    %5190 = vmatprep.subr.bf16.mxu0 0
    %5191 = vmatpush1.bf16.msra.mxu0 %v2644
    %5192 = vmatprep.subr.bf16.mxu0 0
    %5193 = vmatpush1.bf16.msra.mxu0 %v2647
    %5194 = vmatprep.subr.bf16.mxu0 0
    %5195 = vmatpush1.bf16.msra.mxu0 %v2650
    %5196 = vmatprep.subr.bf16.mxu0 0
    %5197 = vmatpush1.bf16.msra.mxu0 %v2653
    %5198 = vmatprep.subr.bf16.mxu0 0
    %5199 = vmatpush1.bf16.msra.mxu0 %v2656
    %5200 = vmatprep.subr.bf16.mxu0 0
    %5201 = vmatpush1.bf16.msra.mxu0 %v2659
    %5202 = vmatprep.subr.bf16.mxu0 0
    %5203 = vmatpush1.bf16.msra.mxu0 %v2662
    %5204 = vmatprep.subr.bf16.mxu0 0
    %5205 = vmatpush1.bf16.msra.mxu0 0
    %5206 = vmatprep.subr.bf16.mxu0 0
    %5207 = vmatpush1.bf16.msra.mxu0 0
    %5208 = vmatprep.subr.bf16.mxu0 0
    %5209 = vmatpush1.bf16.msra.mxu0 0
    %5210 = vmatprep.subr.bf16.mxu0 0
    %5211 = vmatpush1.bf16.msra.mxu0 0
    %5212 = vmatprep.subr.bf16.mxu0 0
    %5213 = vmatpush1.bf16.msra.mxu0 0
    %5214 = vmatprep.subr.bf16.mxu0 0
    %5215 = vmatpush1.bf16.msra.mxu0 0
    %5216 = vmatprep.subr.bf16.mxu0 0
    %5217 = vmatpush1.bf16.msra.mxu0 0
    %5218 = vmatprep.subr.bf16.mxu0 0
    %5219 = vmatpush1.bf16.msra.mxu0 0
    %5220 = vmatprep.mubr.bf16.mxu0 0
    %5221 = vmatmul.mubr.bf16.gmra.mrb[0].mxu0 %v5062
    %v5222 = vpop.f32.mrb[0].mxu0
    %v5223 = vadd.f32 %v5183, %v5222
    %v5224 = vpop.f32.mrb[0].mxu0
    %v5225 = vpop.f32.mrb[0].mxu0
    %v5226 = vpop.f32.mrb[0].mxu0
    %5227 = vdwg.mxu0
    %v5228 = vadd.f32 %v5063, %v5142
    %v5229 = vadd.f32 %v5064, %v5144
    %v5230 = vadd.f32 %v5065, %v5223
    %v5231 = vmul.f32 %v5228, 0.5
    %v5232 = vmul.f32 %v5229, 0.5
    %v5233 = vmul.f32 %v5230, 0.5
    %v5234 = vtanh.pop %v5231
    %v5235 = vtanh.pop %v5232
    %v5236 = vtanh.pop %v5233
    %v5237 = vmul.f32 %v5234, 0.5
    %v5238 = vmul.f32 %v5235, 0.5
    %v5239 = vmul.f32 %v5236, 0.5
    %v5240 = vadd.f32 %v5237, 0.5
    %v5241 = vadd.f32 %v5238, 0.5
    %v5242 = vadd.f32 %v5239, 0.5
    %v5243 = vmul.f32 %v5240, %v4871
    %v5244 = vmul.f32 %v5241, %v4872
    %v5245 = vmul.f32 %v5242, %v4873
    %v5246 = vld [vmem:[#allocation2 + $0x120] sm:$0xff]
    %v5247 = vld [vmem:[#allocation2 + $0x128] sm:$0xff]
    %v5248 = vld [vmem:[#allocation2 + $0x130] sm:$0xff]
    %5249 = vmatprep.subr.bf16.mxu0 %v2847
    %5250 = vmatpush1.bf16.msra.mxu0 %v2846
    %5251 = vmatprep.subr.bf16.mxu0 %v2850
    %5252 = vmatpush1.bf16.msra.mxu0 %v2849
    %5253 = vmatprep.subr.bf16.mxu0 %v2853
    %5254 = vmatpush1.bf16.msra.mxu0 %v2852
    %5255 = vmatprep.subr.bf16.mxu0 %v2856
    %5256 = vmatpush1.bf16.msra.mxu0 %v2855
    %5257 = vmatprep.subr.bf16.mxu0 %v2859
    %5258 = vmatpush1.bf16.msra.mxu0 %v2858
    %5259 = vmatprep.subr.bf16.mxu0 %v2862
    %5260 = vmatpush1.bf16.msra.mxu0 %v2861
    %5261 = vmatprep.subr.bf16.mxu0 %v2865
    %5262 = vmatpush1.bf16.msra.mxu0 %v2864
    %5263 = vmatprep.subr.bf16.mxu0 %v2868
    %5264 = vmatpush1.bf16.msra.mxu0 %v2867
    %5265 = vmatprep.subr.bf16.mxu0 %v2871
    %5266 = vmatpush1.bf16.msra.mxu0 %v2870
    %5267 = vmatprep.subr.bf16.mxu0 %v2874
    %5268 = vmatpush1.bf16.msra.mxu0 %v2873
    %5269 = vmatprep.subr.bf16.mxu0 %v2877
    %5270 = vmatpush1.bf16.msra.mxu0 %v2876
    %5271 = vmatprep.subr.bf16.mxu0 %v2880
    %5272 = vmatpush1.bf16.msra.mxu0 %v2879
    %5273 = vmatprep.subr.bf16.mxu0 %v2883
    %5274 = vmatpush1.bf16.msra.mxu0 %v2882
    %5275 = vmatprep.subr.bf16.mxu0 %v2886
    %5276 = vmatpush1.bf16.msra.mxu0 %v2885
    %5277 = vmatprep.subr.bf16.mxu0 %v2889
    %5278 = vmatpush1.bf16.msra.mxu0 %v2888
    %5279 = vmatprep.subr.bf16.mxu0 %v2892
    %5280 = vmatpush1.bf16.msra.mxu0 %v2891
    %5281 = vmatprep.mubr.bf16.mxu0 %v5061
    %5282 = vmatmul.mubr.bf16.gmra.mrb[0].mxu0 %v5060
    %v5283 = vpop.f32.mrb[0].mxu0
    %v5284 = vadd.f32 0.0, %v5283
    %v5285 = vpop.f32.mrb[0].mxu0
    %v5286 = vadd.f32 0.0, %v5285
    %v5287 = vpop.f32.mrb[0].mxu0
    %v5288 = vpop.f32.mrb[0].mxu0
    %5289 = vdwg.mxu0
    %5290 = vmatprep.subr.bf16.mxu0 %v2895
    %5291 = vmatpush1.bf16.msra.mxu0 %v2894
    %5292 = vmatprep.subr.bf16.mxu0 %v2898
    %5293 = vmatpush1.bf16.msra.mxu0 %v2897
    %5294 = vmatprep.subr.bf16.mxu0 %v2901
    %5295 = vmatpush1.bf16.msra.mxu0 %v2900
    %5296 = vmatprep.subr.bf16.mxu0 %v2904
    %5297 = vmatpush1.bf16.msra.mxu0 %v2903
    %5298 = vmatprep.subr.bf16.mxu0 %v2907
    %5299 = vmatpush1.bf16.msra.mxu0 %v2906
    %5300 = vmatprep.subr.bf16.mxu0 %v2910
    %5301 = vmatpush1.bf16.msra.mxu0 %v2909
    %5302 = vmatprep.subr.bf16.mxu0 %v2913
    %5303 = vmatpush1.bf16.msra.mxu0 %v2912
    %5304 = vmatprep.subr.bf16.mxu0 %v2916
    %5305 = vmatpush1.bf16.msra.mxu0 %v2915
    %5306 = vmatprep.subr.bf16.mxu0 0
    %5307 = vmatpush1.bf16.msra.mxu0 0
    %5308 = vmatprep.subr.bf16.mxu0 0
    %5309 = vmatpush1.bf16.msra.mxu0 0
    %5310 = vmatprep.subr.bf16.mxu0 0
    %5311 = vmatpush1.bf16.msra.mxu0 0
    %5312 = vmatprep.subr.bf16.mxu0 0
    %5313 = vmatpush1.bf16.msra.mxu0 0
    %5314 = vmatprep.subr.bf16.mxu0 0
    %5315 = vmatpush1.bf16.msra.mxu0 0
    %5316 = vmatprep.subr.bf16.mxu0 0
    %5317 = vmatpush1.bf16.msra.mxu0 0
    %5318 = vmatprep.subr.bf16.mxu0 0
    %5319 = vmatpush1.bf16.msra.mxu0 0
    %5320 = vmatprep.subr.bf16.mxu0 0
    %5321 = vmatpush1.bf16.msra.mxu0 0
    %5322 = vmatprep.mubr.bf16.mxu0 0
    %5323 = vmatmul.mubr.bf16.gmra.mrb[0].mxu0 %v5062
    %v5324 = vpop.f32.mrb[0].mxu0
    %v5325 = vadd.f32 %v5284, %v5324
    %v5326 = vpop.f32.mrb[0].mxu0
    %v5327 = vadd.f32 %v5286, %v5326
    %v5328 = vpop.f32.mrb[0].mxu0
    %v5329 = vpop.f32.mrb[0].mxu0
    %5330 = vdwg.mxu0
    %5331 = vmatprep.subr.bf16.mxu0 0
    %5332 = vmatpush1.bf16.msra.mxu0 %v2848
    %5333 = vmatprep.subr.bf16.mxu0 0
    %5334 = vmatpush1.bf16.msra.mxu0 %v2851
    %5335 = vmatprep.subr.bf16.mxu0 0
    %5336 = vmatpush1.bf16.msra.mxu0 %v2854
    %5337 = vmatprep.subr.bf16.mxu0 0
    %5338 = vmatpush1.bf16.msra.mxu0 %v2857
    %5339 = vmatprep.subr.bf16.mxu0 0
    %5340 = vmatpush1.bf16.msra.mxu0 %v2860
    %5341 = vmatprep.subr.bf16.mxu0 0
    %5342 = vmatpush1.bf16.msra.mxu0 %v2863
    %5343 = vmatprep.subr.bf16.mxu0 0
    %5344 = vmatpush1.bf16.msra.mxu0 %v2866
    %5345 = vmatprep.subr.bf16.mxu0 0
    %5346 = vmatpush1.bf16.msra.mxu0 %v2869
    %5347 = vmatprep.subr.bf16.mxu0 0
    %5348 = vmatpush1.bf16.msra.mxu0 %v2872
    %5349 = vmatprep.subr.bf16.mxu0 0
    %5350 = vmatpush1.bf16.msra.mxu0 %v2875
    %5351 = vmatprep.subr.bf16.mxu0 0
    %5352 = vmatpush1.bf16.msra.mxu0 %v2878
    %5353 = vmatprep.subr.bf16.mxu0 0
    %5354 = vmatpush1.bf16.msra.mxu0 %v2881
    %5355 = vmatprep.subr.bf16.mxu0 0
    %5356 = vmatpush1.bf16.msra.mxu0 %v2884
    %5357 = vmatprep.subr.bf16.mxu0 0
    %5358 = vmatpush1.bf16.msra.mxu0 %v2887
    %5359 = vmatprep.subr.bf16.mxu0 0
    %5360 = vmatpush1.bf16.msra.mxu0 %v2890
    %5361 = vmatprep.subr.bf16.mxu0 0
    %5362 = vmatpush1.bf16.msra.mxu0 %v2893
    %5363 = vmatprep.mubr.bf16.mxu0 %v5061
    %5364 = vmatmul.mubr.bf16.gmra.mrb[0].mxu0 %v5060
    %v5365 = vpop.f32.mrb[0].mxu0
    %v5366 = vadd.f32 0.0, %v5365
    %v5367 = vpop.f32.mrb[0].mxu0
    %v5368 = vpop.f32.mrb[0].mxu0
    %v5369 = vpop.f32.mrb[0].mxu0
    %5370 = vdwg.mxu0
    %5371 = vmatprep.subr.bf16.mxu0 0
    %5372 = vmatpush1.bf16.msra.mxu0 %v2896
    %5373 = vmatprep.subr.bf16.mxu0 0
    %5374 = vmatpush1.bf16.msra.mxu0 %v2899
    %5375 = vmatprep.subr.bf16.mxu0 0
    %5376 = vmatpush1.bf16.msra.mxu0 %v2902
    %5377 = vmatprep.subr.bf16.mxu0 0
    %5378 = vmatpush1.bf16.msra.mxu0 %v2905
    %5379 = vmatprep.subr.bf16.mxu0 0
    %5380 = vmatpush1.bf16.msra.mxu0 %v2908
    %5381 = vmatprep.subr.bf16.mxu0 0
    %5382 = vmatpush1.bf16.msra.mxu0 %v2911
    %5383 = vmatprep.subr.bf16.mxu0 0
    %5384 = vmatpush1.bf16.msra.mxu0 %v2914
    %5385 = vmatprep.subr.bf16.mxu0 0
    %5386 = vmatpush1.bf16.msra.mxu0 %v2917
    %5387 = vmatprep.subr.bf16.mxu0 0
    %5388 = vmatpush1.bf16.msra.mxu0 0
    %5389 = vmatprep.subr.bf16.mxu0 0
    %5390 = vmatpush1.bf16.msra.mxu0 0
    %5391 = vmatprep.subr.bf16.mxu0 0
    %5392 = vmatpush1.bf16.msra.mxu0 0
    %5393 = vmatprep.subr.bf16.mxu0 0
    %5394 = vmatpush1.bf16.msra.mxu0 0
    %5395 = vmatprep.subr.bf16.mxu0 0
    %5396 = vmatpush1.bf16.msra.mxu0 0
    %5397 = vmatprep.subr.bf16.mxu0 0
    %5398 = vmatpush1.bf16.msra.mxu0 0
    %5399 = vmatprep.subr.bf16.mxu0 0
    %5400 = vmatpush1.bf16.msra.mxu0 0
    %5401 = vmatprep.subr.bf16.mxu0 0
    %5402 = vmatpush1.bf16.msra.mxu0 0
    %5403 = vmatprep.mubr.bf16.mxu0 0
    %5404 = vmatmul.mubr.bf16.gmra.mrb[0].mxu0 %v5062
    %v5405 = vpop.f32.mrb[0].mxu0
    %v5406 = vadd.f32 %v5366, %v5405
    %v5407 = vpop.f32.mrb[0].mxu0
    %v5408 = vpop.f32.mrb[0].mxu0
    %v5409 = vpop.f32.mrb[0].mxu0
    %5410 = vdwg.mxu0
    %v5411 = vadd.f32 %v5246, %v5325
    %v5412 = vadd.f32 %v5247, %v5327
    %v5413 = vadd.f32 %v5248, %v5406
    %v5414 = vmul.f32 %v5411, 0.5
    %v5415 = vmul.f32 %v5412, 0.5
    %v5416 = vmul.f32 %v5413, 0.5
    %v5417 = vtanh.pop %v5414
    %v5418 = vtanh.pop %v5415
    %v5419 = vtanh.pop %v5416
    %v5420 = vmul.f32 %v5417, 0.5
    %v5421 = vmul.f32 %v5418, 0.5
    %v5422 = vmul.f32 %v5419, 0.5
    %v5423 = vadd.f32 %v5420, 0.5
    %v5424 = vadd.f32 %v5421, 0.5
    %v5425 = vadd.f32 %v5422, 0.5
    %v5426 = vld [vmem:[#allocation2 + $0x150] sm:$0xff]
    %v5427 = vld [vmem:[#allocation2 + $0x158] sm:$0xff]
    %v5428 = vld [vmem:[#allocation2 + $0x160] sm:$0xff]
    %5429 = vmatprep.subr.bf16.mxu0 %v3099
    %5430 = vmatpush1.bf16.msra.mxu0 %v3098
    %5431 = vmatprep.subr.bf16.mxu0 %v3102
    %5432 = vmatpush1.bf16.msra.mxu0 %v3101
    %5433 = vmatprep.subr.bf16.mxu0 %v3105
    %5434 = vmatpush1.bf16.msra.mxu0 %v3104
    %5435 = vmatprep.subr.bf16.mxu0 %v3108
    %5436 = vmatpush1.bf16.msra.mxu0 %v3107
    %5437 = vmatprep.subr.bf16.mxu0 %v3111
    %5438 = vmatpush1.bf16.msra.mxu0 %v3110
    %5439 = vmatprep.subr.bf16.mxu0 %v3114
    %5440 = vmatpush1.bf16.msra.mxu0 %v3113
    %5441 = vmatprep.subr.bf16.mxu0 %v3117
    %5442 = vmatpush1.bf16.msra.mxu0 %v3116
    %5443 = vmatprep.subr.bf16.mxu0 %v3120
    %5444 = vmatpush1.bf16.msra.mxu0 %v3119
    %5445 = vmatprep.subr.bf16.mxu0 %v3123
    %5446 = vmatpush1.bf16.msra.mxu0 %v3122
    %5447 = vmatprep.subr.bf16.mxu0 %v3126
    %5448 = vmatpush1.bf16.msra.mxu0 %v3125
    %5449 = vmatprep.subr.bf16.mxu0 %v3129
    %5450 = vmatpush1.bf16.msra.mxu0 %v3128
    %5451 = vmatprep.subr.bf16.mxu0 %v3132
    %5452 = vmatpush1.bf16.msra.mxu0 %v3131
    %5453 = vmatprep.subr.bf16.mxu0 %v3135
    %5454 = vmatpush1.bf16.msra.mxu0 %v3134
    %5455 = vmatprep.subr.bf16.mxu0 %v3138
    %5456 = vmatpush1.bf16.msra.mxu0 %v3137
    %5457 = vmatprep.subr.bf16.mxu0 %v3141
    %5458 = vmatpush1.bf16.msra.mxu0 %v3140
    %5459 = vmatprep.subr.bf16.mxu0 %v3144
    %5460 = vmatpush1.bf16.msra.mxu0 %v3143
    %5461 = vmatprep.mubr.bf16.mxu0 %v5061
    %5462 = vmatmul.mubr.bf16.gmra.mrb[0].mxu0 %v5060
    %v5463 = vpop.f32.mrb[0].mxu0
    %v5464 = vadd.f32 0.0, %v5463
    %v5465 = vpop.f32.mrb[0].mxu0
    %v5466 = vadd.f32 0.0, %v5465
    %v5467 = vpop.f32.mrb[0].mxu0
    %v5468 = vpop.f32.mrb[0].mxu0
    %5469 = vdwg.mxu0
    %5470 = vmatprep.subr.bf16.mxu0 %v3147
    %5471 = vmatpush1.bf16.msra.mxu0 %v3146
    %5472 = vmatprep.subr.bf16.mxu0 %v3150
    %5473 = vmatpush1.bf16.msra.mxu0 %v3149
    %5474 = vmatprep.subr.bf16.mxu0 %v3153
    %5475 = vmatpush1.bf16.msra.mxu0 %v3152
    %5476 = vmatprep.subr.bf16.mxu0 %v3156
    %5477 = vmatpush1.bf16.msra.mxu0 %v3155
    %5478 = vmatprep.subr.bf16.mxu0 %v3159
    %5479 = vmatpush1.bf16.msra.mxu0 %v3158
    %5480 = vmatprep.subr.bf16.mxu0 %v3162
    %5481 = vmatpush1.bf16.msra.mxu0 %v3161
    %5482 = vmatprep.subr.bf16.mxu0 %v3165
    %5483 = vmatpush1.bf16.msra.mxu0 %v3164
    %5484 = vmatprep.subr.bf16.mxu0 %v3168
    %5485 = vmatpush1.bf16.msra.mxu0 %v3167
    %5486 = vmatprep.subr.bf16.mxu0 0
    %5487 = vmatpush1.bf16.msra.mxu0 0
    %5488 = vmatprep.subr.bf16.mxu0 0
    %5489 = vmatpush1.bf16.msra.mxu0 0
    %5490 = vmatprep.subr.bf16.mxu0 0
    %5491 = vmatpush1.bf16.msra.mxu0 0
    %5492 = vmatprep.subr.bf16.mxu0 0
    %5493 = vmatpush1.bf16.msra.mxu0 0
    %5494 = vmatprep.subr.bf16.mxu0 0
    %5495 = vmatpush1.bf16.msra.mxu0 0
    %5496 = vmatprep.subr.bf16.mxu0 0
    %5497 = vmatpush1.bf16.msra.mxu0 0
    %5498 = vmatprep.subr.bf16.mxu0 0
    %5499 = vmatpush1.bf16.msra.mxu0 0
    %5500 = vmatprep.subr.bf16.mxu0 0
    %5501 = vmatpush1.bf16.msra.mxu0 0
    %5502 = vmatprep.mubr.bf16.mxu0 0
    %5503 = vmatmul.mubr.bf16.gmra.mrb[0].mxu0 %v5062
    %v5504 = vpop.f32.mrb[0].mxu0
    %v5505 = vadd.f32 %v5464, %v5504
    %v5506 = vpop.f32.mrb[0].mxu0
    %v5507 = vadd.f32 %v5466, %v5506
    %v5508 = vpop.f32.mrb[0].mxu0
    %v5509 = vpop.f32.mrb[0].mxu0
    %5510 = vdwg.mxu0
    %5511 = vmatprep.subr.bf16.mxu0 0
    %5512 = vmatpush1.bf16.msra.mxu0 %v3100
    %5513 = vmatprep.subr.bf16.mxu0 0
    %5514 = vmatpush1.bf16.msra.mxu0 %v3103
    %5515 = vmatprep.subr.bf16.mxu0 0
    %5516 = vmatpush1.bf16.msra.mxu0 %v3106
    %5517 = vmatprep.subr.bf16.mxu0 0
    %5518 = vmatpush1.bf16.msra.mxu0 %v3109
    %5519 = vmatprep.subr.bf16.mxu0 0
    %5520 = vmatpush1.bf16.msra.mxu0 %v3112
    %5521 = vmatprep.subr.bf16.mxu0 0
    %5522 = vmatpush1.bf16.msra.mxu0 %v3115
    %5523 = vmatprep.subr.bf16.mxu0 0
    %5524 = vmatpush1.bf16.msra.mxu0 %v3118
    %5525 = vmatprep.subr.bf16.mxu0 0
    %5526 = vmatpush1.bf16.msra.mxu0 %v3121
    %5527 = vmatprep.subr.bf16.mxu0 0
    %5528 = vmatpush1.bf16.msra.mxu0 %v3124
    %5529 = vmatprep.subr.bf16.mxu0 0
    %5530 = vmatpush1.bf16.msra.mxu0 %v3127
    %5531 = vmatprep.subr.bf16.mxu0 0
    %5532 = vmatpush1.bf16.msra.mxu0 %v3130
    %5533 = vmatprep.subr.bf16.mxu0 0
    %5534 = vmatpush1.bf16.msra.mxu0 %v3133
    %5535 = vmatprep.subr.bf16.mxu0 0
    %5536 = vmatpush1.bf16.msra.mxu0 %v3136
    %5537 = vmatprep.subr.bf16.mxu0 0
    %5538 = vmatpush1.bf16.msra.mxu0 %v3139
    %5539 = vmatprep.subr.bf16.mxu0 0
    %5540 = vmatpush1.bf16.msra.mxu0 %v3142
    %5541 = vmatprep.subr.bf16.mxu0 0
    %5542 = vmatpush1.bf16.msra.mxu0 %v3145
    %5543 = vmatprep.mubr.bf16.mxu0 %v5061
    %5544 = vmatmul.mubr.bf16.gmra.mrb[0].mxu0 %v5060
    %v5545 = vpop.f32.mrb[0].mxu0
    %v5546 = vadd.f32 0.0, %v5545
    %v5547 = vpop.f32.mrb[0].mxu0
    %v5548 = vpop.f32.mrb[0].mxu0
    %v5549 = vpop.f32.mrb[0].mxu0
    %5550 = vdwg.mxu0
    %5551 = vmatprep.subr.bf16.mxu0 0
    %5552 = vmatpush1.bf16.msra.mxu0 %v3148
    %5553 = vmatprep.subr.bf16.mxu0 0
    %5554 = vmatpush1.bf16.msra.mxu0 %v3151
    %5555 = vmatprep.subr.bf16.mxu0 0
    %5556 = vmatpush1.bf16.msra.mxu0 %v3154
    %5557 = vmatprep.subr.bf16.mxu0 0
    %5558 = vmatpush1.bf16.msra.mxu0 %v3157
    %5559 = vmatprep.subr.bf16.mxu0 0
    %5560 = vmatpush1.bf16.msra.mxu0 %v3160
    %5561 = vmatprep.subr.bf16.mxu0 0
    %5562 = vmatpush1.bf16.msra.mxu0 %v3163
    %5563 = vmatprep.subr.bf16.mxu0 0
    %5564 = vmatpush1.bf16.msra.mxu0 %v3166
    %5565 = vmatprep.subr.bf16.mxu0 0
    %5566 = vmatpush1.bf16.msra.mxu0 %v3169
    %5567 = vmatprep.subr.bf16.mxu0 0
    %5568 = vmatpush1.bf16.msra.mxu0 0
    %5569 = vmatprep.subr.bf16.mxu0 0
    %5570 = vmatpush1.bf16.msra.mxu0 0
    %5571 = vmatprep.subr.bf16.mxu0 0
    %5572 = vmatpush1.bf16.msra.mxu0 0
    %5573 = vmatprep.subr.bf16.mxu0 0
    %5574 = vmatpush1.bf16.msra.mxu0 0
    %5575 = vmatprep.subr.bf16.mxu0 0
    %5576 = vmatpush1.bf16.msra.mxu0 0
    %5577 = vmatprep.subr.bf16.mxu0 0
    %5578 = vmatpush1.bf16.msra.mxu0 0
    %5579 = vmatprep.subr.bf16.mxu0 0
    %5580 = vmatpush1.bf16.msra.mxu0 0
    %5581 = vmatprep.subr.bf16.mxu0 0
    %5582 = vmatpush1.bf16.msra.mxu0 0
    %5583 = vmatprep.mubr.bf16.mxu0 0
    %5584 = vmatmul.mubr.bf16.gmra.mrb[0].mxu0 %v5062
    %v5585 = vpop.f32.mrb[0].mxu0
    %v5586 = vadd.f32 %v5546, %v5585
    %v5587 = vpop.f32.mrb[0].mxu0
    %v5588 = vpop.f32.mrb[0].mxu0
    %v5589 = vpop.f32.mrb[0].mxu0
    %5590 = vdwg.mxu0
    %v5591 = vadd.f32 %v5426, %v5505
    %v5592 = vadd.f32 %v5427, %v5507
    %v5593 = vadd.f32 %v5428, %v5586
    %v5594 = vtanh.pop %v5591
    %v5595 = vtanh.pop %v5592
    %v5596 = vtanh.pop %v5593
    %v5597 = vmul.f32 %v5423, %v5594
    %v5598 = vmul.f32 %v5424, %v5595
    %v5599 = vmul.f32 %v5425, %v5596
    %v5600 = vadd.f32 %v5243, %v5597
    %v5601 = vadd.f32 %v5244, %v5598
    %v5602 = vadd.f32 %v5245, %v5599
    %v5603 = vld [vmem:[#allocation2 + $0x168] sm:$0xff]
    %v5604 = vld [vmem:[#allocation2 + $0x170] sm:$0xff]
    %v5605 = vld [vmem:[#allocation2 + $0x178] sm:$0xff]
    %5606 = vmatprep.subr.bf16.mxu0 %v3348
    %5607 = vmatpush1.bf16.msra.mxu0 %v3347
    %5608 = vmatprep.subr.bf16.mxu0 %v3351
    %5609 = vmatpush1.bf16.msra.mxu0 %v3350
    %5610 = vmatprep.subr.bf16.mxu0 %v3354
    %5611 = vmatpush1.bf16.msra.mxu0 %v3353
    %5612 = vmatprep.subr.bf16.mxu0 %v3357
    %5613 = vmatpush1.bf16.msra.mxu0 %v3356
    %5614 = vmatprep.subr.bf16.mxu0 %v3360
    %5615 = vmatpush1.bf16.msra.mxu0 %v3359
    %5616 = vmatprep.subr.bf16.mxu0 %v3363
    %5617 = vmatpush1.bf16.msra.mxu0 %v3362
    %5618 = vmatprep.subr.bf16.mxu0 %v3366
    %5619 = vmatpush1.bf16.msra.mxu0 %v3365
    %5620 = vmatprep.subr.bf16.mxu0 %v3369
    %5621 = vmatpush1.bf16.msra.mxu0 %v3368
    %5622 = vmatprep.subr.bf16.mxu0 %v3372
    %5623 = vmatpush1.bf16.msra.mxu0 %v3371
    %5624 = vmatprep.subr.bf16.mxu0 %v3375
    %5625 = vmatpush1.bf16.msra.mxu0 %v3374
    %5626 = vmatprep.subr.bf16.mxu0 %v3378
    %5627 = vmatpush1.bf16.msra.mxu0 %v3377
    %5628 = vmatprep.subr.bf16.mxu0 %v3381
    %5629 = vmatpush1.bf16.msra.mxu0 %v3380
    %5630 = vmatprep.subr.bf16.mxu0 %v3384
    %5631 = vmatpush1.bf16.msra.mxu0 %v3383
    %5632 = vmatprep.subr.bf16.mxu0 %v3387
    %5633 = vmatpush1.bf16.msra.mxu0 %v3386
    %5634 = vmatprep.subr.bf16.mxu0 %v3390
    %5635 = vmatpush1.bf16.msra.mxu0 %v3389
    %5636 = vmatprep.subr.bf16.mxu0 %v3393
    %5637 = vmatpush1.bf16.msra.mxu0 %v3392
    %5638 = vmatprep.mubr.bf16.mxu0 %v5061
    %5639 = vmatmul.mubr.bf16.gmra.mrb[0].mxu0 %v5060
    %v5640 = vpop.f32.mrb[0].mxu0
    %v5641 = vadd.f32 0.0, %v5640
    %v5642 = vpop.f32.mrb[0].mxu0
    %v5643 = vadd.f32 0.0, %v5642
    %v5644 = vpop.f32.mrb[0].mxu0
    %v5645 = vpop.f32.mrb[0].mxu0
    %5646 = vdwg.mxu0
    %5647 = vmatprep.subr.bf16.mxu0 %v3396
    %5648 = vmatpush1.bf16.msra.mxu0 %v3395
    %5649 = vmatprep.subr.bf16.mxu0 %v3399
    %5650 = vmatpush1.bf16.msra.mxu0 %v3398
    %5651 = vmatprep.subr.bf16.mxu0 %v3402
    %5652 = vmatpush1.bf16.msra.mxu0 %v3401
    %5653 = vmatprep.subr.bf16.mxu0 %v3405
    %5654 = vmatpush1.bf16.msra.mxu0 %v3404
    %5655 = vmatprep.subr.bf16.mxu0 %v3408
    %5656 = vmatpush1.bf16.msra.mxu0 %v3407
    %5657 = vmatprep.subr.bf16.mxu0 %v3411
    %5658 = vmatpush1.bf16.msra.mxu0 %v3410
    %5659 = vmatprep.subr.bf16.mxu0 %v3414
    %5660 = vmatpush1.bf16.msra.mxu0 %v3413
    %5661 = vmatprep.subr.bf16.mxu0 %v3417
    %5662 = vmatpush1.bf16.msra.mxu0 %v3416
    %5663 = vmatprep.subr.bf16.mxu0 0
    %5664 = vmatpush1.bf16.msra.mxu0 0
    %5665 = vmatprep.subr.bf16.mxu0 0
    %5666 = vmatpush1.bf16.msra.mxu0 0
    %5667 = vmatprep.subr.bf16.mxu0 0
    %5668 = vmatpush1.bf16.msra.mxu0 0
    %5669 = vmatprep.subr.bf16.mxu0 0
    %5670 = vmatpush1.bf16.msra.mxu0 0
    %5671 = vmatprep.subr.bf16.mxu0 0
    %5672 = vmatpush1.bf16.msra.mxu0 0
    %5673 = vmatprep.subr.bf16.mxu0 0
    %5674 = vmatpush1.bf16.msra.mxu0 0
    %5675 = vmatprep.subr.bf16.mxu0 0
    %5676 = vmatpush1.bf16.msra.mxu0 0
    %5677 = vmatprep.subr.bf16.mxu0 0
    %5678 = vmatpush1.bf16.msra.mxu0 0
    %5679 = vmatprep.mubr.bf16.mxu0 0
    %5680 = vmatmul.mubr.bf16.gmra.mrb[0].mxu0 %v5062
    %v5681 = vpop.f32.mrb[0].mxu0
    %v5682 = vadd.f32 %v5641, %v5681
    %v5683 = vpop.f32.mrb[0].mxu0
    %v5684 = vadd.f32 %v5643, %v5683
    %v5685 = vpop.f32.mrb[0].mxu0
    %v5686 = vpop.f32.mrb[0].mxu0
    %5687 = vdwg.mxu0
    %5688 = vmatprep.subr.bf16.mxu0 0
    %5689 = vmatpush1.bf16.msra.mxu0 %v3349
    %5690 = vmatprep.subr.bf16.mxu0 0
    %5691 = vmatpush1.bf16.msra.mxu0 %v3352
    %5692 = vmatprep.subr.bf16.mxu0 0
    %5693 = vmatpush1.bf16.msra.mxu0 %v3355
    %5694 = vmatprep.subr.bf16.mxu0 0
    %5695 = vmatpush1.bf16.msra.mxu0 %v3358
    %5696 = vmatprep.subr.bf16.mxu0 0
    %5697 = vmatpush1.bf16.msra.mxu0 %v3361
    %5698 = vmatprep.subr.bf16.mxu0 0
    %5699 = vmatpush1.bf16.msra.mxu0 %v3364
    %5700 = vmatprep.subr.bf16.mxu0 0
    %5701 = vmatpush1.bf16.msra.mxu0 %v3367
    %5702 = vmatprep.subr.bf16.mxu0 0
    %5703 = vmatpush1.bf16.msra.mxu0 %v3370
    %5704 = vmatprep.subr.bf16.mxu0 0
    %5705 = vmatpush1.bf16.msra.mxu0 %v3373
    %5706 = vmatprep.subr.bf16.mxu0 0
    %5707 = vmatpush1.bf16.msra.mxu0 %v3376
    %5708 = vmatprep.subr.bf16.mxu0 0
    %5709 = vmatpush1.bf16.msra.mxu0 %v3379
    %5710 = vmatprep.subr.bf16.mxu0 0
    %5711 = vmatpush1.bf16.msra.mxu0 %v3382
    %5712 = vmatprep.subr.bf16.mxu0 0
    %5713 = vmatpush1.bf16.msra.mxu0 %v3385
    %5714 = vmatprep.subr.bf16.mxu0 0
    %5715 = vmatpush1.bf16.msra.mxu0 %v3388
    %5716 = vmatprep.subr.bf16.mxu0 0
    %5717 = vmatpush1.bf16.msra.mxu0 %v3391
    %5718 = vmatprep.subr.bf16.mxu0 0
    %5719 = vmatpush1.bf16.msra.mxu0 %v3394
    %5720 = vmatprep.mubr.bf16.mxu0 %v5061
    %5721 = vmatmul.mubr.bf16.gmra.mrb[0].mxu0 %v5060
    %v5722 = vpop.f32.mrb[0].mxu0
    %v5723 = vadd.f32 0.0, %v5722
    %v5724 = vpop.f32.mrb[0].mxu0
    %v5725 = vpop.f32.mrb[0].mxu0
    %v5726 = vpop.f32.mrb[0].mxu0
    %5727 = vdwg.mxu0
    %5728 = vmatprep.subr.bf16.mxu0 0
    %5729 = vmatpush1.bf16.msra.mxu0 %v3397
    %5730 = vmatprep.subr.bf16.mxu0 0
    %5731 = vmatpush1.bf16.msra.mxu0 %v3400
    %5732 = vmatprep.subr.bf16.mxu0 0
    %5733 = vmatpush1.bf16.msra.mxu0 %v3403
    %5734 = vmatprep.subr.bf16.mxu0 0
    %5735 = vmatpush1.bf16.msra.mxu0 %v3406
    %5736 = vmatprep.subr.bf16.mxu0 0
    %5737 = vmatpush1.bf16.msra.mxu0 %v3409
    %5738 = vmatprep.subr.bf16.mxu0 0
    %5739 = vmatpush1.bf16.msra.mxu0 %v3412
    %5740 = vmatprep.subr.bf16.mxu0 0
    %5741 = vmatpush1.bf16.msra.mxu0 %v3415
    %5742 = vmatprep.subr.bf16.mxu0 0
    %5743 = vmatpush1.bf16.msra.mxu0 %v3418
    %5744 = vmatprep.subr.bf16.mxu0 0
    %5745 = vmatpush1.bf16.msra.mxu0 0
    %5746 = vmatprep.subr.bf16.mxu0 0
    %5747 = vmatpush1.bf16.msra.mxu0 0
    %5748 = vmatprep.subr.bf16.mxu0 0
    %5749 = vmatpush1.bf16.msra.mxu0 0
    %5750 = vmatprep.subr.bf16.mxu0 0
    %5751 = vmatpush1.bf16.msra.mxu0 0
    %5752 = vmatprep.subr.bf16.mxu0 0
    %5753 = vmatpush1.bf16.msra.mxu0 0
    %5754 = vmatprep.subr.bf16.mxu0 0
    %5755 = vmatpush1.bf16.msra.mxu0 0
    %5756 = vmatprep.subr.bf16.mxu0 0
    %5757 = vmatpush1.bf16.msra.mxu0 0
    %5758 = vmatprep.subr.bf16.mxu0 0
    %5759 = vmatpush1.bf16.msra.mxu0 0
    %5760 = vmatprep.mubr.bf16.mxu0 0
    %5761 = vmatmul.mubr.bf16.gmra.mrb[0].mxu0 %v5062
    %v5762 = vpop.f32.mrb[0].mxu0
    %v5763 = vadd.f32 %v5723, %v5762
    %v5764 = vpop.f32.mrb[0].mxu0
    %v5765 = vpop.f32.mrb[0].mxu0
    %v5766 = vpop.f32.mrb[0].mxu0
    %5767 = vdwg.mxu0
    %v5768 = vadd.f32 %v5603, %v5682
    %v5769 = vadd.f32 %v5604, %v5684
    %v5770 = vadd.f32 %v5605, %v5763
    %v5771 = vmul.f32 %v5768, 0.5
    %v5772 = vmul.f32 %v5769, 0.5
    %v5773 = vmul.f32 %v5770, 0.5
    %v5774 = vtanh.pop %v5771
    %v5775 = vtanh.pop %v5772
    %v5776 = vtanh.pop %v5773
    %v5777 = vmul.f32 %v5774, 0.5
    %v5778 = vmul.f32 %v5775, 0.5
    %v5779 = vmul.f32 %v5776, 0.5
    %v5780 = vadd.f32 %v5777, 0.5
    %v5781 = vadd.f32 %v5778, 0.5
    %v5782 = vadd.f32 %v5779, 0.5
    %v5783 = vtanh.pop %v5600
    %v5784 = vtanh.pop %v5601
    %v5785 = vtanh.pop %v5602
    %v5786 = vmul.f32 %v5780, %v5783
    %v5787 = vmul.f32 %v5781, %v5784
    %v5788 = vmul.f32 %v5782, %v5785
    %v5789 = vpack.c.bf16 %v5786, %v5786
    %v5790 = vpack.c.bf16 %v5787, %v5787
    %v5791 = vpack.c.bf16 %v5788, %v5788
    %v5792 = vld [vmem:[#allocation2 + $0x198] sm:$0xff]
    %v5793 = vld [vmem:[#allocation2 + $0x1a0] sm:$0xff]
    %v5794 = vld [vmem:[#allocation2 + $0x1a8] sm:$0xff]
    %5795 = vmatprep.subr.bf16.mxu0 %v2592
    %5796 = vmatpush1.bf16.msra.mxu0 %v2591
    %5797 = vmatprep.subr.bf16.mxu0 %v2595
    %5798 = vmatpush1.bf16.msra.mxu0 %v2594
    %5799 = vmatprep.subr.bf16.mxu0 %v2598
    %5800 = vmatpush1.bf16.msra.mxu0 %v2597
    %5801 = vmatprep.subr.bf16.mxu0 %v2601
    %5802 = vmatpush1.bf16.msra.mxu0 %v2600
    %5803 = vmatprep.subr.bf16.mxu0 %v2604
    %5804 = vmatpush1.bf16.msra.mxu0 %v2603
    %5805 = vmatprep.subr.bf16.mxu0 %v2607
    %5806 = vmatpush1.bf16.msra.mxu0 %v2606
    %5807 = vmatprep.subr.bf16.mxu0 %v2610
    %5808 = vmatpush1.bf16.msra.mxu0 %v2609
    %5809 = vmatprep.subr.bf16.mxu0 %v2613
    %5810 = vmatpush1.bf16.msra.mxu0 %v2612
    %5811 = vmatprep.subr.bf16.mxu0 %v2616
    %5812 = vmatpush1.bf16.msra.mxu0 %v2615
    %5813 = vmatprep.subr.bf16.mxu0 %v2619
    %5814 = vmatpush1.bf16.msra.mxu0 %v2618
    %5815 = vmatprep.subr.bf16.mxu0 %v2622
    %5816 = vmatpush1.bf16.msra.mxu0 %v2621
    %5817 = vmatprep.subr.bf16.mxu0 %v2625
    %5818 = vmatpush1.bf16.msra.mxu0 %v2624
    %5819 = vmatprep.subr.bf16.mxu0 %v2628
    %5820 = vmatpush1.bf16.msra.mxu0 %v2627
    %5821 = vmatprep.subr.bf16.mxu0 %v2631
    %5822 = vmatpush1.bf16.msra.mxu0 %v2630
    %5823 = vmatprep.subr.bf16.mxu0 %v2634
    %5824 = vmatpush1.bf16.msra.mxu0 %v2633
    %5825 = vmatprep.subr.bf16.mxu0 %v2637
    %5826 = vmatpush1.bf16.msra.mxu0 %v2636
    %5827 = vmatprep.mubr.bf16.mxu0 %v5790
    %5828 = vmatmul.mubr.bf16.gmra.mrb[0].mxu0 %v5789
    %v5829 = vpop.f32.mrb[0].mxu0
    %v5830 = vadd.f32 0.0, %v5829
    %v5831 = vpop.f32.mrb[0].mxu0
    %v5832 = vadd.f32 0.0, %v5831
    %v5833 = vpop.f32.mrb[0].mxu0
    %v5834 = vpop.f32.mrb[0].mxu0
    %5835 = vdwg.mxu0
    %5836 = vmatprep.subr.bf16.mxu0 %v2640
    %5837 = vmatpush1.bf16.msra.mxu0 %v2639
    %5838 = vmatprep.subr.bf16.mxu0 %v2643
    %5839 = vmatpush1.bf16.msra.mxu0 %v2642
    %5840 = vmatprep.subr.bf16.mxu0 %v2646
    %5841 = vmatpush1.bf16.msra.mxu0 %v2645
    %5842 = vmatprep.subr.bf16.mxu0 %v2649
    %5843 = vmatpush1.bf16.msra.mxu0 %v2648
    %5844 = vmatprep.subr.bf16.mxu0 %v2652
    %5845 = vmatpush1.bf16.msra.mxu0 %v2651
    %5846 = vmatprep.subr.bf16.mxu0 %v2655
    %5847 = vmatpush1.bf16.msra.mxu0 %v2654
    %5848 = vmatprep.subr.bf16.mxu0 %v2658
    %5849 = vmatpush1.bf16.msra.mxu0 %v2657
    %5850 = vmatprep.subr.bf16.mxu0 %v2661
    %5851 = vmatpush1.bf16.msra.mxu0 %v2660
    %5852 = vmatprep.subr.bf16.mxu0 0
    %5853 = vmatpush1.bf16.msra.mxu0 0
    %5854 = vmatprep.subr.bf16.mxu0 0
    %5855 = vmatpush1.bf16.msra.mxu0 0
    %5856 = vmatprep.subr.bf16.mxu0 0
    %5857 = vmatpush1.bf16.msra.mxu0 0
    %5858 = vmatprep.subr.bf16.mxu0 0
    %5859 = vmatpush1.bf16.msra.mxu0 0
    %5860 = vmatprep.subr.bf16.mxu0 0
    %5861 = vmatpush1.bf16.msra.mxu0 0
    %5862 = vmatprep.subr.bf16.mxu0 0
    %5863 = vmatpush1.bf16.msra.mxu0 0
    %5864 = vmatprep.subr.bf16.mxu0 0
    %5865 = vmatpush1.bf16.msra.mxu0 0
    %5866 = vmatprep.subr.bf16.mxu0 0
    %5867 = vmatpush1.bf16.msra.mxu0 0
    %5868 = vmatprep.mubr.bf16.mxu0 0
    %5869 = vmatmul.mubr.bf16.gmra.mrb[0].mxu0 %v5791
    %v5870 = vpop.f32.mrb[0].mxu0
    %v5871 = vadd.f32 %v5830, %v5870
    %v5872 = vpop.f32.mrb[0].mxu0
    %v5873 = vadd.f32 %v5832, %v5872
    %v5874 = vpop.f32.mrb[0].mxu0
    %v5875 = vpop.f32.mrb[0].mxu0
    %5876 = vdwg.mxu0
    %5877 = vmatprep.subr.bf16.mxu0 0
    %5878 = vmatpush1.bf16.msra.mxu0 %v2593
    %5879 = vmatprep.subr.bf16.mxu0 0
    %5880 = vmatpush1.bf16.msra.mxu0 %v2596
    %5881 = vmatprep.subr.bf16.mxu0 0
    %5882 = vmatpush1.bf16.msra.mxu0 %v2599
    %5883 = vmatprep.subr.bf16.mxu0 0
    %5884 = vmatpush1.bf16.msra.mxu0 %v2602
    %5885 = vmatprep.subr.bf16.mxu0 0
    %5886 = vmatpush1.bf16.msra.mxu0 %v2605
    %5887 = vmatprep.subr.bf16.mxu0 0
    %5888 = vmatpush1.bf16.msra.mxu0 %v2608
    %5889 = vmatprep.subr.bf16.mxu0 0
    %5890 = vmatpush1.bf16.msra.mxu0 %v2611
    %5891 = vmatprep.subr.bf16.mxu0 0
    %5892 = vmatpush1.bf16.msra.mxu0 %v2614
    %5893 = vmatprep.subr.bf16.mxu0 0
    %5894 = vmatpush1.bf16.msra.mxu0 %v2617
    %5895 = vmatprep.subr.bf16.mxu0 0
    %5896 = vmatpush1.bf16.msra.mxu0 %v2620
    %5897 = vmatprep.subr.bf16.mxu0 0
    %5898 = vmatpush1.bf16.msra.mxu0 %v2623
    %5899 = vmatprep.subr.bf16.mxu0 0
    %5900 = vmatpush1.bf16.msra.mxu0 %v2626
    %5901 = vmatprep.subr.bf16.mxu0 0
    %5902 = vmatpush1.bf16.msra.mxu0 %v2629
    %5903 = vmatprep.subr.bf16.mxu0 0
    %5904 = vmatpush1.bf16.msra.mxu0 %v2632
    %5905 = vmatprep.subr.bf16.mxu0 0
    %5906 = vmatpush1.bf16.msra.mxu0 %v2635
    %5907 = vmatprep.subr.bf16.mxu0 0
    %5908 = vmatpush1.bf16.msra.mxu0 %v2638
    %5909 = vmatprep.mubr.bf16.mxu0 %v5790
    %5910 = vmatmul.mubr.bf16.gmra.mrb[0].mxu0 %v5789
    %v5911 = vpop.f32.mrb[0].mxu0
    %v5912 = vadd.f32 0.0, %v5911
    %v5913 = vpop.f32.mrb[0].mxu0
    %v5914 = vpop.f32.mrb[0].mxu0
    %v5915 = vpop.f32.mrb[0].mxu0
    %5916 = vdwg.mxu0
    %5917 = vmatprep.subr.bf16.mxu0 0
    %5918 = vmatpush1.bf16.msra.mxu0 %v2641
    %5919 = vmatprep.subr.bf16.mxu0 0
    %5920 = vmatpush1.bf16.msra.mxu0 %v2644
    %5921 = vmatprep.subr.bf16.mxu0 0
    %5922 = vmatpush1.bf16.msra.mxu0 %v2647
    %5923 = vmatprep.subr.bf16.mxu0 0
    %5924 = vmatpush1.bf16.msra.mxu0 %v2650
    %5925 = vmatprep.subr.bf16.mxu0 0
    %5926 = vmatpush1.bf16.msra.mxu0 %v2653
    %5927 = vmatprep.subr.bf16.mxu0 0
    %5928 = vmatpush1.bf16.msra.mxu0 %v2656
    %5929 = vmatprep.subr.bf16.mxu0 0
    %5930 = vmatpush1.bf16.msra.mxu0 %v2659
    %5931 = vmatprep.subr.bf16.mxu0 0
    %5932 = vmatpush1.bf16.msra.mxu0 %v2662
    %5933 = vmatprep.subr.bf16.mxu0 0
    %5934 = vmatpush1.bf16.msra.mxu0 0
    %5935 = vmatprep.subr.bf16.mxu0 0
    %5936 = vmatpush1.bf16.msra.mxu0 0
    %5937 = vmatprep.subr.bf16.mxu0 0
    %5938 = vmatpush1.bf16.msra.mxu0 0
    %5939 = vmatprep.subr.bf16.mxu0 0
    %5940 = vmatpush1.bf16.msra.mxu0 0
    %5941 = vmatprep.subr.bf16.mxu0 0
    %5942 = vmatpush1.bf16.msra.mxu0 0
    %5943 = vmatprep.subr.bf16.mxu0 0
    %5944 = vmatpush1.bf16.msra.mxu0 0
    %5945 = vmatprep.subr.bf16.mxu0 0
    %5946 = vmatpush1.bf16.msra.mxu0 0
    %5947 = vmatprep.subr.bf16.mxu0 0
    %5948 = vmatpush1.bf16.msra.mxu0 0
    %5949 = vmatprep.mubr.bf16.mxu0 0
    %5950 = vmatmul.mubr.bf16.gmra.mrb[0].mxu0 %v5791
    %v5951 = vpop.f32.mrb[0].mxu0
    %v5952 = vadd.f32 %v5912, %v5951
    %v5953 = vpop.f32.mrb[0].mxu0
    %v5954 = vpop.f32.mrb[0].mxu0
    %v5955 = vpop.f32.mrb[0].mxu0
    %5956 = vdwg.mxu0
    %v5957 = vadd.f32 %v5792, %v5871
    %v5958 = vadd.f32 %v5793, %v5873
    %v5959 = vadd.f32 %v5794, %v5952
    %v5960 = vmul.f32 %v5957, 0.5
    %v5961 = vmul.f32 %v5958, 0.5
    %v5962 = vmul.f32 %v5959, 0.5
    %v5963 = vtanh.pop %v5960
    %v5964 = vtanh.pop %v5961
    %v5965 = vtanh.pop %v5962
    %v5966 = vmul.f32 %v5963, 0.5
    %v5967 = vmul.f32 %v5964, 0.5
    %v5968 = vmul.f32 %v5965, 0.5
    %v5969 = vadd.f32 %v5966, 0.5
    %v5970 = vadd.f32 %v5967, 0.5
    %v5971 = vadd.f32 %v5968, 0.5
    %v5972 = vmul.f32 %v5969, %v5600
    %v5973 = vmul.f32 %v5970, %v5601
    %v5974 = vmul.f32 %v5971, %v5602
    %v5975 = vld [vmem:[#allocation2 + $0x180] sm:$0xff]
    %v5976 = vld [vmem:[#allocation2 + $0x188] sm:$0xff]
    %v5977 = vld [vmem:[#allocation2 + $0x190] sm:$0xff]
    %5978 = vmatprep.subr.bf16.mxu0 %v2847
    %5979 = vmatpush1.bf16.msra.mxu0 %v2846
    %5980 = vmatprep.subr.bf16.mxu0 %v2850
    %5981 = vmatpush1.bf16.msra.mxu0 %v2849
    %5982 = vmatprep.subr.bf16.mxu0 %v2853
    %5983 = vmatpush1.bf16.msra.mxu0 %v2852
    %5984 = vmatprep.subr.bf16.mxu0 %v2856
    %5985 = vmatpush1.bf16.msra.mxu0 %v2855
    %5986 = vmatprep.subr.bf16.mxu0 %v2859
    %5987 = vmatpush1.bf16.msra.mxu0 %v2858
    %5988 = vmatprep.subr.bf16.mxu0 %v2862
    %5989 = vmatpush1.bf16.msra.mxu0 %v2861
    %5990 = vmatprep.subr.bf16.mxu0 %v2865
    %5991 = vmatpush1.bf16.msra.mxu0 %v2864
    %5992 = vmatprep.subr.bf16.mxu0 %v2868
    %5993 = vmatpush1.bf16.msra.mxu0 %v2867
    %5994 = vmatprep.subr.bf16.mxu0 %v2871
    %5995 = vmatpush1.bf16.msra.mxu0 %v2870
    %5996 = vmatprep.subr.bf16.mxu0 %v2874
    %5997 = vmatpush1.bf16.msra.mxu0 %v2873
    %5998 = vmatprep.subr.bf16.mxu0 %v2877
    %5999 = vmatpush1.bf16.msra.mxu0 %v2876
    %6000 = vmatprep.subr.bf16.mxu0 %v2880
    %6001 = vmatpush1.bf16.msra.mxu0 %v2879
    %6002 = vmatprep.subr.bf16.mxu0 %v2883
    %6003 = vmatpush1.bf16.msra.mxu0 %v2882
    %6004 = vmatprep.subr.bf16.mxu0 %v2886
    %6005 = vmatpush1.bf16.msra.mxu0 %v2885
    %6006 = vmatprep.subr.bf16.mxu0 %v2889
    %6007 = vmatpush1.bf16.msra.mxu0 %v2888
    %6008 = vmatprep.subr.bf16.mxu0 %v2892
    %6009 = vmatpush1.bf16.msra.mxu0 %v2891
    %6010 = vmatprep.mubr.bf16.mxu0 %v5790
    %6011 = vmatmul.mubr.bf16.gmra.mrb[0].mxu0 %v5789
    %v6012 = vpop.f32.mrb[0].mxu0
    %v6013 = vadd.f32 0.0, %v6012
    %v6014 = vpop.f32.mrb[0].mxu0
    %v6015 = vadd.f32 0.0, %v6014
    %v6016 = vpop.f32.mrb[0].mxu0
    %v6017 = vpop.f32.mrb[0].mxu0
    %6018 = vdwg.mxu0
    %6019 = vmatprep.subr.bf16.mxu0 %v2895
    %6020 = vmatpush1.bf16.msra.mxu0 %v2894
    %6021 = vmatprep.subr.bf16.mxu0 %v2898
    %6022 = vmatpush1.bf16.msra.mxu0 %v2897
    %6023 = vmatprep.subr.bf16.mxu0 %v2901
    %6024 = vmatpush1.bf16.msra.mxu0 %v2900
    %6025 = vmatprep.subr.bf16.mxu0 %v2904
    %6026 = vmatpush1.bf16.msra.mxu0 %v2903
    %6027 = vmatprep.subr.bf16.mxu0 %v2907
    %6028 = vmatpush1.bf16.msra.mxu0 %v2906
    %6029 = vmatprep.subr.bf16.mxu0 %v2910
    %6030 = vmatpush1.bf16.msra.mxu0 %v2909
    %6031 = vmatprep.subr.bf16.mxu0 %v2913
    %6032 = vmatpush1.bf16.msra.mxu0 %v2912
    %6033 = vmatprep.subr.bf16.mxu0 %v2916
    %6034 = vmatpush1.bf16.msra.mxu0 %v2915
    %6035 = vmatprep.subr.bf16.mxu0 0
    %6036 = vmatpush1.bf16.msra.mxu0 0
    %6037 = vmatprep.subr.bf16.mxu0 0
    %6038 = vmatpush1.bf16.msra.mxu0 0
    %6039 = vmatprep.subr.bf16.mxu0 0
    %6040 = vmatpush1.bf16.msra.mxu0 0
    %6041 = vmatprep.subr.bf16.mxu0 0
    %6042 = vmatpush1.bf16.msra.mxu0 0
    %6043 = vmatprep.subr.bf16.mxu0 0
    %6044 = vmatpush1.bf16.msra.mxu0 0
    %6045 = vmatprep.subr.bf16.mxu0 0
    %6046 = vmatpush1.bf16.msra.mxu0 0
    %6047 = vmatprep.subr.bf16.mxu0 0
    %6048 = vmatpush1.bf16.msra.mxu0 0
    %6049 = vmatprep.subr.bf16.mxu0 0
    %6050 = vmatpush1.bf16.msra.mxu0 0
    %6051 = vmatprep.mubr.bf16.mxu0 0
    %6052 = vmatmul.mubr.bf16.gmra.mrb[0].mxu0 %v5791
    %v6053 = vpop.f32.mrb[0].mxu0
    %v6054 = vadd.f32 %v6013, %v6053
    %v6055 = vpop.f32.mrb[0].mxu0
    %v6056 = vadd.f32 %v6015, %v6055
    %v6057 = vpop.f32.mrb[0].mxu0
    %v6058 = vpop.f32.mrb[0].mxu0
    %6059 = vdwg.mxu0
    %6060 = vmatprep.subr.bf16.mxu0 0
    %6061 = vmatpush1.bf16.msra.mxu0 %v2848
    %6062 = vmatprep.subr.bf16.mxu0 0
    %6063 = vmatpush1.bf16.msra.mxu0 %v2851
    %6064 = vmatprep.subr.bf16.mxu0 0
    %6065 = vmatpush1.bf16.msra.mxu0 %v2854
    %6066 = vmatprep.subr.bf16.mxu0 0
    %6067 = vmatpush1.bf16.msra.mxu0 %v2857
    %6068 = vmatprep.subr.bf16.mxu0 0
    %6069 = vmatpush1.bf16.msra.mxu0 %v2860
    %6070 = vmatprep.subr.bf16.mxu0 0
    %6071 = vmatpush1.bf16.msra.mxu0 %v2863
    %6072 = vmatprep.subr.bf16.mxu0 0
    %6073 = vmatpush1.bf16.msra.mxu0 %v2866
    %6074 = vmatprep.subr.bf16.mxu0 0
    %6075 = vmatpush1.bf16.msra.mxu0 %v2869
    %6076 = vmatprep.subr.bf16.mxu0 0
    %6077 = vmatpush1.bf16.msra.mxu0 %v2872
    %6078 = vmatprep.subr.bf16.mxu0 0
    %6079 = vmatpush1.bf16.msra.mxu0 %v2875
    %6080 = vmatprep.subr.bf16.mxu0 0
    %6081 = vmatpush1.bf16.msra.mxu0 %v2878
    %6082 = vmatprep.subr.bf16.mxu0 0
    %6083 = vmatpush1.bf16.msra.mxu0 %v2881
    %6084 = vmatprep.subr.bf16.mxu0 0
    %6085 = vmatpush1.bf16.msra.mxu0 %v2884
    %6086 = vmatprep.subr.bf16.mxu0 0
    %6087 = vmatpush1.bf16.msra.mxu0 %v2887
    %6088 = vmatprep.subr.bf16.mxu0 0
    %6089 = vmatpush1.bf16.msra.mxu0 %v2890
    %6090 = vmatprep.subr.bf16.mxu0 0
    %6091 = vmatpush1.bf16.msra.mxu0 %v2893
    %6092 = vmatprep.mubr.bf16.mxu0 %v5790
    %6093 = vmatmul.mubr.bf16.gmra.mrb[0].mxu0 %v5789
    %v6094 = vpop.f32.mrb[0].mxu0
    %v6095 = vadd.f32 0.0, %v6094
    %v6096 = vpop.f32.mrb[0].mxu0
    %v6097 = vpop.f32.mrb[0].mxu0
    %v6098 = vpop.f32.mrb[0].mxu0
    %6099 = vdwg.mxu0
    %6100 = vmatprep.subr.bf16.mxu0 0
    %6101 = vmatpush1.bf16.msra.mxu0 %v2896
    %6102 = vmatprep.subr.bf16.mxu0 0
    %6103 = vmatpush1.bf16.msra.mxu0 %v2899
    %6104 = vmatprep.subr.bf16.mxu0 0
    %6105 = vmatpush1.bf16.msra.mxu0 %v2902
    %6106 = vmatprep.subr.bf16.mxu0 0
    %6107 = vmatpush1.bf16.msra.mxu0 %v2905
    %6108 = vmatprep.subr.bf16.mxu0 0
    %6109 = vmatpush1.bf16.msra.mxu0 %v2908
    %6110 = vmatprep.subr.bf16.mxu0 0
    %6111 = vmatpush1.bf16.msra.mxu0 %v2911
    %6112 = vmatprep.subr.bf16.mxu0 0
    %6113 = vmatpush1.bf16.msra.mxu0 %v2914
    %6114 = vmatprep.subr.bf16.mxu0 0
    %6115 = vmatpush1.bf16.msra.mxu0 %v2917
    %6116 = vmatprep.subr.bf16.mxu0 0
    %6117 = vmatpush1.bf16.msra.mxu0 0
    %6118 = vmatprep.subr.bf16.mxu0 0
    %6119 = vmatpush1.bf16.msra.mxu0 0
    %6120 = vmatprep.subr.bf16.mxu0 0
    %6121 = vmatpush1.bf16.msra.mxu0 0
    %6122 = vmatprep.subr.bf16.mxu0 0
    %6123 = vmatpush1.bf16.msra.mxu0 0
    %6124 = vmatprep.subr.bf16.mxu0 0
    %6125 = vmatpush1.bf16.msra.mxu0 0
    %6126 = vmatprep.subr.bf16.mxu0 0
    %6127 = vmatpush1.bf16.msra.mxu0 0
    %6128 = vmatprep.subr.bf16.mxu0 0
    %6129 = vmatpush1.bf16.msra.mxu0 0
    %6130 = vmatprep.subr.bf16.mxu0 0
    %6131 = vmatpush1.bf16.msra.mxu0 0
    %6132 = vmatprep.mubr.bf16.mxu0 0
    %6133 = vmatmul.mubr.bf16.gmra.mrb[0].mxu0 %v5791
    %v6134 = vpop.f32.mrb[0].mxu0
    %v6135 = vadd.f32 %v6095, %v6134
    %v6136 = vpop.f32.mrb[0].mxu0
    %v6137 = vpop.f32.mrb[0].mxu0
    %v6138 = vpop.f32.mrb[0].mxu0
    %6139 = vdwg.mxu0
    %v6140 = vadd.f32 %v5975, %v6054
    %v6141 = vadd.f32 %v5976, %v6056
    %v6142 = vadd.f32 %v5977, %v6135
    %v6143 = vmul.f32 %v6140, 0.5
    %v6144 = vmul.f32 %v6141, 0.5
    %v6145 = vmul.f32 %v6142, 0.5
    %v6146 = vtanh.pop %v6143
    %v6147 = vtanh.pop %v6144
    %v6148 = vtanh.pop %v6145
    %v6149 = vmul.f32 %v6146, 0.5
    %v6150 = vmul.f32 %v6147, 0.5
    %v6151 = vmul.f32 %v6148, 0.5
    %v6152 = vadd.f32 %v6149, 0.5
    %v6153 = vadd.f32 %v6150, 0.5
    %v6154 = vadd.f32 %v6151, 0.5
    %v6155 = vld [vmem:[#allocation2 + $0x1b0] sm:$0xff]
    %v6156 = vld [vmem:[#allocation2 + $0x1b8] sm:$0xff]
    %v6157 = vld [vmem:[#allocation2 + $0x1c0] sm:$0xff]
    %6158 = vmatprep.subr.bf16.mxu0 %v3099
    %6159 = vmatpush1.bf16.msra.mxu0 %v3098
    %6160 = vmatprep.subr.bf16.mxu0 %v3102
    %6161 = vmatpush1.bf16.msra.mxu0 %v3101
    %6162 = vmatprep.subr.bf16.mxu0 %v3105
    %6163 = vmatpush1.bf16.msra.mxu0 %v3104
    %6164 = vmatprep.subr.bf16.mxu0 %v3108
    %6165 = vmatpush1.bf16.msra.mxu0 %v3107
    %6166 = vmatprep.subr.bf16.mxu0 %v3111
    %6167 = vmatpush1.bf16.msra.mxu0 %v3110
    %6168 = vmatprep.subr.bf16.mxu0 %v3114
    %6169 = vmatpush1.bf16.msra.mxu0 %v3113
    %6170 = vmatprep.subr.bf16.mxu0 %v3117
    %6171 = vmatpush1.bf16.msra.mxu0 %v3116
    %6172 = vmatprep.subr.bf16.mxu0 %v3120
    %6173 = vmatpush1.bf16.msra.mxu0 %v3119
    %6174 = vmatprep.subr.bf16.mxu0 %v3123
    %6175 = vmatpush1.bf16.msra.mxu0 %v3122
    %6176 = vmatprep.subr.bf16.mxu0 %v3126
    %6177 = vmatpush1.bf16.msra.mxu0 %v3125
    %6178 = vmatprep.subr.bf16.mxu0 %v3129
    %6179 = vmatpush1.bf16.msra.mxu0 %v3128
    %6180 = vmatprep.subr.bf16.mxu0 %v3132
    %6181 = vmatpush1.bf16.msra.mxu0 %v3131
    %6182 = vmatprep.subr.bf16.mxu0 %v3135
    %6183 = vmatpush1.bf16.msra.mxu0 %v3134
    %6184 = vmatprep.subr.bf16.mxu0 %v3138
    %6185 = vmatpush1.bf16.msra.mxu0 %v3137
    %6186 = vmatprep.subr.bf16.mxu0 %v3141
    %6187 = vmatpush1.bf16.msra.mxu0 %v3140
    %6188 = vmatprep.subr.bf16.mxu0 %v3144
    %6189 = vmatpush1.bf16.msra.mxu0 %v3143
    %6190 = vmatprep.mubr.bf16.mxu0 %v5790
    %6191 = vmatmul.mubr.bf16.gmra.mrb[0].mxu0 %v5789
    %v6192 = vpop.f32.mrb[0].mxu0
    %v6193 = vadd.f32 0.0, %v6192
    %v6194 = vpop.f32.mrb[0].mxu0
    %v6195 = vadd.f32 0.0, %v6194
    %v6196 = vpop.f32.mrb[0].mxu0
    %v6197 = vpop.f32.mrb[0].mxu0
    %6198 = vdwg.mxu0
    %6199 = vmatprep.subr.bf16.mxu0 %v3147
    %6200 = vmatpush1.bf16.msra.mxu0 %v3146
    %6201 = vmatprep.subr.bf16.mxu0 %v3150
    %6202 = vmatpush1.bf16.msra.mxu0 %v3149
    %6203 = vmatprep.subr.bf16.mxu0 %v3153
    %6204 = vmatpush1.bf16.msra.mxu0 %v3152
    %6205 = vmatprep.subr.bf16.mxu0 %v3156
    %6206 = vmatpush1.bf16.msra.mxu0 %v3155
    %6207 = vmatprep.subr.bf16.mxu0 %v3159
    %6208 = vmatpush1.bf16.msra.mxu0 %v3158
    %6209 = vmatprep.subr.bf16.mxu0 %v3162
    %6210 = vmatpush1.bf16.msra.mxu0 %v3161
    %6211 = vmatprep.subr.bf16.mxu0 %v3165
    %6212 = vmatpush1.bf16.msra.mxu0 %v3164
    %6213 = vmatprep.subr.bf16.mxu0 %v3168
    %6214 = vmatpush1.bf16.msra.mxu0 %v3167
    %6215 = vmatprep.subr.bf16.mxu0 0
    %6216 = vmatpush1.bf16.msra.mxu0 0
    %6217 = vmatprep.subr.bf16.mxu0 0
    %6218 = vmatpush1.bf16.msra.mxu0 0
    %6219 = vmatprep.subr.bf16.mxu0 0
    %6220 = vmatpush1.bf16.msra.mxu0 0
    %6221 = vmatprep.subr.bf16.mxu0 0
    %6222 = vmatpush1.bf16.msra.mxu0 0
    %6223 = vmatprep.subr.bf16.mxu0 0
    %6224 = vmatpush1.bf16.msra.mxu0 0
    %6225 = vmatprep.subr.bf16.mxu0 0
    %6226 = vmatpush1.bf16.msra.mxu0 0
    %6227 = vmatprep.subr.bf16.mxu0 0
    %6228 = vmatpush1.bf16.msra.mxu0 0
    %6229 = vmatprep.subr.bf16.mxu0 0
    %6230 = vmatpush1.bf16.msra.mxu0 0
    %6231 = vmatprep.mubr.bf16.mxu0 0
    %6232 = vmatmul.mubr.bf16.gmra.mrb[0].mxu0 %v5791
    %v6233 = vpop.f32.mrb[0].mxu0
    %v6234 = vadd.f32 %v6193, %v6233
    %v6235 = vpop.f32.mrb[0].mxu0
    %v6236 = vadd.f32 %v6195, %v6235
    %v6237 = vpop.f32.mrb[0].mxu0
    %v6238 = vpop.f32.mrb[0].mxu0
    %6239 = vdwg.mxu0
    %6240 = vmatprep.subr.bf16.mxu0 0
    %6241 = vmatpush1.bf16.msra.mxu0 %v3100
    %6242 = vmatprep.subr.bf16.mxu0 0
    %6243 = vmatpush1.bf16.msra.mxu0 %v3103
    %6244 = vmatprep.subr.bf16.mxu0 0
    %6245 = vmatpush1.bf16.msra.mxu0 %v3106
    %6246 = vmatprep.subr.bf16.mxu0 0
    %6247 = vmatpush1.bf16.msra.mxu0 %v3109
    %6248 = vmatprep.subr.bf16.mxu0 0
    %6249 = vmatpush1.bf16.msra.mxu0 %v3112
    %6250 = vmatprep.subr.bf16.mxu0 0
    %6251 = vmatpush1.bf16.msra.mxu0 %v3115
    %6252 = vmatprep.subr.bf16.mxu0 0
    %6253 = vmatpush1.bf16.msra.mxu0 %v3118
    %6254 = vmatprep.subr.bf16.mxu0 0
    %6255 = vmatpush1.bf16.msra.mxu0 %v3121
    %6256 = vmatprep.subr.bf16.mxu0 0
    %6257 = vmatpush1.bf16.msra.mxu0 %v3124
    %6258 = vmatprep.subr.bf16.mxu0 0
    %6259 = vmatpush1.bf16.msra.mxu0 %v3127
    %6260 = vmatprep.subr.bf16.mxu0 0
    %6261 = vmatpush1.bf16.msra.mxu0 %v3130
    %6262 = vmatprep.subr.bf16.mxu0 0
    %6263 = vmatpush1.bf16.msra.mxu0 %v3133
    %6264 = vmatprep.subr.bf16.mxu0 0
    %6265 = vmatpush1.bf16.msra.mxu0 %v3136
    %6266 = vmatprep.subr.bf16.mxu0 0
    %6267 = vmatpush1.bf16.msra.mxu0 %v3139
    %6268 = vmatprep.subr.bf16.mxu0 0
    %6269 = vmatpush1.bf16.msra.mxu0 %v3142
    %6270 = vmatprep.subr.bf16.mxu0 0
    %6271 = vmatpush1.bf16.msra.mxu0 %v3145
    %6272 = vmatprep.mubr.bf16.mxu0 %v5790
    %6273 = vmatmul.mubr.bf16.gmra.mrb[0].mxu0 %v5789
    %v6274 = vpop.f32.mrb[0].mxu0
    %v6275 = vadd.f32 0.0, %v6274
    %v6276 = vpop.f32.mrb[0].mxu0
    %v6277 = vpop.f32.mrb[0].mxu0
    %v6278 = vpop.f32.mrb[0].mxu0
    %6279 = vdwg.mxu0
    %6280 = vmatprep.subr.bf16.mxu0 0
    %6281 = vmatpush1.bf16.msra.mxu0 %v3148
    %6282 = vmatprep.subr.bf16.mxu0 0
    %6283 = vmatpush1.bf16.msra.mxu0 %v3151
    %6284 = vmatprep.subr.bf16.mxu0 0
    %6285 = vmatpush1.bf16.msra.mxu0 %v3154
    %6286 = vmatprep.subr.bf16.mxu0 0
    %6287 = vmatpush1.bf16.msra.mxu0 %v3157
    %6288 = vmatprep.subr.bf16.mxu0 0
    %6289 = vmatpush1.bf16.msra.mxu0 %v3160
    %6290 = vmatprep.subr.bf16.mxu0 0
    %6291 = vmatpush1.bf16.msra.mxu0 %v3163
    %6292 = vmatprep.subr.bf16.mxu0 0
    %6293 = vmatpush1.bf16.msra.mxu0 %v3166
    %6294 = vmatprep.subr.bf16.mxu0 0
    %6295 = vmatpush1.bf16.msra.mxu0 %v3169
    %6296 = vmatprep.subr.bf16.mxu0 0
    %6297 = vmatpush1.bf16.msra.mxu0 0
    %6298 = vmatprep.subr.bf16.mxu0 0
    %6299 = vmatpush1.bf16.msra.mxu0 0
    %6300 = vmatprep.subr.bf16.mxu0 0
    %6301 = vmatpush1.bf16.msra.mxu0 0
    %6302 = vmatprep.subr.bf16.mxu0 0
    %6303 = vmatpush1.bf16.msra.mxu0 0
    %6304 = vmatprep.subr.bf16.mxu0 0
    %6305 = vmatpush1.bf16.msra.mxu0 0
    %6306 = vmatprep.subr.bf16.mxu0 0
    %6307 = vmatpush1.bf16.msra.mxu0 0
    %6308 = vmatprep.subr.bf16.mxu0 0
    %6309 = vmatpush1.bf16.msra.mxu0 0
    %6310 = vmatprep.subr.bf16.mxu0 0
    %6311 = vmatpush1.bf16.msra.mxu0 0
    %6312 = vmatprep.mubr.bf16.mxu0 0
    %6313 = vmatmul.mubr.bf16.gmra.mrb[0].mxu0 %v5791
    %v6314 = vpop.f32.mrb[0].mxu0
    %v6315 = vadd.f32 %v6275, %v6314
    %v6316 = vpop.f32.mrb[0].mxu0
    %v6317 = vpop.f32.mrb[0].mxu0
    %v6318 = vpop.f32.mrb[0].mxu0
    %6319 = vdwg.mxu0
    %v6320 = vadd.f32 %v6155, %v6234
    %v6321 = vadd.f32 %v6156, %v6236
    %v6322 = vadd.f32 %v6157, %v6315
    %v6323 = vtanh.pop %v6320
    %v6324 = vtanh.pop %v6321
    %v6325 = vtanh.pop %v6322
    %v6326 = vmul.f32 %v6152, %v6323
    %v6327 = vmul.f32 %v6153, %v6324
    %v6328 = vmul.f32 %v6154, %v6325
    %v6329 = vadd.f32 %v5972, %v6326
    %v6330 = vadd.f32 %v5973, %v6327
    %v6331 = vadd.f32 %v5974, %v6328
    %v6332 = vld [vmem:[#allocation2 + $0x1c8] sm:$0xff]
    %v6333 = vld [vmem:[#allocation2 + $0x1d0] sm:$0xff]
    %v6334 = vld [vmem:[#allocation2 + $0x1d8] sm:$0xff]
    %6335 = vmatprep.subr.bf16.mxu0 %v3348
    %6336 = vmatpush1.bf16.msra.mxu0 %v3347
    %6337 = vmatprep.subr.bf16.mxu0 %v3351
    %6338 = vmatpush1.bf16.msra.mxu0 %v3350
    %6339 = vmatprep.subr.bf16.mxu0 %v3354
    %6340 = vmatpush1.bf16.msra.mxu0 %v3353
    %6341 = vmatprep.subr.bf16.mxu0 %v3357
    %6342 = vmatpush1.bf16.msra.mxu0 %v3356
    %6343 = vmatprep.subr.bf16.mxu0 %v3360
    %6344 = vmatpush1.bf16.msra.mxu0 %v3359
    %6345 = vmatprep.subr.bf16.mxu0 %v3363
    %6346 = vmatpush1.bf16.msra.mxu0 %v3362
    %6347 = vmatprep.subr.bf16.mxu0 %v3366
    %6348 = vmatpush1.bf16.msra.mxu0 %v3365
    %6349 = vmatprep.subr.bf16.mxu0 %v3369
    %6350 = vmatpush1.bf16.msra.mxu0 %v3368
    %6351 = vmatprep.subr.bf16.mxu0 %v3372
    %6352 = vmatpush1.bf16.msra.mxu0 %v3371
    %6353 = vmatprep.subr.bf16.mxu0 %v3375
    %6354 = vmatpush1.bf16.msra.mxu0 %v3374
    %6355 = vmatprep.subr.bf16.mxu0 %v3378
    %6356 = vmatpush1.bf16.msra.mxu0 %v3377
    %6357 = vmatprep.subr.bf16.mxu0 %v3381
    %6358 = vmatpush1.bf16.msra.mxu0 %v3380
    %6359 = vmatprep.subr.bf16.mxu0 %v3384
    %6360 = vmatpush1.bf16.msra.mxu0 %v3383
    %6361 = vmatprep.subr.bf16.mxu0 %v3387
    %6362 = vmatpush1.bf16.msra.mxu0 %v3386
    %6363 = vmatprep.subr.bf16.mxu0 %v3390
    %6364 = vmatpush1.bf16.msra.mxu0 %v3389
    %6365 = vmatprep.subr.bf16.mxu0 %v3393
    %6366 = vmatpush1.bf16.msra.mxu0 %v3392
    %6367 = vmatprep.mubr.bf16.mxu0 %v5790
    %6368 = vmatmul.mubr.bf16.gmra.mrb[0].mxu0 %v5789
    %v6369 = vpop.f32.mrb[0].mxu0
    %v6370 = vadd.f32 0.0, %v6369
    %v6371 = vpop.f32.mrb[0].mxu0
    %v6372 = vadd.f32 0.0, %v6371
    %v6373 = vpop.f32.mrb[0].mxu0
    %v6374 = vpop.f32.mrb[0].mxu0
    %6375 = vdwg.mxu0
    %6376 = vmatprep.subr.bf16.mxu0 %v3396
    %6377 = vmatpush1.bf16.msra.mxu0 %v3395
    %6378 = vmatprep.subr.bf16.mxu0 %v3399
    %6379 = vmatpush1.bf16.msra.mxu0 %v3398
    %6380 = vmatprep.subr.bf16.mxu0 %v3402
    %6381 = vmatpush1.bf16.msra.mxu0 %v3401
    %6382 = vmatprep.subr.bf16.mxu0 %v3405
    %6383 = vmatpush1.bf16.msra.mxu0 %v3404
    %6384 = vmatprep.subr.bf16.mxu0 %v3408
    %6385 = vmatpush1.bf16.msra.mxu0 %v3407
    %6386 = vmatprep.subr.bf16.mxu0 %v3411
    %6387 = vmatpush1.bf16.msra.mxu0 %v3410
    %6388 = vmatprep.subr.bf16.mxu0 %v3414
    %6389 = vmatpush1.bf16.msra.mxu0 %v3413
    %6390 = vmatprep.subr.bf16.mxu0 %v3417
    %6391 = vmatpush1.bf16.msra.mxu0 %v3416
    %6392 = vmatprep.subr.bf16.mxu0 0
    %6393 = vmatpush1.bf16.msra.mxu0 0
    %6394 = vmatprep.subr.bf16.mxu0 0
    %6395 = vmatpush1.bf16.msra.mxu0 0
    %6396 = vmatprep.subr.bf16.mxu0 0
    %6397 = vmatpush1.bf16.msra.mxu0 0
    %6398 = vmatprep.subr.bf16.mxu0 0
    %6399 = vmatpush1.bf16.msra.mxu0 0
    %6400 = vmatprep.subr.bf16.mxu0 0
    %6401 = vmatpush1.bf16.msra.mxu0 0
    %6402 = vmatprep.subr.bf16.mxu0 0
    %6403 = vmatpush1.bf16.msra.mxu0 0
    %6404 = vmatprep.subr.bf16.mxu0 0
    %6405 = vmatpush1.bf16.msra.mxu0 0
    %6406 = vmatprep.subr.bf16.mxu0 0
    %6407 = vmatpush1.bf16.msra.mxu0 0
    %6408 = vmatprep.mubr.bf16.mxu0 0
    %6409 = vmatmul.mubr.bf16.gmra.mrb[0].mxu0 %v5791
    %v6410 = vpop.f32.mrb[0].mxu0
    %v6411 = vadd.f32 %v6370, %v6410
    %v6412 = vpop.f32.mrb[0].mxu0
    %v6413 = vadd.f32 %v6372, %v6412
    %v6414 = vpop.f32.mrb[0].mxu0
    %v6415 = vpop.f32.mrb[0].mxu0
    %6416 = vdwg.mxu0
    %6417 = vmatprep.subr.bf16.mxu0 0
    %6418 = vmatpush1.bf16.msra.mxu0 %v3349
    %6419 = vmatprep.subr.bf16.mxu0 0
    %6420 = vmatpush1.bf16.msra.mxu0 %v3352
    %6421 = vmatprep.subr.bf16.mxu0 0
    %6422 = vmatpush1.bf16.msra.mxu0 %v3355
    %6423 = vmatprep.subr.bf16.mxu0 0
    %6424 = vmatpush1.bf16.msra.mxu0 %v3358
    %6425 = vmatprep.subr.bf16.mxu0 0
    %6426 = vmatpush1.bf16.msra.mxu0 %v3361
    %6427 = vmatprep.subr.bf16.mxu0 0
    %6428 = vmatpush1.bf16.msra.mxu0 %v3364
    %6429 = vmatprep.subr.bf16.mxu0 0
    %6430 = vmatpush1.bf16.msra.mxu0 %v3367
    %6431 = vmatprep.subr.bf16.mxu0 0
    %6432 = vmatpush1.bf16.msra.mxu0 %v3370
    %6433 = vmatprep.subr.bf16.mxu0 0
    %6434 = vmatpush1.bf16.msra.mxu0 %v3373
    %6435 = vmatprep.subr.bf16.mxu0 0
    %6436 = vmatpush1.bf16.msra.mxu0 %v3376
    %6437 = vmatprep.subr.bf16.mxu0 0
    %6438 = vmatpush1.bf16.msra.mxu0 %v3379
    %6439 = vmatprep.subr.bf16.mxu0 0
    %6440 = vmatpush1.bf16.msra.mxu0 %v3382
    %6441 = vmatprep.subr.bf16.mxu0 0
    %6442 = vmatpush1.bf16.msra.mxu0 %v3385
    %6443 = vmatprep.subr.bf16.mxu0 0
    %6444 = vmatpush1.bf16.msra.mxu0 %v3388
    %6445 = vmatprep.subr.bf16.mxu0 0
    %6446 = vmatpush1.bf16.msra.mxu0 %v3391
    %6447 = vmatprep.subr.bf16.mxu0 0
    %6448 = vmatpush1.bf16.msra.mxu0 %v3394
    %6449 = vmatprep.mubr.bf16.mxu0 %v5790
    %6450 = vmatmul.mubr.bf16.gmra.mrb[0].mxu0 %v5789
    %v6451 = vpop.f32.mrb[0].mxu0
    %v6452 = vadd.f32 0.0, %v6451
    %v6453 = vpop.f32.mrb[0].mxu0
    %v6454 = vpop.f32.mrb[0].mxu0
    %v6455 = vpop.f32.mrb[0].mxu0
    %6456 = vdwg.mxu0
    %6457 = vmatprep.subr.bf16.mxu0 0
    %6458 = vmatpush1.bf16.msra.mxu0 %v3397
    %6459 = vmatprep.subr.bf16.mxu0 0
    %6460 = vmatpush1.bf16.msra.mxu0 %v3400
    %6461 = vmatprep.subr.bf16.mxu0 0
    %6462 = vmatpush1.bf16.msra.mxu0 %v3403
    %6463 = vmatprep.subr.bf16.mxu0 0
    %6464 = vmatpush1.bf16.msra.mxu0 %v3406
    %6465 = vmatprep.subr.bf16.mxu0 0
    %6466 = vmatpush1.bf16.msra.mxu0 %v3409
    %6467 = vmatprep.subr.bf16.mxu0 0
    %6468 = vmatpush1.bf16.msra.mxu0 %v3412
    %6469 = vmatprep.subr.bf16.mxu0 0
    %6470 = vmatpush1.bf16.msra.mxu0 %v3415
    %6471 = vmatprep.subr.bf16.mxu0 0
    %6472 = vmatpush1.bf16.msra.mxu0 %v3418
    %6473 = vmatprep.subr.bf16.mxu0 0
    %6474 = vmatpush1.bf16.msra.mxu0 0
    %6475 = vmatprep.subr.bf16.mxu0 0
    %6476 = vmatpush1.bf16.msra.mxu0 0
    %6477 = vmatprep.subr.bf16.mxu0 0
    %6478 = vmatpush1.bf16.msra.mxu0 0
    %6479 = vmatprep.subr.bf16.mxu0 0
    %6480 = vmatpush1.bf16.msra.mxu0 0
    %6481 = vmatprep.subr.bf16.mxu0 0
    %6482 = vmatpush1.bf16.msra.mxu0 0
    %6483 = vmatprep.subr.bf16.mxu0 0
    %6484 = vmatpush1.bf16.msra.mxu0 0
    %6485 = vmatprep.subr.bf16.mxu0 0
    %6486 = vmatpush1.bf16.msra.mxu0 0
    %6487 = vmatprep.subr.bf16.mxu0 0
    %6488 = vmatpush1.bf16.msra.mxu0 0
    %6489 = vmatprep.mubr.bf16.mxu0 0
    %6490 = vmatmul.mubr.bf16.gmra.mrb[0].mxu0 %v5791
    %v6491 = vpop.f32.mrb[0].mxu0
    %v6492 = vadd.f32 %v6452, %v6491
    %v6493 = vpop.f32.mrb[0].mxu0
    %v6494 = vpop.f32.mrb[0].mxu0
    %v6495 = vpop.f32.mrb[0].mxu0
    %6496 = vdwg.mxu0
    %v6497 = vadd.f32 %v6332, %v6411
    %v6498 = vadd.f32 %v6333, %v6413
    %v6499 = vadd.f32 %v6334, %v6492
    %v6500 = vmul.f32 %v6497, 0.5
    %v6501 = vmul.f32 %v6498, 0.5
    %v6502 = vmul.f32 %v6499, 0.5
    %v6503 = vtanh.pop %v6500
    %v6504 = vtanh.pop %v6501
    %v6505 = vtanh.pop %v6502
    %v6506 = vmul.f32 %v6503, 0.5
    %v6507 = vmul.f32 %v6504, 0.5
    %v6508 = vmul.f32 %v6505, 0.5
    %v6509 = vadd.f32 %v6506, 0.5
    %v6510 = vadd.f32 %v6507, 0.5
    %v6511 = vadd.f32 %v6508, 0.5
    %v6512 = vtanh.pop %v6329
    %v6513 = vtanh.pop %v6330
    %v6514 = vtanh.pop %v6331
    %v6515 = vmul.f32 %v6509, %v6512
    %v6516 = vmul.f32 %v6510, %v6513
    %v6517 = vmul.f32 %v6511, %v6514
    %v6518 = vpack.c.bf16 %v6515, %v6515
    %v6519 = vpack.c.bf16 %v6516, %v6516
    %v6520 = vpack.c.bf16 %v6517, %v6517
    %v6521 = vld [vmem:[#allocation2 + $0x1f8] sm:$0xff]
    %v6522 = vld [vmem:[#allocation2 + $0x200] sm:$0xff]
    %v6523 = vld [vmem:[#allocation2 + $0x208] sm:$0xff]
    %6524 = vmatprep.subr.bf16.mxu0 %v2592
    %6525 = vmatpush1.bf16.msra.mxu0 %v2591
    %6526 = vmatprep.subr.bf16.mxu0 %v2595
    %6527 = vmatpush1.bf16.msra.mxu0 %v2594
    %6528 = vmatprep.subr.bf16.mxu0 %v2598
    %6529 = vmatpush1.bf16.msra.mxu0 %v2597
    %6530 = vmatprep.subr.bf16.mxu0 %v2601
    %6531 = vmatpush1.bf16.msra.mxu0 %v2600
    %6532 = vmatprep.subr.bf16.mxu0 %v2604
    %6533 = vmatpush1.bf16.msra.mxu0 %v2603
    %6534 = vmatprep.subr.bf16.mxu0 %v2607
    %6535 = vmatpush1.bf16.msra.mxu0 %v2606
    %6536 = vmatprep.subr.bf16.mxu0 %v2610
    %6537 = vmatpush1.bf16.msra.mxu0 %v2609
    %6538 = vmatprep.subr.bf16.mxu0 %v2613
    %6539 = vmatpush1.bf16.msra.mxu0 %v2612
    %6540 = vmatprep.subr.bf16.mxu0 %v2616
    %6541 = vmatpush1.bf16.msra.mxu0 %v2615
    %6542 = vmatprep.subr.bf16.mxu0 %v2619
    %6543 = vmatpush1.bf16.msra.mxu0 %v2618
    %6544 = vmatprep.subr.bf16.mxu0 %v2622
    %6545 = vmatpush1.bf16.msra.mxu0 %v2621
    %6546 = vmatprep.subr.bf16.mxu0 %v2625
    %6547 = vmatpush1.bf16.msra.mxu0 %v2624
    %6548 = vmatprep.subr.bf16.mxu0 %v2628
    %6549 = vmatpush1.bf16.msra.mxu0 %v2627
    %6550 = vmatprep.subr.bf16.mxu0 %v2631
    %6551 = vmatpush1.bf16.msra.mxu0 %v2630
    %6552 = vmatprep.subr.bf16.mxu0 %v2634
    %6553 = vmatpush1.bf16.msra.mxu0 %v2633
    %6554 = vmatprep.subr.bf16.mxu0 %v2637
    %6555 = vmatpush1.bf16.msra.mxu0 %v2636
    %6556 = vmatprep.mubr.bf16.mxu0 %v6519
    %6557 = vmatmul.mubr.bf16.gmra.mrb[0].mxu0 %v6518
    %v6558 = vpop.f32.mrb[0].mxu0
    %v6559 = vadd.f32 0.0, %v6558
    %v6560 = vpop.f32.mrb[0].mxu0
    %v6561 = vadd.f32 0.0, %v6560
    %v6562 = vpop.f32.mrb[0].mxu0
    %v6563 = vpop.f32.mrb[0].mxu0
    %6564 = vdwg.mxu0
    %6565 = vmatprep.subr.bf16.mxu0 %v2640
    %6566 = vmatpush1.bf16.msra.mxu0 %v2639
    %6567 = vmatprep.subr.bf16.mxu0 %v2643
    %6568 = vmatpush1.bf16.msra.mxu0 %v2642
    %6569 = vmatprep.subr.bf16.mxu0 %v2646
    %6570 = vmatpush1.bf16.msra.mxu0 %v2645
    %6571 = vmatprep.subr.bf16.mxu0 %v2649
    %6572 = vmatpush1.bf16.msra.mxu0 %v2648
    %6573 = vmatprep.subr.bf16.mxu0 %v2652
    %6574 = vmatpush1.bf16.msra.mxu0 %v2651
    %6575 = vmatprep.subr.bf16.mxu0 %v2655
    %6576 = vmatpush1.bf16.msra.mxu0 %v2654
    %6577 = vmatprep.subr.bf16.mxu0 %v2658
    %6578 = vmatpush1.bf16.msra.mxu0 %v2657
    %6579 = vmatprep.subr.bf16.mxu0 %v2661
    %6580 = vmatpush1.bf16.msra.mxu0 %v2660
    %6581 = vmatprep.subr.bf16.mxu0 0
    %6582 = vmatpush1.bf16.msra.mxu0 0
    %6583 = vmatprep.subr.bf16.mxu0 0
    %6584 = vmatpush1.bf16.msra.mxu0 0
    %6585 = vmatprep.subr.bf16.mxu0 0
    %6586 = vmatpush1.bf16.msra.mxu0 0
    %6587 = vmatprep.subr.bf16.mxu0 0
    %6588 = vmatpush1.bf16.msra.mxu0 0
    %6589 = vmatprep.subr.bf16.mxu0 0
    %6590 = vmatpush1.bf16.msra.mxu0 0
    %6591 = vmatprep.subr.bf16.mxu0 0
    %6592 = vmatpush1.bf16.msra.mxu0 0
    %6593 = vmatprep.subr.bf16.mxu0 0
    %6594 = vmatpush1.bf16.msra.mxu0 0
    %6595 = vmatprep.subr.bf16.mxu0 0
    %6596 = vmatpush1.bf16.msra.mxu0 0
    %6597 = vmatprep.mubr.bf16.mxu0 0
    %6598 = vmatmul.mubr.bf16.gmra.mrb[0].mxu0 %v6520
    %v6599 = vpop.f32.mrb[0].mxu0
    %v6600 = vadd.f32 %v6559, %v6599
    %v6601 = vpop.f32.mrb[0].mxu0
    %v6602 = vadd.f32 %v6561, %v6601
    %v6603 = vpop.f32.mrb[0].mxu0
    %v6604 = vpop.f32.mrb[0].mxu0
    %6605 = vdwg.mxu0
    %6606 = vmatprep.subr.bf16.mxu0 0
    %6607 = vmatpush1.bf16.msra.mxu0 %v2593
    %6608 = vmatprep.subr.bf16.mxu0 0
    %6609 = vmatpush1.bf16.msra.mxu0 %v2596
    %6610 = vmatprep.subr.bf16.mxu0 0
    %6611 = vmatpush1.bf16.msra.mxu0 %v2599
    %6612 = vmatprep.subr.bf16.mxu0 0
    %6613 = vmatpush1.bf16.msra.mxu0 %v2602
    %6614 = vmatprep.subr.bf16.mxu0 0
    %6615 = vmatpush1.bf16.msra.mxu0 %v2605
    %6616 = vmatprep.subr.bf16.mxu0 0
    %6617 = vmatpush1.bf16.msra.mxu0 %v2608
    %6618 = vmatprep.subr.bf16.mxu0 0
    %6619 = vmatpush1.bf16.msra.mxu0 %v2611
    %6620 = vmatprep.subr.bf16.mxu0 0
    %6621 = vmatpush1.bf16.msra.mxu0 %v2614
    %6622 = vmatprep.subr.bf16.mxu0 0
    %6623 = vmatpush1.bf16.msra.mxu0 %v2617
    %6624 = vmatprep.subr.bf16.mxu0 0
    %6625 = vmatpush1.bf16.msra.mxu0 %v2620
    %6626 = vmatprep.subr.bf16.mxu0 0
    %6627 = vmatpush1.bf16.msra.mxu0 %v2623
    %6628 = vmatprep.subr.bf16.mxu0 0
    %6629 = vmatpush1.bf16.msra.mxu0 %v2626
    %6630 = vmatprep.subr.bf16.mxu0 0
    %6631 = vmatpush1.bf16.msra.mxu0 %v2629
    %6632 = vmatprep.subr.bf16.mxu0 0
    %6633 = vmatpush1.bf16.msra.mxu0 %v2632
    %6634 = vmatprep.subr.bf16.mxu0 0
    %6635 = vmatpush1.bf16.msra.mxu0 %v2635
    %6636 = vmatprep.subr.bf16.mxu0 0
    %6637 = vmatpush1.bf16.msra.mxu0 %v2638
    %6638 = vmatprep.mubr.bf16.mxu0 %v6519
    %6639 = vmatmul.mubr.bf16.gmra.mrb[0].mxu0 %v6518
    %v6640 = vpop.f32.mrb[0].mxu0
    %v6641 = vadd.f32 0.0, %v6640
    %v6642 = vpop.f32.mrb[0].mxu0
    %v6643 = vpop.f32.mrb[0].mxu0
    %v6644 = vpop.f32.mrb[0].mxu0
    %6645 = vdwg.mxu0
    %6646 = vmatprep.subr.bf16.mxu0 0
    %6647 = vmatpush1.bf16.msra.mxu0 %v2641
    %6648 = vmatprep.subr.bf16.mxu0 0
    %6649 = vmatpush1.bf16.msra.mxu0 %v2644
    %6650 = vmatprep.subr.bf16.mxu0 0
    %6651 = vmatpush1.bf16.msra.mxu0 %v2647
    %6652 = vmatprep.subr.bf16.mxu0 0
    %6653 = vmatpush1.bf16.msra.mxu0 %v2650
    %6654 = vmatprep.subr.bf16.mxu0 0
    %6655 = vmatpush1.bf16.msra.mxu0 %v2653
    %6656 = vmatprep.subr.bf16.mxu0 0
    %6657 = vmatpush1.bf16.msra.mxu0 %v2656
    %6658 = vmatprep.subr.bf16.mxu0 0
    %6659 = vmatpush1.bf16.msra.mxu0 %v2659
    %6660 = vmatprep.subr.bf16.mxu0 0
    %6661 = vmatpush1.bf16.msra.mxu0 %v2662
    %6662 = vmatprep.subr.bf16.mxu0 0
    %6663 = vmatpush1.bf16.msra.mxu0 0
    %6664 = vmatprep.subr.bf16.mxu0 0
    %6665 = vmatpush1.bf16.msra.mxu0 0
    %6666 = vmatprep.subr.bf16.mxu0 0
    %6667 = vmatpush1.bf16.msra.mxu0 0
    %6668 = vmatprep.subr.bf16.mxu0 0
    %6669 = vmatpush1.bf16.msra.mxu0 0
    %6670 = vmatprep.subr.bf16.mxu0 0
    %6671 = vmatpush1.bf16.msra.mxu0 0
    %6672 = vmatprep.subr.bf16.mxu0 0
    %6673 = vmatpush1.bf16.msra.mxu0 0
    %6674 = vmatprep.subr.bf16.mxu0 0
    %6675 = vmatpush1.bf16.msra.mxu0 0
    %6676 = vmatprep.subr.bf16.mxu0 0
    %6677 = vmatpush1.bf16.msra.mxu0 0
    %6678 = vmatprep.mubr.bf16.mxu0 0
    %6679 = vmatmul.mubr.bf16.gmra.mrb[0].mxu0 %v6520
    %v6680 = vpop.f32.mrb[0].mxu0
    %v6681 = vadd.f32 %v6641, %v6680
    %v6682 = vpop.f32.mrb[0].mxu0
    %v6683 = vpop.f32.mrb[0].mxu0
    %v6684 = vpop.f32.mrb[0].mxu0
    %6685 = vdwg.mxu0
    %v6686 = vadd.f32 %v6521, %v6600
    %v6687 = vadd.f32 %v6522, %v6602
    %v6688 = vadd.f32 %v6523, %v6681
    %v6689 = vmul.f32 %v6686, 0.5
    %v6690 = vmul.f32 %v6687, 0.5
    %v6691 = vmul.f32 %v6688, 0.5
    %v6692 = vtanh.pop %v6689
    %v6693 = vtanh.pop %v6690
    %v6694 = vtanh.pop %v6691
    %v6695 = vmul.f32 %v6692, 0.5
    %v6696 = vmul.f32 %v6693, 0.5
    %v6697 = vmul.f32 %v6694, 0.5
    %v6698 = vadd.f32 %v6695, 0.5
    %v6699 = vadd.f32 %v6696, 0.5
    %v6700 = vadd.f32 %v6697, 0.5
    %v6701 = vmul.f32 %v6698, %v6329
    %v6702 = vmul.f32 %v6699, %v6330
    %v6703 = vmul.f32 %v6700, %v6331
    %v6704 = vld [vmem:[#allocation2 + $0x1e0] sm:$0xff]
    %v6705 = vld [vmem:[#allocation2 + $0x1e8] sm:$0xff]
    %v6706 = vld [vmem:[#allocation2 + $0x1f0] sm:$0xff]
    %6707 = vmatprep.subr.bf16.mxu0 %v2847
    %6708 = vmatpush1.bf16.msra.mxu0 %v2846
    %6709 = vmatprep.subr.bf16.mxu0 %v2850
    %6710 = vmatpush1.bf16.msra.mxu0 %v2849
    %6711 = vmatprep.subr.bf16.mxu0 %v2853
    %6712 = vmatpush1.bf16.msra.mxu0 %v2852
    %6713 = vmatprep.subr.bf16.mxu0 %v2856
    %6714 = vmatpush1.bf16.msra.mxu0 %v2855
    %6715 = vmatprep.subr.bf16.mxu0 %v2859
    %6716 = vmatpush1.bf16.msra.mxu0 %v2858
    %6717 = vmatprep.subr.bf16.mxu0 %v2862
    %6718 = vmatpush1.bf16.msra.mxu0 %v2861
    %6719 = vmatprep.subr.bf16.mxu0 %v2865
    %6720 = vmatpush1.bf16.msra.mxu0 %v2864
    %6721 = vmatprep.subr.bf16.mxu0 %v2868
    %6722 = vmatpush1.bf16.msra.mxu0 %v2867
    %6723 = vmatprep.subr.bf16.mxu0 %v2871
    %6724 = vmatpush1.bf16.msra.mxu0 %v2870
    %6725 = vmatprep.subr.bf16.mxu0 %v2874
    %6726 = vmatpush1.bf16.msra.mxu0 %v2873
    %6727 = vmatprep.subr.bf16.mxu0 %v2877
    %6728 = vmatpush1.bf16.msra.mxu0 %v2876
    %6729 = vmatprep.subr.bf16.mxu0 %v2880
    %6730 = vmatpush1.bf16.msra.mxu0 %v2879
    %6731 = vmatprep.subr.bf16.mxu0 %v2883
    %6732 = vmatpush1.bf16.msra.mxu0 %v2882
    %6733 = vmatprep.subr.bf16.mxu0 %v2886
    %6734 = vmatpush1.bf16.msra.mxu0 %v2885
    %6735 = vmatprep.subr.bf16.mxu0 %v2889
    %6736 = vmatpush1.bf16.msra.mxu0 %v2888
    %6737 = vmatprep.subr.bf16.mxu0 %v2892
    %6738 = vmatpush1.bf16.msra.mxu0 %v2891
    %6739 = vmatprep.mubr.bf16.mxu0 %v6519
    %6740 = vmatmul.mubr.bf16.gmra.mrb[0].mxu0 %v6518
    %v6741 = vpop.f32.mrb[0].mxu0
    %v6742 = vadd.f32 0.0, %v6741
    %v6743 = vpop.f32.mrb[0].mxu0
    %v6744 = vadd.f32 0.0, %v6743
    %v6745 = vpop.f32.mrb[0].mxu0
    %v6746 = vpop.f32.mrb[0].mxu0
    %6747 = vdwg.mxu0
    %6748 = vmatprep.subr.bf16.mxu0 %v2895
    %6749 = vmatpush1.bf16.msra.mxu0 %v2894
    %6750 = vmatprep.subr.bf16.mxu0 %v2898
    %6751 = vmatpush1.bf16.msra.mxu0 %v2897
    %6752 = vmatprep.subr.bf16.mxu0 %v2901
    %6753 = vmatpush1.bf16.msra.mxu0 %v2900
    %6754 = vmatprep.subr.bf16.mxu0 %v2904
    %6755 = vmatpush1.bf16.msra.mxu0 %v2903
    %6756 = vmatprep.subr.bf16.mxu0 %v2907
    %6757 = vmatpush1.bf16.msra.mxu0 %v2906
    %6758 = vmatprep.subr.bf16.mxu0 %v2910
    %6759 = vmatpush1.bf16.msra.mxu0 %v2909
    %6760 = vmatprep.subr.bf16.mxu0 %v2913
    %6761 = vmatpush1.bf16.msra.mxu0 %v2912
    %6762 = vmatprep.subr.bf16.mxu0 %v2916
    %6763 = vmatpush1.bf16.msra.mxu0 %v2915
    %6764 = vmatprep.subr.bf16.mxu0 0
    %6765 = vmatpush1.bf16.msra.mxu0 0
    %6766 = vmatprep.subr.bf16.mxu0 0
    %6767 = vmatpush1.bf16.msra.mxu0 0
    %6768 = vmatprep.subr.bf16.mxu0 0
    %6769 = vmatpush1.bf16.msra.mxu0 0
    %6770 = vmatprep.subr.bf16.mxu0 0
    %6771 = vmatpush1.bf16.msra.mxu0 0
    %6772 = vmatprep.subr.bf16.mxu0 0
    %6773 = vmatpush1.bf16.msra.mxu0 0
    %6774 = vmatprep.subr.bf16.mxu0 0
    %6775 = vmatpush1.bf16.msra.mxu0 0
    %6776 = vmatprep.subr.bf16.mxu0 0
    %6777 = vmatpush1.bf16.msra.mxu0 0
    %6778 = vmatprep.subr.bf16.mxu0 0
    %6779 = vmatpush1.bf16.msra.mxu0 0
    %6780 = vmatprep.mubr.bf16.mxu0 0
    %6781 = vmatmul.mubr.bf16.gmra.mrb[0].mxu0 %v6520
    %v6782 = vpop.f32.mrb[0].mxu0
    %v6783 = vadd.f32 %v6742, %v6782
    %v6784 = vpop.f32.mrb[0].mxu0
    %v6785 = vadd.f32 %v6744, %v6784
    %v6786 = vpop.f32.mrb[0].mxu0
    %v6787 = vpop.f32.mrb[0].mxu0
    %6788 = vdwg.mxu0
    %6789 = vmatprep.subr.bf16.mxu0 0
    %6790 = vmatpush1.bf16.msra.mxu0 %v2848
    %6791 = vmatprep.subr.bf16.mxu0 0
    %6792 = vmatpush1.bf16.msra.mxu0 %v2851
    %6793 = vmatprep.subr.bf16.mxu0 0
    %6794 = vmatpush1.bf16.msra.mxu0 %v2854
    %6795 = vmatprep.subr.bf16.mxu0 0
    %6796 = vmatpush1.bf16.msra.mxu0 %v2857
    %6797 = vmatprep.subr.bf16.mxu0 0
    %6798 = vmatpush1.bf16.msra.mxu0 %v2860
    %6799 = vmatprep.subr.bf16.mxu0 0
    %6800 = vmatpush1.bf16.msra.mxu0 %v2863
    %6801 = vmatprep.subr.bf16.mxu0 0
    %6802 = vmatpush1.bf16.msra.mxu0 %v2866
    %6803 = vmatprep.subr.bf16.mxu0 0
    %6804 = vmatpush1.bf16.msra.mxu0 %v2869
    %6805 = vmatprep.subr.bf16.mxu0 0
    %6806 = vmatpush1.bf16.msra.mxu0 %v2872
    %6807 = vmatprep.subr.bf16.mxu0 0
    %6808 = vmatpush1.bf16.msra.mxu0 %v2875
    %6809 = vmatprep.subr.bf16.mxu0 0
    %6810 = vmatpush1.bf16.msra.mxu0 %v2878
    %6811 = vmatprep.subr.bf16.mxu0 0
    %6812 = vmatpush1.bf16.msra.mxu0 %v2881
    %6813 = vmatprep.subr.bf16.mxu0 0
    %6814 = vmatpush1.bf16.msra.mxu0 %v2884
    %6815 = vmatprep.subr.bf16.mxu0 0
    %6816 = vmatpush1.bf16.msra.mxu0 %v2887
    %6817 = vmatprep.subr.bf16.mxu0 0
    %6818 = vmatpush1.bf16.msra.mxu0 %v2890
    %6819 = vmatprep.subr.bf16.mxu0 0
    %6820 = vmatpush1.bf16.msra.mxu0 %v2893
    %6821 = vmatprep.mubr.bf16.mxu0 %v6519
    %6822 = vmatmul.mubr.bf16.gmra.mrb[0].mxu0 %v6518
    %v6823 = vpop.f32.mrb[0].mxu0
    %v6824 = vadd.f32 0.0, %v6823
    %v6825 = vpop.f32.mrb[0].mxu0
    %v6826 = vpop.f32.mrb[0].mxu0
    %v6827 = vpop.f32.mrb[0].mxu0
    %6828 = vdwg.mxu0
    %6829 = vmatprep.subr.bf16.mxu0 0
    %6830 = vmatpush1.bf16.msra.mxu0 %v2896
    %6831 = vmatprep.subr.bf16.mxu0 0
    %6832 = vmatpush1.bf16.msra.mxu0 %v2899
    %6833 = vmatprep.subr.bf16.mxu0 0
    %6834 = vmatpush1.bf16.msra.mxu0 %v2902
    %6835 = vmatprep.subr.bf16.mxu0 0
    %6836 = vmatpush1.bf16.msra.mxu0 %v2905
    %6837 = vmatprep.subr.bf16.mxu0 0
    %6838 = vmatpush1.bf16.msra.mxu0 %v2908
    %6839 = vmatprep.subr.bf16.mxu0 0
    %6840 = vmatpush1.bf16.msra.mxu0 %v2911
    %6841 = vmatprep.subr.bf16.mxu0 0
    %6842 = vmatpush1.bf16.msra.mxu0 %v2914
    %6843 = vmatprep.subr.bf16.mxu0 0
    %6844 = vmatpush1.bf16.msra.mxu0 %v2917
    %6845 = vmatprep.subr.bf16.mxu0 0
    %6846 = vmatpush1.bf16.msra.mxu0 0
    %6847 = vmatprep.subr.bf16.mxu0 0
    %6848 = vmatpush1.bf16.msra.mxu0 0
    %6849 = vmatprep.subr.bf16.mxu0 0
    %6850 = vmatpush1.bf16.msra.mxu0 0
    %6851 = vmatprep.subr.bf16.mxu0 0
    %6852 = vmatpush1.bf16.msra.mxu0 0
    %6853 = vmatprep.subr.bf16.mxu0 0
    %6854 = vmatpush1.bf16.msra.mxu0 0
    %6855 = vmatprep.subr.bf16.mxu0 0
    %6856 = vmatpush1.bf16.msra.mxu0 0
    %6857 = vmatprep.subr.bf16.mxu0 0
    %6858 = vmatpush1.bf16.msra.mxu0 0
    %6859 = vmatprep.subr.bf16.mxu0 0
    %6860 = vmatpush1.bf16.msra.mxu0 0
    %6861 = vmatprep.mubr.bf16.mxu0 0
    %6862 = vmatmul.mubr.bf16.gmra.mrb[0].mxu0 %v6520
    %v6863 = vpop.f32.mrb[0].mxu0
    %v6864 = vadd.f32 %v6824, %v6863
    %v6865 = vpop.f32.mrb[0].mxu0
    %v6866 = vpop.f32.mrb[0].mxu0
    %v6867 = vpop.f32.mrb[0].mxu0
    %6868 = vdwg.mxu0
    %v6869 = vadd.f32 %v6704, %v6783
    %v6870 = vadd.f32 %v6705, %v6785
    %v6871 = vadd.f32 %v6706, %v6864
    %v6872 = vmul.f32 %v6869, 0.5
    %v6873 = vmul.f32 %v6870, 0.5
    %v6874 = vmul.f32 %v6871, 0.5
    %v6875 = vtanh.pop %v6872
    %v6876 = vtanh.pop %v6873
    %v6877 = vtanh.pop %v6874
    %v6878 = vmul.f32 %v6875, 0.5
    %v6879 = vmul.f32 %v6876, 0.5
    %v6880 = vmul.f32 %v6877, 0.5
    %v6881 = vadd.f32 %v6878, 0.5
    %v6882 = vadd.f32 %v6879, 0.5
    %v6883 = vadd.f32 %v6880, 0.5
    %v6884 = vld [vmem:[#allocation2 + $0x210] sm:$0xff]
    %v6885 = vld [vmem:[#allocation2 + $0x218] sm:$0xff]
    %v6886 = vld [vmem:[#allocation2 + $0x220] sm:$0xff]
    %6887 = vmatprep.subr.bf16.mxu0 %v3099
    %6888 = vmatpush1.bf16.msra.mxu0 %v3098
    %6889 = vmatprep.subr.bf16.mxu0 %v3102
    %6890 = vmatpush1.bf16.msra.mxu0 %v3101
    %6891 = vmatprep.subr.bf16.mxu0 %v3105
    %6892 = vmatpush1.bf16.msra.mxu0 %v3104
    %6893 = vmatprep.subr.bf16.mxu0 %v3108
    %6894 = vmatpush1.bf16.msra.mxu0 %v3107
    %6895 = vmatprep.subr.bf16.mxu0 %v3111
    %6896 = vmatpush1.bf16.msra.mxu0 %v3110
    %6897 = vmatprep.subr.bf16.mxu0 %v3114
    %6898 = vmatpush1.bf16.msra.mxu0 %v3113
    %6899 = vmatprep.subr.bf16.mxu0 %v3117
    %6900 = vmatpush1.bf16.msra.mxu0 %v3116
    %6901 = vmatprep.subr.bf16.mxu0 %v3120
    %6902 = vmatpush1.bf16.msra.mxu0 %v3119
    %6903 = vmatprep.subr.bf16.mxu0 %v3123
    %6904 = vmatpush1.bf16.msra.mxu0 %v3122
    %6905 = vmatprep.subr.bf16.mxu0 %v3126
    %6906 = vmatpush1.bf16.msra.mxu0 %v3125
    %6907 = vmatprep.subr.bf16.mxu0 %v3129
    %6908 = vmatpush1.bf16.msra.mxu0 %v3128
    %6909 = vmatprep.subr.bf16.mxu0 %v3132
    %6910 = vmatpush1.bf16.msra.mxu0 %v3131
    %6911 = vmatprep.subr.bf16.mxu0 %v3135
    %6912 = vmatpush1.bf16.msra.mxu0 %v3134
    %6913 = vmatprep.subr.bf16.mxu0 %v3138
    %6914 = vmatpush1.bf16.msra.mxu0 %v3137
    %6915 = vmatprep.subr.bf16.mxu0 %v3141
    %6916 = vmatpush1.bf16.msra.mxu0 %v3140
    %6917 = vmatprep.subr.bf16.mxu0 %v3144
    %6918 = vmatpush1.bf16.msra.mxu0 %v3143
    %6919 = vmatprep.mubr.bf16.mxu0 %v6519
    %6920 = vmatmul.mubr.bf16.gmra.mrb[0].mxu0 %v6518
    %v6921 = vpop.f32.mrb[0].mxu0
    %v6922 = vadd.f32 0.0, %v6921
    %v6923 = vpop.f32.mrb[0].mxu0
    %v6924 = vadd.f32 0.0, %v6923
    %v6925 = vpop.f32.mrb[0].mxu0
    %v6926 = vpop.f32.mrb[0].mxu0
    %6927 = vdwg.mxu0
    %6928 = vmatprep.subr.bf16.mxu0 %v3147
    %6929 = vmatpush1.bf16.msra.mxu0 %v3146
    %6930 = vmatprep.subr.bf16.mxu0 %v3150
    %6931 = vmatpush1.bf16.msra.mxu0 %v3149
    %6932 = vmatprep.subr.bf16.mxu0 %v3153
    %6933 = vmatpush1.bf16.msra.mxu0 %v3152
    %6934 = vmatprep.subr.bf16.mxu0 %v3156
    %6935 = vmatpush1.bf16.msra.mxu0 %v3155
    %6936 = vmatprep.subr.bf16.mxu0 %v3159
    %6937 = vmatpush1.bf16.msra.mxu0 %v3158
    %6938 = vmatprep.subr.bf16.mxu0 %v3162
    %6939 = vmatpush1.bf16.msra.mxu0 %v3161
    %6940 = vmatprep.subr.bf16.mxu0 %v3165
    %6941 = vmatpush1.bf16.msra.mxu0 %v3164
    %6942 = vmatprep.subr.bf16.mxu0 %v3168
    %6943 = vmatpush1.bf16.msra.mxu0 %v3167
    %6944 = vmatprep.subr.bf16.mxu0 0
    %6945 = vmatpush1.bf16.msra.mxu0 0
    %6946 = vmatprep.subr.bf16.mxu0 0
    %6947 = vmatpush1.bf16.msra.mxu0 0
    %6948 = vmatprep.subr.bf16.mxu0 0
    %6949 = vmatpush1.bf16.msra.mxu0 0
    %6950 = vmatprep.subr.bf16.mxu0 0
    %6951 = vmatpush1.bf16.msra.mxu0 0
    %6952 = vmatprep.subr.bf16.mxu0 0
    %6953 = vmatpush1.bf16.msra.mxu0 0
    %6954 = vmatprep.subr.bf16.mxu0 0
    %6955 = vmatpush1.bf16.msra.mxu0 0
    %6956 = vmatprep.subr.bf16.mxu0 0
    %6957 = vmatpush1.bf16.msra.mxu0 0
    %6958 = vmatprep.subr.bf16.mxu0 0
    %6959 = vmatpush1.bf16.msra.mxu0 0
    %6960 = vmatprep.mubr.bf16.mxu0 0
    %6961 = vmatmul.mubr.bf16.gmra.mrb[0].mxu0 %v6520
    %v6962 = vpop.f32.mrb[0].mxu0
    %v6963 = vadd.f32 %v6922, %v6962
    %v6964 = vpop.f32.mrb[0].mxu0
    %v6965 = vadd.f32 %v6924, %v6964
    %v6966 = vpop.f32.mrb[0].mxu0
    %v6967 = vpop.f32.mrb[0].mxu0
    %6968 = vdwg.mxu0
    %6969 = vmatprep.subr.bf16.mxu0 0
    %6970 = vmatpush1.bf16.msra.mxu0 %v3100
    %6971 = vmatprep.subr.bf16.mxu0 0
    %6972 = vmatpush1.bf16.msra.mxu0 %v3103
    %6973 = vmatprep.subr.bf16.mxu0 0
    %6974 = vmatpush1.bf16.msra.mxu0 %v3106
    %6975 = vmatprep.subr.bf16.mxu0 0
    %6976 = vmatpush1.bf16.msra.mxu0 %v3109
    %6977 = vmatprep.subr.bf16.mxu0 0
    %6978 = vmatpush1.bf16.msra.mxu0 %v3112
    %6979 = vmatprep.subr.bf16.mxu0 0
    %6980 = vmatpush1.bf16.msra.mxu0 %v3115
    %6981 = vmatprep.subr.bf16.mxu0 0
    %6982 = vmatpush1.bf16.msra.mxu0 %v3118
    %6983 = vmatprep.subr.bf16.mxu0 0
    %6984 = vmatpush1.bf16.msra.mxu0 %v3121
    %6985 = vmatprep.subr.bf16.mxu0 0
    %6986 = vmatpush1.bf16.msra.mxu0 %v3124
    %6987 = vmatprep.subr.bf16.mxu0 0
    %6988 = vmatpush1.bf16.msra.mxu0 %v3127
    %6989 = vmatprep.subr.bf16.mxu0 0
    %6990 = vmatpush1.bf16.msra.mxu0 %v3130
    %6991 = vmatprep.subr.bf16.mxu0 0
    %6992 = vmatpush1.bf16.msra.mxu0 %v3133
    %6993 = vmatprep.subr.bf16.mxu0 0
    %6994 = vmatpush1.bf16.msra.mxu0 %v3136
    %6995 = vmatprep.subr.bf16.mxu0 0
    %6996 = vmatpush1.bf16.msra.mxu0 %v3139
    %6997 = vmatprep.subr.bf16.mxu0 0
    %6998 = vmatpush1.bf16.msra.mxu0 %v3142
    %6999 = vmatprep.subr.bf16.mxu0 0
    %7000 = vmatpush1.bf16.msra.mxu0 %v3145
    %7001 = vmatprep.mubr.bf16.mxu0 %v6519
    %7002 = vmatmul.mubr.bf16.gmra.mrb[0].mxu0 %v6518
    %v7003 = vpop.f32.mrb[0].mxu0
    %v7004 = vadd.f32 0.0, %v7003
    %v7005 = vpop.f32.mrb[0].mxu0
    %v7006 = vpop.f32.mrb[0].mxu0
    %v7007 = vpop.f32.mrb[0].mxu0
    %7008 = vdwg.mxu0
    %7009 = vmatprep.subr.bf16.mxu0 0
    %7010 = vmatpush1.bf16.msra.mxu0 %v3148
    %7011 = vmatprep.subr.bf16.mxu0 0
    %7012 = vmatpush1.bf16.msra.mxu0 %v3151
    %7013 = vmatprep.subr.bf16.mxu0 0
    %7014 = vmatpush1.bf16.msra.mxu0 %v3154
    %7015 = vmatprep.subr.bf16.mxu0 0
    %7016 = vmatpush1.bf16.msra.mxu0 %v3157
    %7017 = vmatprep.subr.bf16.mxu0 0
    %7018 = vmatpush1.bf16.msra.mxu0 %v3160
    %7019 = vmatprep.subr.bf16.mxu0 0
    %7020 = vmatpush1.bf16.msra.mxu0 %v3163
    %7021 = vmatprep.subr.bf16.mxu0 0
    %7022 = vmatpush1.bf16.msra.mxu0 %v3166
    %7023 = vmatprep.subr.bf16.mxu0 0
    %7024 = vmatpush1.bf16.msra.mxu0 %v3169
    %7025 = vmatprep.subr.bf16.mxu0 0
    %7026 = vmatpush1.bf16.msra.mxu0 0
    %7027 = vmatprep.subr.bf16.mxu0 0
    %7028 = vmatpush1.bf16.msra.mxu0 0
    %7029 = vmatprep.subr.bf16.mxu0 0
    %7030 = vmatpush1.bf16.msra.mxu0 0
    %7031 = vmatprep.subr.bf16.mxu0 0
    %7032 = vmatpush1.bf16.msra.mxu0 0
    %7033 = vmatprep.subr.bf16.mxu0 0
    %7034 = vmatpush1.bf16.msra.mxu0 0
    %7035 = vmatprep.subr.bf16.mxu0 0
    %7036 = vmatpush1.bf16.msra.mxu0 0
    %7037 = vmatprep.subr.bf16.mxu0 0
    %7038 = vmatpush1.bf16.msra.mxu0 0
    %7039 = vmatprep.subr.bf16.mxu0 0
    %7040 = vmatpush1.bf16.msra.mxu0 0
    %7041 = vmatprep.mubr.bf16.mxu0 0
    %7042 = vmatmul.mubr.bf16.gmra.mrb[0].mxu0 %v6520
    %v7043 = vpop.f32.mrb[0].mxu0
    %v7044 = vadd.f32 %v7004, %v7043
    %v7045 = vpop.f32.mrb[0].mxu0
    %v7046 = vpop.f32.mrb[0].mxu0
    %v7047 = vpop.f32.mrb[0].mxu0
    %7048 = vdwg.mxu0
    %v7049 = vadd.f32 %v6884, %v6963
    %v7050 = vadd.f32 %v6885, %v6965
    %v7051 = vadd.f32 %v6886, %v7044
    %v7052 = vtanh.pop %v7049
    %v7053 = vtanh.pop %v7050
    %v7054 = vtanh.pop %v7051
    %v7055 = vmul.f32 %v6881, %v7052
    %v7056 = vmul.f32 %v6882, %v7053
    %v7057 = vmul.f32 %v6883, %v7054
    %v7058 = vadd.f32 %v6701, %v7055
    %v7059 = vadd.f32 %v6702, %v7056
    %v7060 = vadd.f32 %v6703, %v7057
    %v7061 = vld [vmem:[#allocation2 + $0x228] sm:$0xff]
    %v7062 = vld [vmem:[#allocation2 + $0x230] sm:$0xff]
    %v7063 = vld [vmem:[#allocation2 + $0x238] sm:$0xff]
    %7064 = vmatprep.subr.bf16.mxu0 %v3348
    %7065 = vmatpush1.bf16.msra.mxu0 %v3347
    %7066 = vmatprep.subr.bf16.mxu0 %v3351
    %7067 = vmatpush1.bf16.msra.mxu0 %v3350
    %7068 = vmatprep.subr.bf16.mxu0 %v3354
    %7069 = vmatpush1.bf16.msra.mxu0 %v3353
    %7070 = vmatprep.subr.bf16.mxu0 %v3357
    %7071 = vmatpush1.bf16.msra.mxu0 %v3356
    %7072 = vmatprep.subr.bf16.mxu0 %v3360
    %7073 = vmatpush1.bf16.msra.mxu0 %v3359
    %7074 = vmatprep.subr.bf16.mxu0 %v3363
    %7075 = vmatpush1.bf16.msra.mxu0 %v3362
    %7076 = vmatprep.subr.bf16.mxu0 %v3366
    %7077 = vmatpush1.bf16.msra.mxu0 %v3365
    %7078 = vmatprep.subr.bf16.mxu0 %v3369
    %7079 = vmatpush1.bf16.msra.mxu0 %v3368
    %7080 = vmatprep.subr.bf16.mxu0 %v3372
    %7081 = vmatpush1.bf16.msra.mxu0 %v3371
    %7082 = vmatprep.subr.bf16.mxu0 %v3375
    %7083 = vmatpush1.bf16.msra.mxu0 %v3374
    %7084 = vmatprep.subr.bf16.mxu0 %v3378
    %7085 = vmatpush1.bf16.msra.mxu0 %v3377
    %7086 = vmatprep.subr.bf16.mxu0 %v3381
    %7087 = vmatpush1.bf16.msra.mxu0 %v3380
    %7088 = vmatprep.subr.bf16.mxu0 %v3384
    %7089 = vmatpush1.bf16.msra.mxu0 %v3383
    %7090 = vmatprep.subr.bf16.mxu0 %v3387
    %7091 = vmatpush1.bf16.msra.mxu0 %v3386
    %7092 = vmatprep.subr.bf16.mxu0 %v3390
    %7093 = vmatpush1.bf16.msra.mxu0 %v3389
    %7094 = vmatprep.subr.bf16.mxu0 %v3393
    %7095 = vmatpush1.bf16.msra.mxu0 %v3392
    %7096 = vmatprep.mubr.bf16.mxu0 %v6519
    %7097 = vmatmul.mubr.bf16.gmra.mrb[0].mxu0 %v6518
    %v7098 = vpop.f32.mrb[0].mxu0
    %v7099 = vadd.f32 0.0, %v7098
    %v7100 = vpop.f32.mrb[0].mxu0
    %v7101 = vadd.f32 0.0, %v7100
    %v7102 = vpop.f32.mrb[0].mxu0
    %v7103 = vpop.f32.mrb[0].mxu0
    %7104 = vdwg.mxu0
    %7105 = vmatprep.subr.bf16.mxu0 %v3396
    %7106 = vmatpush1.bf16.msra.mxu0 %v3395
    %7107 = vmatprep.subr.bf16.mxu0 %v3399
    %7108 = vmatpush1.bf16.msra.mxu0 %v3398
    %7109 = vmatprep.subr.bf16.mxu0 %v3402
    %7110 = vmatpush1.bf16.msra.mxu0 %v3401
    %7111 = vmatprep.subr.bf16.mxu0 %v3405
    %7112 = vmatpush1.bf16.msra.mxu0 %v3404
    %7113 = vmatprep.subr.bf16.mxu0 %v3408
    %7114 = vmatpush1.bf16.msra.mxu0 %v3407
    %7115 = vmatprep.subr.bf16.mxu0 %v3411
    %7116 = vmatpush1.bf16.msra.mxu0 %v3410
    %7117 = vmatprep.subr.bf16.mxu0 %v3414
    %7118 = vmatpush1.bf16.msra.mxu0 %v3413
    %7119 = vmatprep.subr.bf16.mxu0 %v3417
    %7120 = vmatpush1.bf16.msra.mxu0 %v3416
    %7121 = vmatprep.subr.bf16.mxu0 0
    %7122 = vmatpush1.bf16.msra.mxu0 0
    %7123 = vmatprep.subr.bf16.mxu0 0
    %7124 = vmatpush1.bf16.msra.mxu0 0
    %7125 = vmatprep.subr.bf16.mxu0 0
    %7126 = vmatpush1.bf16.msra.mxu0 0
    %7127 = vmatprep.subr.bf16.mxu0 0
    %7128 = vmatpush1.bf16.msra.mxu0 0
    %7129 = vmatprep.subr.bf16.mxu0 0
    %7130 = vmatpush1.bf16.msra.mxu0 0
    %7131 = vmatprep.subr.bf16.mxu0 0
    %7132 = vmatpush1.bf16.msra.mxu0 0
    %7133 = vmatprep.subr.bf16.mxu0 0
    %7134 = vmatpush1.bf16.msra.mxu0 0
    %7135 = vmatprep.subr.bf16.mxu0 0
    %7136 = vmatpush1.bf16.msra.mxu0 0
    %7137 = vmatprep.mubr.bf16.mxu0 0
    %7138 = vmatmul.mubr.bf16.gmra.mrb[0].mxu0 %v6520
    %v7139 = vpop.f32.mrb[0].mxu0
    %v7140 = vadd.f32 %v7099, %v7139
    %v7141 = vpop.f32.mrb[0].mxu0
    %v7142 = vadd.f32 %v7101, %v7141
    %v7143 = vpop.f32.mrb[0].mxu0
    %v7144 = vpop.f32.mrb[0].mxu0
    %7145 = vdwg.mxu0
    %7146 = vmatprep.subr.bf16.mxu0 0
    %7147 = vmatpush1.bf16.msra.mxu0 %v3349
    %7148 = vmatprep.subr.bf16.mxu0 0
    %7149 = vmatpush1.bf16.msra.mxu0 %v3352
    %7150 = vmatprep.subr.bf16.mxu0 0
    %7151 = vmatpush1.bf16.msra.mxu0 %v3355
    %7152 = vmatprep.subr.bf16.mxu0 0
    %7153 = vmatpush1.bf16.msra.mxu0 %v3358
    %7154 = vmatprep.subr.bf16.mxu0 0
    %7155 = vmatpush1.bf16.msra.mxu0 %v3361
    %7156 = vmatprep.subr.bf16.mxu0 0
    %7157 = vmatpush1.bf16.msra.mxu0 %v3364
    %7158 = vmatprep.subr.bf16.mxu0 0
    %7159 = vmatpush1.bf16.msra.mxu0 %v3367
    %7160 = vmatprep.subr.bf16.mxu0 0
    %7161 = vmatpush1.bf16.msra.mxu0 %v3370
    %7162 = vmatprep.subr.bf16.mxu0 0
    %7163 = vmatpush1.bf16.msra.mxu0 %v3373
    %7164 = vmatprep.subr.bf16.mxu0 0
    %7165 = vmatpush1.bf16.msra.mxu0 %v3376
    %7166 = vmatprep.subr.bf16.mxu0 0
    %7167 = vmatpush1.bf16.msra.mxu0 %v3379
    %7168 = vmatprep.subr.bf16.mxu0 0
    %7169 = vmatpush1.bf16.msra.mxu0 %v3382
    %7170 = vmatprep.subr.bf16.mxu0 0
    %7171 = vmatpush1.bf16.msra.mxu0 %v3385
    %7172 = vmatprep.subr.bf16.mxu0 0
    %7173 = vmatpush1.bf16.msra.mxu0 %v3388
    %7174 = vmatprep.subr.bf16.mxu0 0
    %7175 = vmatpush1.bf16.msra.mxu0 %v3391
    %7176 = vmatprep.subr.bf16.mxu0 0
    %7177 = vmatpush1.bf16.msra.mxu0 %v3394
    %7178 = vmatprep.mubr.bf16.mxu0 %v6519
    %7179 = vmatmul.mubr.bf16.gmra.mrb[0].mxu0 %v6518
    %v7180 = vpop.f32.mrb[0].mxu0
    %v7181 = vadd.f32 0.0, %v7180
    %v7182 = vpop.f32.mrb[0].mxu0
    %v7183 = vpop.f32.mrb[0].mxu0
    %v7184 = vpop.f32.mrb[0].mxu0
    %7185 = vdwg.mxu0
    %7186 = vmatprep.subr.bf16.mxu0 0
    %7187 = vmatpush1.bf16.msra.mxu0 %v3397
    %7188 = vmatprep.subr.bf16.mxu0 0
    %7189 = vmatpush1.bf16.msra.mxu0 %v3400
    %7190 = vmatprep.subr.bf16.mxu0 0
    %7191 = vmatpush1.bf16.msra.mxu0 %v3403
    %7192 = vmatprep.subr.bf16.mxu0 0
    %7193 = vmatpush1.bf16.msra.mxu0 %v3406
    %7194 = vmatprep.subr.bf16.mxu0 0
    %7195 = vmatpush1.bf16.msra.mxu0 %v3409
    %7196 = vmatprep.subr.bf16.mxu0 0
    %7197 = vmatpush1.bf16.msra.mxu0 %v3412
    %7198 = vmatprep.subr.bf16.mxu0 0
    %7199 = vmatpush1.bf16.msra.mxu0 %v3415
    %7200 = vmatprep.subr.bf16.mxu0 0
    %7201 = vmatpush1.bf16.msra.mxu0 %v3418
    %7202 = vmatprep.subr.bf16.mxu0 0
    %7203 = vmatpush1.bf16.msra.mxu0 0
    %7204 = vmatprep.subr.bf16.mxu0 0
    %7205 = vmatpush1.bf16.msra.mxu0 0
    %7206 = vmatprep.subr.bf16.mxu0 0
    %7207 = vmatpush1.bf16.msra.mxu0 0
    %7208 = vmatprep.subr.bf16.mxu0 0
    %7209 = vmatpush1.bf16.msra.mxu0 0
    %7210 = vmatprep.subr.bf16.mxu0 0
    %7211 = vmatpush1.bf16.msra.mxu0 0
    %7212 = vmatprep.subr.bf16.mxu0 0
    %7213 = vmatpush1.bf16.msra.mxu0 0
    %7214 = vmatprep.subr.bf16.mxu0 0
    %7215 = vmatpush1.bf16.msra.mxu0 0
    %7216 = vmatprep.subr.bf16.mxu0 0
    %7217 = vmatpush1.bf16.msra.mxu0 0
    %7218 = vmatprep.mubr.bf16.mxu0 0
    %7219 = vmatmul.mubr.bf16.gmra.mrb[0].mxu0 %v6520
    %v7220 = vpop.f32.mrb[0].mxu0
    %v7221 = vadd.f32 %v7181, %v7220
    %v7222 = vpop.f32.mrb[0].mxu0
    %v7223 = vpop.f32.mrb[0].mxu0
    %v7224 = vpop.f32.mrb[0].mxu0
    %7225 = vdwg.mxu0
    %v7226 = vadd.f32 %v7061, %v7140
    %v7227 = vadd.f32 %v7062, %v7142
    %v7228 = vadd.f32 %v7063, %v7221
    %v7229 = vmul.f32 %v7226, 0.5
    %v7230 = vmul.f32 %v7227, 0.5
    %v7231 = vmul.f32 %v7228, 0.5
    %v7232 = vtanh.pop %v7229
    %v7233 = vtanh.pop %v7230
    %v7234 = vtanh.pop %v7231
    %v7235 = vmul.f32 %v7232, 0.5
    %v7236 = vmul.f32 %v7233, 0.5
    %v7237 = vmul.f32 %v7234, 0.5
    %v7238 = vadd.f32 %v7235, 0.5
    %v7239 = vadd.f32 %v7236, 0.5
    %v7240 = vadd.f32 %v7237, 0.5
    %v7241 = vtanh.pop %v7058
    %v7242 = vtanh.pop %v7059
    %v7243 = vtanh.pop %v7060
    %v7244 = vmul.f32 %v7238, %v7241
    %v7245 = vmul.f32 %v7239, %v7242
    %v7246 = vmul.f32 %v7240, %v7243
    %v7247 = vpack.c.bf16 %v7244, %v7244
    %v7248 = vpack.c.bf16 %v7245, %v7245
    %v7249 = vpack.c.bf16 %v7246, %v7246
    %v7250 = vld [vmem:[#allocation2 + $0x258] sm:$0xff]
    %v7251 = vld [vmem:[#allocation2 + $0x260] sm:$0xff]
    %v7252 = vld [vmem:[#allocation2 + $0x268] sm:$0xff]
    %7253 = vmatprep.subr.bf16.mxu0 %v2592
    %7254 = vmatpush1.bf16.msra.mxu0 %v2591
    %7255 = vmatprep.subr.bf16.mxu0 %v2595
    %7256 = vmatpush1.bf16.msra.mxu0 %v2594
    %7257 = vmatprep.subr.bf16.mxu0 %v2598
    %7258 = vmatpush1.bf16.msra.mxu0 %v2597
    %7259 = vmatprep.subr.bf16.mxu0 %v2601
    %7260 = vmatpush1.bf16.msra.mxu0 %v2600
    %7261 = vmatprep.subr.bf16.mxu0 %v2604
    %7262 = vmatpush1.bf16.msra.mxu0 %v2603
    %7263 = vmatprep.subr.bf16.mxu0 %v2607
    %7264 = vmatpush1.bf16.msra.mxu0 %v2606
    %7265 = vmatprep.subr.bf16.mxu0 %v2610
    %7266 = vmatpush1.bf16.msra.mxu0 %v2609
    %7267 = vmatprep.subr.bf16.mxu0 %v2613
    %7268 = vmatpush1.bf16.msra.mxu0 %v2612
    %7269 = vmatprep.subr.bf16.mxu0 %v2616
    %7270 = vmatpush1.bf16.msra.mxu0 %v2615
    %7271 = vmatprep.subr.bf16.mxu0 %v2619
    %7272 = vmatpush1.bf16.msra.mxu0 %v2618
    %7273 = vmatprep.subr.bf16.mxu0 %v2622
    %7274 = vmatpush1.bf16.msra.mxu0 %v2621
    %7275 = vmatprep.subr.bf16.mxu0 %v2625
    %7276 = vmatpush1.bf16.msra.mxu0 %v2624
    %7277 = vmatprep.subr.bf16.mxu0 %v2628
    %7278 = vmatpush1.bf16.msra.mxu0 %v2627
    %7279 = vmatprep.subr.bf16.mxu0 %v2631
    %7280 = vmatpush1.bf16.msra.mxu0 %v2630
    %7281 = vmatprep.subr.bf16.mxu0 %v2634
    %7282 = vmatpush1.bf16.msra.mxu0 %v2633
    %7283 = vmatprep.subr.bf16.mxu0 %v2637
    %7284 = vmatpush1.bf16.msra.mxu0 %v2636
    %7285 = vmatprep.mubr.bf16.mxu0 %v7248
    %7286 = vmatmul.mubr.bf16.gmra.mrb[0].mxu0 %v7247
    %v7287 = vpop.f32.mrb[0].mxu0
    %v7288 = vadd.f32 0.0, %v7287
    %v7289 = vpop.f32.mrb[0].mxu0
    %v7290 = vadd.f32 0.0, %v7289
    %v7291 = vpop.f32.mrb[0].mxu0
    %v7292 = vpop.f32.mrb[0].mxu0
    %7293 = vdwg.mxu0
    %7294 = vmatprep.subr.bf16.mxu0 %v2640
    %7295 = vmatpush1.bf16.msra.mxu0 %v2639
    %7296 = vmatprep.subr.bf16.mxu0 %v2643
    %7297 = vmatpush1.bf16.msra.mxu0 %v2642
    %7298 = vmatprep.subr.bf16.mxu0 %v2646
    %7299 = vmatpush1.bf16.msra.mxu0 %v2645
    %7300 = vmatprep.subr.bf16.mxu0 %v2649
    %7301 = vmatpush1.bf16.msra.mxu0 %v2648
    %7302 = vmatprep.subr.bf16.mxu0 %v2652
    %7303 = vmatpush1.bf16.msra.mxu0 %v2651
    %7304 = vmatprep.subr.bf16.mxu0 %v2655
    %7305 = vmatpush1.bf16.msra.mxu0 %v2654
    %7306 = vmatprep.subr.bf16.mxu0 %v2658
    %7307 = vmatpush1.bf16.msra.mxu0 %v2657
    %7308 = vmatprep.subr.bf16.mxu0 %v2661
    %7309 = vmatpush1.bf16.msra.mxu0 %v2660
    %7310 = vmatprep.subr.bf16.mxu0 0
    %7311 = vmatpush1.bf16.msra.mxu0 0
    %7312 = vmatprep.subr.bf16.mxu0 0
    %7313 = vmatpush1.bf16.msra.mxu0 0
    %7314 = vmatprep.subr.bf16.mxu0 0
    %7315 = vmatpush1.bf16.msra.mxu0 0
    %7316 = vmatprep.subr.bf16.mxu0 0
    %7317 = vmatpush1.bf16.msra.mxu0 0
    %7318 = vmatprep.subr.bf16.mxu0 0
    %7319 = vmatpush1.bf16.msra.mxu0 0
    %7320 = vmatprep.subr.bf16.mxu0 0
    %7321 = vmatpush1.bf16.msra.mxu0 0
    %7322 = vmatprep.subr.bf16.mxu0 0
    %7323 = vmatpush1.bf16.msra.mxu0 0
    %7324 = vmatprep.subr.bf16.mxu0 0
    %7325 = vmatpush1.bf16.msra.mxu0 0
    %7326 = vmatprep.mubr.bf16.mxu0 0
    %7327 = vmatmul.mubr.bf16.gmra.mrb[0].mxu0 %v7249
    %v7328 = vpop.f32.mrb[0].mxu0
    %v7329 = vadd.f32 %v7288, %v7328
    %v7330 = vpop.f32.mrb[0].mxu0
    %v7331 = vadd.f32 %v7290, %v7330
    %v7332 = vpop.f32.mrb[0].mxu0
    %v7333 = vpop.f32.mrb[0].mxu0
    %7334 = vdwg.mxu0
    %7335 = vmatprep.subr.bf16.mxu0 0
    %7336 = vmatpush1.bf16.msra.mxu0 %v2593
    %7337 = vmatprep.subr.bf16.mxu0 0
    %7338 = vmatpush1.bf16.msra.mxu0 %v2596
    %7339 = vmatprep.subr.bf16.mxu0 0
    %7340 = vmatpush1.bf16.msra.mxu0 %v2599
    %7341 = vmatprep.subr.bf16.mxu0 0
    %7342 = vmatpush1.bf16.msra.mxu0 %v2602
    %7343 = vmatprep.subr.bf16.mxu0 0
    %7344 = vmatpush1.bf16.msra.mxu0 %v2605
    %7345 = vmatprep.subr.bf16.mxu0 0
    %7346 = vmatpush1.bf16.msra.mxu0 %v2608
    %7347 = vmatprep.subr.bf16.mxu0 0
    %7348 = vmatpush1.bf16.msra.mxu0 %v2611
    %7349 = vmatprep.subr.bf16.mxu0 0
    %7350 = vmatpush1.bf16.msra.mxu0 %v2614
    %7351 = vmatprep.subr.bf16.mxu0 0
    %7352 = vmatpush1.bf16.msra.mxu0 %v2617
    %7353 = vmatprep.subr.bf16.mxu0 0
    %7354 = vmatpush1.bf16.msra.mxu0 %v2620
    %7355 = vmatprep.subr.bf16.mxu0 0
    %7356 = vmatpush1.bf16.msra.mxu0 %v2623
    %7357 = vmatprep.subr.bf16.mxu0 0
    %7358 = vmatpush1.bf16.msra.mxu0 %v2626
    %7359 = vmatprep.subr.bf16.mxu0 0
    %7360 = vmatpush1.bf16.msra.mxu0 %v2629
    %7361 = vmatprep.subr.bf16.mxu0 0
    %7362 = vmatpush1.bf16.msra.mxu0 %v2632
    %7363 = vmatprep.subr.bf16.mxu0 0
    %7364 = vmatpush1.bf16.msra.mxu0 %v2635
    %7365 = vmatprep.subr.bf16.mxu0 0
    %7366 = vmatpush1.bf16.msra.mxu0 %v2638
    %7367 = vmatprep.mubr.bf16.mxu0 %v7248
    %7368 = vmatmul.mubr.bf16.gmra.mrb[0].mxu0 %v7247
    %v7369 = vpop.f32.mrb[0].mxu0
    %v7370 = vadd.f32 0.0, %v7369
    %v7371 = vpop.f32.mrb[0].mxu0
    %v7372 = vpop.f32.mrb[0].mxu0
    %v7373 = vpop.f32.mrb[0].mxu0
    %7374 = vdwg.mxu0
    %7375 = vmatprep.subr.bf16.mxu0 0
    %7376 = vmatpush1.bf16.msra.mxu0 %v2641
    %7377 = vmatprep.subr.bf16.mxu0 0
    %7378 = vmatpush1.bf16.msra.mxu0 %v2644
    %7379 = vmatprep.subr.bf16.mxu0 0
    %7380 = vmatpush1.bf16.msra.mxu0 %v2647
    %7381 = vmatprep.subr.bf16.mxu0 0
    %7382 = vmatpush1.bf16.msra.mxu0 %v2650
    %7383 = vmatprep.subr.bf16.mxu0 0
    %7384 = vmatpush1.bf16.msra.mxu0 %v2653
    %7385 = vmatprep.subr.bf16.mxu0 0
    %7386 = vmatpush1.bf16.msra.mxu0 %v2656
    %7387 = vmatprep.subr.bf16.mxu0 0
    %7388 = vmatpush1.bf16.msra.mxu0 %v2659
    %7389 = vmatprep.subr.bf16.mxu0 0
    %7390 = vmatpush1.bf16.msra.mxu0 %v2662
    %7391 = vmatprep.subr.bf16.mxu0 0
    %7392 = vmatpush1.bf16.msra.mxu0 0
    %7393 = vmatprep.subr.bf16.mxu0 0
    %7394 = vmatpush1.bf16.msra.mxu0 0
    %7395 = vmatprep.subr.bf16.mxu0 0
    %7396 = vmatpush1.bf16.msra.mxu0 0
    %7397 = vmatprep.subr.bf16.mxu0 0
    %7398 = vmatpush1.bf16.msra.mxu0 0
    %7399 = vmatprep.subr.bf16.mxu0 0
    %7400 = vmatpush1.bf16.msra.mxu0 0
    %7401 = vmatprep.subr.bf16.mxu0 0
    %7402 = vmatpush1.bf16.msra.mxu0 0
    %7403 = vmatprep.subr.bf16.mxu0 0
    %7404 = vmatpush1.bf16.msra.mxu0 0
    %7405 = vmatprep.subr.bf16.mxu0 0
    %7406 = vmatpush1.bf16.msra.mxu0 0
    %7407 = vmatprep.mubr.bf16.mxu0 0
    %7408 = vmatmul.mubr.bf16.gmra.mrb[0].mxu0 %v7249
    %v7409 = vpop.f32.mrb[0].mxu0
    %v7410 = vadd.f32 %v7370, %v7409
    %v7411 = vpop.f32.mrb[0].mxu0
    %v7412 = vpop.f32.mrb[0].mxu0
    %v7413 = vpop.f32.mrb[0].mxu0
    %7414 = vdwg.mxu0
    %v7415 = vadd.f32 %v7250, %v7329
    %v7416 = vadd.f32 %v7251, %v7331
    %v7417 = vadd.f32 %v7252, %v7410
    %v7418 = vmul.f32 %v7415, 0.5
    %v7419 = vmul.f32 %v7416, 0.5
    %v7420 = vmul.f32 %v7417, 0.5
    %v7421 = vtanh.pop %v7418
    %v7422 = vtanh.pop %v7419
    %v7423 = vtanh.pop %v7420
    %v7424 = vmul.f32 %v7421, 0.5
    %v7425 = vmul.f32 %v7422, 0.5
    %v7426 = vmul.f32 %v7423, 0.5
    %v7427 = vadd.f32 %v7424, 0.5
    %v7428 = vadd.f32 %v7425, 0.5
    %v7429 = vadd.f32 %v7426, 0.5
    %v7430 = vmul.f32 %v7427, %v7058
    %v7431 = vmul.f32 %v7428, %v7059
    %v7432 = vmul.f32 %v7429, %v7060
    %v7433 = vld [vmem:[#allocation2 + $0x240] sm:$0xff]
    %v7434 = vld [vmem:[#allocation2 + $0x248] sm:$0xff]
    %v7435 = vld [vmem:[#allocation2 + $0x250] sm:$0xff]
    %7436 = vmatprep.subr.bf16.mxu0 %v2847
    %7437 = vmatpush1.bf16.msra.mxu0 %v2846
    %7438 = vmatprep.subr.bf16.mxu0 %v2850
    %7439 = vmatpush1.bf16.msra.mxu0 %v2849
    %7440 = vmatprep.subr.bf16.mxu0 %v2853
    %7441 = vmatpush1.bf16.msra.mxu0 %v2852
    %7442 = vmatprep.subr.bf16.mxu0 %v2856
    %7443 = vmatpush1.bf16.msra.mxu0 %v2855
    %7444 = vmatprep.subr.bf16.mxu0 %v2859
    %7445 = vmatpush1.bf16.msra.mxu0 %v2858
    %7446 = vmatprep.subr.bf16.mxu0 %v2862
    %7447 = vmatpush1.bf16.msra.mxu0 %v2861
    %7448 = vmatprep.subr.bf16.mxu0 %v2865
    %7449 = vmatpush1.bf16.msra.mxu0 %v2864
    %7450 = vmatprep.subr.bf16.mxu0 %v2868
    %7451 = vmatpush1.bf16.msra.mxu0 %v2867
    %7452 = vmatprep.subr.bf16.mxu0 %v2871
    %7453 = vmatpush1.bf16.msra.mxu0 %v2870
    %7454 = vmatprep.subr.bf16.mxu0 %v2874
    %7455 = vmatpush1.bf16.msra.mxu0 %v2873
    %7456 = vmatprep.subr.bf16.mxu0 %v2877
    %7457 = vmatpush1.bf16.msra.mxu0 %v2876
    %7458 = vmatprep.subr.bf16.mxu0 %v2880
    %7459 = vmatpush1.bf16.msra.mxu0 %v2879
    %7460 = vmatprep.subr.bf16.mxu0 %v2883
    %7461 = vmatpush1.bf16.msra.mxu0 %v2882
    %7462 = vmatprep.subr.bf16.mxu0 %v2886
    %7463 = vmatpush1.bf16.msra.mxu0 %v2885
    %7464 = vmatprep.subr.bf16.mxu0 %v2889
    %7465 = vmatpush1.bf16.msra.mxu0 %v2888
    %7466 = vmatprep.subr.bf16.mxu0 %v2892
    %7467 = vmatpush1.bf16.msra.mxu0 %v2891
    %7468 = vmatprep.mubr.bf16.mxu0 %v7248
    %7469 = vmatmul.mubr.bf16.gmra.mrb[0].mxu0 %v7247
    %v7470 = vpop.f32.mrb[0].mxu0
    %v7471 = vadd.f32 0.0, %v7470
    %v7472 = vpop.f32.mrb[0].mxu0
    %v7473 = vadd.f32 0.0, %v7472
    %v7474 = vpop.f32.mrb[0].mxu0
    %v7475 = vpop.f32.mrb[0].mxu0
    %7476 = vdwg.mxu0
    %7477 = vmatprep.subr.bf16.mxu0 %v2895
    %7478 = vmatpush1.bf16.msra.mxu0 %v2894
    %7479 = vmatprep.subr.bf16.mxu0 %v2898
    %7480 = vmatpush1.bf16.msra.mxu0 %v2897
    %7481 = vmatprep.subr.bf16.mxu0 %v2901
    %7482 = vmatpush1.bf16.msra.mxu0 %v2900
    %7483 = vmatprep.subr.bf16.mxu0 %v2904
    %7484 = vmatpush1.bf16.msra.mxu0 %v2903
    %7485 = vmatprep.subr.bf16.mxu0 %v2907
    %7486 = vmatpush1.bf16.msra.mxu0 %v2906
    %7487 = vmatprep.subr.bf16.mxu0 %v2910
    %7488 = vmatpush1.bf16.msra.mxu0 %v2909
    %7489 = vmatprep.subr.bf16.mxu0 %v2913
    %7490 = vmatpush1.bf16.msra.mxu0 %v2912
    %7491 = vmatprep.subr.bf16.mxu0 %v2916
    %7492 = vmatpush1.bf16.msra.mxu0 %v2915
    %7493 = vmatprep.subr.bf16.mxu0 0
    %7494 = vmatpush1.bf16.msra.mxu0 0
    %7495 = vmatprep.subr.bf16.mxu0 0
    %7496 = vmatpush1.bf16.msra.mxu0 0
    %7497 = vmatprep.subr.bf16.mxu0 0
    %7498 = vmatpush1.bf16.msra.mxu0 0
    %7499 = vmatprep.subr.bf16.mxu0 0
    %7500 = vmatpush1.bf16.msra.mxu0 0
    %7501 = vmatprep.subr.bf16.mxu0 0
    %7502 = vmatpush1.bf16.msra.mxu0 0
    %7503 = vmatprep.subr.bf16.mxu0 0
    %7504 = vmatpush1.bf16.msra.mxu0 0
    %7505 = vmatprep.subr.bf16.mxu0 0
    %7506 = vmatpush1.bf16.msra.mxu0 0
    %7507 = vmatprep.subr.bf16.mxu0 0
    %7508 = vmatpush1.bf16.msra.mxu0 0
    %7509 = vmatprep.mubr.bf16.mxu0 0
    %7510 = vmatmul.mubr.bf16.gmra.mrb[0].mxu0 %v7249
    %v7511 = vpop.f32.mrb[0].mxu0
    %v7512 = vadd.f32 %v7471, %v7511
    %v7513 = vpop.f32.mrb[0].mxu0
    %v7514 = vadd.f32 %v7473, %v7513
    %v7515 = vpop.f32.mrb[0].mxu0
    %v7516 = vpop.f32.mrb[0].mxu0
    %7517 = vdwg.mxu0
    %7518 = vmatprep.subr.bf16.mxu0 0
    %7519 = vmatpush1.bf16.msra.mxu0 %v2848
    %7520 = vmatprep.subr.bf16.mxu0 0
    %7521 = vmatpush1.bf16.msra.mxu0 %v2851
    %7522 = vmatprep.subr.bf16.mxu0 0
    %7523 = vmatpush1.bf16.msra.mxu0 %v2854
    %7524 = vmatprep.subr.bf16.mxu0 0
    %7525 = vmatpush1.bf16.msra.mxu0 %v2857
    %7526 = vmatprep.subr.bf16.mxu0 0
    %7527 = vmatpush1.bf16.msra.mxu0 %v2860
    %7528 = vmatprep.subr.bf16.mxu0 0
    %7529 = vmatpush1.bf16.msra.mxu0 %v2863
    %7530 = vmatprep.subr.bf16.mxu0 0
    %7531 = vmatpush1.bf16.msra.mxu0 %v2866
    %7532 = vmatprep.subr.bf16.mxu0 0
    %7533 = vmatpush1.bf16.msra.mxu0 %v2869
    %7534 = vmatprep.subr.bf16.mxu0 0
    %7535 = vmatpush1.bf16.msra.mxu0 %v2872
    %7536 = vmatprep.subr.bf16.mxu0 0
    %7537 = vmatpush1.bf16.msra.mxu0 %v2875
    %7538 = vmatprep.subr.bf16.mxu0 0
    %7539 = vmatpush1.bf16.msra.mxu0 %v2878
    %7540 = vmatprep.subr.bf16.mxu0 0
    %7541 = vmatpush1.bf16.msra.mxu0 %v2881
    %7542 = vmatprep.subr.bf16.mxu0 0
    %7543 = vmatpush1.bf16.msra.mxu0 %v2884
    %7544 = vmatprep.subr.bf16.mxu0 0
    %7545 = vmatpush1.bf16.msra.mxu0 %v2887
    %7546 = vmatprep.subr.bf16.mxu0 0
    %7547 = vmatpush1.bf16.msra.mxu0 %v2890
    %7548 = vmatprep.subr.bf16.mxu0 0
    %7549 = vmatpush1.bf16.msra.mxu0 %v2893
    %7550 = vmatprep.mubr.bf16.mxu0 %v7248
    %7551 = vmatmul.mubr.bf16.gmra.mrb[0].mxu0 %v7247
    %v7552 = vpop.f32.mrb[0].mxu0
    %v7553 = vadd.f32 0.0, %v7552
    %v7554 = vpop.f32.mrb[0].mxu0
    %v7555 = vpop.f32.mrb[0].mxu0
    %v7556 = vpop.f32.mrb[0].mxu0
    %7557 = vdwg.mxu0
    %7558 = vmatprep.subr.bf16.mxu0 0
    %7559 = vmatpush1.bf16.msra.mxu0 %v2896
    %7560 = vmatprep.subr.bf16.mxu0 0
    %7561 = vmatpush1.bf16.msra.mxu0 %v2899
    %7562 = vmatprep.subr.bf16.mxu0 0
    %7563 = vmatpush1.bf16.msra.mxu0 %v2902
    %7564 = vmatprep.subr.bf16.mxu0 0
    %7565 = vmatpush1.bf16.msra.mxu0 %v2905
    %7566 = vmatprep.subr.bf16.mxu0 0
    %7567 = vmatpush1.bf16.msra.mxu0 %v2908
    %7568 = vmatprep.subr.bf16.mxu0 0
    %7569 = vmatpush1.bf16.msra.mxu0 %v2911
    %7570 = vmatprep.subr.bf16.mxu0 0
    %7571 = vmatpush1.bf16.msra.mxu0 %v2914
    %7572 = vmatprep.subr.bf16.mxu0 0
    %7573 = vmatpush1.bf16.msra.mxu0 %v2917
    %7574 = vmatprep.subr.bf16.mxu0 0
    %7575 = vmatpush1.bf16.msra.mxu0 0
    %7576 = vmatprep.subr.bf16.mxu0 0
    %7577 = vmatpush1.bf16.msra.mxu0 0
    %7578 = vmatprep.subr.bf16.mxu0 0
    %7579 = vmatpush1.bf16.msra.mxu0 0
    %7580 = vmatprep.subr.bf16.mxu0 0
    %7581 = vmatpush1.bf16.msra.mxu0 0
    %7582 = vmatprep.subr.bf16.mxu0 0
    %7583 = vmatpush1.bf16.msra.mxu0 0
    %7584 = vmatprep.subr.bf16.mxu0 0
    %7585 = vmatpush1.bf16.msra.mxu0 0
    %7586 = vmatprep.subr.bf16.mxu0 0
    %7587 = vmatpush1.bf16.msra.mxu0 0
    %7588 = vmatprep.subr.bf16.mxu0 0
    %7589 = vmatpush1.bf16.msra.mxu0 0
    %7590 = vmatprep.mubr.bf16.mxu0 0
    %7591 = vmatmul.mubr.bf16.gmra.mrb[0].mxu0 %v7249
    %v7592 = vpop.f32.mrb[0].mxu0
    %v7593 = vadd.f32 %v7553, %v7592
    %v7594 = vpop.f32.mrb[0].mxu0
    %v7595 = vpop.f32.mrb[0].mxu0
    %v7596 = vpop.f32.mrb[0].mxu0
    %7597 = vdwg.mxu0
    %v7598 = vadd.f32 %v7433, %v7512
    %v7599 = vadd.f32 %v7434, %v7514
    %v7600 = vadd.f32 %v7435, %v7593
    %v7601 = vmul.f32 %v7598, 0.5
    %v7602 = vmul.f32 %v7599, 0.5
    %v7603 = vmul.f32 %v7600, 0.5
    %v7604 = vtanh.pop %v7601
    %v7605 = vtanh.pop %v7602
    %v7606 = vtanh.pop %v7603
    %v7607 = vmul.f32 %v7604, 0.5
    %v7608 = vmul.f32 %v7605, 0.5
    %v7609 = vmul.f32 %v7606, 0.5
    %v7610 = vadd.f32 %v7607, 0.5
    %v7611 = vadd.f32 %v7608, 0.5
    %v7612 = vadd.f32 %v7609, 0.5
    %v7613 = vld [vmem:[#allocation2 + $0x270] sm:$0xff]
    %v7614 = vld [vmem:[#allocation2 + $0x278] sm:$0xff]
    %v7615 = vld [vmem:[#allocation2 + $0x280] sm:$0xff]
    %7616 = vmatprep.subr.bf16.mxu0 %v3099
    %7617 = vmatpush1.bf16.msra.mxu0 %v3098
    %7618 = vmatprep.subr.bf16.mxu0 %v3102
    %7619 = vmatpush1.bf16.msra.mxu0 %v3101
    %7620 = vmatprep.subr.bf16.mxu0 %v3105
    %7621 = vmatpush1.bf16.msra.mxu0 %v3104
    %7622 = vmatprep.subr.bf16.mxu0 %v3108
    %7623 = vmatpush1.bf16.msra.mxu0 %v3107
    %7624 = vmatprep.subr.bf16.mxu0 %v3111
    %7625 = vmatpush1.bf16.msra.mxu0 %v3110
    %7626 = vmatprep.subr.bf16.mxu0 %v3114
    %7627 = vmatpush1.bf16.msra.mxu0 %v3113
    %7628 = vmatprep.subr.bf16.mxu0 %v3117
    %7629 = vmatpush1.bf16.msra.mxu0 %v3116
    %7630 = vmatprep.subr.bf16.mxu0 %v3120
    %7631 = vmatpush1.bf16.msra.mxu0 %v3119
    %7632 = vmatprep.subr.bf16.mxu0 %v3123
    %7633 = vmatpush1.bf16.msra.mxu0 %v3122
    %7634 = vmatprep.subr.bf16.mxu0 %v3126
    %7635 = vmatpush1.bf16.msra.mxu0 %v3125
    %7636 = vmatprep.subr.bf16.mxu0 %v3129
    %7637 = vmatpush1.bf16.msra.mxu0 %v3128
    %7638 = vmatprep.subr.bf16.mxu0 %v3132
    %7639 = vmatpush1.bf16.msra.mxu0 %v3131
    %7640 = vmatprep.subr.bf16.mxu0 %v3135
    %7641 = vmatpush1.bf16.msra.mxu0 %v3134
    %7642 = vmatprep.subr.bf16.mxu0 %v3138
    %7643 = vmatpush1.bf16.msra.mxu0 %v3137
    %7644 = vmatprep.subr.bf16.mxu0 %v3141
    %7645 = vmatpush1.bf16.msra.mxu0 %v3140
    %7646 = vmatprep.subr.bf16.mxu0 %v3144
    %7647 = vmatpush1.bf16.msra.mxu0 %v3143
    %7648 = vmatprep.mubr.bf16.mxu0 %v7248
    %7649 = vmatmul.mubr.bf16.gmra.mrb[0].mxu0 %v7247
    %v7650 = vpop.f32.mrb[0].mxu0
    %v7651 = vadd.f32 0.0, %v7650
    %v7652 = vpop.f32.mrb[0].mxu0
    %v7653 = vadd.f32 0.0, %v7652
    %v7654 = vpop.f32.mrb[0].mxu0
    %v7655 = vpop.f32.mrb[0].mxu0
    %7656 = vdwg.mxu0
    %7657 = vmatprep.subr.bf16.mxu0 %v3147
    %7658 = vmatpush1.bf16.msra.mxu0 %v3146
    %7659 = vmatprep.subr.bf16.mxu0 %v3150
    %7660 = vmatpush1.bf16.msra.mxu0 %v3149
    %7661 = vmatprep.subr.bf16.mxu0 %v3153
    %7662 = vmatpush1.bf16.msra.mxu0 %v3152
    %7663 = vmatprep.subr.bf16.mxu0 %v3156
    %7664 = vmatpush1.bf16.msra.mxu0 %v3155
    %7665 = vmatprep.subr.bf16.mxu0 %v3159
    %7666 = vmatpush1.bf16.msra.mxu0 %v3158
    %7667 = vmatprep.subr.bf16.mxu0 %v3162
    %7668 = vmatpush1.bf16.msra.mxu0 %v3161
    %7669 = vmatprep.subr.bf16.mxu0 %v3165
    %7670 = vmatpush1.bf16.msra.mxu0 %v3164
    %7671 = vmatprep.subr.bf16.mxu0 %v3168
    %7672 = vmatpush1.bf16.msra.mxu0 %v3167
    %7673 = vmatprep.subr.bf16.mxu0 0
    %7674 = vmatpush1.bf16.msra.mxu0 0
    %7675 = vmatprep.subr.bf16.mxu0 0
    %7676 = vmatpush1.bf16.msra.mxu0 0
    %7677 = vmatprep.subr.bf16.mxu0 0
    %7678 = vmatpush1.bf16.msra.mxu0 0
    %7679 = vmatprep.subr.bf16.mxu0 0
    %7680 = vmatpush1.bf16.msra.mxu0 0
    %7681 = vmatprep.subr.bf16.mxu0 0
    %7682 = vmatpush1.bf16.msra.mxu0 0
    %7683 = vmatprep.subr.bf16.mxu0 0
    %7684 = vmatpush1.bf16.msra.mxu0 0
    %7685 = vmatprep.subr.bf16.mxu0 0
    %7686 = vmatpush1.bf16.msra.mxu0 0
    %7687 = vmatprep.subr.bf16.mxu0 0
    %7688 = vmatpush1.bf16.msra.mxu0 0
    %7689 = vmatprep.mubr.bf16.mxu0 0
    %7690 = vmatmul.mubr.bf16.gmra.mrb[0].mxu0 %v7249
    %v7691 = vpop.f32.mrb[0].mxu0
    %v7692 = vadd.f32 %v7651, %v7691
    %v7693 = vpop.f32.mrb[0].mxu0
    %v7694 = vadd.f32 %v7653, %v7693
    %v7695 = vpop.f32.mrb[0].mxu0
    %v7696 = vpop.f32.mrb[0].mxu0
    %7697 = vdwg.mxu0
    %7698 = vmatprep.subr.bf16.mxu0 0
    %7699 = vmatpush1.bf16.msra.mxu0 %v3100
    %7700 = vmatprep.subr.bf16.mxu0 0
    %7701 = vmatpush1.bf16.msra.mxu0 %v3103
    %7702 = vmatprep.subr.bf16.mxu0 0
    %7703 = vmatpush1.bf16.msra.mxu0 %v3106
    %7704 = vmatprep.subr.bf16.mxu0 0
    %7705 = vmatpush1.bf16.msra.mxu0 %v3109
    %7706 = vmatprep.subr.bf16.mxu0 0
    %7707 = vmatpush1.bf16.msra.mxu0 %v3112
    %7708 = vmatprep.subr.bf16.mxu0 0
    %7709 = vmatpush1.bf16.msra.mxu0 %v3115
    %7710 = vmatprep.subr.bf16.mxu0 0
    %7711 = vmatpush1.bf16.msra.mxu0 %v3118
    %7712 = vmatprep.subr.bf16.mxu0 0
    %7713 = vmatpush1.bf16.msra.mxu0 %v3121
    %7714 = vmatprep.subr.bf16.mxu0 0
    %7715 = vmatpush1.bf16.msra.mxu0 %v3124
    %7716 = vmatprep.subr.bf16.mxu0 0
    %7717 = vmatpush1.bf16.msra.mxu0 %v3127
    %7718 = vmatprep.subr.bf16.mxu0 0
    %7719 = vmatpush1.bf16.msra.mxu0 %v3130
    %7720 = vmatprep.subr.bf16.mxu0 0
    %7721 = vmatpush1.bf16.msra.mxu0 %v3133
    %7722 = vmatprep.subr.bf16.mxu0 0
    %7723 = vmatpush1.bf16.msra.mxu0 %v3136
    %7724 = vmatprep.subr.bf16.mxu0 0
    %7725 = vmatpush1.bf16.msra.mxu0 %v3139
    %7726 = vmatprep.subr.bf16.mxu0 0
    %7727 = vmatpush1.bf16.msra.mxu0 %v3142
    %7728 = vmatprep.subr.bf16.mxu0 0
    %7729 = vmatpush1.bf16.msra.mxu0 %v3145
    %7730 = vmatprep.mubr.bf16.mxu0 %v7248
    %7731 = vmatmul.mubr.bf16.gmra.mrb[0].mxu0 %v7247
    %v7732 = vpop.f32.mrb[0].mxu0
    %v7733 = vadd.f32 0.0, %v7732
    %v7734 = vpop.f32.mrb[0].mxu0
    %v7735 = vpop.f32.mrb[0].mxu0
    %v7736 = vpop.f32.mrb[0].mxu0
    %7737 = vdwg.mxu0
    %7738 = vmatprep.subr.bf16.mxu0 0
    %7739 = vmatpush1.bf16.msra.mxu0 %v3148
    %7740 = vmatprep.subr.bf16.mxu0 0
    %7741 = vmatpush1.bf16.msra.mxu0 %v3151
    %7742 = vmatprep.subr.bf16.mxu0 0
    %7743 = vmatpush1.bf16.msra.mxu0 %v3154
    %7744 = vmatprep.subr.bf16.mxu0 0
    %7745 = vmatpush1.bf16.msra.mxu0 %v3157
    %7746 = vmatprep.subr.bf16.mxu0 0
    %7747 = vmatpush1.bf16.msra.mxu0 %v3160
    %7748 = vmatprep.subr.bf16.mxu0 0
    %7749 = vmatpush1.bf16.msra.mxu0 %v3163
    %7750 = vmatprep.subr.bf16.mxu0 0
    %7751 = vmatpush1.bf16.msra.mxu0 %v3166
    %7752 = vmatprep.subr.bf16.mxu0 0
    %7753 = vmatpush1.bf16.msra.mxu0 %v3169
    %7754 = vmatprep.subr.bf16.mxu0 0
    %7755 = vmatpush1.bf16.msra.mxu0 0
    %7756 = vmatprep.subr.bf16.mxu0 0
    %7757 = vmatpush1.bf16.msra.mxu0 0
    %7758 = vmatprep.subr.bf16.mxu0 0
    %7759 = vmatpush1.bf16.msra.mxu0 0
    %7760 = vmatprep.subr.bf16.mxu0 0
    %7761 = vmatpush1.bf16.msra.mxu0 0
    %7762 = vmatprep.subr.bf16.mxu0 0
    %7763 = vmatpush1.bf16.msra.mxu0 0
    %7764 = vmatprep.subr.bf16.mxu0 0
    %7765 = vmatpush1.bf16.msra.mxu0 0
    %7766 = vmatprep.subr.bf16.mxu0 0
    %7767 = vmatpush1.bf16.msra.mxu0 0
    %7768 = vmatprep.subr.bf16.mxu0 0
    %7769 = vmatpush1.bf16.msra.mxu0 0
    %7770 = vmatprep.mubr.bf16.mxu0 0
    %7771 = vmatmul.mubr.bf16.gmra.mrb[0].mxu0 %v7249
    %v7772 = vpop.f32.mrb[0].mxu0
    %v7773 = vadd.f32 %v7733, %v7772
    %v7774 = vpop.f32.mrb[0].mxu0
    %v7775 = vpop.f32.mrb[0].mxu0
    %v7776 = vpop.f32.mrb[0].mxu0
    %7777 = vdwg.mxu0
    %v7778 = vadd.f32 %v7613, %v7692
    %v7779 = vadd.f32 %v7614, %v7694
    %v7780 = vadd.f32 %v7615, %v7773
    %v7781 = vtanh.pop %v7778
    %v7782 = vtanh.pop %v7779
    %v7783 = vtanh.pop %v7780
    %v7784 = vmul.f32 %v7610, %v7781
    %v7785 = vmul.f32 %v7611, %v7782
    %v7786 = vmul.f32 %v7612, %v7783
    %v7787 = vadd.f32 %v7430, %v7784
    %v7788 = vadd.f32 %v7431, %v7785
    %v7789 = vadd.f32 %v7432, %v7786
    %v7790 = vld [vmem:[#allocation2 + $0x288] sm:$0xff]
    %v7791 = vld [vmem:[#allocation2 + $0x290] sm:$0xff]
    %v7792 = vld [vmem:[#allocation2 + $0x298] sm:$0xff]
    %7793 = vmatprep.subr.bf16.mxu0 %v3348
    %7794 = vmatpush1.bf16.msra.mxu0 %v3347
    %7795 = vmatprep.subr.bf16.mxu0 %v3351
    %7796 = vmatpush1.bf16.msra.mxu0 %v3350
    %7797 = vmatprep.subr.bf16.mxu0 %v3354
    %7798 = vmatpush1.bf16.msra.mxu0 %v3353
    %7799 = vmatprep.subr.bf16.mxu0 %v3357
    %7800 = vmatpush1.bf16.msra.mxu0 %v3356
    %7801 = vmatprep.subr.bf16.mxu0 %v3360
    %7802 = vmatpush1.bf16.msra.mxu0 %v3359
    %7803 = vmatprep.subr.bf16.mxu0 %v3363
    %7804 = vmatpush1.bf16.msra.mxu0 %v3362
    %7805 = vmatprep.subr.bf16.mxu0 %v3366
    %7806 = vmatpush1.bf16.msra.mxu0 %v3365
    %7807 = vmatprep.subr.bf16.mxu0 %v3369
    %7808 = vmatpush1.bf16.msra.mxu0 %v3368
    %7809 = vmatprep.subr.bf16.mxu0 %v3372
    %7810 = vmatpush1.bf16.msra.mxu0 %v3371
    %7811 = vmatprep.subr.bf16.mxu0 %v3375
    %7812 = vmatpush1.bf16.msra.mxu0 %v3374
    %7813 = vmatprep.subr.bf16.mxu0 %v3378
    %7814 = vmatpush1.bf16.msra.mxu0 %v3377
    %7815 = vmatprep.subr.bf16.mxu0 %v3381
    %7816 = vmatpush1.bf16.msra.mxu0 %v3380
    %7817 = vmatprep.subr.bf16.mxu0 %v3384
    %7818 = vmatpush1.bf16.msra.mxu0 %v3383
    %7819 = vmatprep.subr.bf16.mxu0 %v3387
    %7820 = vmatpush1.bf16.msra.mxu0 %v3386
    %7821 = vmatprep.subr.bf16.mxu0 %v3390
    %7822 = vmatpush1.bf16.msra.mxu0 %v3389
    %7823 = vmatprep.subr.bf16.mxu0 %v3393
    %7824 = vmatpush1.bf16.msra.mxu0 %v3392
    %7825 = vmatprep.mubr.bf16.mxu0 %v7248
    %7826 = vmatmul.mubr.bf16.gmra.mrb[0].mxu0 %v7247
    %v7827 = vpop.f32.mrb[0].mxu0
    %v7828 = vadd.f32 0.0, %v7827
    %v7829 = vpop.f32.mrb[0].mxu0
    %v7830 = vadd.f32 0.0, %v7829
    %v7831 = vpop.f32.mrb[0].mxu0
    %v7832 = vpop.f32.mrb[0].mxu0
    %7833 = vdwg.mxu0
    %7834 = vmatprep.subr.bf16.mxu0 %v3396
    %7835 = vmatpush1.bf16.msra.mxu0 %v3395
    %7836 = vmatprep.subr.bf16.mxu0 %v3399
    %7837 = vmatpush1.bf16.msra.mxu0 %v3398
    %7838 = vmatprep.subr.bf16.mxu0 %v3402
    %7839 = vmatpush1.bf16.msra.mxu0 %v3401
    %7840 = vmatprep.subr.bf16.mxu0 %v3405
    %7841 = vmatpush1.bf16.msra.mxu0 %v3404
    %7842 = vmatprep.subr.bf16.mxu0 %v3408
    %7843 = vmatpush1.bf16.msra.mxu0 %v3407
    %7844 = vmatprep.subr.bf16.mxu0 %v3411
    %7845 = vmatpush1.bf16.msra.mxu0 %v3410
    %7846 = vmatprep.subr.bf16.mxu0 %v3414
    %7847 = vmatpush1.bf16.msra.mxu0 %v3413
    %7848 = vmatprep.subr.bf16.mxu0 %v3417
    %7849 = vmatpush1.bf16.msra.mxu0 %v3416
    %7850 = vmatprep.subr.bf16.mxu0 0
    %7851 = vmatpush1.bf16.msra.mxu0 0
    %7852 = vmatprep.subr.bf16.mxu0 0
    %7853 = vmatpush1.bf16.msra.mxu0 0
    %7854 = vmatprep.subr.bf16.mxu0 0
    %7855 = vmatpush1.bf16.msra.mxu0 0
    %7856 = vmatprep.subr.bf16.mxu0 0
    %7857 = vmatpush1.bf16.msra.mxu0 0
    %7858 = vmatprep.subr.bf16.mxu0 0
    %7859 = vmatpush1.bf16.msra.mxu0 0
    %7860 = vmatprep.subr.bf16.mxu0 0
    %7861 = vmatpush1.bf16.msra.mxu0 0
    %7862 = vmatprep.subr.bf16.mxu0 0
    %7863 = vmatpush1.bf16.msra.mxu0 0
    %7864 = vmatprep.subr.bf16.mxu0 0
    %7865 = vmatpush1.bf16.msra.mxu0 0
    %7866 = vmatprep.mubr.bf16.mxu0 0
    %7867 = vmatmul.mubr.bf16.gmra.mrb[0].mxu0 %v7249
    %v7868 = vpop.f32.mrb[0].mxu0
    %v7869 = vadd.f32 %v7828, %v7868
    %v7870 = vpop.f32.mrb[0].mxu0
    %v7871 = vadd.f32 %v7830, %v7870
    %v7872 = vpop.f32.mrb[0].mxu0
    %v7873 = vpop.f32.mrb[0].mxu0
    %7874 = vdwg.mxu0
    %7875 = vmatprep.subr.bf16.mxu0 0
    %7876 = vmatpush1.bf16.msra.mxu0 %v3349
    %7877 = vmatprep.subr.bf16.mxu0 0
    %7878 = vmatpush1.bf16.msra.mxu0 %v3352
    %7879 = vmatprep.subr.bf16.mxu0 0
    %7880 = vmatpush1.bf16.msra.mxu0 %v3355
    %7881 = vmatprep.subr.bf16.mxu0 0
    %7882 = vmatpush1.bf16.msra.mxu0 %v3358
    %7883 = vmatprep.subr.bf16.mxu0 0
    %7884 = vmatpush1.bf16.msra.mxu0 %v3361
    %7885 = vmatprep.subr.bf16.mxu0 0
    %7886 = vmatpush1.bf16.msra.mxu0 %v3364
    %7887 = vmatprep.subr.bf16.mxu0 0
    %7888 = vmatpush1.bf16.msra.mxu0 %v3367
    %7889 = vmatprep.subr.bf16.mxu0 0
    %7890 = vmatpush1.bf16.msra.mxu0 %v3370
    %7891 = vmatprep.subr.bf16.mxu0 0
    %7892 = vmatpush1.bf16.msra.mxu0 %v3373
    %7893 = vmatprep.subr.bf16.mxu0 0
    %7894 = vmatpush1.bf16.msra.mxu0 %v3376
    %7895 = vmatprep.subr.bf16.mxu0 0
    %7896 = vmatpush1.bf16.msra.mxu0 %v3379
    %7897 = vmatprep.subr.bf16.mxu0 0
    %7898 = vmatpush1.bf16.msra.mxu0 %v3382
    %7899 = vmatprep.subr.bf16.mxu0 0
    %7900 = vmatpush1.bf16.msra.mxu0 %v3385
    %7901 = vmatprep.subr.bf16.mxu0 0
    %7902 = vmatpush1.bf16.msra.mxu0 %v3388
    %7903 = vmatprep.subr.bf16.mxu0 0
    %7904 = vmatpush1.bf16.msra.mxu0 %v3391
    %7905 = vmatprep.subr.bf16.mxu0 0
    %7906 = vmatpush1.bf16.msra.mxu0 %v3394
    %7907 = vmatprep.mubr.bf16.mxu0 %v7248
    %7908 = vmatmul.mubr.bf16.gmra.mrb[0].mxu0 %v7247
    %v7909 = vpop.f32.mrb[0].mxu0
    %v7910 = vadd.f32 0.0, %v7909
    %v7911 = vpop.f32.mrb[0].mxu0
    %v7912 = vpop.f32.mrb[0].mxu0
    %v7913 = vpop.f32.mrb[0].mxu0
    %7914 = vdwg.mxu0
    %7915 = vmatprep.subr.bf16.mxu0 0
    %7916 = vmatpush1.bf16.msra.mxu0 %v3397
    %7917 = vmatprep.subr.bf16.mxu0 0
    %7918 = vmatpush1.bf16.msra.mxu0 %v3400
    %7919 = vmatprep.subr.bf16.mxu0 0
    %7920 = vmatpush1.bf16.msra.mxu0 %v3403
    %7921 = vmatprep.subr.bf16.mxu0 0
    %7922 = vmatpush1.bf16.msra.mxu0 %v3406
    %7923 = vmatprep.subr.bf16.mxu0 0
    %7924 = vmatpush1.bf16.msra.mxu0 %v3409
    %7925 = vmatprep.subr.bf16.mxu0 0
    %7926 = vmatpush1.bf16.msra.mxu0 %v3412
    %7927 = vmatprep.subr.bf16.mxu0 0
    %7928 = vmatpush1.bf16.msra.mxu0 %v3415
    %7929 = vmatprep.subr.bf16.mxu0 0
    %7930 = vmatpush1.bf16.msra.mxu0 %v3418
    %7931 = vmatprep.subr.bf16.mxu0 0
    %7932 = vmatpush1.bf16.msra.mxu0 0
    %7933 = vmatprep.subr.bf16.mxu0 0
    %7934 = vmatpush1.bf16.msra.mxu0 0
    %7935 = vmatprep.subr.bf16.mxu0 0
    %7936 = vmatpush1.bf16.msra.mxu0 0
    %7937 = vmatprep.subr.bf16.mxu0 0
    %7938 = vmatpush1.bf16.msra.mxu0 0
    %7939 = vmatprep.subr.bf16.mxu0 0
    %7940 = vmatpush1.bf16.msra.mxu0 0
    %7941 = vmatprep.subr.bf16.mxu0 0
    %7942 = vmatpush1.bf16.msra.mxu0 0
    %7943 = vmatprep.subr.bf16.mxu0 0
    %7944 = vmatpush1.bf16.msra.mxu0 0
    %7945 = vmatprep.subr.bf16.mxu0 0
    %7946 = vmatpush1.bf16.msra.mxu0 0
    %7947 = vmatprep.mubr.bf16.mxu0 0
    %7948 = vmatmul.mubr.bf16.gmra.mrb[0].mxu0 %v7249
    %v7949 = vpop.f32.mrb[0].mxu0
    %v7950 = vadd.f32 %v7910, %v7949
    %v7951 = vpop.f32.mrb[0].mxu0
    %v7952 = vpop.f32.mrb[0].mxu0
    %v7953 = vpop.f32.mrb[0].mxu0
    %7954 = vdwg.mxu0
    %v7955 = vadd.f32 %v7790, %v7869
    %v7956 = vadd.f32 %v7791, %v7871
    %v7957 = vadd.f32 %v7792, %v7950
    %v7958 = vmul.f32 %v7955, 0.5
    %v7959 = vmul.f32 %v7956, 0.5
    %v7960 = vmul.f32 %v7957, 0.5
    %v7961 = vtanh.pop %v7958
    %v7962 = vtanh.pop %v7959
    %v7963 = vtanh.pop %v7960
    %v7964 = vmul.f32 %v7961, 0.5
    %v7965 = vmul.f32 %v7962, 0.5
    %v7966 = vmul.f32 %v7963, 0.5
    %v7967 = vadd.f32 %v7964, 0.5
    %v7968 = vadd.f32 %v7965, 0.5
    %v7969 = vadd.f32 %v7966, 0.5
    %v7970 = vtanh.pop %v7787
    %v7971 = vtanh.pop %v7788
    %v7972 = vtanh.pop %v7789
    %v7973 = vmul.f32 %v7967, %v7970
    %v7974 = vmul.f32 %v7968, %v7971
    %v7975 = vmul.f32 %v7969, %v7972
    %v7976 = vpack.c.bf16 %v7973, %v7973
    %v7977 = vpack.c.bf16 %v7974, %v7974
    %v7978 = vpack.c.bf16 %v7975, %v7975
    %v7979 = vld [vmem:[#allocation2 + $0x2b8] sm:$0xff]
    %v7980 = vld [vmem:[#allocation2 + $0x2c0] sm:$0xff]
    %v7981 = vld [vmem:[#allocation2 + $0x2c8] sm:$0xff]
    %7982 = vmatprep.subr.bf16.mxu0 %v2592
    %7983 = vmatpush1.bf16.msra.mxu0 %v2591
    %7984 = vmatprep.subr.bf16.mxu0 %v2595
    %7985 = vmatpush1.bf16.msra.mxu0 %v2594
    %7986 = vmatprep.subr.bf16.mxu0 %v2598
    %7987 = vmatpush1.bf16.msra.mxu0 %v2597
    %7988 = vmatprep.subr.bf16.mxu0 %v2601
    %7989 = vmatpush1.bf16.msra.mxu0 %v2600
    %7990 = vmatprep.subr.bf16.mxu0 %v2604
    %7991 = vmatpush1.bf16.msra.mxu0 %v2603
    %7992 = vmatprep.subr.bf16.mxu0 %v2607
    %7993 = vmatpush1.bf16.msra.mxu0 %v2606
    %7994 = vmatprep.subr.bf16.mxu0 %v2610
    %7995 = vmatpush1.bf16.msra.mxu0 %v2609
    %7996 = vmatprep.subr.bf16.mxu0 %v2613
    %7997 = vmatpush1.bf16.msra.mxu0 %v2612
    %7998 = vmatprep.subr.bf16.mxu0 %v2616
    %7999 = vmatpush1.bf16.msra.mxu0 %v2615
    %8000 = vmatprep.subr.bf16.mxu0 %v2619
    %8001 = vmatpush1.bf16.msra.mxu0 %v2618
    %8002 = vmatprep.subr.bf16.mxu0 %v2622
    %8003 = vmatpush1.bf16.msra.mxu0 %v2621
    %8004 = vmatprep.subr.bf16.mxu0 %v2625
    %8005 = vmatpush1.bf16.msra.mxu0 %v2624
    %8006 = vmatprep.subr.bf16.mxu0 %v2628
    %8007 = vmatpush1.bf16.msra.mxu0 %v2627
    %8008 = vmatprep.subr.bf16.mxu0 %v2631
    %8009 = vmatpush1.bf16.msra.mxu0 %v2630
    %8010 = vmatprep.subr.bf16.mxu0 %v2634
    %8011 = vmatpush1.bf16.msra.mxu0 %v2633
    %8012 = vmatprep.subr.bf16.mxu0 %v2637
    %8013 = vmatpush1.bf16.msra.mxu0 %v2636
    %8014 = vmatprep.mubr.bf16.mxu0 %v7977
    %8015 = vmatmul.mubr.bf16.gmra.mrb[0].mxu0 %v7976
    %v8016 = vpop.f32.mrb[0].mxu0
    %v8017 = vadd.f32 0.0, %v8016
    %v8018 = vpop.f32.mrb[0].mxu0
    %v8019 = vadd.f32 0.0, %v8018
    %v8020 = vpop.f32.mrb[0].mxu0
    %v8021 = vpop.f32.mrb[0].mxu0
    %8022 = vdwg.mxu0
    %8023 = vmatprep.subr.bf16.mxu0 %v2640
    %8024 = vmatpush1.bf16.msra.mxu0 %v2639
    %8025 = vmatprep.subr.bf16.mxu0 %v2643
    %8026 = vmatpush1.bf16.msra.mxu0 %v2642
    %8027 = vmatprep.subr.bf16.mxu0 %v2646
    %8028 = vmatpush1.bf16.msra.mxu0 %v2645
    %8029 = vmatprep.subr.bf16.mxu0 %v2649
    %8030 = vmatpush1.bf16.msra.mxu0 %v2648
    %8031 = vmatprep.subr.bf16.mxu0 %v2652
    %8032 = vmatpush1.bf16.msra.mxu0 %v2651
    %8033 = vmatprep.subr.bf16.mxu0 %v2655
    %8034 = vmatpush1.bf16.msra.mxu0 %v2654
    %8035 = vmatprep.subr.bf16.mxu0 %v2658
    %8036 = vmatpush1.bf16.msra.mxu0 %v2657
    %8037 = vmatprep.subr.bf16.mxu0 %v2661
    %8038 = vmatpush1.bf16.msra.mxu0 %v2660
    %8039 = vmatprep.subr.bf16.mxu0 0
    %8040 = vmatpush1.bf16.msra.mxu0 0
    %8041 = vmatprep.subr.bf16.mxu0 0
    %8042 = vmatpush1.bf16.msra.mxu0 0
    %8043 = vmatprep.subr.bf16.mxu0 0
    %8044 = vmatpush1.bf16.msra.mxu0 0
    %8045 = vmatprep.subr.bf16.mxu0 0
    %8046 = vmatpush1.bf16.msra.mxu0 0
    %8047 = vmatprep.subr.bf16.mxu0 0
    %8048 = vmatpush1.bf16.msra.mxu0 0
    %8049 = vmatprep.subr.bf16.mxu0 0
    %8050 = vmatpush1.bf16.msra.mxu0 0
    %8051 = vmatprep.subr.bf16.mxu0 0
    %8052 = vmatpush1.bf16.msra.mxu0 0
    %8053 = vmatprep.subr.bf16.mxu0 0
    %8054 = vmatpush1.bf16.msra.mxu0 0
    %8055 = vmatprep.mubr.bf16.mxu0 0
    %8056 = vmatmul.mubr.bf16.gmra.mrb[0].mxu0 %v7978
    %v8057 = vpop.f32.mrb[0].mxu0
    %v8058 = vadd.f32 %v8017, %v8057
    %v8059 = vpop.f32.mrb[0].mxu0
    %v8060 = vadd.f32 %v8019, %v8059
    %v8061 = vpop.f32.mrb[0].mxu0
    %v8062 = vpop.f32.mrb[0].mxu0
    %8063 = vdwg.mxu0
    %8064 = vmatprep.subr.bf16.mxu0 0
    %8065 = vmatpush1.bf16.msra.mxu0 %v2593
    %8066 = vmatprep.subr.bf16.mxu0 0
    %8067 = vmatpush1.bf16.msra.mxu0 %v2596
    %8068 = vmatprep.subr.bf16.mxu0 0
    %8069 = vmatpush1.bf16.msra.mxu0 %v2599
    %8070 = vmatprep.subr.bf16.mxu0 0
    %8071 = vmatpush1.bf16.msra.mxu0 %v2602
    %8072 = vmatprep.subr.bf16.mxu0 0
    %8073 = vmatpush1.bf16.msra.mxu0 %v2605
    %8074 = vmatprep.subr.bf16.mxu0 0
    %8075 = vmatpush1.bf16.msra.mxu0 %v2608
    %8076 = vmatprep.subr.bf16.mxu0 0
    %8077 = vmatpush1.bf16.msra.mxu0 %v2611
    %8078 = vmatprep.subr.bf16.mxu0 0
    %8079 = vmatpush1.bf16.msra.mxu0 %v2614
    %8080 = vmatprep.subr.bf16.mxu0 0
    %8081 = vmatpush1.bf16.msra.mxu0 %v2617
    %8082 = vmatprep.subr.bf16.mxu0 0
    %8083 = vmatpush1.bf16.msra.mxu0 %v2620
    %8084 = vmatprep.subr.bf16.mxu0 0
    %8085 = vmatpush1.bf16.msra.mxu0 %v2623
    %8086 = vmatprep.subr.bf16.mxu0 0
    %8087 = vmatpush1.bf16.msra.mxu0 %v2626
    %8088 = vmatprep.subr.bf16.mxu0 0
    %8089 = vmatpush1.bf16.msra.mxu0 %v2629
    %8090 = vmatprep.subr.bf16.mxu0 0
    %8091 = vmatpush1.bf16.msra.mxu0 %v2632
    %8092 = vmatprep.subr.bf16.mxu0 0
    %8093 = vmatpush1.bf16.msra.mxu0 %v2635
    %8094 = vmatprep.subr.bf16.mxu0 0
    %8095 = vmatpush1.bf16.msra.mxu0 %v2638
    %8096 = vmatprep.mubr.bf16.mxu0 %v7977
    %8097 = vmatmul.mubr.bf16.gmra.mrb[0].mxu0 %v7976
    %v8098 = vpop.f32.mrb[0].mxu0
    %v8099 = vadd.f32 0.0, %v8098
    %v8100 = vpop.f32.mrb[0].mxu0
    %v8101 = vpop.f32.mrb[0].mxu0
    %v8102 = vpop.f32.mrb[0].mxu0
    %8103 = vdwg.mxu0
    %8104 = vmatprep.subr.bf16.mxu0 0
    %8105 = vmatpush1.bf16.msra.mxu0 %v2641
    %8106 = vmatprep.subr.bf16.mxu0 0
    %8107 = vmatpush1.bf16.msra.mxu0 %v2644
    %8108 = vmatprep.subr.bf16.mxu0 0
    %8109 = vmatpush1.bf16.msra.mxu0 %v2647
    %8110 = vmatprep.subr.bf16.mxu0 0
    %8111 = vmatpush1.bf16.msra.mxu0 %v2650
    %8112 = vmatprep.subr.bf16.mxu0 0
    %8113 = vmatpush1.bf16.msra.mxu0 %v2653
    %8114 = vmatprep.subr.bf16.mxu0 0
    %8115 = vmatpush1.bf16.msra.mxu0 %v2656
    %8116 = vmatprep.subr.bf16.mxu0 0
    %8117 = vmatpush1.bf16.msra.mxu0 %v2659
    %8118 = vmatprep.subr.bf16.mxu0 0
    %8119 = vmatpush1.bf16.msra.mxu0 %v2662
    %8120 = vmatprep.subr.bf16.mxu0 0
    %8121 = vmatpush1.bf16.msra.mxu0 0
    %8122 = vmatprep.subr.bf16.mxu0 0
    %8123 = vmatpush1.bf16.msra.mxu0 0
    %8124 = vmatprep.subr.bf16.mxu0 0
    %8125 = vmatpush1.bf16.msra.mxu0 0
    %8126 = vmatprep.subr.bf16.mxu0 0
    %8127 = vmatpush1.bf16.msra.mxu0 0
    %8128 = vmatprep.subr.bf16.mxu0 0
    %8129 = vmatpush1.bf16.msra.mxu0 0
    %8130 = vmatprep.subr.bf16.mxu0 0
    %8131 = vmatpush1.bf16.msra.mxu0 0
    %8132 = vmatprep.subr.bf16.mxu0 0
    %8133 = vmatpush1.bf16.msra.mxu0 0
    %8134 = vmatprep.subr.bf16.mxu0 0
    %8135 = vmatpush1.bf16.msra.mxu0 0
    %8136 = vmatprep.mubr.bf16.mxu0 0
    %8137 = vmatmul.mubr.bf16.gmra.mrb[0].mxu0 %v7978
    %v8138 = vpop.f32.mrb[0].mxu0
    %v8139 = vadd.f32 %v8099, %v8138
    %v8140 = vpop.f32.mrb[0].mxu0
    %v8141 = vpop.f32.mrb[0].mxu0
    %v8142 = vpop.f32.mrb[0].mxu0
    %8143 = vdwg.mxu0
    %v8144 = vadd.f32 %v7979, %v8058
    %v8145 = vadd.f32 %v7980, %v8060
    %v8146 = vadd.f32 %v7981, %v8139
    %v8147 = vmul.f32 %v8144, 0.5
    %v8148 = vmul.f32 %v8145, 0.5
    %v8149 = vmul.f32 %v8146, 0.5
    %v8150 = vtanh.pop %v8147
    %v8151 = vtanh.pop %v8148
    %v8152 = vtanh.pop %v8149
    %v8153 = vmul.f32 %v8150, 0.5
    %v8154 = vmul.f32 %v8151, 0.5
    %v8155 = vmul.f32 %v8152, 0.5
    %v8156 = vadd.f32 %v8153, 0.5
    %v8157 = vadd.f32 %v8154, 0.5
    %v8158 = vadd.f32 %v8155, 0.5
    %v8159 = vmul.f32 %v8156, %v7787
    %v8160 = vmul.f32 %v8157, %v7788
    %v8161 = vmul.f32 %v8158, %v7789
    %v8162 = vld [vmem:[#allocation2 + $0x2a0] sm:$0xff]
    %v8163 = vld [vmem:[#allocation2 + $0x2a8] sm:$0xff]
    %v8164 = vld [vmem:[#allocation2 + $0x2b0] sm:$0xff]
    %8165 = vmatprep.subr.bf16.mxu0 %v2847
    %8166 = vmatpush1.bf16.msra.mxu0 %v2846
    %8167 = vmatprep.subr.bf16.mxu0 %v2850
    %8168 = vmatpush1.bf16.msra.mxu0 %v2849
    %8169 = vmatprep.subr.bf16.mxu0 %v2853
    %8170 = vmatpush1.bf16.msra.mxu0 %v2852
    %8171 = vmatprep.subr.bf16.mxu0 %v2856
    %8172 = vmatpush1.bf16.msra.mxu0 %v2855
    %8173 = vmatprep.subr.bf16.mxu0 %v2859
    %8174 = vmatpush1.bf16.msra.mxu0 %v2858
    %8175 = vmatprep.subr.bf16.mxu0 %v2862
    %8176 = vmatpush1.bf16.msra.mxu0 %v2861
    %8177 = vmatprep.subr.bf16.mxu0 %v2865
    %8178 = vmatpush1.bf16.msra.mxu0 %v2864
    %8179 = vmatprep.subr.bf16.mxu0 %v2868
    %8180 = vmatpush1.bf16.msra.mxu0 %v2867
    %8181 = vmatprep.subr.bf16.mxu0 %v2871
    %8182 = vmatpush1.bf16.msra.mxu0 %v2870
    %8183 = vmatprep.subr.bf16.mxu0 %v2874
    %8184 = vmatpush1.bf16.msra.mxu0 %v2873
    %8185 = vmatprep.subr.bf16.mxu0 %v2877
    %8186 = vmatpush1.bf16.msra.mxu0 %v2876
    %8187 = vmatprep.subr.bf16.mxu0 %v2880
    %8188 = vmatpush1.bf16.msra.mxu0 %v2879
    %8189 = vmatprep.subr.bf16.mxu0 %v2883
    %8190 = vmatpush1.bf16.msra.mxu0 %v2882
    %8191 = vmatprep.subr.bf16.mxu0 %v2886
    %8192 = vmatpush1.bf16.msra.mxu0 %v2885
    %8193 = vmatprep.subr.bf16.mxu0 %v2889
    %8194 = vmatpush1.bf16.msra.mxu0 %v2888
    %8195 = vmatprep.subr.bf16.mxu0 %v2892
    %8196 = vmatpush1.bf16.msra.mxu0 %v2891
    %8197 = vmatprep.mubr.bf16.mxu0 %v7977
    %8198 = vmatmul.mubr.bf16.gmra.mrb[0].mxu0 %v7976
    %v8199 = vpop.f32.mrb[0].mxu0
    %v8200 = vadd.f32 0.0, %v8199
    %v8201 = vpop.f32.mrb[0].mxu0
    %v8202 = vadd.f32 0.0, %v8201
    %v8203 = vpop.f32.mrb[0].mxu0
    %v8204 = vpop.f32.mrb[0].mxu0
    %8205 = vdwg.mxu0
    %8206 = vmatprep.subr.bf16.mxu0 %v2895
    %8207 = vmatpush1.bf16.msra.mxu0 %v2894
    %8208 = vmatprep.subr.bf16.mxu0 %v2898
    %8209 = vmatpush1.bf16.msra.mxu0 %v2897
    %8210 = vmatprep.subr.bf16.mxu0 %v2901
    %8211 = vmatpush1.bf16.msra.mxu0 %v2900
    %8212 = vmatprep.subr.bf16.mxu0 %v2904
    %8213 = vmatpush1.bf16.msra.mxu0 %v2903
    %8214 = vmatprep.subr.bf16.mxu0 %v2907
    %8215 = vmatpush1.bf16.msra.mxu0 %v2906
    %8216 = vmatprep.subr.bf16.mxu0 %v2910
    %8217 = vmatpush1.bf16.msra.mxu0 %v2909
    %8218 = vmatprep.subr.bf16.mxu0 %v2913
    %8219 = vmatpush1.bf16.msra.mxu0 %v2912
    %8220 = vmatprep.subr.bf16.mxu0 %v2916
    %8221 = vmatpush1.bf16.msra.mxu0 %v2915
    %8222 = vmatprep.subr.bf16.mxu0 0
    %8223 = vmatpush1.bf16.msra.mxu0 0
    %8224 = vmatprep.subr.bf16.mxu0 0
    %8225 = vmatpush1.bf16.msra.mxu0 0
    %8226 = vmatprep.subr.bf16.mxu0 0
    %8227 = vmatpush1.bf16.msra.mxu0 0
    %8228 = vmatprep.subr.bf16.mxu0 0
    %8229 = vmatpush1.bf16.msra.mxu0 0
    %8230 = vmatprep.subr.bf16.mxu0 0
    %8231 = vmatpush1.bf16.msra.mxu0 0
    %8232 = vmatprep.subr.bf16.mxu0 0
    %8233 = vmatpush1.bf16.msra.mxu0 0
    %8234 = vmatprep.subr.bf16.mxu0 0
    %8235 = vmatpush1.bf16.msra.mxu0 0
    %8236 = vmatprep.subr.bf16.mxu0 0
    %8237 = vmatpush1.bf16.msra.mxu0 0
    %8238 = vmatprep.mubr.bf16.mxu0 0
    %8239 = vmatmul.mubr.bf16.gmra.mrb[0].mxu0 %v7978
    %v8240 = vpop.f32.mrb[0].mxu0
    %v8241 = vadd.f32 %v8200, %v8240
    %v8242 = vpop.f32.mrb[0].mxu0
    %v8243 = vadd.f32 %v8202, %v8242
    %v8244 = vpop.f32.mrb[0].mxu0
    %v8245 = vpop.f32.mrb[0].mxu0
    %8246 = vdwg.mxu0
    %8247 = vmatprep.subr.bf16.mxu0 0
    %8248 = vmatpush1.bf16.msra.mxu0 %v2848
    %8249 = vmatprep.subr.bf16.mxu0 0
    %8250 = vmatpush1.bf16.msra.mxu0 %v2851
    %8251 = vmatprep.subr.bf16.mxu0 0
    %8252 = vmatpush1.bf16.msra.mxu0 %v2854
    %8253 = vmatprep.subr.bf16.mxu0 0
    %8254 = vmatpush1.bf16.msra.mxu0 %v2857
    %8255 = vmatprep.subr.bf16.mxu0 0
    %8256 = vmatpush1.bf16.msra.mxu0 %v2860
    %8257 = vmatprep.subr.bf16.mxu0 0
    %8258 = vmatpush1.bf16.msra.mxu0 %v2863
    %8259 = vmatprep.subr.bf16.mxu0 0
    %8260 = vmatpush1.bf16.msra.mxu0 %v2866
    %8261 = vmatprep.subr.bf16.mxu0 0
    %8262 = vmatpush1.bf16.msra.mxu0 %v2869
    %8263 = vmatprep.subr.bf16.mxu0 0
    %8264 = vmatpush1.bf16.msra.mxu0 %v2872
    %8265 = vmatprep.subr.bf16.mxu0 0
    %8266 = vmatpush1.bf16.msra.mxu0 %v2875
    %8267 = vmatprep.subr.bf16.mxu0 0
    %8268 = vmatpush1.bf16.msra.mxu0 %v2878
    %8269 = vmatprep.subr.bf16.mxu0 0
    %8270 = vmatpush1.bf16.msra.mxu0 %v2881
    %8271 = vmatprep.subr.bf16.mxu0 0
    %8272 = vmatpush1.bf16.msra.mxu0 %v2884
    %8273 = vmatprep.subr.bf16.mxu0 0
    %8274 = vmatpush1.bf16.msra.mxu0 %v2887
    %8275 = vmatprep.subr.bf16.mxu0 0
    %8276 = vmatpush1.bf16.msra.mxu0 %v2890
    %8277 = vmatprep.subr.bf16.mxu0 0
    %8278 = vmatpush1.bf16.msra.mxu0 %v2893
    %8279 = vmatprep.mubr.bf16.mxu0 %v7977
    %8280 = vmatmul.mubr.bf16.gmra.mrb[0].mxu0 %v7976
    %v8281 = vpop.f32.mrb[0].mxu0
    %v8282 = vadd.f32 0.0, %v8281
    %v8283 = vpop.f32.mrb[0].mxu0
    %v8284 = vpop.f32.mrb[0].mxu0
    %v8285 = vpop.f32.mrb[0].mxu0
    %8286 = vdwg.mxu0
    %8287 = vmatprep.subr.bf16.mxu0 0
    %8288 = vmatpush1.bf16.msra.mxu0 %v2896
    %8289 = vmatprep.subr.bf16.mxu0 0
    %8290 = vmatpush1.bf16.msra.mxu0 %v2899
    %8291 = vmatprep.subr.bf16.mxu0 0
    %8292 = vmatpush1.bf16.msra.mxu0 %v2902
    %8293 = vmatprep.subr.bf16.mxu0 0
    %8294 = vmatpush1.bf16.msra.mxu0 %v2905
    %8295 = vmatprep.subr.bf16.mxu0 0
    %8296 = vmatpush1.bf16.msra.mxu0 %v2908
    %8297 = vmatprep.subr.bf16.mxu0 0
    %8298 = vmatpush1.bf16.msra.mxu0 %v2911
    %8299 = vmatprep.subr.bf16.mxu0 0
    %8300 = vmatpush1.bf16.msra.mxu0 %v2914
    %8301 = vmatprep.subr.bf16.mxu0 0
    %8302 = vmatpush1.bf16.msra.mxu0 %v2917
    %8303 = vmatprep.subr.bf16.mxu0 0
    %8304 = vmatpush1.bf16.msra.mxu0 0
    %8305 = vmatprep.subr.bf16.mxu0 0
    %8306 = vmatpush1.bf16.msra.mxu0 0
    %8307 = vmatprep.subr.bf16.mxu0 0
    %8308 = vmatpush1.bf16.msra.mxu0 0
    %8309 = vmatprep.subr.bf16.mxu0 0
    %8310 = vmatpush1.bf16.msra.mxu0 0
    %8311 = vmatprep.subr.bf16.mxu0 0
    %8312 = vmatpush1.bf16.msra.mxu0 0
    %8313 = vmatprep.subr.bf16.mxu0 0
    %8314 = vmatpush1.bf16.msra.mxu0 0
    %8315 = vmatprep.subr.bf16.mxu0 0
    %8316 = vmatpush1.bf16.msra.mxu0 0
    %8317 = vmatprep.subr.bf16.mxu0 0
    %8318 = vmatpush1.bf16.msra.mxu0 0
    %8319 = vmatprep.mubr.bf16.mxu0 0
    %8320 = vmatmul.mubr.bf16.gmra.mrb[0].mxu0 %v7978
    %v8321 = vpop.f32.mrb[0].mxu0
    %v8322 = vadd.f32 %v8282, %v8321
    %v8323 = vpop.f32.mrb[0].mxu0
    %v8324 = vpop.f32.mrb[0].mxu0
    %v8325 = vpop.f32.mrb[0].mxu0
    %8326 = vdwg.mxu0
    %v8327 = vadd.f32 %v8162, %v8241
    %v8328 = vadd.f32 %v8163, %v8243
    %v8329 = vadd.f32 %v8164, %v8322
    %v8330 = vmul.f32 %v8327, 0.5
    %v8331 = vmul.f32 %v8328, 0.5
    %v8332 = vmul.f32 %v8329, 0.5
    %v8333 = vtanh.pop %v8330
    %v8334 = vtanh.pop %v8331
    %v8335 = vtanh.pop %v8332
    %v8336 = vmul.f32 %v8333, 0.5
    %v8337 = vmul.f32 %v8334, 0.5
    %v8338 = vmul.f32 %v8335, 0.5
    %v8339 = vadd.f32 %v8336, 0.5
    %v8340 = vadd.f32 %v8337, 0.5
    %v8341 = vadd.f32 %v8338, 0.5
    %v8342 = vld [vmem:[#allocation2 + $0x2d0] sm:$0xff]
    %v8343 = vld [vmem:[#allocation2 + $0x2d8] sm:$0xff]
    %v8344 = vld [vmem:[#allocation2 + $0x2e0] sm:$0xff]
    %8345 = vmatprep.subr.bf16.mxu0 %v3099
    %8346 = vmatpush1.bf16.msra.mxu0 %v3098
    %8347 = vmatprep.subr.bf16.mxu0 %v3102
    %8348 = vmatpush1.bf16.msra.mxu0 %v3101
    %8349 = vmatprep.subr.bf16.mxu0 %v3105
    %8350 = vmatpush1.bf16.msra.mxu0 %v3104
    %8351 = vmatprep.subr.bf16.mxu0 %v3108
    %8352 = vmatpush1.bf16.msra.mxu0 %v3107
    %8353 = vmatprep.subr.bf16.mxu0 %v3111
    %8354 = vmatpush1.bf16.msra.mxu0 %v3110
    %8355 = vmatprep.subr.bf16.mxu0 %v3114
    %8356 = vmatpush1.bf16.msra.mxu0 %v3113
    %8357 = vmatprep.subr.bf16.mxu0 %v3117
    %8358 = vmatpush1.bf16.msra.mxu0 %v3116
    %8359 = vmatprep.subr.bf16.mxu0 %v3120
    %8360 = vmatpush1.bf16.msra.mxu0 %v3119
    %8361 = vmatprep.subr.bf16.mxu0 %v3123
    %8362 = vmatpush1.bf16.msra.mxu0 %v3122
    %8363 = vmatprep.subr.bf16.mxu0 %v3126
    %8364 = vmatpush1.bf16.msra.mxu0 %v3125
    %8365 = vmatprep.subr.bf16.mxu0 %v3129
    %8366 = vmatpush1.bf16.msra.mxu0 %v3128
    %8367 = vmatprep.subr.bf16.mxu0 %v3132
    %8368 = vmatpush1.bf16.msra.mxu0 %v3131
    %8369 = vmatprep.subr.bf16.mxu0 %v3135
    %8370 = vmatpush1.bf16.msra.mxu0 %v3134
    %8371 = vmatprep.subr.bf16.mxu0 %v3138
    %8372 = vmatpush1.bf16.msra.mxu0 %v3137
    %8373 = vmatprep.subr.bf16.mxu0 %v3141
    %8374 = vmatpush1.bf16.msra.mxu0 %v3140
    %8375 = vmatprep.subr.bf16.mxu0 %v3144
    %8376 = vmatpush1.bf16.msra.mxu0 %v3143
    %8377 = vmatprep.mubr.bf16.mxu0 %v7977
    %8378 = vmatmul.mubr.bf16.gmra.mrb[0].mxu0 %v7976
    %v8379 = vpop.f32.mrb[0].mxu0
    %v8380 = vadd.f32 0.0, %v8379
    %v8381 = vpop.f32.mrb[0].mxu0
    %v8382 = vadd.f32 0.0, %v8381
    %v8383 = vpop.f32.mrb[0].mxu0
    %v8384 = vpop.f32.mrb[0].mxu0
    %8385 = vdwg.mxu0
    %8386 = vmatprep.subr.bf16.mxu0 %v3147
    %8387 = vmatpush1.bf16.msra.mxu0 %v3146
    %8388 = vmatprep.subr.bf16.mxu0 %v3150
    %8389 = vmatpush1.bf16.msra.mxu0 %v3149
    %8390 = vmatprep.subr.bf16.mxu0 %v3153
    %8391 = vmatpush1.bf16.msra.mxu0 %v3152
    %8392 = vmatprep.subr.bf16.mxu0 %v3156
    %8393 = vmatpush1.bf16.msra.mxu0 %v3155
    %8394 = vmatprep.subr.bf16.mxu0 %v3159
    %8395 = vmatpush1.bf16.msra.mxu0 %v3158
    %8396 = vmatprep.subr.bf16.mxu0 %v3162
    %8397 = vmatpush1.bf16.msra.mxu0 %v3161
    %8398 = vmatprep.subr.bf16.mxu0 %v3165
    %8399 = vmatpush1.bf16.msra.mxu0 %v3164
    %8400 = vmatprep.subr.bf16.mxu0 %v3168
    %8401 = vmatpush1.bf16.msra.mxu0 %v3167
    %8402 = vmatprep.subr.bf16.mxu0 0
    %8403 = vmatpush1.bf16.msra.mxu0 0
    %8404 = vmatprep.subr.bf16.mxu0 0
    %8405 = vmatpush1.bf16.msra.mxu0 0
    %8406 = vmatprep.subr.bf16.mxu0 0
    %8407 = vmatpush1.bf16.msra.mxu0 0
    %8408 = vmatprep.subr.bf16.mxu0 0
    %8409 = vmatpush1.bf16.msra.mxu0 0
    %8410 = vmatprep.subr.bf16.mxu0 0
    %8411 = vmatpush1.bf16.msra.mxu0 0
    %8412 = vmatprep.subr.bf16.mxu0 0
    %8413 = vmatpush1.bf16.msra.mxu0 0
    %8414 = vmatprep.subr.bf16.mxu0 0
    %8415 = vmatpush1.bf16.msra.mxu0 0
    %8416 = vmatprep.subr.bf16.mxu0 0
    %8417 = vmatpush1.bf16.msra.mxu0 0
    %8418 = vmatprep.mubr.bf16.mxu0 0
    %8419 = vmatmul.mubr.bf16.gmra.mrb[0].mxu0 %v7978
    %v8420 = vpop.f32.mrb[0].mxu0
    %v8421 = vadd.f32 %v8380, %v8420
    %v8422 = vpop.f32.mrb[0].mxu0
    %v8423 = vadd.f32 %v8382, %v8422
    %v8424 = vpop.f32.mrb[0].mxu0
    %v8425 = vpop.f32.mrb[0].mxu0
    %8426 = vdwg.mxu0
    %8427 = vmatprep.subr.bf16.mxu0 0
    %8428 = vmatpush1.bf16.msra.mxu0 %v3100
    %8429 = vmatprep.subr.bf16.mxu0 0
    %8430 = vmatpush1.bf16.msra.mxu0 %v3103
    %8431 = vmatprep.subr.bf16.mxu0 0
    %8432 = vmatpush1.bf16.msra.mxu0 %v3106
    %8433 = vmatprep.subr.bf16.mxu0 0
    %8434 = vmatpush1.bf16.msra.mxu0 %v3109
    %8435 = vmatprep.subr.bf16.mxu0 0
    %8436 = vmatpush1.bf16.msra.mxu0 %v3112
    %8437 = vmatprep.subr.bf16.mxu0 0
    %8438 = vmatpush1.bf16.msra.mxu0 %v3115
    %8439 = vmatprep.subr.bf16.mxu0 0
    %8440 = vmatpush1.bf16.msra.mxu0 %v3118
    %8441 = vmatprep.subr.bf16.mxu0 0
    %8442 = vmatpush1.bf16.msra.mxu0 %v3121
    %8443 = vmatprep.subr.bf16.mxu0 0
    %8444 = vmatpush1.bf16.msra.mxu0 %v3124
    %8445 = vmatprep.subr.bf16.mxu0 0
    %8446 = vmatpush1.bf16.msra.mxu0 %v3127
    %8447 = vmatprep.subr.bf16.mxu0 0
    %8448 = vmatpush1.bf16.msra.mxu0 %v3130
    %8449 = vmatprep.subr.bf16.mxu0 0
    %8450 = vmatpush1.bf16.msra.mxu0 %v3133
    %8451 = vmatprep.subr.bf16.mxu0 0
    %8452 = vmatpush1.bf16.msra.mxu0 %v3136
    %8453 = vmatprep.subr.bf16.mxu0 0
    %8454 = vmatpush1.bf16.msra.mxu0 %v3139
    %8455 = vmatprep.subr.bf16.mxu0 0
    %8456 = vmatpush1.bf16.msra.mxu0 %v3142
    %8457 = vmatprep.subr.bf16.mxu0 0
    %8458 = vmatpush1.bf16.msra.mxu0 %v3145
    %8459 = vmatprep.mubr.bf16.mxu0 %v7977
    %8460 = vmatmul.mubr.bf16.gmra.mrb[0].mxu0 %v7976
    %v8461 = vpop.f32.mrb[0].mxu0
    %v8462 = vadd.f32 0.0, %v8461
    %v8463 = vpop.f32.mrb[0].mxu0
    %v8464 = vpop.f32.mrb[0].mxu0
    %v8465 = vpop.f32.mrb[0].mxu0
    %8466 = vdwg.mxu0
    %8467 = vmatprep.subr.bf16.mxu0 0
    %8468 = vmatpush1.bf16.msra.mxu0 %v3148
    %8469 = vmatprep.subr.bf16.mxu0 0
    %8470 = vmatpush1.bf16.msra.mxu0 %v3151
    %8471 = vmatprep.subr.bf16.mxu0 0
    %8472 = vmatpush1.bf16.msra.mxu0 %v3154
    %8473 = vmatprep.subr.bf16.mxu0 0
    %8474 = vmatpush1.bf16.msra.mxu0 %v3157
    %8475 = vmatprep.subr.bf16.mxu0 0
    %8476 = vmatpush1.bf16.msra.mxu0 %v3160
    %8477 = vmatprep.subr.bf16.mxu0 0
    %8478 = vmatpush1.bf16.msra.mxu0 %v3163
    %8479 = vmatprep.subr.bf16.mxu0 0
    %8480 = vmatpush1.bf16.msra.mxu0 %v3166
    %8481 = vmatprep.subr.bf16.mxu0 0
    %8482 = vmatpush1.bf16.msra.mxu0 %v3169
    %8483 = vmatprep.subr.bf16.mxu0 0
    %8484 = vmatpush1.bf16.msra.mxu0 0
    %8485 = vmatprep.subr.bf16.mxu0 0
    %8486 = vmatpush1.bf16.msra.mxu0 0
    %8487 = vmatprep.subr.bf16.mxu0 0
    %8488 = vmatpush1.bf16.msra.mxu0 0
    %8489 = vmatprep.subr.bf16.mxu0 0
    %8490 = vmatpush1.bf16.msra.mxu0 0
    %8491 = vmatprep.subr.bf16.mxu0 0
    %8492 = vmatpush1.bf16.msra.mxu0 0
    %8493 = vmatprep.subr.bf16.mxu0 0
    %8494 = vmatpush1.bf16.msra.mxu0 0
    %8495 = vmatprep.subr.bf16.mxu0 0
    %8496 = vmatpush1.bf16.msra.mxu0 0
    %8497 = vmatprep.subr.bf16.mxu0 0
    %8498 = vmatpush1.bf16.msra.mxu0 0
    %8499 = vmatprep.mubr.bf16.mxu0 0
    %8500 = vmatmul.mubr.bf16.gmra.mrb[0].mxu0 %v7978
    %v8501 = vpop.f32.mrb[0].mxu0
    %v8502 = vadd.f32 %v8462, %v8501
    %v8503 = vpop.f32.mrb[0].mxu0
    %v8504 = vpop.f32.mrb[0].mxu0
    %v8505 = vpop.f32.mrb[0].mxu0
    %8506 = vdwg.mxu0
    %v8507 = vadd.f32 %v8342, %v8421
    %v8508 = vadd.f32 %v8343, %v8423
    %v8509 = vadd.f32 %v8344, %v8502
    %v8510 = vtanh.pop %v8507
    %v8511 = vtanh.pop %v8508
    %v8512 = vtanh.pop %v8509
    %v8513 = vmul.f32 %v8339, %v8510
    %v8514 = vmul.f32 %v8340, %v8511
    %v8515 = vmul.f32 %v8341, %v8512
    %v8516 = vadd.f32 %v8159, %v8513
    %v8517 = vadd.f32 %v8160, %v8514
    %v8518 = vadd.f32 %v8161, %v8515
    %v8519 = vld [vmem:[#allocation2 + $0x2e8] sm:$0xff]
    %v8520 = vld [vmem:[#allocation2 + $0x2f0] sm:$0xff]
    %v8521 = vld [vmem:[#allocation2 + $0x2f8] sm:$0xff]
    %8522 = vmatprep.subr.bf16.mxu0 %v3348
    %8523 = vmatpush1.bf16.msra.mxu0 %v3347
    %8524 = vmatprep.subr.bf16.mxu0 %v3351
    %8525 = vmatpush1.bf16.msra.mxu0 %v3350
    %8526 = vmatprep.subr.bf16.mxu0 %v3354
    %8527 = vmatpush1.bf16.msra.mxu0 %v3353
    %8528 = vmatprep.subr.bf16.mxu0 %v3357
    %8529 = vmatpush1.bf16.msra.mxu0 %v3356
    %8530 = vmatprep.subr.bf16.mxu0 %v3360
    %8531 = vmatpush1.bf16.msra.mxu0 %v3359
    %8532 = vmatprep.subr.bf16.mxu0 %v3363
    %8533 = vmatpush1.bf16.msra.mxu0 %v3362
    %8534 = vmatprep.subr.bf16.mxu0 %v3366
    %8535 = vmatpush1.bf16.msra.mxu0 %v3365
    %8536 = vmatprep.subr.bf16.mxu0 %v3369
    %8537 = vmatpush1.bf16.msra.mxu0 %v3368
    %8538 = vmatprep.subr.bf16.mxu0 %v3372
    %8539 = vmatpush1.bf16.msra.mxu0 %v3371
    %8540 = vmatprep.subr.bf16.mxu0 %v3375
    %8541 = vmatpush1.bf16.msra.mxu0 %v3374
    %8542 = vmatprep.subr.bf16.mxu0 %v3378
    %8543 = vmatpush1.bf16.msra.mxu0 %v3377
    %8544 = vmatprep.subr.bf16.mxu0 %v3381
    %8545 = vmatpush1.bf16.msra.mxu0 %v3380
    %8546 = vmatprep.subr.bf16.mxu0 %v3384
    %8547 = vmatpush1.bf16.msra.mxu0 %v3383
    %8548 = vmatprep.subr.bf16.mxu0 %v3387
    %8549 = vmatpush1.bf16.msra.mxu0 %v3386
    %8550 = vmatprep.subr.bf16.mxu0 %v3390
    %8551 = vmatpush1.bf16.msra.mxu0 %v3389
    %8552 = vmatprep.subr.bf16.mxu0 %v3393
    %8553 = vmatpush1.bf16.msra.mxu0 %v3392
    %8554 = vmatprep.mubr.bf16.mxu0 %v7977
    %8555 = vmatmul.mubr.bf16.gmra.mrb[0].mxu0 %v7976
    %v8556 = vpop.f32.mrb[0].mxu0
    %v8557 = vadd.f32 0.0, %v8556
    %v8558 = vpop.f32.mrb[0].mxu0
    %v8559 = vadd.f32 0.0, %v8558
    %v8560 = vpop.f32.mrb[0].mxu0
    %v8561 = vpop.f32.mrb[0].mxu0
    %8562 = vdwg.mxu0
    %8563 = vmatprep.subr.bf16.mxu0 %v3396
    %8564 = vmatpush1.bf16.msra.mxu0 %v3395
    %8565 = vmatprep.subr.bf16.mxu0 %v3399
    %8566 = vmatpush1.bf16.msra.mxu0 %v3398
    %8567 = vmatprep.subr.bf16.mxu0 %v3402
    %8568 = vmatpush1.bf16.msra.mxu0 %v3401
    %8569 = vmatprep.subr.bf16.mxu0 %v3405
    %8570 = vmatpush1.bf16.msra.mxu0 %v3404
    %8571 = vmatprep.subr.bf16.mxu0 %v3408
    %8572 = vmatpush1.bf16.msra.mxu0 %v3407
    %8573 = vmatprep.subr.bf16.mxu0 %v3411
    %8574 = vmatpush1.bf16.msra.mxu0 %v3410
    %8575 = vmatprep.subr.bf16.mxu0 %v3414
    %8576 = vmatpush1.bf16.msra.mxu0 %v3413
    %8577 = vmatprep.subr.bf16.mxu0 %v3417
    %8578 = vmatpush1.bf16.msra.mxu0 %v3416
    %8579 = vmatprep.subr.bf16.mxu0 0
    %8580 = vmatpush1.bf16.msra.mxu0 0
    %8581 = vmatprep.subr.bf16.mxu0 0
    %8582 = vmatpush1.bf16.msra.mxu0 0
    %8583 = vmatprep.subr.bf16.mxu0 0
    %8584 = vmatpush1.bf16.msra.mxu0 0
    %8585 = vmatprep.subr.bf16.mxu0 0
    %8586 = vmatpush1.bf16.msra.mxu0 0
    %8587 = vmatprep.subr.bf16.mxu0 0
    %8588 = vmatpush1.bf16.msra.mxu0 0
    %8589 = vmatprep.subr.bf16.mxu0 0
    %8590 = vmatpush1.bf16.msra.mxu0 0
    %8591 = vmatprep.subr.bf16.mxu0 0
    %8592 = vmatpush1.bf16.msra.mxu0 0
    %8593 = vmatprep.subr.bf16.mxu0 0
    %8594 = vmatpush1.bf16.msra.mxu0 0
    %8595 = vmatprep.mubr.bf16.mxu0 0
    %8596 = vmatmul.mubr.bf16.gmra.mrb[0].mxu0 %v7978
    %v8597 = vpop.f32.mrb[0].mxu0
    %v8598 = vadd.f32 %v8557, %v8597
    %v8599 = vpop.f32.mrb[0].mxu0
    %v8600 = vadd.f32 %v8559, %v8599
    %v8601 = vpop.f32.mrb[0].mxu0
    %v8602 = vpop.f32.mrb[0].mxu0
    %8603 = vdwg.mxu0
    %8604 = vmatprep.subr.bf16.mxu0 0
    %8605 = vmatpush1.bf16.msra.mxu0 %v3349
    %8606 = vmatprep.subr.bf16.mxu0 0
    %8607 = vmatpush1.bf16.msra.mxu0 %v3352
    %8608 = vmatprep.subr.bf16.mxu0 0
    %8609 = vmatpush1.bf16.msra.mxu0 %v3355
    %8610 = vmatprep.subr.bf16.mxu0 0
    %8611 = vmatpush1.bf16.msra.mxu0 %v3358
    %8612 = vmatprep.subr.bf16.mxu0 0
    %8613 = vmatpush1.bf16.msra.mxu0 %v3361
    %8614 = vmatprep.subr.bf16.mxu0 0
    %8615 = vmatpush1.bf16.msra.mxu0 %v3364
    %8616 = vmatprep.subr.bf16.mxu0 0
    %8617 = vmatpush1.bf16.msra.mxu0 %v3367
    %8618 = vmatprep.subr.bf16.mxu0 0
    %8619 = vmatpush1.bf16.msra.mxu0 %v3370
    %8620 = vmatprep.subr.bf16.mxu0 0
    %8621 = vmatpush1.bf16.msra.mxu0 %v3373
    %8622 = vmatprep.subr.bf16.mxu0 0
    %8623 = vmatpush1.bf16.msra.mxu0 %v3376
    %8624 = vmatprep.subr.bf16.mxu0 0
    %8625 = vmatpush1.bf16.msra.mxu0 %v3379
    %8626 = vmatprep.subr.bf16.mxu0 0
    %8627 = vmatpush1.bf16.msra.mxu0 %v3382
    %8628 = vmatprep.subr.bf16.mxu0 0
    %8629 = vmatpush1.bf16.msra.mxu0 %v3385
    %8630 = vmatprep.subr.bf16.mxu0 0
    %8631 = vmatpush1.bf16.msra.mxu0 %v3388
    %8632 = vmatprep.subr.bf16.mxu0 0
    %8633 = vmatpush1.bf16.msra.mxu0 %v3391
    %8634 = vmatprep.subr.bf16.mxu0 0
    %8635 = vmatpush1.bf16.msra.mxu0 %v3394
    %8636 = vmatprep.mubr.bf16.mxu0 %v7977
    %8637 = vmatmul.mubr.bf16.gmra.mrb[0].mxu0 %v7976
    %v8638 = vpop.f32.mrb[0].mxu0
    %v8639 = vadd.f32 0.0, %v8638
    %v8640 = vpop.f32.mrb[0].mxu0
    %v8641 = vpop.f32.mrb[0].mxu0
    %v8642 = vpop.f32.mrb[0].mxu0
    %8643 = vdwg.mxu0
    %8644 = vmatprep.subr.bf16.mxu0 0
    %8645 = vmatpush1.bf16.msra.mxu0 %v3397
    %8646 = vmatprep.subr.bf16.mxu0 0
    %8647 = vmatpush1.bf16.msra.mxu0 %v3400
    %8648 = vmatprep.subr.bf16.mxu0 0
    %8649 = vmatpush1.bf16.msra.mxu0 %v3403
    %8650 = vmatprep.subr.bf16.mxu0 0
    %8651 = vmatpush1.bf16.msra.mxu0 %v3406
    %8652 = vmatprep.subr.bf16.mxu0 0
    %8653 = vmatpush1.bf16.msra.mxu0 %v3409
    %8654 = vmatprep.subr.bf16.mxu0 0
    %8655 = vmatpush1.bf16.msra.mxu0 %v3412
    %8656 = vmatprep.subr.bf16.mxu0 0
    %8657 = vmatpush1.bf16.msra.mxu0 %v3415
    %8658 = vmatprep.subr.bf16.mxu0 0
    %8659 = vmatpush1.bf16.msra.mxu0 %v3418
    %8660 = vmatprep.subr.bf16.mxu0 0
    %8661 = vmatpush1.bf16.msra.mxu0 0
    %8662 = vmatprep.subr.bf16.mxu0 0
    %8663 = vmatpush1.bf16.msra.mxu0 0
    %8664 = vmatprep.subr.bf16.mxu0 0
    %8665 = vmatpush1.bf16.msra.mxu0 0
    %8666 = vmatprep.subr.bf16.mxu0 0
    %8667 = vmatpush1.bf16.msra.mxu0 0
    %8668 = vmatprep.subr.bf16.mxu0 0
    %8669 = vmatpush1.bf16.msra.mxu0 0
    %8670 = vmatprep.subr.bf16.mxu0 0
    %8671 = vmatpush1.bf16.msra.mxu0 0
    %8672 = vmatprep.subr.bf16.mxu0 0
    %8673 = vmatpush1.bf16.msra.mxu0 0
    %8674 = vmatprep.subr.bf16.mxu0 0
    %8675 = vmatpush1.bf16.msra.mxu0 0
    %8676 = vmatprep.mubr.bf16.mxu0 0
    %8677 = vmatmul.mubr.bf16.gmra.mrb[0].mxu0 %v7978
    %v8678 = vpop.f32.mrb[0].mxu0
    %v8679 = vadd.f32 %v8639, %v8678
    %v8680 = vpop.f32.mrb[0].mxu0
    %v8681 = vpop.f32.mrb[0].mxu0
    %v8682 = vpop.f32.mrb[0].mxu0
    %8683 = vdwg.mxu0
    %v8684 = vadd.f32 %v8519, %v8598
    %v8685 = vadd.f32 %v8520, %v8600
    %v8686 = vadd.f32 %v8521, %v8679
    %v8687 = vmul.f32 %v8684, 0.5
    %v8688 = vmul.f32 %v8685, 0.5
    %v8689 = vmul.f32 %v8686, 0.5
    %v8690 = vtanh.pop %v8687
    %v8691 = vtanh.pop %v8688
    %v8692 = vtanh.pop %v8689
    %v8693 = vmul.f32 %v8690, 0.5
    %v8694 = vmul.f32 %v8691, 0.5
    %v8695 = vmul.f32 %v8692, 0.5
    %v8696 = vadd.f32 %v8693, 0.5
    %v8697 = vadd.f32 %v8694, 0.5
    %v8698 = vadd.f32 %v8695, 0.5
    %v8699 = vtanh.pop %v8516
    %v8700 = vtanh.pop %v8517
    %v8701 = vtanh.pop %v8518
    %v8702 = vmul.f32 %v8696, %v8699
    %v8703 = vmul.f32 %v8697, %v8700
    %v8704 = vmul.f32 %v8698, %v8701
    %8705 = vst [vmem:[#allocation11] sm:$0xff] %v8702
    %8706 = vst [vmem:[#allocation11 + $0x8] sm:$0xff] %v8703
    %8707 = vst [vmem:[#allocation11 + $0x10] sm:$0xff] %v8704
    // Predicated region
    $region26: #{tpu_custom_call.1} parent=1 // pred_check
      _
    $region27: #{tpu_custom_call.1} parent=1 // pred_check_branch
      %8709 = sbr.rel (0) target = $region29
    $region28: #{tpu_custom_call.1} parent=1 // pred_region
      %s8711 = ssub.s32 384, 384
      %8712 = vsyncadd [#allocation7], %s8711
      %s8714 = sshll.u32 [#allocation11], 4
      %s8715 = int_to_ptr.vmem [resolvable:$true] %s8714
      %8717 = dma.vmem_to_hbm [thread:$0]  %s8715, 384, %s4, [#allocation7]
    $region29: #{tpu_custom_call.1} parent=1 // pred_fallthru
      _
    // Predicated region
    $region30: #{tpu_custom_call.1} parent=1 // pred_check
      _
    $region31: #{tpu_custom_call.1} parent=1 // pred_check_branch
      %8719 = sbr.rel (0) target = $region33
    $region32: #{tpu_custom_call.1} parent=1 // pred_region
      %8720 = dma.done [#allocation7], 384
    $region33: #{tpu_custom_call.1} parent=1 // pred_fallthru
      _
    %8721 = vsyncpa [#allocation6], 1
    %8722 = vsyncpa [#allocation9], 1
    %8723 = vsyncpa [#allocation7], 1
  %8724 = vsyncmov [#allocation4]
  %s8725 = vpop.sfrf %8724
  %p8726 = scmp.eq.s32.totalorder %s8725, 0
  %p8727 = pneg %p8726
  %8729 = shalt.err (%p8727)

</llo_original>
